<compile_context>
chip_gen: v5e
topology: v5e:2x2
jax: 0.10.0
libtpu: 0.0.40
codegen_flags: <defaults>
</compile_context>

<pallas_src>
import functools
import math

import jax
import jax.numpy as jnp
from jax.experimental import pallas as pl
from jax.experimental.pallas import tpu as pltpu

EPS = 1e-5


# --------------------------------------------------------------------------- #
# Helpers
# --------------------------------------------------------------------------- #
def _sds(start, size, stride):
    """Static slice helper: use a strided pl.ds only when stride > 1."""
    if stride == 1:
        return pl.ds(start, size)
    return pl.ds(start, size, stride=stride)


def _pick_nb(n, max_nb=8):
    """Images per grid step: largest divisor of n that is <= max_nb.

    Fewer, fatter steps amortize the per-step overhead and fill the MXU M dim.
    (On v7x an even grid length keeps both TensorCores busy; for tiny n we
    still prefer the fatter step.)
    """
    nb = 1
    for d in range(1, max_nb + 1):
        if n % d == 0:
            nb = d
    return nb


def _pad_up(v, m):
    return -(-v // m) * m


def _vmem_bytes(shape, dtype):
    """Rough VMEM footprint of one buffer with (sublane, lane) tile padding."""
    item = jnp.dtype(dtype).itemsize
    s = list(shape)
    s[-1] = _pad_up(s[-1], 128)
    if len(s) > 1:
        s[-2] = _pad_up(s[-2], 32 // item)      # 8 sublanes * (32-bit / item)
    return item * math.prod(s)


# --------------------------------------------------------------------------- #
# Fused ResnetBlock kernel (NB batch elements per grid step)
# --------------------------------------------------------------------------- #
def _resnet_block_kernel(stride, has_sc_conv, *refs):
    if has_sc_conv:
        (x_ref, w1_ref, w2_ref, wse1_ref, wse2_ref, wsc_ref,
         cinp_ref, coutp_ref, o_ref, xp_ref, hp_ref, pa_ref, pb_ref) = refs
    else:
        (x_ref, w1_ref, w2_ref, wse1_ref, wse2_ref,
         cinp_ref, coutp_ref, o_ref, xp_ref, hp_ref, pa_ref, pb_ref) = refs
        wsc_ref = None

    NB, H, W, Cin = x_ref.shape
    Cout = coutp_ref.shape[1]
    Ho = (H - 1) // stride + 1
    Wo = (W - 1) // stride + 1
    M1 = NB * H * W            # rows of the conv1 im2col matmul
    M2 = Ho * Wo               # output positions per image
    Mo = NB * M2               # rows of the conv2 im2col matmul

    # Packed per-channel parameters (two small tables).
    cinp = cinp_ref[...]                                    # (2, Cin)
    coutp = coutp_ref[...]                                  # (8, Cout)
    pre1_s, pre1_b = cinp[0:1, :], cinp[1:2, :]             # folded BN1
    b1, alpha = coutp[0:1, :], coutp[1:2, :]                # conv1 bias, PReLU
    pre2_s, pre2_b = coutp[2:3, :], coutp[3:4, :]           # folded BN2
    post2_s, post2_b = coutp[4:5, :], coutp[5:6, :]         # conv2 bias + BN3
    sc_s, sc_b = coutp[6:7, :], coutp[7:8, :]               # shortcut affine

    # ---- BN1 -> padded VMEM scratch (border-only zeroing, interior store) --
    xp_ref[:, 0:1, :, :] = jnp.zeros((NB, 1, W + 2, Cin), jnp.float32)
    xp_ref[:, H + 1:H + 2, :, :] = jnp.zeros((NB, 1, W + 2, Cin), jnp.float32)
    xp_ref[:, :, 0:1, :] = jnp.zeros((NB, H + 2, 1, Cin), jnp.float32)
    xp_ref[:, :, W + 1:W + 2, :] = jnp.zeros((NB, H + 2, 1, Cin), jnp.float32)
    x_bn = x_ref[...].astype(jnp.float32) * pre1_s + pre1_b        # (NB,H,W,Cin)
    xp_ref[:, 1:H + 1, 1:W + 1, :] = x_bn

    # ---- conv1: 3x3 / stride 1, im2col staged into bf16 VMEM, one matmul ---
    for k in range(9):
        dh, dw = divmod(k, 3)
        tap = xp_ref[:, dh:dh + H, dw:dw + W, :].reshape(M1, Cin)
        pa_ref[:, k * Cin:(k + 1) * Cin] = tap.astype(jnp.bfloat16)
    h = jnp.dot(pa_ref[...], w1_ref[...],
                preferred_element_type=jnp.float32)                # (M1, Cout)

    # conv1 bias + per-channel PReLU
    h = h + b1
    h = jnp.where(h >= 0.0, h, h * alpha)

    # ---- BN2 -> padded VMEM scratch for the strided conv2 ------------------
    hp_ref[:, 0:1, :, :] = jnp.zeros((NB, 1, W + 2, Cout), jnp.float32)
    hp_ref[:, H + 1:H + 2, :, :] = jnp.zeros((NB, 1, W + 2, Cout), jnp.float32)
    hp_ref[:, :, 0:1, :] = jnp.zeros((NB, H + 2, 1, Cout), jnp.float32)
    hp_ref[:, :, W + 1:W + 2, :] = jnp.zeros((NB, H + 2, 1, Cout), jnp.float32)
    hp_ref[:, 1:H + 1, 1:W + 1, :] = (h * pre2_s + pre2_b).reshape(NB, H, W, Cout)

    # ---- conv2: 3x3 / stride `stride`, strided taps staged, one matmul -----
    for k in range(9):
        dh, dw = divmod(k, 3)
        tap = hp_ref[:, _sds(dh, Ho, stride), _sds(dw, Wo, stride), :]
        pb_ref[:, k * Cout:(k + 1) * Cout] = (
            tap.reshape(Mo, Cout).astype(jnp.bfloat16))
    y = jnp.dot(pb_ref[...], w2_ref[...],
                preferred_element_type=jnp.float32)                # (Mo, Cout)

    # conv2 bias + folded BN3
    y = y * post2_s + post2_b

    # ---- SE (per image): avgpool -> 1x1 -> ReLU -> 1x1 -> sigmoid -> gate --
    y3 = y.reshape(NB, M2, Cout)
    pooled = jnp.mean(y3, axis=1)                                  # (NB, Cout)
    z = jnp.maximum(
        jnp.dot(pooled, wse1_ref[...], preferred_element_type=jnp.float32), 0.0)
    g = jnp.dot(z, wse2_ref[...], preferred_element_type=jnp.float32)
    gate = 1.0 / (1.0 + jnp.exp(-g))                               # (NB, Cout)
    y3 = y3 * gate[:, None, :]

    # ---- shortcut: MaxPool2d(1, stride) or Conv2d(1x1, stride) + BN --------
    xs = x_ref[:, _sds(0, Ho, stride), _sds(0, Wo, stride), :].reshape(Mo, Cin)
    if has_sc_conv:
        sc = jnp.dot(xs.astype(jnp.bfloat16), wsc_ref[...],
                     preferred_element_type=jnp.float32)
        sc = sc * sc_s + sc_b
    else:
        sc = xs                                                    # Cin == Cout

    o_ref[...] = (y3 + sc.reshape(NB, M2, Cout)).astype(o_ref.dtype)


# --------------------------------------------------------------------------- #
# ResnetBlock forward (wrappers)
# --------------------------------------------------------------------------- #
def fold_bn(p):
    scale = p['gamma'] * jax.lax.rsqrt(p['var'] + EPS)
    shift = p['beta'] - p['mean'] * scale
    return scale, shift


def resnet_block_forward_nhwc(x_nhwc, params, in_c, out_c, stride, max_nb=8):
    """NHWC in, NHWC out.  Use this directly in an all-Pallas NHWC pipeline."""
    x = x_nhwc.astype(jnp.float32)
    N, H, W, _ = x.shape
    Ho = (H - 1) // stride + 1
    Wo = (W - 1) // stride + 1
    M2 = Ho * Wo
    cr = params['w_se1'].shape[-1]
    has_sc_conv = in_c != out_c
    NB = _pick_nb(N, max_nb)

    s1, t1 = fold_bn(params['bn1'])
    s2, t2 = fold_bn(params['bn2'])
    s3, t3 = fold_bn(params['bn3'])
    if has_sc_conv:
        ss, ts = fold_bn(params['bn_sc'])
        sc_s, sc_b = ss, params['b_sc'] * ss + ts
    else:
        sc_s = jnp.ones((out_c,), jnp.float32)
        sc_b = jnp.zeros((out_c,), jnp.float32)

    # Packed per-channel parameter tables (minimize tiny-input DMAs).
    cin_p = jnp.stack([s1, t1]).astype(jnp.float32)                # (2, Cin)
    cout_p = jnp.stack([params['b1'], params['alpha'], s2, t2, s3,
                        params['b2'] * s3 + t3, sc_s, sc_b]).astype(jnp.float32)

    # Pre-arranged im2col weights, bf16 for the MXU.
    w1 = params['w1'].reshape(9 * in_c, out_c).astype(jnp.bfloat16)
    w2 = params['w2'].reshape(9 * out_c, out_c).astype(jnp.bfloat16)
    wse1 = params['w_se1'].astype(jnp.float32)
    wse2 = params['w_se2'].astype(jnp.float32)

    in_specs = [
        pl.BlockSpec((NB, H, W, in_c), lambda n: (n, 0, 0, 0)),
        pl.BlockSpec((9 * in_c, out_c), lambda n: (0, 0)),
        pl.BlockSpec((9 * out_c, out_c), lambda n: (0, 0)),
        pl.BlockSpec((out_c, cr), lambda n: (0, 0)),
        pl.BlockSpec((cr, out_c), lambda n: (0, 0)),
    ]
    args = [x, w1, w2, wse1, wse2]
    if has_sc_conv:
        in_specs.append(pl.BlockSpec((in_c, out_c), lambda n: (0, 0)))
        args.append(params['w_sc'].reshape(in_c, out_c).astype(jnp.bfloat16))
    in_specs += [
        pl.BlockSpec((2, in_c), lambda n: (0, 0)),
        pl.BlockSpec((8, out_c), lambda n: (0, 0)),
    ]
    args += [cin_p, cout_p]

    scratch_shapes = [
        pltpu.VMEM((NB, H + 2, W + 2, in_c), jnp.float32),    # padded BN1(x)
        pltpu.VMEM((NB, H + 2, W + 2, out_c), jnp.float32),   # padded BN2(h)
        pltpu.VMEM((NB * H * W, 9 * in_c), jnp.bfloat16),     # conv1 im2col
        pltpu.VMEM((NB * M2, 9 * out_c), jnp.bfloat16),       # conv2 im2col
    ]

    # Padded-layout VMEM estimate; only raise the limit when actually needed.
    io_bufs = [((NB, H, W, in_c), jnp.float32),
               ((NB, M2, out_c), jnp.float32),
               ((9 * in_c, out_c), jnp.bfloat16),
               ((9 * out_c, out_c), jnp.bfloat16),
               ((out_c, cr), jnp.float32),
               ((cr, out_c), jnp.float32),
               ((2, in_c), jnp.float32),
               ((8, out_c), jnp.float32)]
    if has_sc_conv:
        io_bufs.append(((in_c, out_c), jnp.bfloat16))
    scratch_bufs = [((NB, H + 2, W + 2, in_c), jnp.float32),
                    ((NB, H + 2, W + 2, out_c), jnp.float32),
                    ((NB * H * W, 9 * in_c), jnp.bfloat16),
                    ((NB * M2, 9 * out_c), jnp.bfloat16)]
    est = (2 * sum(_vmem_bytes(s, d) for s, d in io_bufs)     # double-buffered
           + sum(_vmem_bytes(s, d) for s, d in scratch_bufs)
           + (4 << 20))                                       # headroom
    compiler_kwargs = dict(dimension_semantics=("parallel",))
    if est > (32 << 20):
        compiler_kwargs["vmem_limit_bytes"] = int(min(est, 96 << 20))

    out = pl.pallas_call(
        functools.partial(_resnet_block_kernel, stride, has_sc_conv),
        out_shape=jax.ShapeDtypeStruct((N, M2, out_c), jnp.float32),
        grid=(N // NB,),
        in_specs=in_specs,
        out_specs=pl.BlockSpec((NB, M2, out_c), lambda n: (n, 0, 0)),
        scratch_shapes=scratch_shapes,
        compiler_params=pltpu.CompilerParams(**compiler_kwargs),
    )(*args)

    return out.reshape(N, Ho, Wo, out_c)


def resnet_block_forward(x_nchw, params, in_c, out_c, stride, max_nb=8):
    """PyTorch-compatible NCHW boundary.

    The two transposes are full HBM round-trips; when adjacent blocks are also
    Pallas/NHWC, call `resnet_block_forward_nhwc` directly instead.
    """
    x = jnp.transpose(x_nchw, (0, 2, 3, 1))                       # NCHW -> NHWC
    out = resnet_block_forward_nhwc(x, params, in_c, out_c, stride, max_nb)
    return jnp.transpose(out, (0, 3, 1, 2))                       # NHWC -> NCHW


# --------------------------------------------------------------------------- #
# Deterministic parameter init (synthetic; shapes from ResnetBlock.__init__)
# --------------------------------------------------------------------------- #
def init_params(key, in_c, out_c, reduction=16):
    ks = jax.random.split(key, 12)

    def bn_params(k, c):
        k1, k2, k3, k4 = jax.random.split(k, 4)
        return dict(gamma=jax.random.uniform(k1, (c,), minval=0.5, maxval=1.5),
                    beta=0.1 * jax.random.normal(k2, (c,)),
                    mean=0.1 * jax.random.normal(k3, (c,)),
                    var=jax.random.uniform(k4, (c,), minval=0.5, maxval=1.5))

    p = {}
    p['bn1'] = bn_params(ks[0], in_c)
    p['w1'] = 0.1 * jax.random.normal(ks[1], (3, 3, in_c, out_c))   # HWIO
    p['b1'] = 0.1 * jax.random.normal(ks[2], (out_c,))
    p['alpha'] = 0.25 * jnp.ones((out_c,), jnp.float32)             # PReLU init
    p['bn2'] = bn_params(ks[3], out_c)
    p['w2'] = 0.1 * jax.random.normal(ks[4], (3, 3, out_c, out_c))
    p['b2'] = 0.1 * jax.random.normal(ks[5], (out_c,))
    p['bn3'] = bn_params(ks[6], out_c)
    cr = out_c // reduction
    p['w_se1'] = 0.1 * jax.random.normal(ks[7], (out_c, cr))
    p['w_se2'] = 0.1 * jax.random.normal(ks[8], (cr, out_c))
    if in_c != out_c:
        p['w_sc'] = 0.1 * jax.random.normal(ks[9], (1, 1, in_c, out_c))
        p['b_sc'] = 0.1 * jax.random.normal(ks[10], (out_c,))
        p['bn_sc'] = bn_params(ks[11], out_c)
    return p


# --------------------------------------------------------------------------- #
# Pure-JAX reference (sanity check of the Pallas implementation)
# --------------------------------------------------------------------------- #
def reference_forward(x_nchw, params, in_c, out_c, stride):
    x = jnp.transpose(x_nchw, (0, 2, 3, 1)).astype(jnp.float32)
    HP = jax.lax.Precision.HIGHEST

    def bn(v, p):
        return (v - p['mean']) * (p['gamma'] * jax.lax.rsqrt(p['var'] + EPS)) + p['beta']

    def conv(v, w, b, s, pad):
        y = jax.lax.conv_general_dilated(
            v, w, window_strides=(s, s), padding=pad,
            dimension_numbers=('NHWC', 'HWIO', 'NHWC'), precision=HP)
        return y if b is None else y + b

    h = bn(x, params['bn1'])
    h = conv(h, params['w1'], params['b1'], 1, ((1, 1), (1, 1)))
    h = jnp.where(h >= 0, h, h * params['alpha'])
    h = bn(h, params['bn2'])
    h = conv(h, params['w2'], params['b2'], stride, ((1, 1), (1, 1)))
    h = bn(h, params['bn3'])
    pooled = jnp.mean(h, axis=(1, 2), keepdims=True)
    z = jnp.maximum(jnp.einsum('nhwc,cr->nhwr', pooled, params['w_se1'],
                               precision=HP), 0.0)
    gate = jax.nn.sigmoid(jnp.einsum('nhwr,rc->nhwc', z, params['w_se2'],
                                     precision=HP))
    h = h * gate
    if in_c == out_c:
        sc = x[:, ::stride, ::stride, :]
    else:
        sc = conv(x, params['w_sc'], params['b_sc'], stride, 'VALID')
        sc = bn(sc, params['bn_sc'])
    return jnp.transpose(h + sc, (0, 3, 1, 2))


# --------------------------------------------------------------------------- #
if __name__ == "__main__":
    key = jax.random.PRNGKey(0)
    N, H, W = 2, 16, 16
    configs = [
        dict(in_c=32, out_c=64, stride=2),   # Conv1x1+BN shortcut path
        dict(in_c=32, out_c=32, stride=1),   # MaxPool(1, stride) shortcut path
    ]
    for i, cfg in enumerate(configs):
        kp, kx = jax.random.split(jax.random.fold_in(key, i))
        params = init_params(kp, cfg['in_c'], cfg['out_c'])
        x = jax.random.normal(kx, (N, cfg['in_c'], H, W), jnp.float32)

        out = resnet_block_forward(x, params, cfg['in_c'], cfg['out_c'], cfg['stride'])
        out = jax.block_until_ready(out)

        ref = reference_forward(x, params, cfg['in_c'], cfg['out_c'], cfg['stride'])
        assert out.shape == ref.shape, (out.shape, ref.shape)
        err = float(jnp.max(jnp.abs(out - ref)))
        scale = float(jnp.max(jnp.abs(ref))) + 1e-6
        assert err / scale < 2e-2, f"config {cfg}: max abs err {err} (scale {scale})"

    print("KERNEL_OK")
</pallas_src>

<mosaic_0001>
module attributes {stable_mosaic.version = 11 : i64} {
  func.func @_resnet_block_kernel(%arg0: i32, %arg1: memref<2x16x16x32xf32, #tpu.memory_space<vmem>>, %arg2: memref<288x64xbf16, #tpu.memory_space<vmem>>, %arg3: memref<576x64xbf16, #tpu.memory_space<vmem>>, %arg4: memref<64x4xf32, #tpu.memory_space<vmem>>, %arg5: memref<4x64xf32, #tpu.memory_space<vmem>>, %arg6: memref<32x64xbf16, #tpu.memory_space<vmem>>, %arg7: memref<2x32xf32, #tpu.memory_space<vmem>>, %arg8: memref<8x64xf32, #tpu.memory_space<vmem>>, %arg9: memref<2x64x64xf32, #tpu.memory_space<vmem>>, %arg10: memref<2x18x18x32xf32, #tpu.memory_space<vmem>>, %arg11: memref<2x18x18x64xf32, #tpu.memory_space<vmem>>, %arg12: memref<512x288xbf16, #tpu.memory_space<vmem>>, %arg13: memref<128x576xbf16, #tpu.memory_space<vmem>>) attributes {dimension_semantics = [#tpu.dimension_semantics<parallel>], iteration_bounds = array<i64: 1>, scalar_prefetch = 0 : i64, scratch_operands = 4 : i64, tpu.core_type = #tpu.core_type<tc>, window_params = [{transform_indices = @transform_0, window_bounds = array<i64: 2, 16, 16, 32>}, {pipeline_mode = #tpu.pipeline_mode<synchronous>, transform_indices = @transform_1, window_bounds = array<i64: 288, 64>}, {pipeline_mode = #tpu.pipeline_mode<synchronous>, transform_indices = @transform_2, window_bounds = array<i64: 576, 64>}, {pipeline_mode = #tpu.pipeline_mode<synchronous>, transform_indices = @transform_3, window_bounds = array<i64: 64, 4>}, {pipeline_mode = #tpu.pipeline_mode<synchronous>, transform_indices = @transform_4, window_bounds = array<i64: 4, 64>}, {pipeline_mode = #tpu.pipeline_mode<synchronous>, transform_indices = @transform_5, window_bounds = array<i64: 32, 64>}, {pipeline_mode = #tpu.pipeline_mode<synchronous>, transform_indices = @transform_6, window_bounds = array<i64: 2, 32>}, {pipeline_mode = #tpu.pipeline_mode<synchronous>, transform_indices = @transform_7, window_bounds = array<i64: 8, 64>}, {transform_indices = @transform_8, window_bounds = array<i64: 2, 64, 64>}]} {
    %c0 = arith.constant 0 : index
    %c0_0 = arith.constant 0 : index
    %0 = vector.load %arg7[%c0, %c0_0] : memref<2x32xf32, #tpu.memory_space<vmem>>, vector<2x32xf32>
    %c0_1 = arith.constant 0 : index
    %c0_2 = arith.constant 0 : index
    %1 = vector.load %arg8[%c0_1, %c0_2] : memref<8x64xf32, #tpu.memory_space<vmem>>, vector<8x64xf32>
    %2 = vector.extract_strided_slice %0 {offsets = [0, 0], sizes = [1, 32], strides = [1, 1]} : vector<2x32xf32> to vector<1x32xf32>
    %3 = vector.extract_strided_slice %0 {offsets = [1, 0], sizes = [1, 32], strides = [1, 1]} : vector<2x32xf32> to vector<1x32xf32>
    %4 = vector.extract_strided_slice %1 {offsets = [0, 0], sizes = [1, 64], strides = [1, 1]} : vector<8x64xf32> to vector<1x64xf32>
    %5 = vector.extract_strided_slice %1 {offsets = [1, 0], sizes = [1, 64], strides = [1, 1]} : vector<8x64xf32> to vector<1x64xf32>
    %6 = vector.extract_strided_slice %1 {offsets = [2, 0], sizes = [1, 64], strides = [1, 1]} : vector<8x64xf32> to vector<1x64xf32>
    %7 = vector.extract_strided_slice %1 {offsets = [3, 0], sizes = [1, 64], strides = [1, 1]} : vector<8x64xf32> to vector<1x64xf32>
    %8 = vector.extract_strided_slice %1 {offsets = [4, 0], sizes = [1, 64], strides = [1, 1]} : vector<8x64xf32> to vector<1x64xf32>
    %9 = vector.extract_strided_slice %1 {offsets = [5, 0], sizes = [1, 64], strides = [1, 1]} : vector<8x64xf32> to vector<1x64xf32>
    %10 = vector.extract_strided_slice %1 {offsets = [6, 0], sizes = [1, 64], strides = [1, 1]} : vector<8x64xf32> to vector<1x64xf32>
    %11 = vector.extract_strided_slice %1 {offsets = [7, 0], sizes = [1, 64], strides = [1, 1]} : vector<8x64xf32> to vector<1x64xf32>
    %cst = arith.constant 0.000000e+00 : f32
    %12 = vector.broadcast %cst : f32 to vector<2x1x18x32xf32>
    %c0_3 = arith.constant 0 : index
    %c0_4 = arith.constant 0 : index
    %c0_5 = arith.constant 0 : index
    %c0_6 = arith.constant 0 : index
    %13 = vector.load %arg10[%c0_3, %c0_4, %c0_5, %c0_6] : memref<2x18x18x32xf32, #tpu.memory_space<vmem>>, vector<2x1x18x32xf32>
    tpu.vector_store %arg10[%c0_3, %c0_4, %c0_5, %c0_6], %12 {strides = array<i32>} : memref<2x18x18x32xf32, #tpu.memory_space<vmem>>, vector<2x1x18x32xf32>,
    %cst_7 = arith.constant 0.000000e+00 : f32
    %14 = vector.broadcast %cst_7 : f32 to vector<2x1x18x32xf32>
    %c0_8 = arith.constant 0 : index
    %c17 = arith.constant 17 : index
    %c0_9 = arith.constant 0 : index
    %c0_10 = arith.constant 0 : index
    %15 = vector.load %arg10[%c0_8, %c17, %c0_9, %c0_10] : memref<2x18x18x32xf32, #tpu.memory_space<vmem>>, vector<2x1x18x32xf32>
    tpu.vector_store %arg10[%c0_8, %c17, %c0_9, %c0_10], %14 {strides = array<i32>} : memref<2x18x18x32xf32, #tpu.memory_space<vmem>>, vector<2x1x18x32xf32>,
    %cst_11 = arith.constant 0.000000e+00 : f32
    %16 = vector.broadcast %cst_11 : f32 to vector<2x18x1x32xf32>
    %c0_12 = arith.constant 0 : index
    %c0_13 = arith.constant 0 : index
    %c0_14 = arith.constant 0 : index
    %c0_15 = arith.constant 0 : index
    %17 = vector.load %arg10[%c0_12, %c0_13, %c0_14, %c0_15] : memref<2x18x18x32xf32, #tpu.memory_space<vmem>>, vector<2x18x1x32xf32>
    tpu.vector_store %arg10[%c0_12, %c0_13, %c0_14, %c0_15], %16 {strides = array<i32>} : memref<2x18x18x32xf32, #tpu.memory_space<vmem>>, vector<2x18x1x32xf32>,
    %cst_16 = arith.constant 0.000000e+00 : f32
    %18 = vector.broadcast %cst_16 : f32 to vector<2x18x1x32xf32>
    %c0_17 = arith.constant 0 : index
    %c0_18 = arith.constant 0 : index
    %c17_19 = arith.constant 17 : index
    %c0_20 = arith.constant 0 : index
    %19 = vector.load %arg10[%c0_17, %c0_18, %c17_19, %c0_20] : memref<2x18x18x32xf32, #tpu.memory_space<vmem>>, vector<2x18x1x32xf32>
    tpu.vector_store %arg10[%c0_17, %c0_18, %c17_19, %c0_20], %18 {strides = array<i32>} : memref<2x18x18x32xf32, #tpu.memory_space<vmem>>, vector<2x18x1x32xf32>,
    %c0_21 = arith.constant 0 : index
    %c0_22 = arith.constant 0 : index
    %c0_23 = arith.constant 0 : index
    %c0_24 = arith.constant 0 : index
    %20 = vector.load %arg1[%c0_21, %c0_22, %c0_23, %c0_24] : memref<2x16x16x32xf32, #tpu.memory_space<vmem>>, vector<2x16x16x32xf32>
    %21 = vector.shape_cast %2 : vector<1x32xf32> to vector<1x1x1x32xf32>
    %22 = vector.broadcast %21 : vector<1x1x1x32xf32> to vector<2x16x16x32xf32>
    %23 = arith.mulf %20, %22 : vector<2x16x16x32xf32>
    %24 = vector.shape_cast %3 : vector<1x32xf32> to vector<1x1x1x32xf32>
    %25 = vector.broadcast %24 : vector<1x1x1x32xf32> to vector<2x16x16x32xf32>
    %26 = arith.addf %23, %25 : vector<2x16x16x32xf32>
    %c0_25 = arith.constant 0 : index
    %c1 = arith.constant 1 : index
    %c1_26 = arith.constant 1 : index
    %c0_27 = arith.constant 0 : index
    %27 = vector.load %arg10[%c0_25, %c1, %c1_26, %c0_27] : memref<2x18x18x32xf32, #tpu.memory_space<vmem>>, vector<2x16x16x32xf32>
    tpu.vector_store %arg10[%c0_25, %c1, %c1_26, %c0_27], %26 {strides = array<i32>} : memref<2x18x18x32xf32, #tpu.memory_space<vmem>>, vector<2x16x16x32xf32>,
    %c0_28 = arith.constant 0 : index
    %c0_29 = arith.constant 0 : index
    %c0_30 = arith.constant 0 : index
    %c0_31 = arith.constant 0 : index
    %28 = vector.load %arg10[%c0_28, %c0_29, %c0_30, %c0_31] : memref<2x18x18x32xf32, #tpu.memory_space<vmem>>, vector<2x16x16x32xf32>
    %29 = vector.shape_cast %28 : vector<2x16x16x32xf32> to vector<512x32xf32>
    %30 = arith.truncf %29 : vector<512x32xf32> to vector<512x32xbf16>
    %c0_32 = arith.constant 0 : index
    %c0_33 = arith.constant 0 : index
    %31 = vector.load %arg12[%c0_32, %c0_33] : memref<512x288xbf16, #tpu.memory_space<vmem>>, vector<512x32xbf16>
    tpu.vector_store %arg12[%c0_32, %c0_33], %30 {strides = array<i32>} : memref<512x288xbf16, #tpu.memory_space<vmem>>, vector<512x32xbf16>,
    %c0_34 = arith.constant 0 : index
    %c0_35 = arith.constant 0 : index
    %c1_36 = arith.constant 1 : index
    %c0_37 = arith.constant 0 : index
    %32 = vector.load %arg10[%c0_34, %c0_35, %c1_36, %c0_37] : memref<2x18x18x32xf32, #tpu.memory_space<vmem>>, vector<2x16x16x32xf32>
    %33 = vector.shape_cast %32 : vector<2x16x16x32xf32> to vector<512x32xf32>
    %34 = arith.truncf %33 : vector<512x32xf32> to vector<512x32xbf16>
    %c0_38 = arith.constant 0 : index
    %c32 = arith.constant 32 : index
    %35 = vector.load %arg12[%c0_38, %c32] : memref<512x288xbf16, #tpu.memory_space<vmem>>, vector<512x32xbf16>
    tpu.vector_store %arg12[%c0_38, %c32], %34 {strides = array<i32>} : memref<512x288xbf16, #tpu.memory_space<vmem>>, vector<512x32xbf16>,
    %c0_39 = arith.constant 0 : index
    %c0_40 = arith.constant 0 : index
    %c2 = arith.constant 2 : index
    %c0_41 = arith.constant 0 : index
    %36 = vector.load %arg10[%c0_39, %c0_40, %c2, %c0_41] : memref<2x18x18x32xf32, #tpu.memory_space<vmem>>, vector<2x16x16x32xf32>
    %37 = vector.shape_cast %36 : vector<2x16x16x32xf32> to vector<512x32xf32>
    %38 = arith.truncf %37 : vector<512x32xf32> to vector<512x32xbf16>
    %c0_42 = arith.constant 0 : index
    %c64 = arith.constant 64 : index
    %39 = vector.load %arg12[%c0_42, %c64] : memref<512x288xbf16, #tpu.memory_space<vmem>>, vector<512x32xbf16>
    tpu.vector_store %arg12[%c0_42, %c64], %38 {strides = array<i32>} : memref<512x288xbf16, #tpu.memory_space<vmem>>, vector<512x32xbf16>,
    %c0_43 = arith.constant 0 : index
    %c1_44 = arith.constant 1 : index
    %c0_45 = arith.constant 0 : index
    %c0_46 = arith.constant 0 : index
    %40 = vector.load %arg10[%c0_43, %c1_44, %c0_45, %c0_46] : memref<2x18x18x32xf32, #tpu.memory_space<vmem>>, vector<2x16x16x32xf32>
    %41 = vector.shape_cast %40 : vector<2x16x16x32xf32> to vector<512x32xf32>
    %42 = arith.truncf %41 : vector<512x32xf32> to vector<512x32xbf16>
    %c0_47 = arith.constant 0 : index
    %c96 = arith.constant 96 : index
    %43 = vector.load %arg12[%c0_47, %c96] : memref<512x288xbf16, #tpu.memory_space<vmem>>, vector<512x32xbf16>
    tpu.vector_store %arg12[%c0_47, %c96], %42 {strides = array<i32>} : memref<512x288xbf16, #tpu.memory_space<vmem>>, vector<512x32xbf16>,
    %c0_48 = arith.constant 0 : index
    %c1_49 = arith.constant 1 : index
    %c1_50 = arith.constant 1 : index
    %c0_51 = arith.constant 0 : index
    %44 = vector.load %arg10[%c0_48, %c1_49, %c1_50, %c0_51] : memref<2x18x18x32xf32, #tpu.memory_space<vmem>>, vector<2x16x16x32xf32>
    %45 = vector.shape_cast %44 : vector<2x16x16x32xf32> to vector<512x32xf32>
    %46 = arith.truncf %45 : vector<512x32xf32> to vector<512x32xbf16>
    %c0_52 = arith.constant 0 : index
    %c128 = arith.constant 128 : index
    %47 = vector.load %arg12[%c0_52, %c128] : memref<512x288xbf16, #tpu.memory_space<vmem>>, vector<512x32xbf16>
    tpu.vector_store %arg12[%c0_52, %c128], %46 {strides = array<i32>} : memref<512x288xbf16, #tpu.memory_space<vmem>>, vector<512x32xbf16>,
    %c0_53 = arith.constant 0 : index
    %c1_54 = arith.constant 1 : index
    %c2_55 = arith.constant 2 : index
    %c0_56 = arith.constant 0 : index
    %48 = vector.load %arg10[%c0_53, %c1_54, %c2_55, %c0_56] : memref<2x18x18x32xf32, #tpu.memory_space<vmem>>, vector<2x16x16x32xf32>
    %49 = vector.shape_cast %48 : vector<2x16x16x32xf32> to vector<512x32xf32>
    %50 = arith.truncf %49 : vector<512x32xf32> to vector<512x32xbf16>
    %c0_57 = arith.constant 0 : index
    %c160 = arith.constant 160 : index
    %51 = vector.load %arg12[%c0_57, %c160] : memref<512x288xbf16, #tpu.memory_space<vmem>>, vector<512x32xbf16>
    tpu.vector_store %arg12[%c0_57, %c160], %50 {strides = array<i32>} : memref<512x288xbf16, #tpu.memory_space<vmem>>, vector<512x32xbf16>,
    %c0_58 = arith.constant 0 : index
    %c2_59 = arith.constant 2 : index
    %c0_60 = arith.constant 0 : index
    %c0_61 = arith.constant 0 : index
    %52 = vector.load %arg10[%c0_58, %c2_59, %c0_60, %c0_61] : memref<2x18x18x32xf32, #tpu.memory_space<vmem>>, vector<2x16x16x32xf32>
    %53 = vector.shape_cast %52 : vector<2x16x16x32xf32> to vector<512x32xf32>
    %54 = arith.truncf %53 : vector<512x32xf32> to vector<512x32xbf16>
    %c0_62 = arith.constant 0 : index
    %c192 = arith.constant 192 : index
    %55 = vector.load %arg12[%c0_62, %c192] : memref<512x288xbf16, #tpu.memory_space<vmem>>, vector<512x32xbf16>
    tpu.vector_store %arg12[%c0_62, %c192], %54 {strides = array<i32>} : memref<512x288xbf16, #tpu.memory_space<vmem>>, vector<512x32xbf16>,
    %c0_63 = arith.constant 0 : index
    %c2_64 = arith.constant 2 : index
    %c1_65 = arith.constant 1 : index
    %c0_66 = arith.constant 0 : index
    %56 = vector.load %arg10[%c0_63, %c2_64, %c1_65, %c0_66] : memref<2x18x18x32xf32, #tpu.memory_space<vmem>>, vector<2x16x16x32xf32>
    %57 = vector.shape_cast %56 : vector<2x16x16x32xf32> to vector<512x32xf32>
    %58 = arith.truncf %57 : vector<512x32xf32> to vector<512x32xbf16>
    %c0_67 = arith.constant 0 : index
    %c224 = arith.constant 224 : index
    %59 = vector.load %arg12[%c0_67, %c224] : memref<512x288xbf16, #tpu.memory_space<vmem>>, vector<512x32xbf16>
    tpu.vector_store %arg12[%c0_67, %c224], %58 {strides = array<i32>} : memref<512x288xbf16, #tpu.memory_space<vmem>>, vector<512x32xbf16>,
    %c0_68 = arith.constant 0 : index
    %c2_69 = arith.constant 2 : index
    %c2_70 = arith.constant 2 : index
    %c0_71 = arith.constant 0 : index
    %60 = vector.load %arg10[%c0_68, %c2_69, %c2_70, %c0_71] : memref<2x18x18x32xf32, #tpu.memory_space<vmem>>, vector<2x16x16x32xf32>
    %61 = vector.shape_cast %60 : vector<2x16x16x32xf32> to vector<512x32xf32>
    %62 = arith.truncf %61 : vector<512x32xf32> to vector<512x32xbf16>
    %c0_72 = arith.constant 0 : index
    %c256 = arith.constant 256 : index
    %63 = vector.load %arg12[%c0_72, %c256] : memref<512x288xbf16, #tpu.memory_space<vmem>>, vector<512x32xbf16>
    tpu.vector_store %arg12[%c0_72, %c256], %62 {strides = array<i32>} : memref<512x288xbf16, #tpu.memory_space<vmem>>, vector<512x32xbf16>,
    %c0_73 = arith.constant 0 : index
    %c0_74 = arith.constant 0 : index
    %64 = vector.load %arg12[%c0_73, %c0_74] : memref<512x288xbf16, #tpu.memory_space<vmem>>, vector<512x288xbf16>
    %c0_75 = arith.constant 0 : index
    %c0_76 = arith.constant 0 : index
    %65 = vector.load %arg2[%c0_75, %c0_76] : memref<288x64xbf16, #tpu.memory_space<vmem>>, vector<288x64xbf16>
    %cst_77 = arith.constant dense<0.000000e+00> : vector<512x64xf32>
    %66 = tpu.matmul %64, %65, %cst_77 {dimension_numbers = #tpu.dot_dimension_numbers<[1], [0], [0], [1], [0, 0, 1, 1], [], []>} : vector<512x288xbf16>, vector<288x64xbf16>, vector<512x64xf32> -> vector<512x64xf32>
    %67 = vector.broadcast %4 : vector<1x64xf32> to vector<512x64xf32>
    %68 = arith.addf %66, %67 : vector<512x64xf32>
    %cst_78 = arith.constant 0.000000e+00 : f32
    %69 = vector.broadcast %cst_78 : f32 to vector<512x64xf32>
    %70 = arith.cmpf oge, %68, %69 : vector<512x64xf32>
    %71 = vector.broadcast %5 : vector<1x64xf32> to vector<512x64xf32>
    %72 = arith.mulf %68, %71 : vector<512x64xf32>
    %73 = arith.select %70, %68, %72 : vector<512x64xi1>, vector<512x64xf32>
    %cst_79 = arith.constant 0.000000e+00 : f32
    %74 = vector.broadcast %cst_79 : f32 to vector<2x1x18x64xf32>
    %c0_80 = arith.constant 0 : index
    %c0_81 = arith.constant 0 : index
    %c0_82 = arith.constant 0 : index
    %c0_83 = arith.constant 0 : index
    %75 = vector.load %arg11[%c0_80, %c0_81, %c0_82, %c0_83] : memref<2x18x18x64xf32, #tpu.memory_space<vmem>>, vector<2x1x18x64xf32>
    tpu.vector_store %arg11[%c0_80, %c0_81, %c0_82, %c0_83], %74 {strides = array<i32>} : memref<2x18x18x64xf32, #tpu.memory_space<vmem>>, vector<2x1x18x64xf32>,
    %cst_84 = arith.constant 0.000000e+00 : f32
    %76 = vector.broadcast %cst_84 : f32 to vector<2x1x18x64xf32>
    %c0_85 = arith.constant 0 : index
    %c17_86 = arith.constant 17 : index
    %c0_87 = arith.constant 0 : index
    %c0_88 = arith.constant 0 : index
    %77 = vector.load %arg11[%c0_85, %c17_86, %c0_87, %c0_88] : memref<2x18x18x64xf32, #tpu.memory_space<vmem>>, vector<2x1x18x64xf32>
    tpu.vector_store %arg11[%c0_85, %c17_86, %c0_87, %c0_88], %76 {strides = array<i32>} : memref<2x18x18x64xf32, #tpu.memory_space<vmem>>, vector<2x1x18x64xf32>,
    %cst_89 = arith.constant 0.000000e+00 : f32
    %78 = vector.broadcast %cst_89 : f32 to vector<2x18x1x64xf32>
    %c0_90 = arith.constant 0 : index
    %c0_91 = arith.constant 0 : index
    %c0_92 = arith.constant 0 : index
    %c0_93 = arith.constant 0 : index
    %79 = vector.load %arg11[%c0_90, %c0_91, %c0_92, %c0_93] : memref<2x18x18x64xf32, #tpu.memory_space<vmem>>, vector<2x18x1x64xf32>
    tpu.vector_store %arg11[%c0_90, %c0_91, %c0_92, %c0_93], %78 {strides = array<i32>} : memref<2x18x18x64xf32, #tpu.memory_space<vmem>>, vector<2x18x1x64xf32>,
    %cst_94 = arith.constant 0.000000e+00 : f32
    %80 = vector.broadcast %cst_94 : f32 to vector<2x18x1x64xf32>
    %c0_95 = arith.constant 0 : index
    %c0_96 = arith.constant 0 : index
    %c17_97 = arith.constant 17 : index
    %c0_98 = arith.constant 0 : index
    %81 = vector.load %arg11[%c0_95, %c0_96, %c17_97, %c0_98] : memref<2x18x18x64xf32, #tpu.memory_space<vmem>>, vector<2x18x1x64xf32>
    tpu.vector_store %arg11[%c0_95, %c0_96, %c17_97, %c0_98], %80 {strides = array<i32>} : memref<2x18x18x64xf32, #tpu.memory_space<vmem>>, vector<2x18x1x64xf32>,
    %82 = vector.broadcast %6 : vector<1x64xf32> to vector<512x64xf32>
    %83 = arith.mulf %73, %82 : vector<512x64xf32>
    %84 = vector.broadcast %7 : vector<1x64xf32> to vector<512x64xf32>
    %85 = arith.addf %83, %84 : vector<512x64xf32>
    %86 = vector.shape_cast %85 : vector<512x64xf32> to vector<2x16x16x64xf32>
    %c0_99 = arith.constant 0 : index
    %c1_100 = arith.constant 1 : index
    %c1_101 = arith.constant 1 : index
    %c0_102 = arith.constant 0 : index
    %87 = vector.load %arg11[%c0_99, %c1_100, %c1_101, %c0_102] : memref<2x18x18x64xf32, #tpu.memory_space<vmem>>, vector<2x16x16x64xf32>
    tpu.vector_store %arg11[%c0_99, %c1_100, %c1_101, %c0_102], %86 {strides = array<i32>} : memref<2x18x18x64xf32, #tpu.memory_space<vmem>>, vector<2x16x16x64xf32>,
    %c0_103 = arith.constant 0 : index
    %c0_104 = arith.constant 0 : index
    %c0_105 = arith.constant 0 : index
    %c0_106 = arith.constant 0 : index
    %88 = tpu.strided_load %arg11[%c0_103, %c0_104, %c0_105, %c0_106] {strides = array<i32: 1, 2, 2, 1>} : memref<2x18x18x64xf32, #tpu.memory_space<vmem>>, vector<2x8x8x64xf32>
    %89 = vector.shape_cast %88 : vector<2x8x8x64xf32> to vector<128x64xf32>
    %90 = arith.truncf %89 : vector<128x64xf32> to vector<128x64xbf16>
    %c0_107 = arith.constant 0 : index
    %c0_108 = arith.constant 0 : index
    %91 = vector.load %arg13[%c0_107, %c0_108] : memref<128x576xbf16, #tpu.memory_space<vmem>>, vector<128x64xbf16>
    tpu.vector_store %arg13[%c0_107, %c0_108], %90 {strides = array<i32>} : memref<128x576xbf16, #tpu.memory_space<vmem>>, vector<128x64xbf16>,
    %c0_109 = arith.constant 0 : index
    %c0_110 = arith.constant 0 : index
    %c1_111 = arith.constant 1 : index
    %c0_112 = arith.constant 0 : index
    %92 = tpu.strided_load %arg11[%c0_109, %c0_110, %c1_111, %c0_112] {strides = array<i32: 1, 2, 2, 1>} : memref<2x18x18x64xf32, #tpu.memory_space<vmem>>, vector<2x8x8x64xf32>
    %93 = vector.shape_cast %92 : vector<2x8x8x64xf32> to vector<128x64xf32>
    %94 = arith.truncf %93 : vector<128x64xf32> to vector<128x64xbf16>
    %c0_113 = arith.constant 0 : index
    %c64_114 = arith.constant 64 : index
    %95 = vector.load %arg13[%c0_113, %c64_114] : memref<128x576xbf16, #tpu.memory_space<vmem>>, vector<128x64xbf16>
    tpu.vector_store %arg13[%c0_113, %c64_114], %94 {strides = array<i32>} : memref<128x576xbf16, #tpu.memory_space<vmem>>, vector<128x64xbf16>,
    %c0_115 = arith.constant 0 : index
    %c0_116 = arith.constant 0 : index
    %c2_117 = arith.constant 2 : index
    %c0_118 = arith.constant 0 : index
    %96 = tpu.strided_load %arg11[%c0_115, %c0_116, %c2_117, %c0_118] {strides = array<i32: 1, 2, 2, 1>} : memref<2x18x18x64xf32, #tpu.memory_space<vmem>>, vector<2x8x8x64xf32>
    %97 = vector.shape_cast %96 : vector<2x8x8x64xf32> to vector<128x64xf32>
    %98 = arith.truncf %97 : vector<128x64xf32> to vector<128x64xbf16>
    %c0_119 = arith.constant 0 : index
    %c128_120 = arith.constant 128 : index
    %99 = vector.load %arg13[%c0_119, %c128_120] : memref<128x576xbf16, #tpu.memory_space<vmem>>, vector<128x64xbf16>
    tpu.vector_store %arg13[%c0_119, %c128_120], %98 {strides = array<i32>} : memref<128x576xbf16, #tpu.memory_space<vmem>>, vector<128x64xbf16>,
    %c0_121 = arith.constant 0 : index
    %c1_122 = arith.constant 1 : index
    %c0_123 = arith.constant 0 : index
    %c0_124 = arith.constant 0 : index
    %100 = tpu.strided_load %arg11[%c0_121, %c1_122, %c0_123, %c0_124] {strides = array<i32: 1, 2, 2, 1>} : memref<2x18x18x64xf32, #tpu.memory_space<vmem>>, vector<2x8x8x64xf32>
    %101 = vector.shape_cast %100 : vector<2x8x8x64xf32> to vector<128x64xf32>
    %102 = arith.truncf %101 : vector<128x64xf32> to vector<128x64xbf16>
    %c0_125 = arith.constant 0 : index
    %c192_126 = arith.constant 192 : index
    %103 = vector.load %arg13[%c0_125, %c192_126] : memref<128x576xbf16, #tpu.memory_space<vmem>>, vector<128x64xbf16>
    tpu.vector_store %arg13[%c0_125, %c192_126], %102 {strides = array<i32>} : memref<128x576xbf16, #tpu.memory_space<vmem>>, vector<128x64xbf16>,
    %c0_127 = arith.constant 0 : index
    %c1_128 = arith.constant 1 : index
    %c1_129 = arith.constant 1 : index
    %c0_130 = arith.constant 0 : index
    %104 = tpu.strided_load %arg11[%c0_127, %c1_128, %c1_129, %c0_130] {strides = array<i32: 1, 2, 2, 1>} : memref<2x18x18x64xf32, #tpu.memory_space<vmem>>, vector<2x8x8x64xf32>
    %105 = vector.shape_cast %104 : vector<2x8x8x64xf32> to vector<128x64xf32>
    %106 = arith.truncf %105 : vector<128x64xf32> to vector<128x64xbf16>
    %c0_131 = arith.constant 0 : index
    %c256_132 = arith.constant 256 : index
    %107 = vector.load %arg13[%c0_131, %c256_132] : memref<128x576xbf16, #tpu.memory_space<vmem>>, vector<128x64xbf16>
    tpu.vector_store %arg13[%c0_131, %c256_132], %106 {strides = array<i32>} : memref<128x576xbf16, #tpu.memory_space<vmem>>, vector<128x64xbf16>,
    %c0_133 = arith.constant 0 : index
    %c1_134 = arith.constant 1 : index
    %c2_135 = arith.constant 2 : index
    %c0_136 = arith.constant 0 : index
    %108 = tpu.strided_load %arg11[%c0_133, %c1_134, %c2_135, %c0_136] {strides = array<i32: 1, 2, 2, 1>} : memref<2x18x18x64xf32, #tpu.memory_space<vmem>>, vector<2x8x8x64xf32>
    %109 = vector.shape_cast %108 : vector<2x8x8x64xf32> to vector<128x64xf32>
    %110 = arith.truncf %109 : vector<128x64xf32> to vector<128x64xbf16>
    %c0_137 = arith.constant 0 : index
    %c320 = arith.constant 320 : index
    %111 = vector.load %arg13[%c0_137, %c320] : memref<128x576xbf16, #tpu.memory_space<vmem>>, vector<128x64xbf16>
    tpu.vector_store %arg13[%c0_137, %c320], %110 {strides = array<i32>} : memref<128x576xbf16, #tpu.memory_space<vmem>>, vector<128x64xbf16>,
    %c0_138 = arith.constant 0 : index
    %c2_139 = arith.constant 2 : index
    %c0_140 = arith.constant 0 : index
    %c0_141 = arith.constant 0 : index
    %112 = tpu.strided_load %arg11[%c0_138, %c2_139, %c0_140, %c0_141] {strides = array<i32: 1, 2, 2, 1>} : memref<2x18x18x64xf32, #tpu.memory_space<vmem>>, vector<2x8x8x64xf32>
    %113 = vector.shape_cast %112 : vector<2x8x8x64xf32> to vector<128x64xf32>
    %114 = arith.truncf %113 : vector<128x64xf32> to vector<128x64xbf16>
    %c0_142 = arith.constant 0 : index
    %c384 = arith.constant 384 : index
    %115 = vector.load %arg13[%c0_142, %c384] : memref<128x576xbf16, #tpu.memory_space<vmem>>, vector<128x64xbf16>
    tpu.vector_store %arg13[%c0_142, %c384], %114 {strides = array<i32>} : memref<128x576xbf16, #tpu.memory_space<vmem>>, vector<128x64xbf16>,
    %c0_143 = arith.constant 0 : index
    %c2_144 = arith.constant 2 : index
    %c1_145 = arith.constant 1 : index
    %c0_146 = arith.constant 0 : index
    %116 = tpu.strided_load %arg11[%c0_143, %c2_144, %c1_145, %c0_146] {strides = array<i32: 1, 2, 2, 1>} : memref<2x18x18x64xf32, #tpu.memory_space<vmem>>, vector<2x8x8x64xf32>
    %117 = vector.shape_cast %116 : vector<2x8x8x64xf32> to vector<128x64xf32>
    %118 = arith.truncf %117 : vector<128x64xf32> to vector<128x64xbf16>
    %c0_147 = arith.constant 0 : index
    %c448 = arith.constant 448 : index
    %119 = vector.load %arg13[%c0_147, %c448] : memref<128x576xbf16, #tpu.memory_space<vmem>>, vector<128x64xbf16>
    tpu.vector_store %arg13[%c0_147, %c448], %118 {strides = array<i32>} : memref<128x576xbf16, #tpu.memory_space<vmem>>, vector<128x64xbf16>,
    %c0_148 = arith.constant 0 : index
    %c2_149 = arith.constant 2 : index
    %c2_150 = arith.constant 2 : index
    %c0_151 = arith.constant 0 : index
    %120 = tpu.strided_load %arg11[%c0_148, %c2_149, %c2_150, %c0_151] {strides = array<i32: 1, 2, 2, 1>} : memref<2x18x18x64xf32, #tpu.memory_space<vmem>>, vector<2x8x8x64xf32>
    %121 = vector.shape_cast %120 : vector<2x8x8x64xf32> to vector<128x64xf32>
    %122 = arith.truncf %121 : vector<128x64xf32> to vector<128x64xbf16>
    %c0_152 = arith.constant 0 : index
    %c512 = arith.constant 512 : index
    %123 = vector.load %arg13[%c0_152, %c512] : memref<128x576xbf16, #tpu.memory_space<vmem>>, vector<128x64xbf16>
    tpu.vector_store %arg13[%c0_152, %c512], %122 {strides = array<i32>} : memref<128x576xbf16, #tpu.memory_space<vmem>>, vector<128x64xbf16>,
    %c0_153 = arith.constant 0 : index
    %c0_154 = arith.constant 0 : index
    %124 = vector.load %arg13[%c0_153, %c0_154] : memref<128x576xbf16, #tpu.memory_space<vmem>>, vector<128x576xbf16>
    %c0_155 = arith.constant 0 : index
    %c0_156 = arith.constant 0 : index
    %125 = vector.load %arg3[%c0_155, %c0_156] : memref<576x64xbf16, #tpu.memory_space<vmem>>, vector<576x64xbf16>
    %cst_157 = arith.constant dense<0.000000e+00> : vector<128x64xf32>
    %126 = tpu.matmul %124, %125, %cst_157 {dimension_numbers = #tpu.dot_dimension_numbers<[1], [0], [0], [1], [0, 0, 1, 1], [], []>} : vector<128x576xbf16>, vector<576x64xbf16>, vector<128x64xf32> -> vector<128x64xf32>
    %127 = vector.broadcast %8 : vector<1x64xf32> to vector<128x64xf32>
    %128 = arith.mulf %126, %127 : vector<128x64xf32>
    %129 = vector.broadcast %9 : vector<1x64xf32> to vector<128x64xf32>
    %130 = arith.addf %128, %129 : vector<128x64xf32>
    %131 = vector.shape_cast %130 : vector<128x64xf32> to vector<2x64x64xf32>
    %cst_158 = arith.constant dense<0.000000e+00> : vector<2x64xf32>
    %132 = vector.multi_reduction <add>, %131, %cst_158 [1] : vector<2x64x64xf32> to vector<2x64xf32>
    %cst_159 = arith.constant 6.400000e+01 : f32
    %133 = vector.broadcast %cst_159 : f32 to vector<2x64xf32>
    %134 = arith.divf %132, %133 : vector<2x64xf32>
    %c0_160 = arith.constant 0 : index
    %c0_161 = arith.constant 0 : index
    %135 = vector.load %arg4[%c0_160, %c0_161] : memref<64x4xf32, #tpu.memory_space<vmem>>, vector<64x4xf32>
    %cst_162 = arith.constant dense<0.000000e+00> : vector<2x4xf32>
    %136 = tpu.matmul %134, %135, %cst_162 {dimension_numbers = #tpu.dot_dimension_numbers<[1], [0], [0], [1], [0, 0, 1, 1], [], []>} : vector<2x64xf32>, vector<64x4xf32>, vector<2x4xf32> -> vector<2x4xf32>
    %cst_163 = arith.constant 0.000000e+00 : f32
    %137 = vector.broadcast %cst_163 : f32 to vector<2x4xf32>
    %138 = arith.maximumf %136, %137 : vector<2x4xf32>
    %c0_164 = arith.constant 0 : index
    %c0_165 = arith.constant 0 : index
    %139 = vector.load %arg5[%c0_164, %c0_165] : memref<4x64xf32, #tpu.memory_space<vmem>>, vector<4x64xf32>
    %cst_166 = arith.constant dense<0.000000e+00> : vector<2x64xf32>
    %140 = tpu.matmul %138, %139, %cst_166 {dimension_numbers = #tpu.dot_dimension_numbers<[1], [0], [0], [1], [0, 0, 1, 1], [], []>} : vector<2x4xf32>, vector<4x64xf32>, vector<2x64xf32> -> vector<2x64xf32>
    %cst_167 = arith.constant 0.000000e+00 : f32
    %141 = vector.broadcast %cst_167 : f32 to vector<2x64xf32>
    %142 = arith.subf %141, %140 : vector<2x64xf32>
    %143 = math.exp %142 : vector<2x64xf32>
    %cst_168 = arith.constant 1.000000e+00 : f32
    %144 = vector.broadcast %cst_168 : f32 to vector<2x64xf32>
    %145 = arith.addf %144, %143 : vector<2x64xf32>
    %cst_169 = arith.constant 1.000000e+00 : f32
    %146 = vector.broadcast %cst_169 : f32 to vector<2x64xf32>
    %147 = arith.divf %146, %145 : vector<2x64xf32>
    %148 = vector.shape_cast %147 : vector<2x64xf32> to vector<2x1x64xf32>
    %149 = vector.broadcast %148 : vector<2x1x64xf32> to vector<2x64x64xf32>
    %150 = arith.mulf %131, %149 : vector<2x64x64xf32>
    %c0_170 = arith.constant 0 : index
    %c0_171 = arith.constant 0 : index
    %c0_172 = arith.constant 0 : index
    %c0_173 = arith.constant 0 : index
    %151 = tpu.strided_load %arg1[%c0_170, %c0_171, %c0_172, %c0_173] {strides = array<i32: 1, 2, 2, 1>} : memref<2x16x16x32xf32, #tpu.memory_space<vmem>>, vector<2x8x8x32xf32>
    %152 = vector.shape_cast %151 : vector<2x8x8x32xf32> to vector<128x32xf32>
    %153 = arith.truncf %152 : vector<128x32xf32> to vector<128x32xbf16>
    %c0_174 = arith.constant 0 : index
    %c0_175 = arith.constant 0 : index
    %154 = vector.load %arg6[%c0_174, %c0_175] : memref<32x64xbf16, #tpu.memory_space<vmem>>, vector<32x64xbf16>
    %cst_176 = arith.constant dense<0.000000e+00> : vector<128x64xf32>
    %155 = tpu.matmul %153, %154, %cst_176 {dimension_numbers = #tpu.dot_dimension_numbers<[1], [0], [0], [1], [0, 0, 1, 1], [], []>} : vector<128x32xbf16>, vector<32x64xbf16>, vector<128x64xf32> -> vector<128x64xf32>
    %156 = vector.broadcast %10 : vector<1x64xf32> to vector<128x64xf32>
    %157 = arith.mulf %155, %156 : vector<128x64xf32>
    %158 = vector.broadcast %11 : vector<1x64xf32> to vector<128x64xf32>
    %159 = arith.addf %157, %158 : vector<128x64xf32>
    %160 = vector.shape_cast %159 : vector<128x64xf32> to vector<2x64x64xf32>
    %161 = arith.addf %150, %160 : vector<2x64x64xf32>
    %c0_177 = arith.constant 0 : index
    %c0_178 = arith.constant 0 : index
    %c0_179 = arith.constant 0 : index
    %162 = vector.load %arg9[%c0_177, %c0_178, %c0_179] : memref<2x64x64xf32, #tpu.memory_space<vmem>>, vector<2x64x64xf32>
    tpu.vector_store %arg9[%c0_177, %c0_178, %c0_179], %161 {strides = array<i32>} : memref<2x64x64xf32, #tpu.memory_space<vmem>>, vector<2x64x64xf32>,
    return
  }
  func.func @transform_0(%arg0: i32) -> (i32, i32, i32, i32) {
    %c0_i32 = arith.constant 0 : i32
    %c0_i32_0 = arith.constant 0 : i32
    %c0_i32_1 = arith.constant 0 : i32
    %c0_i32_2 = arith.constant 0 : i32
    return %arg0, %c0_i32, %c0_i32_0, %c0_i32_1 : i32, i32, i32, i32
  }
  func.func @transform_1(%arg0: i32) -> (i32, i32) {
    %c0_i32 = arith.constant 0 : i32
    %c0_i32_0 = arith.constant 0 : i32
    %c0_i32_1 = arith.constant 0 : i32
    return %c0_i32, %c0_i32_0 : i32, i32
  }
  func.func @transform_2(%arg0: i32) -> (i32, i32) {
    %c0_i32 = arith.constant 0 : i32
    %c0_i32_0 = arith.constant 0 : i32
    %c0_i32_1 = arith.constant 0 : i32
    return %c0_i32, %c0_i32_0 : i32, i32
  }
  func.func @transform_3(%arg0: i32) -> (i32, i32) {
    %c0_i32 = arith.constant 0 : i32
    %c0_i32_0 = arith.constant 0 : i32
    %c0_i32_1 = arith.constant 0 : i32
    return %c0_i32, %c0_i32_0 : i32, i32
  }
  func.func @transform_4(%arg0: i32) -> (i32, i32) {
    %c0_i32 = arith.constant 0 : i32
    %c0_i32_0 = arith.constant 0 : i32
    %c0_i32_1 = arith.constant 0 : i32
    return %c0_i32, %c0_i32_0 : i32, i32
  }
  func.func @transform_5(%arg0: i32) -> (i32, i32) {
    %c0_i32 = arith.constant 0 : i32
    %c0_i32_0 = arith.constant 0 : i32
    %c0_i32_1 = arith.constant 0 : i32
    return %c0_i32, %c0_i32_0 : i32, i32
  }
  func.func @transform_6(%arg0: i32) -> (i32, i32) {
    %c0_i32 = arith.constant 0 : i32
    %c0_i32_0 = arith.constant 0 : i32
    %c0_i32_1 = arith.constant 0 : i32
    return %c0_i32, %c0_i32_0 : i32, i32
  }
  func.func @transform_7(%arg0: i32) -> (i32, i32) {
    %c0_i32 = arith.constant 0 : i32
    %c0_i32_0 = arith.constant 0 : i32
    %c0_i32_1 = arith.constant 0 : i32
    return %c0_i32, %c0_i32_0 : i32, i32
  }
  func.func @transform_8(%arg0: i32) -> (i32, i32, i32) {
    %c0_i32 = arith.constant 0 : i32
    %c0_i32_0 = arith.constant 0 : i32
    %c0_i32_1 = arith.constant 0 : i32
    return %arg0, %c0_i32, %c0_i32_0 : i32, i32, i32
  }
}

</mosaic_0001>

<llo_original>
// kernel: tpu_custom_call.1
$region0: #{tpu_custom_call.1}
  #allocation0 [shape = 'u32[]', space=smem, size = 0x4, offset = 0x4, fixed_abs, tag = 'smem constant byte address 0x4 - core index']
  #allocation1 [shape = 'u32[72,128]{1,0:T(1,128)}', space=vmem, size = 0x9000, scoped, tag = 'internal scratch']
  #allocation2 [shape = 'f32[2,18,18,32]{3,2,1,0:T(8,128)}', space=vmem, size = 0x6c000, scoped, tag = 'scratch operand']
  #allocation3 [shape = 'f32[2,18,18,64]{3,2,1,0:T(8,128)}', space=vmem, size = 0x6c000, scoped, tag = 'scratch operand']
  #allocation4 [shape = 'bf16[512,288]{1,0:T(8,128)(2,1)}', space=vmem, size = 0x60000, scoped, tag = 'scratch operand']
  #allocation5 [shape = 'bf16[128,576]{1,0:T(8,128)(2,1)}', space=vmem, size = 0x28000, scoped, tag = 'scratch operand']
  %s0 = inlined_call_operand.vmem [shape: f32[2,16,16,32], index: 0, kind: input, shape index: {}]
  %s1 = inlined_call_operand.vmem [shape: bf16[288,64], index: 1, kind: input, shape index: {}]
  %s2 = inlined_call_operand.vmem [shape: bf16[576,64], index: 2, kind: input, shape index: {}]
  %s3 = inlined_call_operand.vmem [shape: f32[64,4], index: 3, kind: input, shape index: {}]
  %s4 = inlined_call_operand.vmem [shape: f32[4,64], index: 4, kind: input, shape index: {}]
  %s5 = inlined_call_operand.vmem [shape: bf16[32,64], index: 5, kind: input, shape index: {}]
  %s6 = inlined_call_operand.vmem [shape: f32[2,32], index: 6, kind: input, shape index: {}]
  %s7 = inlined_call_operand.vmem [shape: f32[8,64], index: 7, kind: input, shape index: {}]
  %s8 = inlined_call_operand.hbm [shape: f32[2,64,64], index: 8, kind: output, shape index: {}]
  %s9 = sld [smem:[#allocation0]]
  $region42: #{tpu_custom_call.1} parent=0
    _
  %s11 = ssub.s32 1, %s9
  %s12 = scalar_select 0, %s11, %s9
  $region1: #{tpu_custom_call.1} parent=0
    #allocation6 [shape = 'u8[65536]{0}', space=vmem, size = 0x10000, scoped, tag = 'output window, operand 0, single buffered']
    #allocation7 [shape = 's32[1]{0}', space=sflag, size = 0x4, scoped, tag = 'scoped memory for tpu_custom_call.1']
    %13 = vsyncpa [#allocation7], 0
    // Predicated region
    $region2: #{tpu_custom_call.1} parent=1 // pred_check
      _
    $region3: #{tpu_custom_call.1} parent=1 // pred_check_branch
      %15 = sbr.rel (0) target = $region5
    $region4: #{tpu_custom_call.1} parent=1 // pred_region
      _
    $region5: #{tpu_custom_call.1} parent=1 // pred_fallthru
      _
    // Predicated region
    $region6: #{tpu_custom_call.1} parent=1 // pred_check
      _
    $region7: #{tpu_custom_call.1} parent=1 // pred_check_branch
      %17 = sbr.rel (0) target = $region9
    $region8: #{tpu_custom_call.1} parent=1 // pred_region
      _
    $region9: #{tpu_custom_call.1} parent=1 // pred_fallthru
      _
    // Predicated region
    $region10: #{tpu_custom_call.1} parent=1 // pred_check
      _
    $region11: #{tpu_custom_call.1} parent=1 // pred_check_branch
      %19 = sbr.rel (0) target = $region13
    $region12: #{tpu_custom_call.1} parent=1 // pred_region
      _
    $region13: #{tpu_custom_call.1} parent=1 // pred_fallthru
      _
    // Predicated region
    $region14: #{tpu_custom_call.1} parent=1 // pred_check
      _
    $region15: #{tpu_custom_call.1} parent=1 // pred_check_branch
      %21 = sbr.rel (0) target = $region17
    $region16: #{tpu_custom_call.1} parent=1 // pred_region
      _
    $region17: #{tpu_custom_call.1} parent=1 // pred_fallthru
      _
    // Predicated region
    $region18: #{tpu_custom_call.1} parent=1 // pred_check
      _
    $region19: #{tpu_custom_call.1} parent=1 // pred_check_branch
      %23 = sbr.rel (0) target = $region21
    $region20: #{tpu_custom_call.1} parent=1 // pred_region
      _
    $region21: #{tpu_custom_call.1} parent=1 // pred_fallthru
      _
    // Predicated region
    $region22: #{tpu_custom_call.1} parent=1 // pred_check
      _
    $region23: #{tpu_custom_call.1} parent=1 // pred_check_branch
      %25 = sbr.rel (0) target = $region25
    $region24: #{tpu_custom_call.1} parent=1 // pred_region
      _
    $region25: #{tpu_custom_call.1} parent=1 // pred_fallthru
      _
    // Predicated region
    $region26: #{tpu_custom_call.1} parent=1 // pred_check
      _
    $region27: #{tpu_custom_call.1} parent=1 // pred_check_branch
      %27 = sbr.rel (0) target = $region29
    $region28: #{tpu_custom_call.1} parent=1 // pred_region
      _
    $region29: #{tpu_custom_call.1} parent=1 // pred_fallthru
      _
    // Predicated region
    $region30: #{tpu_custom_call.1} parent=1 // pred_check
      _
    $region31: #{tpu_custom_call.1} parent=1 // pred_check_branch
      %29 = sbr.rel (0) target = $region33
    $region32: #{tpu_custom_call.1} parent=1 // pred_region
      _
    $region33: #{tpu_custom_call.1} parent=1 // pred_fallthru
      _
    %v31 = vld [vmem:[%s6] sm:$0x3]
    %v32 = vld [vmem:[%s7] sm:$0xff]
    %vm33 = vcmask 261120
    %34 = vst.msk [vmem:[#allocation2] sm:$0xff] %vm33, 0.0
    %35 = vst.msk [vmem:[#allocation2 + $0x8] sm:$0xff] %vm33, 0.0
    %vm36 = vcmask 254976
    %37 = vst.msk [vmem:[#allocation2 + $0x10] sm:$0x3] %vm36, 0.0
    %38 = vst.msk [vmem:[#allocation2 + $0x1b0] sm:$0xff] %vm33, 0.0
    %39 = vst.msk [vmem:[#allocation2 + $0x1b8] sm:$0xff] %vm33, 0.0
    %40 = vst.msk [vmem:[#allocation2 + $0x1c0] sm:$0x3] %vm36, 0.0
    %s41 = scalar_lea.vmem [#allocation2], 408
    %42 = vst.msk [vmem:[%s41] sm:$0xff] %vm33, 0.0
    %43 = vst.msk [vmem:[%s41 + $0x8] sm:$0xff] %vm33, 0.0
    %44 = vst.msk [vmem:[%s41 + $0x10] sm:$0x3] %vm36, 0.0
    %45 = vst.msk [vmem:[%s41 + $0x1b0] sm:$0xff] %vm33, 0.0
    %46 = vst.msk [vmem:[%s41 + $0x1b8] sm:$0xff] %vm33, 0.0
    %47 = vst.msk [vmem:[%s41 + $0x1c0] sm:$0x3] %vm36, 0.0
    %vm48 = vcmask 253952
    %49 = vst.msk [vmem:[#allocation2] sm:$0x1] %vm48, 0.0
    %50 = vst.msk [vmem:[#allocation2 + $0x18] sm:$0x1] %vm48, 0.0
    %51 = vst.msk [vmem:[#allocation2 + $0x30] sm:$0x1] %vm48, 0.0
    %52 = vst.msk [vmem:[#allocation2 + $0x48] sm:$0x1] %vm48, 0.0
    %53 = vst.msk [vmem:[#allocation2 + $0x60] sm:$0x1] %vm48, 0.0
    %54 = vst.msk [vmem:[#allocation2 + $0x78] sm:$0x1] %vm48, 0.0
    %55 = vst.msk [vmem:[#allocation2 + $0x90] sm:$0x1] %vm48, 0.0
    %56 = vst.msk [vmem:[#allocation2 + $0xa8] sm:$0x1] %vm48, 0.0
    %57 = vst.msk [vmem:[#allocation2 + $0xc0] sm:$0x1] %vm48, 0.0
    %58 = vst.msk [vmem:[#allocation2 + $0xd8] sm:$0x1] %vm48, 0.0
    %59 = vst.msk [vmem:[#allocation2 + $0xf0] sm:$0x1] %vm48, 0.0
    %60 = vst.msk [vmem:[#allocation2 + $0x108] sm:$0x1] %vm48, 0.0
    %61 = vst.msk [vmem:[#allocation2 + $0x120] sm:$0x1] %vm48, 0.0
    %62 = vst.msk [vmem:[#allocation2 + $0x138] sm:$0x1] %vm48, 0.0
    %63 = vst.msk [vmem:[#allocation2 + $0x150] sm:$0x1] %vm48, 0.0
    %64 = vst.msk [vmem:[#allocation2 + $0x168] sm:$0x1] %vm48, 0.0
    %65 = vst.msk [vmem:[#allocation2 + $0x180] sm:$0x1] %vm48, 0.0
    %66 = vst.msk [vmem:[#allocation2 + $0x198] sm:$0x1] %vm48, 0.0
    %67 = vst.msk [vmem:[#allocation2 + $0x1b0] sm:$0x1] %vm48, 0.0
    %68 = vst.msk [vmem:[#allocation2 + $0x1c8] sm:$0x1] %vm48, 0.0
    %69 = vst.msk [vmem:[#allocation2 + $0x1e0] sm:$0x1] %vm48, 0.0
    %70 = vst.msk [vmem:[#allocation2 + $0x1f8] sm:$0x1] %vm48, 0.0
    %71 = vst.msk [vmem:[#allocation2 + $0x210] sm:$0x1] %vm48, 0.0
    %72 = vst.msk [vmem:[#allocation2 + $0x228] sm:$0x1] %vm48, 0.0
    %73 = vst.msk [vmem:[#allocation2 + $0x240] sm:$0x1] %vm48, 0.0
    %74 = vst.msk [vmem:[#allocation2 + $0x258] sm:$0x1] %vm48, 0.0
    %75 = vst.msk [vmem:[#allocation2 + $0x270] sm:$0x1] %vm48, 0.0
    %76 = vst.msk [vmem:[#allocation2 + $0x288] sm:$0x1] %vm48, 0.0
    %77 = vst.msk [vmem:[#allocation2 + $0x2a0] sm:$0x1] %vm48, 0.0
    %78 = vst.msk [vmem:[#allocation2 + $0x2b8] sm:$0x1] %vm48, 0.0
    %79 = vst.msk [vmem:[#allocation2 + $0x2d0] sm:$0x1] %vm48, 0.0
    %80 = vst.msk [vmem:[#allocation2 + $0x2e8] sm:$0x1] %vm48, 0.0
    %81 = vst.msk [vmem:[#allocation2 + $0x300] sm:$0x1] %vm48, 0.0
    %82 = vst.msk [vmem:[#allocation2 + $0x318] sm:$0x1] %vm48, 0.0
    %83 = vst.msk [vmem:[#allocation2 + $0x330] sm:$0x1] %vm48, 0.0
    %84 = vst.msk [vmem:[#allocation2 + $0x348] sm:$0x1] %vm48, 0.0
    %85 = vst.msk [vmem:[#allocation2 + $0x11] sm:$0x1] %vm48, 0.0
    %86 = vst.msk [vmem:[#allocation2 + $0x29] sm:$0x1] %vm48, 0.0
    %87 = vst.msk [vmem:[#allocation2 + $0x41] sm:$0x1] %vm48, 0.0
    %88 = vst.msk [vmem:[#allocation2 + $0x59] sm:$0x1] %vm48, 0.0
    %89 = vst.msk [vmem:[#allocation2 + $0x71] sm:$0x1] %vm48, 0.0
    %90 = vst.msk [vmem:[#allocation2 + $0x89] sm:$0x1] %vm48, 0.0
    %91 = vst.msk [vmem:[#allocation2 + $0xa1] sm:$0x1] %vm48, 0.0
    %92 = vst.msk [vmem:[#allocation2 + $0xb9] sm:$0x1] %vm48, 0.0
    %93 = vst.msk [vmem:[#allocation2 + $0xd1] sm:$0x1] %vm48, 0.0
    %94 = vst.msk [vmem:[#allocation2 + $0xe9] sm:$0x1] %vm48, 0.0
    %95 = vst.msk [vmem:[#allocation2 + $0x101] sm:$0x1] %vm48, 0.0
    %96 = vst.msk [vmem:[#allocation2 + $0x119] sm:$0x1] %vm48, 0.0
    %97 = vst.msk [vmem:[#allocation2 + $0x131] sm:$0x1] %vm48, 0.0
    %98 = vst.msk [vmem:[#allocation2 + $0x149] sm:$0x1] %vm48, 0.0
    %99 = vst.msk [vmem:[#allocation2 + $0x161] sm:$0x1] %vm48, 0.0
    %100 = vst.msk [vmem:[#allocation2 + $0x179] sm:$0x1] %vm48, 0.0
    %101 = vst.msk [vmem:[#allocation2 + $0x191] sm:$0x1] %vm48, 0.0
    %102 = vst.msk [vmem:[#allocation2 + $0x1a9] sm:$0x1] %vm48, 0.0
    %103 = vst.msk [vmem:[#allocation2 + $0x1c1] sm:$0x1] %vm48, 0.0
    %104 = vst.msk [vmem:[#allocation2 + $0x1d9] sm:$0x1] %vm48, 0.0
    %105 = vst.msk [vmem:[#allocation2 + $0x1f1] sm:$0x1] %vm48, 0.0
    %106 = vst.msk [vmem:[#allocation2 + $0x209] sm:$0x1] %vm48, 0.0
    %107 = vst.msk [vmem:[#allocation2 + $0x221] sm:$0x1] %vm48, 0.0
    %108 = vst.msk [vmem:[#allocation2 + $0x239] sm:$0x1] %vm48, 0.0
    %109 = vst.msk [vmem:[#allocation2 + $0x251] sm:$0x1] %vm48, 0.0
    %110 = vst.msk [vmem:[#allocation2 + $0x269] sm:$0x1] %vm48, 0.0
    %111 = vst.msk [vmem:[#allocation2 + $0x281] sm:$0x1] %vm48, 0.0
    %112 = vst.msk [vmem:[#allocation2 + $0x299] sm:$0x1] %vm48, 0.0
    %113 = vst.msk [vmem:[#allocation2 + $0x2b1] sm:$0x1] %vm48, 0.0
    %114 = vst.msk [vmem:[#allocation2 + $0x2c9] sm:$0x1] %vm48, 0.0
    %115 = vst.msk [vmem:[#allocation2 + $0x2e1] sm:$0x1] %vm48, 0.0
    %116 = vst.msk [vmem:[#allocation2 + $0x2f9] sm:$0x1] %vm48, 0.0
    %117 = vst.msk [vmem:[#allocation2 + $0x311] sm:$0x1] %vm48, 0.0
    %118 = vst.msk [vmem:[#allocation2 + $0x329] sm:$0x1] %vm48, 0.0
    %119 = vst.msk [vmem:[#allocation2 + $0x341] sm:$0x1] %vm48, 0.0
    %120 = vst.msk [vmem:[#allocation2 + $0x359] sm:$0x1] %vm48, 0.0
    %v121 = vld [vmem:[%s0] sm:$0xff]
    %v122 = vld [vmem:[%s0 + $0x8] sm:$0xff]
    %v123 = vld [vmem:[%s0 + $0x10] sm:$0xff]
    %v124 = vld [vmem:[%s0 + $0x18] sm:$0xff]
    %v125 = vld [vmem:[%s0 + $0x20] sm:$0xff]
    %v126 = vld [vmem:[%s0 + $0x28] sm:$0xff]
    %v127 = vld [vmem:[%s0 + $0x30] sm:$0xff]
    %v128 = vld [vmem:[%s0 + $0x38] sm:$0xff]
    %v129 = vld [vmem:[%s0 + $0x40] sm:$0xff]
    %v130 = vld [vmem:[%s0 + $0x48] sm:$0xff]
    %v131 = vld [vmem:[%s0 + $0x50] sm:$0xff]
    %v132 = vld [vmem:[%s0 + $0x58] sm:$0xff]
    %v133 = vld [vmem:[%s0 + $0x60] sm:$0xff]
    %v134 = vld [vmem:[%s0 + $0x68] sm:$0xff]
    %v135 = vld [vmem:[%s0 + $0x70] sm:$0xff]
    %v136 = vld [vmem:[%s0 + $0x78] sm:$0xff]
    %v137 = vld [vmem:[%s0 + $0x80] sm:$0xff]
    %v138 = vld [vmem:[%s0 + $0x88] sm:$0xff]
    %v139 = vld [vmem:[%s0 + $0x90] sm:$0xff]
    %v140 = vld [vmem:[%s0 + $0x98] sm:$0xff]
    %v141 = vld [vmem:[%s0 + $0xa0] sm:$0xff]
    %v142 = vld [vmem:[%s0 + $0xa8] sm:$0xff]
    %v143 = vld [vmem:[%s0 + $0xb0] sm:$0xff]
    %v144 = vld [vmem:[%s0 + $0xb8] sm:$0xff]
    %v145 = vld [vmem:[%s0 + $0xc0] sm:$0xff]
    %v146 = vld [vmem:[%s0 + $0xc8] sm:$0xff]
    %v147 = vld [vmem:[%s0 + $0xd0] sm:$0xff]
    %v148 = vld [vmem:[%s0 + $0xd8] sm:$0xff]
    %v149 = vld [vmem:[%s0 + $0xe0] sm:$0xff]
    %v150 = vld [vmem:[%s0 + $0xe8] sm:$0xff]
    %v151 = vld [vmem:[%s0 + $0xf0] sm:$0xff]
    %v152 = vld [vmem:[%s0 + $0xf8] sm:$0xff]
    %v153 = vld [vmem:[%s0 + $0x100] sm:$0xff]
    %v154 = vld [vmem:[%s0 + $0x108] sm:$0xff]
    %v155 = vld [vmem:[%s0 + $0x110] sm:$0xff]
    %v156 = vld [vmem:[%s0 + $0x118] sm:$0xff]
    %v157 = vld [vmem:[%s0 + $0x120] sm:$0xff]
    %v158 = vld [vmem:[%s0 + $0x128] sm:$0xff]
    %v159 = vld [vmem:[%s0 + $0x130] sm:$0xff]
    %v160 = vld [vmem:[%s0 + $0x138] sm:$0xff]
    %v161 = vld [vmem:[%s0 + $0x140] sm:$0xff]
    %v162 = vld [vmem:[%s0 + $0x148] sm:$0xff]
    %v163 = vld [vmem:[%s0 + $0x150] sm:$0xff]
    %v164 = vld [vmem:[%s0 + $0x158] sm:$0xff]
    %v165 = vld [vmem:[%s0 + $0x160] sm:$0xff]
    %v166 = vld [vmem:[%s0 + $0x168] sm:$0xff]
    %v167 = vld [vmem:[%s0 + $0x170] sm:$0xff]
    %v168 = vld [vmem:[%s0 + $0x178] sm:$0xff]
    %v169 = vld [vmem:[%s0 + $0x180] sm:$0xff]
    %v170 = vld [vmem:[%s0 + $0x188] sm:$0xff]
    %v171 = vld [vmem:[%s0 + $0x190] sm:$0xff]
    %v172 = vld [vmem:[%s0 + $0x198] sm:$0xff]
    %v173 = vld [vmem:[%s0 + $0x1a0] sm:$0xff]
    %v174 = vld [vmem:[%s0 + $0x1a8] sm:$0xff]
    %v175 = vld [vmem:[%s0 + $0x1b0] sm:$0xff]
    %v176 = vld [vmem:[%s0 + $0x1b8] sm:$0xff]
    %v177 = vld [vmem:[%s0 + $0x1c0] sm:$0xff]
    %v178 = vld [vmem:[%s0 + $0x1c8] sm:$0xff]
    %v179 = vld [vmem:[%s0 + $0x1d0] sm:$0xff]
    %v180 = vld [vmem:[%s0 + $0x1d8] sm:$0xff]
    %v181 = vld [vmem:[%s0 + $0x1e0] sm:$0xff]
    %v182 = vld [vmem:[%s0 + $0x1e8] sm:$0xff]
    %v183 = vld [vmem:[%s0 + $0x1f0] sm:$0xff]
    %v184 = vld [vmem:[%s0 + $0x1f8] sm:$0xff]
    %v185 = vperm.slane %v31, 0
    %v186 = vmul.f32 %v121, %v185
    %v187 = vmul.f32 %v122, %v185
    %v188 = vmul.f32 %v123, %v185
    %v189 = vmul.f32 %v124, %v185
    %v190 = vmul.f32 %v125, %v185
    %v191 = vmul.f32 %v126, %v185
    %v192 = vmul.f32 %v127, %v185
    %v193 = vmul.f32 %v128, %v185
    %v194 = vmul.f32 %v129, %v185
    %v195 = vmul.f32 %v130, %v185
    %v196 = vmul.f32 %v131, %v185
    %v197 = vmul.f32 %v132, %v185
    %v198 = vmul.f32 %v133, %v185
    %v199 = vmul.f32 %v134, %v185
    %v200 = vmul.f32 %v135, %v185
    %v201 = vmul.f32 %v136, %v185
    %v202 = vmul.f32 %v137, %v185
    %v203 = vmul.f32 %v138, %v185
    %v204 = vmul.f32 %v139, %v185
    %v205 = vmul.f32 %v140, %v185
    %v206 = vmul.f32 %v141, %v185
    %v207 = vmul.f32 %v142, %v185
    %v208 = vmul.f32 %v143, %v185
    %v209 = vmul.f32 %v144, %v185
    %v210 = vmul.f32 %v145, %v185
    %v211 = vmul.f32 %v146, %v185
    %v212 = vmul.f32 %v147, %v185
    %v213 = vmul.f32 %v148, %v185
    %v214 = vmul.f32 %v149, %v185
    %v215 = vmul.f32 %v150, %v185
    %v216 = vmul.f32 %v151, %v185
    %v217 = vmul.f32 %v152, %v185
    %v218 = vmul.f32 %v153, %v185
    %v219 = vmul.f32 %v154, %v185
    %v220 = vmul.f32 %v155, %v185
    %v221 = vmul.f32 %v156, %v185
    %v222 = vmul.f32 %v157, %v185
    %v223 = vmul.f32 %v158, %v185
    %v224 = vmul.f32 %v159, %v185
    %v225 = vmul.f32 %v160, %v185
    %v226 = vmul.f32 %v161, %v185
    %v227 = vmul.f32 %v162, %v185
    %v228 = vmul.f32 %v163, %v185
    %v229 = vmul.f32 %v164, %v185
    %v230 = vmul.f32 %v165, %v185
    %v231 = vmul.f32 %v166, %v185
    %v232 = vmul.f32 %v167, %v185
    %v233 = vmul.f32 %v168, %v185
    %v234 = vmul.f32 %v169, %v185
    %v235 = vmul.f32 %v170, %v185
    %v236 = vmul.f32 %v171, %v185
    %v237 = vmul.f32 %v172, %v185
    %v238 = vmul.f32 %v173, %v185
    %v239 = vmul.f32 %v174, %v185
    %v240 = vmul.f32 %v175, %v185
    %v241 = vmul.f32 %v176, %v185
    %v242 = vmul.f32 %v177, %v185
    %v243 = vmul.f32 %v178, %v185
    %v244 = vmul.f32 %v179, %v185
    %v245 = vmul.f32 %v180, %v185
    %v246 = vmul.f32 %v181, %v185
    %v247 = vmul.f32 %v182, %v185
    %v248 = vmul.f32 %v183, %v185
    %v249 = vmul.f32 %v184, %v185
    %v250 = vperm.slane %v31, 1
    %v251 = vadd.f32 %v186, %v250
    %v252 = vadd.f32 %v187, %v250
    %v253 = vadd.f32 %v188, %v250
    %v254 = vadd.f32 %v189, %v250
    %v255 = vadd.f32 %v190, %v250
    %v256 = vadd.f32 %v191, %v250
    %v257 = vadd.f32 %v192, %v250
    %v258 = vadd.f32 %v193, %v250
    %v259 = vadd.f32 %v194, %v250
    %v260 = vadd.f32 %v195, %v250
    %v261 = vadd.f32 %v196, %v250
    %v262 = vadd.f32 %v197, %v250
    %v263 = vadd.f32 %v198, %v250
    %v264 = vadd.f32 %v199, %v250
    %v265 = vadd.f32 %v200, %v250
    %v266 = vadd.f32 %v201, %v250
    %v267 = vadd.f32 %v202, %v250
    %v268 = vadd.f32 %v203, %v250
    %v269 = vadd.f32 %v204, %v250
    %v270 = vadd.f32 %v205, %v250
    %v271 = vadd.f32 %v206, %v250
    %v272 = vadd.f32 %v207, %v250
    %v273 = vadd.f32 %v208, %v250
    %v274 = vadd.f32 %v209, %v250
    %v275 = vadd.f32 %v210, %v250
    %v276 = vadd.f32 %v211, %v250
    %v277 = vadd.f32 %v212, %v250
    %v278 = vadd.f32 %v213, %v250
    %v279 = vadd.f32 %v214, %v250
    %v280 = vadd.f32 %v215, %v250
    %v281 = vadd.f32 %v216, %v250
    %v282 = vadd.f32 %v217, %v250
    %v283 = vadd.f32 %v218, %v250
    %v284 = vadd.f32 %v219, %v250
    %v285 = vadd.f32 %v220, %v250
    %v286 = vadd.f32 %v221, %v250
    %v287 = vadd.f32 %v222, %v250
    %v288 = vadd.f32 %v223, %v250
    %v289 = vadd.f32 %v224, %v250
    %v290 = vadd.f32 %v225, %v250
    %v291 = vadd.f32 %v226, %v250
    %v292 = vadd.f32 %v227, %v250
    %v293 = vadd.f32 %v228, %v250
    %v294 = vadd.f32 %v229, %v250
    %v295 = vadd.f32 %v230, %v250
    %v296 = vadd.f32 %v231, %v250
    %v297 = vadd.f32 %v232, %v250
    %v298 = vadd.f32 %v233, %v250
    %v299 = vadd.f32 %v234, %v250
    %v300 = vadd.f32 %v235, %v250
    %v301 = vadd.f32 %v236, %v250
    %v302 = vadd.f32 %v237, %v250
    %v303 = vadd.f32 %v238, %v250
    %v304 = vadd.f32 %v239, %v250
    %v305 = vadd.f32 %v240, %v250
    %v306 = vadd.f32 %v241, %v250
    %v307 = vadd.f32 %v242, %v250
    %v308 = vadd.f32 %v243, %v250
    %v309 = vadd.f32 %v244, %v250
    %v310 = vadd.f32 %v245, %v250
    %v311 = vadd.f32 %v246, %v250
    %v312 = vadd.f32 %v247, %v250
    %v313 = vadd.f32 %v248, %v250
    %v314 = vadd.f32 %v249, %v250
    %s315 = scalar_lea.vmem [#allocation2], 24
    %316 = vst.msk [vmem:[%s315 + $0x1] sm:$0xff] %vm33, %v251
    %317 = vst.msk [vmem:[%s315 + $0x9] sm:$0xff] %vm33, %v252
    %318 = vst.msk [vmem:[%s315 + $0x19] sm:$0xff] %vm33, %v253
    %319 = vst.msk [vmem:[%s315 + $0x21] sm:$0xff] %vm33, %v254
    %320 = vst.msk [vmem:[%s315 + $0x31] sm:$0xff] %vm33, %v255
    %321 = vst.msk [vmem:[%s315 + $0x39] sm:$0xff] %vm33, %v256
    %322 = vst.msk [vmem:[%s315 + $0x49] sm:$0xff] %vm33, %v257
    %323 = vst.msk [vmem:[%s315 + $0x51] sm:$0xff] %vm33, %v258
    %324 = vst.msk [vmem:[%s315 + $0x61] sm:$0xff] %vm33, %v259
    %325 = vst.msk [vmem:[%s315 + $0x69] sm:$0xff] %vm33, %v260
    %326 = vst.msk [vmem:[%s315 + $0x79] sm:$0xff] %vm33, %v261
    %327 = vst.msk [vmem:[%s315 + $0x81] sm:$0xff] %vm33, %v262
    %328 = vst.msk [vmem:[%s315 + $0x91] sm:$0xff] %vm33, %v263
    %329 = vst.msk [vmem:[%s315 + $0x99] sm:$0xff] %vm33, %v264
    %330 = vst.msk [vmem:[%s315 + $0xa9] sm:$0xff] %vm33, %v265
    %331 = vst.msk [vmem:[%s315 + $0xb1] sm:$0xff] %vm33, %v266
    %332 = vst.msk [vmem:[%s315 + $0xc1] sm:$0xff] %vm33, %v267
    %333 = vst.msk [vmem:[%s315 + $0xc9] sm:$0xff] %vm33, %v268
    %334 = vst.msk [vmem:[%s315 + $0xd9] sm:$0xff] %vm33, %v269
    %335 = vst.msk [vmem:[%s315 + $0xe1] sm:$0xff] %vm33, %v270
    %336 = vst.msk [vmem:[%s315 + $0xf1] sm:$0xff] %vm33, %v271
    %337 = vst.msk [vmem:[%s315 + $0xf9] sm:$0xff] %vm33, %v272
    %338 = vst.msk [vmem:[%s315 + $0x109] sm:$0xff] %vm33, %v273
    %339 = vst.msk [vmem:[%s315 + $0x111] sm:$0xff] %vm33, %v274
    %340 = vst.msk [vmem:[%s315 + $0x121] sm:$0xff] %vm33, %v275
    %341 = vst.msk [vmem:[%s315 + $0x129] sm:$0xff] %vm33, %v276
    %342 = vst.msk [vmem:[%s315 + $0x139] sm:$0xff] %vm33, %v277
    %343 = vst.msk [vmem:[%s315 + $0x141] sm:$0xff] %vm33, %v278
    %344 = vst.msk [vmem:[%s315 + $0x151] sm:$0xff] %vm33, %v279
    %345 = vst.msk [vmem:[%s315 + $0x159] sm:$0xff] %vm33, %v280
    %346 = vst.msk [vmem:[%s315 + $0x169] sm:$0xff] %vm33, %v281
    %347 = vst.msk [vmem:[%s315 + $0x171] sm:$0xff] %vm33, %v282
    %348 = vst.msk [vmem:[%s315 + $0x1b1] sm:$0xff] %vm33, %v283
    %349 = vst.msk [vmem:[%s315 + $0x1b9] sm:$0xff] %vm33, %v284
    %350 = vst.msk [vmem:[%s315 + $0x1c9] sm:$0xff] %vm33, %v285
    %351 = vst.msk [vmem:[%s315 + $0x1d1] sm:$0xff] %vm33, %v286
    %352 = vst.msk [vmem:[%s315 + $0x1e1] sm:$0xff] %vm33, %v287
    %353 = vst.msk [vmem:[%s315 + $0x1e9] sm:$0xff] %vm33, %v288
    %354 = vst.msk [vmem:[%s315 + $0x1f9] sm:$0xff] %vm33, %v289
    %355 = vst.msk [vmem:[%s315 + $0x201] sm:$0xff] %vm33, %v290
    %356 = vst.msk [vmem:[%s315 + $0x211] sm:$0xff] %vm33, %v291
    %357 = vst.msk [vmem:[%s315 + $0x219] sm:$0xff] %vm33, %v292
    %358 = vst.msk [vmem:[%s315 + $0x229] sm:$0xff] %vm33, %v293
    %359 = vst.msk [vmem:[%s315 + $0x231] sm:$0xff] %vm33, %v294
    %360 = vst.msk [vmem:[%s315 + $0x241] sm:$0xff] %vm33, %v295
    %361 = vst.msk [vmem:[%s315 + $0x249] sm:$0xff] %vm33, %v296
    %362 = vst.msk [vmem:[%s315 + $0x259] sm:$0xff] %vm33, %v297
    %363 = vst.msk [vmem:[%s315 + $0x261] sm:$0xff] %vm33, %v298
    %364 = vst.msk [vmem:[%s315 + $0x271] sm:$0xff] %vm33, %v299
    %365 = vst.msk [vmem:[%s315 + $0x279] sm:$0xff] %vm33, %v300
    %366 = vst.msk [vmem:[%s315 + $0x289] sm:$0xff] %vm33, %v301
    %367 = vst.msk [vmem:[%s315 + $0x291] sm:$0xff] %vm33, %v302
    %368 = vst.msk [vmem:[%s315 + $0x2a1] sm:$0xff] %vm33, %v303
    %369 = vst.msk [vmem:[%s315 + $0x2a9] sm:$0xff] %vm33, %v304
    %370 = vst.msk [vmem:[%s315 + $0x2b9] sm:$0xff] %vm33, %v305
    %371 = vst.msk [vmem:[%s315 + $0x2c1] sm:$0xff] %vm33, %v306
    %372 = vst.msk [vmem:[%s315 + $0x2d1] sm:$0xff] %vm33, %v307
    %373 = vst.msk [vmem:[%s315 + $0x2d9] sm:$0xff] %vm33, %v308
    %374 = vst.msk [vmem:[%s315 + $0x2e9] sm:$0xff] %vm33, %v309
    %375 = vst.msk [vmem:[%s315 + $0x2f1] sm:$0xff] %vm33, %v310
    %376 = vst.msk [vmem:[%s315 + $0x301] sm:$0xff] %vm33, %v311
    %377 = vst.msk [vmem:[%s315 + $0x309] sm:$0xff] %vm33, %v312
    %378 = vst.msk [vmem:[%s315 + $0x319] sm:$0xff] %vm33, %v313
    %379 = vst.msk [vmem:[%s315 + $0x321] sm:$0xff] %vm33, %v314
    %v380 = vld [vmem:[#allocation2] sm:$0xff]
    %v381 = vld [vmem:[#allocation2 + $0x8] sm:$0xff]
    %v382 = vld [vmem:[#allocation2 + $0x18] sm:$0xff]
    %v383 = vld [vmem:[#allocation2 + $0x20] sm:$0xff]
    %v384 = vld [vmem:[#allocation2 + $0x30] sm:$0xff]
    %v385 = vld [vmem:[#allocation2 + $0x38] sm:$0xff]
    %v386 = vld [vmem:[#allocation2 + $0x48] sm:$0xff]
    %v387 = vld [vmem:[#allocation2 + $0x50] sm:$0xff]
    %v388 = vld [vmem:[#allocation2 + $0x60] sm:$0xff]
    %v389 = vld [vmem:[#allocation2 + $0x68] sm:$0xff]
    %v390 = vld [vmem:[#allocation2 + $0x78] sm:$0xff]
    %v391 = vld [vmem:[#allocation2 + $0x80] sm:$0xff]
    %v392 = vld [vmem:[#allocation2 + $0x90] sm:$0xff]
    %v393 = vld [vmem:[#allocation2 + $0x98] sm:$0xff]
    %v394 = vld [vmem:[#allocation2 + $0xa8] sm:$0xff]
    %v395 = vld [vmem:[#allocation2 + $0xb0] sm:$0xff]
    %v396 = vld [vmem:[#allocation2 + $0xc0] sm:$0xff]
    %v397 = vld [vmem:[#allocation2 + $0xc8] sm:$0xff]
    %v398 = vld [vmem:[#allocation2 + $0xd8] sm:$0xff]
    %v399 = vld [vmem:[#allocation2 + $0xe0] sm:$0xff]
    %v400 = vld [vmem:[#allocation2 + $0xf0] sm:$0xff]
    %v401 = vld [vmem:[#allocation2 + $0xf8] sm:$0xff]
    %v402 = vld [vmem:[#allocation2 + $0x108] sm:$0xff]
    %v403 = vld [vmem:[#allocation2 + $0x110] sm:$0xff]
    %v404 = vld [vmem:[#allocation2 + $0x120] sm:$0xff]
    %v405 = vld [vmem:[#allocation2 + $0x128] sm:$0xff]
    %v406 = vld [vmem:[#allocation2 + $0x138] sm:$0xff]
    %v407 = vld [vmem:[#allocation2 + $0x140] sm:$0xff]
    %v408 = vld [vmem:[#allocation2 + $0x150] sm:$0xff]
    %v409 = vld [vmem:[#allocation2 + $0x158] sm:$0xff]
    %v410 = vld [vmem:[#allocation2 + $0x168] sm:$0xff]
    %v411 = vld [vmem:[#allocation2 + $0x170] sm:$0xff]
    %v412 = vld [vmem:[#allocation2 + $0x1b0] sm:$0xff]
    %v413 = vld [vmem:[#allocation2 + $0x1b8] sm:$0xff]
    %v414 = vld [vmem:[#allocation2 + $0x1c8] sm:$0xff]
    %v415 = vld [vmem:[#allocation2 + $0x1d0] sm:$0xff]
    %v416 = vld [vmem:[#allocation2 + $0x1e0] sm:$0xff]
    %v417 = vld [vmem:[#allocation2 + $0x1e8] sm:$0xff]
    %v418 = vld [vmem:[#allocation2 + $0x1f8] sm:$0xff]
    %v419 = vld [vmem:[#allocation2 + $0x200] sm:$0xff]
    %v420 = vld [vmem:[#allocation2 + $0x210] sm:$0xff]
    %v421 = vld [vmem:[#allocation2 + $0x218] sm:$0xff]
    %v422 = vld [vmem:[#allocation2 + $0x228] sm:$0xff]
    %v423 = vld [vmem:[#allocation2 + $0x230] sm:$0xff]
    %v424 = vld [vmem:[#allocation2 + $0x240] sm:$0xff]
    %v425 = vld [vmem:[#allocation2 + $0x248] sm:$0xff]
    %v426 = vld [vmem:[#allocation2 + $0x258] sm:$0xff]
    %v427 = vld [vmem:[#allocation2 + $0x260] sm:$0xff]
    %v428 = vld [vmem:[#allocation2 + $0x270] sm:$0xff]
    %v429 = vld [vmem:[#allocation2 + $0x278] sm:$0xff]
    %v430 = vld [vmem:[#allocation2 + $0x288] sm:$0xff]
    %v431 = vld [vmem:[#allocation2 + $0x290] sm:$0xff]
    %v432 = vld [vmem:[#allocation2 + $0x2a0] sm:$0xff]
    %v433 = vld [vmem:[#allocation2 + $0x2a8] sm:$0xff]
    %v434 = vld [vmem:[#allocation2 + $0x2b8] sm:$0xff]
    %v435 = vld [vmem:[#allocation2 + $0x2c0] sm:$0xff]
    %v436 = vld [vmem:[#allocation2 + $0x2d0] sm:$0xff]
    %v437 = vld [vmem:[#allocation2 + $0x2d8] sm:$0xff]
    %v438 = vld [vmem:[#allocation2 + $0x2e8] sm:$0xff]
    %v439 = vld [vmem:[#allocation2 + $0x2f0] sm:$0xff]
    %v440 = vld [vmem:[#allocation2 + $0x300] sm:$0xff]
    %v441 = vld [vmem:[#allocation2 + $0x308] sm:$0xff]
    %v442 = vld [vmem:[#allocation2 + $0x318] sm:$0xff]
    %v443 = vld [vmem:[#allocation2 + $0x320] sm:$0xff]
    %v444 = vpack.c.bf16 %v380, %v380
    %v445 = vpack.c.bf16 %v381, %v381
    %v446 = vpack.c.bf16 %v382, %v382
    %v447 = vpack.c.bf16 %v383, %v383
    %v448 = vpack.c.bf16 %v384, %v384
    %v449 = vpack.c.bf16 %v385, %v385
    %v450 = vpack.c.bf16 %v386, %v386
    %v451 = vpack.c.bf16 %v387, %v387
    %v452 = vpack.c.bf16 %v388, %v388
    %v453 = vpack.c.bf16 %v389, %v389
    %v454 = vpack.c.bf16 %v390, %v390
    %v455 = vpack.c.bf16 %v391, %v391
    %v456 = vpack.c.bf16 %v392, %v392
    %v457 = vpack.c.bf16 %v393, %v393
    %v458 = vpack.c.bf16 %v394, %v394
    %v459 = vpack.c.bf16 %v395, %v395
    %v460 = vpack.c.bf16 %v396, %v396
    %v461 = vpack.c.bf16 %v397, %v397
    %v462 = vpack.c.bf16 %v398, %v398
    %v463 = vpack.c.bf16 %v399, %v399
    %v464 = vpack.c.bf16 %v400, %v400
    %v465 = vpack.c.bf16 %v401, %v401
    %v466 = vpack.c.bf16 %v402, %v402
    %v467 = vpack.c.bf16 %v403, %v403
    %v468 = vpack.c.bf16 %v404, %v404
    %v469 = vpack.c.bf16 %v405, %v405
    %v470 = vpack.c.bf16 %v406, %v406
    %v471 = vpack.c.bf16 %v407, %v407
    %v472 = vpack.c.bf16 %v408, %v408
    %v473 = vpack.c.bf16 %v409, %v409
    %v474 = vpack.c.bf16 %v410, %v410
    %v475 = vpack.c.bf16 %v411, %v411
    %v476 = vpack.c.bf16 %v412, %v412
    %v477 = vpack.c.bf16 %v413, %v413
    %v478 = vpack.c.bf16 %v414, %v414
    %v479 = vpack.c.bf16 %v415, %v415
    %v480 = vpack.c.bf16 %v416, %v416
    %v481 = vpack.c.bf16 %v417, %v417
    %v482 = vpack.c.bf16 %v418, %v418
    %v483 = vpack.c.bf16 %v419, %v419
    %v484 = vpack.c.bf16 %v420, %v420
    %v485 = vpack.c.bf16 %v421, %v421
    %v486 = vpack.c.bf16 %v422, %v422
    %v487 = vpack.c.bf16 %v423, %v423
    %v488 = vpack.c.bf16 %v424, %v424
    %v489 = vpack.c.bf16 %v425, %v425
    %v490 = vpack.c.bf16 %v426, %v426
    %v491 = vpack.c.bf16 %v427, %v427
    %v492 = vpack.c.bf16 %v428, %v428
    %v493 = vpack.c.bf16 %v429, %v429
    %v494 = vpack.c.bf16 %v430, %v430
    %v495 = vpack.c.bf16 %v431, %v431
    %v496 = vpack.c.bf16 %v432, %v432
    %v497 = vpack.c.bf16 %v433, %v433
    %v498 = vpack.c.bf16 %v434, %v434
    %v499 = vpack.c.bf16 %v435, %v435
    %v500 = vpack.c.bf16 %v436, %v436
    %v501 = vpack.c.bf16 %v437, %v437
    %v502 = vpack.c.bf16 %v438, %v438
    %v503 = vpack.c.bf16 %v439, %v439
    %v504 = vpack.c.bf16 %v440, %v440
    %v505 = vpack.c.bf16 %v441, %v441
    %v506 = vpack.c.bf16 %v442, %v442
    %v507 = vpack.c.bf16 %v443, %v443
    %vm508 = vcmask 257024
    %509 = vst.msk [vmem:[#allocation4] sm:$0xf] %vm508, %v444
    %510 = vst.msk [vmem:[#allocation4 + $0xc] sm:$0xf] %vm508, %v445
    %511 = vst.msk [vmem:[#allocation4 + $0x18] sm:$0xf] %vm508, %v446
    %512 = vst.msk [vmem:[#allocation4 + $0x24] sm:$0xf] %vm508, %v447
    %513 = vst.msk [vmem:[#allocation4 + $0x30] sm:$0xf] %vm508, %v448
    %514 = vst.msk [vmem:[#allocation4 + $0x3c] sm:$0xf] %vm508, %v449
    %515 = vst.msk [vmem:[#allocation4 + $0x48] sm:$0xf] %vm508, %v450
    %516 = vst.msk [vmem:[#allocation4 + $0x54] sm:$0xf] %vm508, %v451
    %517 = vst.msk [vmem:[#allocation4 + $0x60] sm:$0xf] %vm508, %v452
    %518 = vst.msk [vmem:[#allocation4 + $0x6c] sm:$0xf] %vm508, %v453
    %519 = vst.msk [vmem:[#allocation4 + $0x78] sm:$0xf] %vm508, %v454
    %520 = vst.msk [vmem:[#allocation4 + $0x84] sm:$0xf] %vm508, %v455
    %521 = vst.msk [vmem:[#allocation4 + $0x90] sm:$0xf] %vm508, %v456
    %522 = vst.msk [vmem:[#allocation4 + $0x9c] sm:$0xf] %vm508, %v457
    %523 = vst.msk [vmem:[#allocation4 + $0xa8] sm:$0xf] %vm508, %v458
    %524 = vst.msk [vmem:[#allocation4 + $0xb4] sm:$0xf] %vm508, %v459
    %525 = vst.msk [vmem:[#allocation4 + $0xc0] sm:$0xf] %vm508, %v460
    %526 = vst.msk [vmem:[#allocation4 + $0xcc] sm:$0xf] %vm508, %v461
    %527 = vst.msk [vmem:[#allocation4 + $0xd8] sm:$0xf] %vm508, %v462
    %528 = vst.msk [vmem:[#allocation4 + $0xe4] sm:$0xf] %vm508, %v463
    %529 = vst.msk [vmem:[#allocation4 + $0xf0] sm:$0xf] %vm508, %v464
    %530 = vst.msk [vmem:[#allocation4 + $0xfc] sm:$0xf] %vm508, %v465
    %531 = vst.msk [vmem:[#allocation4 + $0x108] sm:$0xf] %vm508, %v466
    %532 = vst.msk [vmem:[#allocation4 + $0x114] sm:$0xf] %vm508, %v467
    %533 = vst.msk [vmem:[#allocation4 + $0x120] sm:$0xf] %vm508, %v468
    %534 = vst.msk [vmem:[#allocation4 + $0x12c] sm:$0xf] %vm508, %v469
    %535 = vst.msk [vmem:[#allocation4 + $0x138] sm:$0xf] %vm508, %v470
    %536 = vst.msk [vmem:[#allocation4 + $0x144] sm:$0xf] %vm508, %v471
    %537 = vst.msk [vmem:[#allocation4 + $0x150] sm:$0xf] %vm508, %v472
    %538 = vst.msk [vmem:[#allocation4 + $0x15c] sm:$0xf] %vm508, %v473
    %539 = vst.msk [vmem:[#allocation4 + $0x168] sm:$0xf] %vm508, %v474
    %540 = vst.msk [vmem:[#allocation4 + $0x174] sm:$0xf] %vm508, %v475
    %541 = vst.msk [vmem:[#allocation4 + $0x180] sm:$0xf] %vm508, %v476
    %542 = vst.msk [vmem:[#allocation4 + $0x18c] sm:$0xf] %vm508, %v477
    %543 = vst.msk [vmem:[#allocation4 + $0x198] sm:$0xf] %vm508, %v478
    %544 = vst.msk [vmem:[#allocation4 + $0x1a4] sm:$0xf] %vm508, %v479
    %545 = vst.msk [vmem:[#allocation4 + $0x1b0] sm:$0xf] %vm508, %v480
    %546 = vst.msk [vmem:[#allocation4 + $0x1bc] sm:$0xf] %vm508, %v481
    %547 = vst.msk [vmem:[#allocation4 + $0x1c8] sm:$0xf] %vm508, %v482
    %548 = vst.msk [vmem:[#allocation4 + $0x1d4] sm:$0xf] %vm508, %v483
    %549 = vst.msk [vmem:[#allocation4 + $0x1e0] sm:$0xf] %vm508, %v484
    %550 = vst.msk [vmem:[#allocation4 + $0x1ec] sm:$0xf] %vm508, %v485
    %551 = vst.msk [vmem:[#allocation4 + $0x1f8] sm:$0xf] %vm508, %v486
    %552 = vst.msk [vmem:[#allocation4 + $0x204] sm:$0xf] %vm508, %v487
    %553 = vst.msk [vmem:[#allocation4 + $0x210] sm:$0xf] %vm508, %v488
    %554 = vst.msk [vmem:[#allocation4 + $0x21c] sm:$0xf] %vm508, %v489
    %555 = vst.msk [vmem:[#allocation4 + $0x228] sm:$0xf] %vm508, %v490
    %556 = vst.msk [vmem:[#allocation4 + $0x234] sm:$0xf] %vm508, %v491
    %557 = vst.msk [vmem:[#allocation4 + $0x240] sm:$0xf] %vm508, %v492
    %558 = vst.msk [vmem:[#allocation4 + $0x24c] sm:$0xf] %vm508, %v493
    %559 = vst.msk [vmem:[#allocation4 + $0x258] sm:$0xf] %vm508, %v494
    %560 = vst.msk [vmem:[#allocation4 + $0x264] sm:$0xf] %vm508, %v495
    %561 = vst.msk [vmem:[#allocation4 + $0x270] sm:$0xf] %vm508, %v496
    %562 = vst.msk [vmem:[#allocation4 + $0x27c] sm:$0xf] %vm508, %v497
    %563 = vst.msk [vmem:[#allocation4 + $0x288] sm:$0xf] %vm508, %v498
    %564 = vst.msk [vmem:[#allocation4 + $0x294] sm:$0xf] %vm508, %v499
    %565 = vst.msk [vmem:[#allocation4 + $0x2a0] sm:$0xf] %vm508, %v500
    %566 = vst.msk [vmem:[#allocation4 + $0x2ac] sm:$0xf] %vm508, %v501
    %567 = vst.msk [vmem:[#allocation4 + $0x2b8] sm:$0xf] %vm508, %v502
    %568 = vst.msk [vmem:[#allocation4 + $0x2c4] sm:$0xf] %vm508, %v503
    %569 = vst.msk [vmem:[#allocation4 + $0x2d0] sm:$0xf] %vm508, %v504
    %570 = vst.msk [vmem:[#allocation4 + $0x2dc] sm:$0xf] %vm508, %v505
    %571 = vst.msk [vmem:[#allocation4 + $0x2e8] sm:$0xf] %vm508, %v506
    %572 = vst.msk [vmem:[#allocation4 + $0x2f4] sm:$0xf] %vm508, %v507
    %v573 = vld [vmem:[#allocation2 + $0x1] sm:$0xff]
    %v574 = vld [vmem:[#allocation2 + $0x9] sm:$0xff]
    %v575 = vld [vmem:[#allocation2 + $0x19] sm:$0xff]
    %v576 = vld [vmem:[#allocation2 + $0x21] sm:$0xff]
    %v577 = vld [vmem:[#allocation2 + $0x31] sm:$0xff]
    %v578 = vld [vmem:[#allocation2 + $0x39] sm:$0xff]
    %v579 = vld [vmem:[#allocation2 + $0x49] sm:$0xff]
    %v580 = vld [vmem:[#allocation2 + $0x51] sm:$0xff]
    %v581 = vld [vmem:[#allocation2 + $0x61] sm:$0xff]
    %v582 = vld [vmem:[#allocation2 + $0x69] sm:$0xff]
    %v583 = vld [vmem:[#allocation2 + $0x79] sm:$0xff]
    %v584 = vld [vmem:[#allocation2 + $0x81] sm:$0xff]
    %v585 = vld [vmem:[#allocation2 + $0x91] sm:$0xff]
    %v586 = vld [vmem:[#allocation2 + $0x99] sm:$0xff]
    %v587 = vld [vmem:[#allocation2 + $0xa9] sm:$0xff]
    %v588 = vld [vmem:[#allocation2 + $0xb1] sm:$0xff]
    %v589 = vld [vmem:[#allocation2 + $0xc1] sm:$0xff]
    %v590 = vld [vmem:[#allocation2 + $0xc9] sm:$0xff]
    %v591 = vld [vmem:[#allocation2 + $0xd9] sm:$0xff]
    %v592 = vld [vmem:[#allocation2 + $0xe1] sm:$0xff]
    %v593 = vld [vmem:[#allocation2 + $0xf1] sm:$0xff]
    %v594 = vld [vmem:[#allocation2 + $0xf9] sm:$0xff]
    %v595 = vld [vmem:[#allocation2 + $0x109] sm:$0xff]
    %v596 = vld [vmem:[#allocation2 + $0x111] sm:$0xff]
    %v597 = vld [vmem:[#allocation2 + $0x121] sm:$0xff]
    %v598 = vld [vmem:[#allocation2 + $0x129] sm:$0xff]
    %v599 = vld [vmem:[#allocation2 + $0x139] sm:$0xff]
    %v600 = vld [vmem:[#allocation2 + $0x141] sm:$0xff]
    %v601 = vld [vmem:[#allocation2 + $0x151] sm:$0xff]
    %v602 = vld [vmem:[#allocation2 + $0x159] sm:$0xff]
    %v603 = vld [vmem:[#allocation2 + $0x169] sm:$0xff]
    %v604 = vld [vmem:[#allocation2 + $0x171] sm:$0xff]
    %v605 = vld [vmem:[#allocation2 + $0x1b1] sm:$0xff]
    %v606 = vld [vmem:[#allocation2 + $0x1b9] sm:$0xff]
    %v607 = vld [vmem:[#allocation2 + $0x1c9] sm:$0xff]
    %v608 = vld [vmem:[#allocation2 + $0x1d1] sm:$0xff]
    %v609 = vld [vmem:[#allocation2 + $0x1e1] sm:$0xff]
    %v610 = vld [vmem:[#allocation2 + $0x1e9] sm:$0xff]
    %v611 = vld [vmem:[#allocation2 + $0x1f9] sm:$0xff]
    %v612 = vld [vmem:[#allocation2 + $0x201] sm:$0xff]
    %v613 = vld [vmem:[#allocation2 + $0x211] sm:$0xff]
    %v614 = vld [vmem:[#allocation2 + $0x219] sm:$0xff]
    %v615 = vld [vmem:[#allocation2 + $0x229] sm:$0xff]
    %v616 = vld [vmem:[#allocation2 + $0x231] sm:$0xff]
    %v617 = vld [vmem:[#allocation2 + $0x241] sm:$0xff]
    %v618 = vld [vmem:[#allocation2 + $0x249] sm:$0xff]
    %v619 = vld [vmem:[#allocation2 + $0x259] sm:$0xff]
    %v620 = vld [vmem:[#allocation2 + $0x261] sm:$0xff]
    %v621 = vld [vmem:[#allocation2 + $0x271] sm:$0xff]
    %v622 = vld [vmem:[#allocation2 + $0x279] sm:$0xff]
    %v623 = vld [vmem:[#allocation2 + $0x289] sm:$0xff]
    %v624 = vld [vmem:[#allocation2 + $0x291] sm:$0xff]
    %v625 = vld [vmem:[#allocation2 + $0x2a1] sm:$0xff]
    %v626 = vld [vmem:[#allocation2 + $0x2a9] sm:$0xff]
    %v627 = vld [vmem:[#allocation2 + $0x2b9] sm:$0xff]
    %v628 = vld [vmem:[#allocation2 + $0x2c1] sm:$0xff]
    %v629 = vld [vmem:[#allocation2 + $0x2d1] sm:$0xff]
    %v630 = vld [vmem:[#allocation2 + $0x2d9] sm:$0xff]
    %v631 = vld [vmem:[#allocation2 + $0x2e9] sm:$0xff]
    %v632 = vld [vmem:[#allocation2 + $0x2f1] sm:$0xff]
    %v633 = vld [vmem:[#allocation2 + $0x301] sm:$0xff]
    %v634 = vld [vmem:[#allocation2 + $0x309] sm:$0xff]
    %v635 = vld [vmem:[#allocation2 + $0x319] sm:$0xff]
    %v636 = vld [vmem:[#allocation2 + $0x321] sm:$0xff]
    %v637 = vpack.c.bf16 %v573, %v573
    %v638 = vpack.c.bf16 %v574, %v574
    %v639 = vpack.c.bf16 %v575, %v575
    %v640 = vpack.c.bf16 %v576, %v576
    %v641 = vpack.c.bf16 %v577, %v577
    %v642 = vpack.c.bf16 %v578, %v578
    %v643 = vpack.c.bf16 %v579, %v579
    %v644 = vpack.c.bf16 %v580, %v580
    %v645 = vpack.c.bf16 %v581, %v581
    %v646 = vpack.c.bf16 %v582, %v582
    %v647 = vpack.c.bf16 %v583, %v583
    %v648 = vpack.c.bf16 %v584, %v584
    %v649 = vpack.c.bf16 %v585, %v585
    %v650 = vpack.c.bf16 %v586, %v586
    %v651 = vpack.c.bf16 %v587, %v587
    %v652 = vpack.c.bf16 %v588, %v588
    %v653 = vpack.c.bf16 %v589, %v589
    %v654 = vpack.c.bf16 %v590, %v590
    %v655 = vpack.c.bf16 %v591, %v591
    %v656 = vpack.c.bf16 %v592, %v592
    %v657 = vpack.c.bf16 %v593, %v593
    %v658 = vpack.c.bf16 %v594, %v594
    %v659 = vpack.c.bf16 %v595, %v595
    %v660 = vpack.c.bf16 %v596, %v596
    %v661 = vpack.c.bf16 %v597, %v597
    %v662 = vpack.c.bf16 %v598, %v598
    %v663 = vpack.c.bf16 %v599, %v599
    %v664 = vpack.c.bf16 %v600, %v600
    %v665 = vpack.c.bf16 %v601, %v601
    %v666 = vpack.c.bf16 %v602, %v602
    %v667 = vpack.c.bf16 %v603, %v603
    %v668 = vpack.c.bf16 %v604, %v604
    %v669 = vpack.c.bf16 %v605, %v605
    %v670 = vpack.c.bf16 %v606, %v606
    %v671 = vpack.c.bf16 %v607, %v607
    %v672 = vpack.c.bf16 %v608, %v608
    %v673 = vpack.c.bf16 %v609, %v609
    %v674 = vpack.c.bf16 %v610, %v610
    %v675 = vpack.c.bf16 %v611, %v611
    %v676 = vpack.c.bf16 %v612, %v612
    %v677 = vpack.c.bf16 %v613, %v613
    %v678 = vpack.c.bf16 %v614, %v614
    %v679 = vpack.c.bf16 %v615, %v615
    %v680 = vpack.c.bf16 %v616, %v616
    %v681 = vpack.c.bf16 %v617, %v617
    %v682 = vpack.c.bf16 %v618, %v618
    %v683 = vpack.c.bf16 %v619, %v619
    %v684 = vpack.c.bf16 %v620, %v620
    %v685 = vpack.c.bf16 %v621, %v621
    %v686 = vpack.c.bf16 %v622, %v622
    %v687 = vpack.c.bf16 %v623, %v623
    %v688 = vpack.c.bf16 %v624, %v624
    %v689 = vpack.c.bf16 %v625, %v625
    %v690 = vpack.c.bf16 %v626, %v626
    %v691 = vpack.c.bf16 %v627, %v627
    %v692 = vpack.c.bf16 %v628, %v628
    %v693 = vpack.c.bf16 %v629, %v629
    %v694 = vpack.c.bf16 %v630, %v630
    %v695 = vpack.c.bf16 %v631, %v631
    %v696 = vpack.c.bf16 %v632, %v632
    %v697 = vpack.c.bf16 %v633, %v633
    %v698 = vpack.c.bf16 %v634, %v634
    %v699 = vpack.c.bf16 %v635, %v635
    %v700 = vpack.c.bf16 %v636, %v636
    %765 = vrot.lane.b32.xlu0 %v637, 32
    %v766 = vpop.permute.xlu0 %765
    %767 = vrot.lane.b32.xlu0 %v638, 32
    %v768 = vpop.permute.xlu0 %767
    %769 = vrot.lane.b32.xlu0 %v639, 32
    %v770 = vpop.permute.xlu0 %769
    %771 = vrot.lane.b32.xlu0 %v640, 32
    %v772 = vpop.permute.xlu0 %771
    %773 = vrot.lane.b32.xlu0 %v641, 32
    %v774 = vpop.permute.xlu0 %773
    %775 = vrot.lane.b32.xlu0 %v642, 32
    %v776 = vpop.permute.xlu0 %775
    %777 = vrot.lane.b32.xlu0 %v643, 32
    %v778 = vpop.permute.xlu0 %777
    %779 = vrot.lane.b32.xlu0 %v644, 32
    %v780 = vpop.permute.xlu0 %779
    %781 = vrot.lane.b32.xlu0 %v645, 32
    %v782 = vpop.permute.xlu0 %781
    %783 = vrot.lane.b32.xlu0 %v646, 32
    %v784 = vpop.permute.xlu0 %783
    %785 = vrot.lane.b32.xlu0 %v647, 32
    %v786 = vpop.permute.xlu0 %785
    %787 = vrot.lane.b32.xlu0 %v648, 32
    %v788 = vpop.permute.xlu0 %787
    %789 = vrot.lane.b32.xlu0 %v649, 32
    %v790 = vpop.permute.xlu0 %789
    %791 = vrot.lane.b32.xlu0 %v650, 32
    %v792 = vpop.permute.xlu0 %791
    %793 = vrot.lane.b32.xlu0 %v651, 32
    %v794 = vpop.permute.xlu0 %793
    %795 = vrot.lane.b32.xlu0 %v652, 32
    %v796 = vpop.permute.xlu0 %795
    %797 = vrot.lane.b32.xlu0 %v653, 32
    %v798 = vpop.permute.xlu0 %797
    %799 = vrot.lane.b32.xlu0 %v654, 32
    %v800 = vpop.permute.xlu0 %799
    %801 = vrot.lane.b32.xlu0 %v655, 32
    %v802 = vpop.permute.xlu0 %801
    %803 = vrot.lane.b32.xlu0 %v656, 32
    %v804 = vpop.permute.xlu0 %803
    %805 = vrot.lane.b32.xlu0 %v657, 32
    %v806 = vpop.permute.xlu0 %805
    %807 = vrot.lane.b32.xlu0 %v658, 32
    %v808 = vpop.permute.xlu0 %807
    %809 = vrot.lane.b32.xlu0 %v659, 32
    %v810 = vpop.permute.xlu0 %809
    %811 = vrot.lane.b32.xlu0 %v660, 32
    %v812 = vpop.permute.xlu0 %811
    %813 = vrot.lane.b32.xlu0 %v661, 32
    %v814 = vpop.permute.xlu0 %813
    %815 = vrot.lane.b32.xlu0 %v662, 32
    %v816 = vpop.permute.xlu0 %815
    %817 = vrot.lane.b32.xlu0 %v663, 32
    %v818 = vpop.permute.xlu0 %817
    %819 = vrot.lane.b32.xlu0 %v664, 32
    %v820 = vpop.permute.xlu0 %819
    %821 = vrot.lane.b32.xlu0 %v665, 32
    %v822 = vpop.permute.xlu0 %821
    %823 = vrot.lane.b32.xlu0 %v666, 32
    %v824 = vpop.permute.xlu0 %823
    %825 = vrot.lane.b32.xlu0 %v667, 32
    %v826 = vpop.permute.xlu0 %825
    %827 = vrot.lane.b32.xlu0 %v668, 32
    %v828 = vpop.permute.xlu0 %827
    %829 = vrot.lane.b32.xlu0 %v669, 32
    %v830 = vpop.permute.xlu0 %829
    %831 = vrot.lane.b32.xlu0 %v670, 32
    %v832 = vpop.permute.xlu0 %831
    %833 = vrot.lane.b32.xlu0 %v671, 32
    %v834 = vpop.permute.xlu0 %833
    %835 = vrot.lane.b32.xlu0 %v672, 32
    %v836 = vpop.permute.xlu0 %835
    %837 = vrot.lane.b32.xlu0 %v673, 32
    %v838 = vpop.permute.xlu0 %837
    %839 = vrot.lane.b32.xlu0 %v674, 32
    %v840 = vpop.permute.xlu0 %839
    %841 = vrot.lane.b32.xlu0 %v675, 32
    %v842 = vpop.permute.xlu0 %841
    %843 = vrot.lane.b32.xlu0 %v676, 32
    %v844 = vpop.permute.xlu0 %843
    %845 = vrot.lane.b32.xlu0 %v677, 32
    %v846 = vpop.permute.xlu0 %845
    %847 = vrot.lane.b32.xlu0 %v678, 32
    %v848 = vpop.permute.xlu0 %847
    %849 = vrot.lane.b32.xlu0 %v679, 32
    %v850 = vpop.permute.xlu0 %849
    %851 = vrot.lane.b32.xlu0 %v680, 32
    %v852 = vpop.permute.xlu0 %851
    %853 = vrot.lane.b32.xlu0 %v681, 32
    %v854 = vpop.permute.xlu0 %853
    %855 = vrot.lane.b32.xlu0 %v682, 32
    %v856 = vpop.permute.xlu0 %855
    %857 = vrot.lane.b32.xlu0 %v683, 32
    %v858 = vpop.permute.xlu0 %857
    %859 = vrot.lane.b32.xlu0 %v684, 32
    %v860 = vpop.permute.xlu0 %859
    %861 = vrot.lane.b32.xlu0 %v685, 32
    %v862 = vpop.permute.xlu0 %861
    %863 = vrot.lane.b32.xlu0 %v686, 32
    %v864 = vpop.permute.xlu0 %863
    %865 = vrot.lane.b32.xlu0 %v687, 32
    %v866 = vpop.permute.xlu0 %865
    %867 = vrot.lane.b32.xlu0 %v688, 32
    %v868 = vpop.permute.xlu0 %867
    %869 = vrot.lane.b32.xlu0 %v689, 32
    %v870 = vpop.permute.xlu0 %869
    %871 = vrot.lane.b32.xlu0 %v690, 32
    %v872 = vpop.permute.xlu0 %871
    %873 = vrot.lane.b32.xlu0 %v691, 32
    %v874 = vpop.permute.xlu0 %873
    %875 = vrot.lane.b32.xlu0 %v692, 32
    %v876 = vpop.permute.xlu0 %875
    %877 = vrot.lane.b32.xlu0 %v693, 32
    %v878 = vpop.permute.xlu0 %877
    %879 = vrot.lane.b32.xlu0 %v694, 32
    %v880 = vpop.permute.xlu0 %879
    %881 = vrot.lane.b32.xlu0 %v695, 32
    %v882 = vpop.permute.xlu0 %881
    %883 = vrot.lane.b32.xlu0 %v696, 32
    %v884 = vpop.permute.xlu0 %883
    %885 = vrot.lane.b32.xlu0 %v697, 32
    %v886 = vpop.permute.xlu0 %885
    %887 = vrot.lane.b32.xlu0 %v698, 32
    %v888 = vpop.permute.xlu0 %887
    %889 = vrot.lane.b32.xlu0 %v699, 32
    %v890 = vpop.permute.xlu0 %889
    %891 = vrot.lane.b32.xlu0 %v700, 32
    %v892 = vpop.permute.xlu0 %891
    %vm957 = vcmask 519424
    %958 = vst.msk [vmem:[#allocation4] sm:$0xf] %vm957, %v766
    %959 = vst.msk [vmem:[#allocation4 + $0xc] sm:$0xf] %vm957, %v768
    %960 = vst.msk [vmem:[#allocation4 + $0x18] sm:$0xf] %vm957, %v770
    %961 = vst.msk [vmem:[#allocation4 + $0x24] sm:$0xf] %vm957, %v772
    %962 = vst.msk [vmem:[#allocation4 + $0x30] sm:$0xf] %vm957, %v774
    %963 = vst.msk [vmem:[#allocation4 + $0x3c] sm:$0xf] %vm957, %v776
    %964 = vst.msk [vmem:[#allocation4 + $0x48] sm:$0xf] %vm957, %v778
    %965 = vst.msk [vmem:[#allocation4 + $0x54] sm:$0xf] %vm957, %v780
    %966 = vst.msk [vmem:[#allocation4 + $0x60] sm:$0xf] %vm957, %v782
    %967 = vst.msk [vmem:[#allocation4 + $0x6c] sm:$0xf] %vm957, %v784
    %968 = vst.msk [vmem:[#allocation4 + $0x78] sm:$0xf] %vm957, %v786
    %969 = vst.msk [vmem:[#allocation4 + $0x84] sm:$0xf] %vm957, %v788
    %970 = vst.msk [vmem:[#allocation4 + $0x90] sm:$0xf] %vm957, %v790
    %971 = vst.msk [vmem:[#allocation4 + $0x9c] sm:$0xf] %vm957, %v792
    %972 = vst.msk [vmem:[#allocation4 + $0xa8] sm:$0xf] %vm957, %v794
    %973 = vst.msk [vmem:[#allocation4 + $0xb4] sm:$0xf] %vm957, %v796
    %974 = vst.msk [vmem:[#allocation4 + $0xc0] sm:$0xf] %vm957, %v798
    %975 = vst.msk [vmem:[#allocation4 + $0xcc] sm:$0xf] %vm957, %v800
    %976 = vst.msk [vmem:[#allocation4 + $0xd8] sm:$0xf] %vm957, %v802
    %977 = vst.msk [vmem:[#allocation4 + $0xe4] sm:$0xf] %vm957, %v804
    %978 = vst.msk [vmem:[#allocation4 + $0xf0] sm:$0xf] %vm957, %v806
    %979 = vst.msk [vmem:[#allocation4 + $0xfc] sm:$0xf] %vm957, %v808
    %980 = vst.msk [vmem:[#allocation4 + $0x108] sm:$0xf] %vm957, %v810
    %981 = vst.msk [vmem:[#allocation4 + $0x114] sm:$0xf] %vm957, %v812
    %982 = vst.msk [vmem:[#allocation4 + $0x120] sm:$0xf] %vm957, %v814
    %983 = vst.msk [vmem:[#allocation4 + $0x12c] sm:$0xf] %vm957, %v816
    %984 = vst.msk [vmem:[#allocation4 + $0x138] sm:$0xf] %vm957, %v818
    %985 = vst.msk [vmem:[#allocation4 + $0x144] sm:$0xf] %vm957, %v820
    %986 = vst.msk [vmem:[#allocation4 + $0x150] sm:$0xf] %vm957, %v822
    %987 = vst.msk [vmem:[#allocation4 + $0x15c] sm:$0xf] %vm957, %v824
    %988 = vst.msk [vmem:[#allocation4 + $0x168] sm:$0xf] %vm957, %v826
    %989 = vst.msk [vmem:[#allocation4 + $0x174] sm:$0xf] %vm957, %v828
    %990 = vst.msk [vmem:[#allocation4 + $0x180] sm:$0xf] %vm957, %v830
    %991 = vst.msk [vmem:[#allocation4 + $0x18c] sm:$0xf] %vm957, %v832
    %992 = vst.msk [vmem:[#allocation4 + $0x198] sm:$0xf] %vm957, %v834
    %993 = vst.msk [vmem:[#allocation4 + $0x1a4] sm:$0xf] %vm957, %v836
    %994 = vst.msk [vmem:[#allocation4 + $0x1b0] sm:$0xf] %vm957, %v838
    %995 = vst.msk [vmem:[#allocation4 + $0x1bc] sm:$0xf] %vm957, %v840
    %996 = vst.msk [vmem:[#allocation4 + $0x1c8] sm:$0xf] %vm957, %v842
    %997 = vst.msk [vmem:[#allocation4 + $0x1d4] sm:$0xf] %vm957, %v844
    %998 = vst.msk [vmem:[#allocation4 + $0x1e0] sm:$0xf] %vm957, %v846
    %999 = vst.msk [vmem:[#allocation4 + $0x1ec] sm:$0xf] %vm957, %v848
    %1000 = vst.msk [vmem:[#allocation4 + $0x1f8] sm:$0xf] %vm957, %v850
    %1001 = vst.msk [vmem:[#allocation4 + $0x204] sm:$0xf] %vm957, %v852
    %1002 = vst.msk [vmem:[#allocation4 + $0x210] sm:$0xf] %vm957, %v854
    %1003 = vst.msk [vmem:[#allocation4 + $0x21c] sm:$0xf] %vm957, %v856
    %1004 = vst.msk [vmem:[#allocation4 + $0x228] sm:$0xf] %vm957, %v858
    %1005 = vst.msk [vmem:[#allocation4 + $0x234] sm:$0xf] %vm957, %v860
    %1006 = vst.msk [vmem:[#allocation4 + $0x240] sm:$0xf] %vm957, %v862
    %1007 = vst.msk [vmem:[#allocation4 + $0x24c] sm:$0xf] %vm957, %v864
    %1008 = vst.msk [vmem:[#allocation4 + $0x258] sm:$0xf] %vm957, %v866
    %1009 = vst.msk [vmem:[#allocation4 + $0x264] sm:$0xf] %vm957, %v868
    %1010 = vst.msk [vmem:[#allocation4 + $0x270] sm:$0xf] %vm957, %v870
    %1011 = vst.msk [vmem:[#allocation4 + $0x27c] sm:$0xf] %vm957, %v872
    %1012 = vst.msk [vmem:[#allocation4 + $0x288] sm:$0xf] %vm957, %v874
    %1013 = vst.msk [vmem:[#allocation4 + $0x294] sm:$0xf] %vm957, %v876
    %1014 = vst.msk [vmem:[#allocation4 + $0x2a0] sm:$0xf] %vm957, %v878
    %1015 = vst.msk [vmem:[#allocation4 + $0x2ac] sm:$0xf] %vm957, %v880
    %1016 = vst.msk [vmem:[#allocation4 + $0x2b8] sm:$0xf] %vm957, %v882
    %1017 = vst.msk [vmem:[#allocation4 + $0x2c4] sm:$0xf] %vm957, %v884
    %1018 = vst.msk [vmem:[#allocation4 + $0x2d0] sm:$0xf] %vm957, %v886
    %1019 = vst.msk [vmem:[#allocation4 + $0x2dc] sm:$0xf] %vm957, %v888
    %1020 = vst.msk [vmem:[#allocation4 + $0x2e8] sm:$0xf] %vm957, %v890
    %1021 = vst.msk [vmem:[#allocation4 + $0x2f4] sm:$0xf] %vm957, %v892
    %v1022 = vld [vmem:[#allocation2 + $0x2] sm:$0xff]
    %v1023 = vld [vmem:[#allocation2 + $0xa] sm:$0xff]
    %v1024 = vld [vmem:[#allocation2 + $0x1a] sm:$0xff]
    %v1025 = vld [vmem:[#allocation2 + $0x22] sm:$0xff]
    %v1026 = vld [vmem:[#allocation2 + $0x32] sm:$0xff]
    %v1027 = vld [vmem:[#allocation2 + $0x3a] sm:$0xff]
    %v1028 = vld [vmem:[#allocation2 + $0x4a] sm:$0xff]
    %v1029 = vld [vmem:[#allocation2 + $0x52] sm:$0xff]
    %v1030 = vld [vmem:[#allocation2 + $0x62] sm:$0xff]
    %v1031 = vld [vmem:[#allocation2 + $0x6a] sm:$0xff]
    %v1032 = vld [vmem:[#allocation2 + $0x7a] sm:$0xff]
    %v1033 = vld [vmem:[#allocation2 + $0x82] sm:$0xff]
    %v1034 = vld [vmem:[#allocation2 + $0x92] sm:$0xff]
    %v1035 = vld [vmem:[#allocation2 + $0x9a] sm:$0xff]
    %v1036 = vld [vmem:[#allocation2 + $0xaa] sm:$0xff]
    %v1037 = vld [vmem:[#allocation2 + $0xb2] sm:$0xff]
    %v1038 = vld [vmem:[#allocation2 + $0xc2] sm:$0xff]
    %v1039 = vld [vmem:[#allocation2 + $0xca] sm:$0xff]
    %v1040 = vld [vmem:[#allocation2 + $0xda] sm:$0xff]
    %v1041 = vld [vmem:[#allocation2 + $0xe2] sm:$0xff]
    %v1042 = vld [vmem:[#allocation2 + $0xf2] sm:$0xff]
    %v1043 = vld [vmem:[#allocation2 + $0xfa] sm:$0xff]
    %v1044 = vld [vmem:[#allocation2 + $0x10a] sm:$0xff]
    %v1045 = vld [vmem:[#allocation2 + $0x112] sm:$0xff]
    %v1046 = vld [vmem:[#allocation2 + $0x122] sm:$0xff]
    %v1047 = vld [vmem:[#allocation2 + $0x12a] sm:$0xff]
    %v1048 = vld [vmem:[#allocation2 + $0x13a] sm:$0xff]
    %v1049 = vld [vmem:[#allocation2 + $0x142] sm:$0xff]
    %v1050 = vld [vmem:[#allocation2 + $0x152] sm:$0xff]
    %v1051 = vld [vmem:[#allocation2 + $0x15a] sm:$0xff]
    %v1052 = vld [vmem:[#allocation2 + $0x16a] sm:$0xff]
    %v1053 = vld [vmem:[#allocation2 + $0x172] sm:$0xff]
    %v1054 = vld [vmem:[#allocation2 + $0x1b2] sm:$0xff]
    %v1055 = vld [vmem:[#allocation2 + $0x1ba] sm:$0xff]
    %v1056 = vld [vmem:[#allocation2 + $0x1ca] sm:$0xff]
    %v1057 = vld [vmem:[#allocation2 + $0x1d2] sm:$0xff]
    %v1058 = vld [vmem:[#allocation2 + $0x1e2] sm:$0xff]
    %v1059 = vld [vmem:[#allocation2 + $0x1ea] sm:$0xff]
    %v1060 = vld [vmem:[#allocation2 + $0x1fa] sm:$0xff]
    %v1061 = vld [vmem:[#allocation2 + $0x202] sm:$0xff]
    %v1062 = vld [vmem:[#allocation2 + $0x212] sm:$0xff]
    %v1063 = vld [vmem:[#allocation2 + $0x21a] sm:$0xff]
    %v1064 = vld [vmem:[#allocation2 + $0x22a] sm:$0xff]
    %v1065 = vld [vmem:[#allocation2 + $0x232] sm:$0xff]
    %v1066 = vld [vmem:[#allocation2 + $0x242] sm:$0xff]
    %v1067 = vld [vmem:[#allocation2 + $0x24a] sm:$0xff]
    %v1068 = vld [vmem:[#allocation2 + $0x25a] sm:$0xff]
    %v1069 = vld [vmem:[#allocation2 + $0x262] sm:$0xff]
    %v1070 = vld [vmem:[#allocation2 + $0x272] sm:$0xff]
    %v1071 = vld [vmem:[#allocation2 + $0x27a] sm:$0xff]
    %v1072 = vld [vmem:[#allocation2 + $0x28a] sm:$0xff]
    %v1073 = vld [vmem:[#allocation2 + $0x292] sm:$0xff]
    %v1074 = vld [vmem:[#allocation2 + $0x2a2] sm:$0xff]
    %v1075 = vld [vmem:[#allocation2 + $0x2aa] sm:$0xff]
    %v1076 = vld [vmem:[#allocation2 + $0x2ba] sm:$0xff]
    %v1077 = vld [vmem:[#allocation2 + $0x2c2] sm:$0xff]
    %v1078 = vld [vmem:[#allocation2 + $0x2d2] sm:$0xff]
    %v1079 = vld [vmem:[#allocation2 + $0x2da] sm:$0xff]
    %v1080 = vld [vmem:[#allocation2 + $0x2ea] sm:$0xff]
    %v1081 = vld [vmem:[#allocation2 + $0x2f2] sm:$0xff]
    %v1082 = vld [vmem:[#allocation2 + $0x302] sm:$0xff]
    %v1083 = vld [vmem:[#allocation2 + $0x30a] sm:$0xff]
    %v1084 = vld [vmem:[#allocation2 + $0x31a] sm:$0xff]
    %v1085 = vld [vmem:[#allocation2 + $0x322] sm:$0xff]
    %v1086 = vpack.c.bf16 %v1022, %v1022
    %v1087 = vpack.c.bf16 %v1023, %v1023
    %v1088 = vpack.c.bf16 %v1024, %v1024
    %v1089 = vpack.c.bf16 %v1025, %v1025
    %v1090 = vpack.c.bf16 %v1026, %v1026
    %v1091 = vpack.c.bf16 %v1027, %v1027
    %v1092 = vpack.c.bf16 %v1028, %v1028
    %v1093 = vpack.c.bf16 %v1029, %v1029
    %v1094 = vpack.c.bf16 %v1030, %v1030
    %v1095 = vpack.c.bf16 %v1031, %v1031
    %v1096 = vpack.c.bf16 %v1032, %v1032
    %v1097 = vpack.c.bf16 %v1033, %v1033
    %v1098 = vpack.c.bf16 %v1034, %v1034
    %v1099 = vpack.c.bf16 %v1035, %v1035
    %v1100 = vpack.c.bf16 %v1036, %v1036
    %v1101 = vpack.c.bf16 %v1037, %v1037
    %v1102 = vpack.c.bf16 %v1038, %v1038
    %v1103 = vpack.c.bf16 %v1039, %v1039
    %v1104 = vpack.c.bf16 %v1040, %v1040
    %v1105 = vpack.c.bf16 %v1041, %v1041
    %v1106 = vpack.c.bf16 %v1042, %v1042
    %v1107 = vpack.c.bf16 %v1043, %v1043
    %v1108 = vpack.c.bf16 %v1044, %v1044
    %v1109 = vpack.c.bf16 %v1045, %v1045
    %v1110 = vpack.c.bf16 %v1046, %v1046
    %v1111 = vpack.c.bf16 %v1047, %v1047
    %v1112 = vpack.c.bf16 %v1048, %v1048
    %v1113 = vpack.c.bf16 %v1049, %v1049
    %v1114 = vpack.c.bf16 %v1050, %v1050
    %v1115 = vpack.c.bf16 %v1051, %v1051
    %v1116 = vpack.c.bf16 %v1052, %v1052
    %v1117 = vpack.c.bf16 %v1053, %v1053
    %v1118 = vpack.c.bf16 %v1054, %v1054
    %v1119 = vpack.c.bf16 %v1055, %v1055
    %v1120 = vpack.c.bf16 %v1056, %v1056
    %v1121 = vpack.c.bf16 %v1057, %v1057
    %v1122 = vpack.c.bf16 %v1058, %v1058
    %v1123 = vpack.c.bf16 %v1059, %v1059
    %v1124 = vpack.c.bf16 %v1060, %v1060
    %v1125 = vpack.c.bf16 %v1061, %v1061
    %v1126 = vpack.c.bf16 %v1062, %v1062
    %v1127 = vpack.c.bf16 %v1063, %v1063
    %v1128 = vpack.c.bf16 %v1064, %v1064
    %v1129 = vpack.c.bf16 %v1065, %v1065
    %v1130 = vpack.c.bf16 %v1066, %v1066
    %v1131 = vpack.c.bf16 %v1067, %v1067
    %v1132 = vpack.c.bf16 %v1068, %v1068
    %v1133 = vpack.c.bf16 %v1069, %v1069
    %v1134 = vpack.c.bf16 %v1070, %v1070
    %v1135 = vpack.c.bf16 %v1071, %v1071
    %v1136 = vpack.c.bf16 %v1072, %v1072
    %v1137 = vpack.c.bf16 %v1073, %v1073
    %v1138 = vpack.c.bf16 %v1074, %v1074
    %v1139 = vpack.c.bf16 %v1075, %v1075
    %v1140 = vpack.c.bf16 %v1076, %v1076
    %v1141 = vpack.c.bf16 %v1077, %v1077
    %v1142 = vpack.c.bf16 %v1078, %v1078
    %v1143 = vpack.c.bf16 %v1079, %v1079
    %v1144 = vpack.c.bf16 %v1080, %v1080
    %v1145 = vpack.c.bf16 %v1081, %v1081
    %v1146 = vpack.c.bf16 %v1082, %v1082
    %v1147 = vpack.c.bf16 %v1083, %v1083
    %v1148 = vpack.c.bf16 %v1084, %v1084
    %v1149 = vpack.c.bf16 %v1085, %v1085
    %1214 = vrot.lane.b32.xlu0 %v1086, 64
    %v1215 = vpop.permute.xlu0 %1214
    %1216 = vrot.lane.b32.xlu0 %v1087, 64
    %v1217 = vpop.permute.xlu0 %1216
    %1218 = vrot.lane.b32.xlu0 %v1088, 64
    %v1219 = vpop.permute.xlu0 %1218
    %1220 = vrot.lane.b32.xlu0 %v1089, 64
    %v1221 = vpop.permute.xlu0 %1220
    %1222 = vrot.lane.b32.xlu0 %v1090, 64
    %v1223 = vpop.permute.xlu0 %1222
    %1224 = vrot.lane.b32.xlu0 %v1091, 64
    %v1225 = vpop.permute.xlu0 %1224
    %1226 = vrot.lane.b32.xlu0 %v1092, 64
    %v1227 = vpop.permute.xlu0 %1226
    %1228 = vrot.lane.b32.xlu0 %v1093, 64
    %v1229 = vpop.permute.xlu0 %1228
    %1230 = vrot.lane.b32.xlu0 %v1094, 64
    %v1231 = vpop.permute.xlu0 %1230
    %1232 = vrot.lane.b32.xlu0 %v1095, 64
    %v1233 = vpop.permute.xlu0 %1232
    %1234 = vrot.lane.b32.xlu0 %v1096, 64
    %v1235 = vpop.permute.xlu0 %1234
    %1236 = vrot.lane.b32.xlu0 %v1097, 64
    %v1237 = vpop.permute.xlu0 %1236
    %1238 = vrot.lane.b32.xlu0 %v1098, 64
    %v1239 = vpop.permute.xlu0 %1238
    %1240 = vrot.lane.b32.xlu0 %v1099, 64
    %v1241 = vpop.permute.xlu0 %1240
    %1242 = vrot.lane.b32.xlu0 %v1100, 64
    %v1243 = vpop.permute.xlu0 %1242
    %1244 = vrot.lane.b32.xlu0 %v1101, 64
    %v1245 = vpop.permute.xlu0 %1244
    %1246 = vrot.lane.b32.xlu0 %v1102, 64
    %v1247 = vpop.permute.xlu0 %1246
    %1248 = vrot.lane.b32.xlu0 %v1103, 64
    %v1249 = vpop.permute.xlu0 %1248
    %1250 = vrot.lane.b32.xlu0 %v1104, 64
    %v1251 = vpop.permute.xlu0 %1250
    %1252 = vrot.lane.b32.xlu0 %v1105, 64
    %v1253 = vpop.permute.xlu0 %1252
    %1254 = vrot.lane.b32.xlu0 %v1106, 64
    %v1255 = vpop.permute.xlu0 %1254
    %1256 = vrot.lane.b32.xlu0 %v1107, 64
    %v1257 = vpop.permute.xlu0 %1256
    %1258 = vrot.lane.b32.xlu0 %v1108, 64
    %v1259 = vpop.permute.xlu0 %1258
    %1260 = vrot.lane.b32.xlu0 %v1109, 64
    %v1261 = vpop.permute.xlu0 %1260
    %1262 = vrot.lane.b32.xlu0 %v1110, 64
    %v1263 = vpop.permute.xlu0 %1262
    %1264 = vrot.lane.b32.xlu0 %v1111, 64
    %v1265 = vpop.permute.xlu0 %1264
    %1266 = vrot.lane.b32.xlu0 %v1112, 64
    %v1267 = vpop.permute.xlu0 %1266
    %1268 = vrot.lane.b32.xlu0 %v1113, 64
    %v1269 = vpop.permute.xlu0 %1268
    %1270 = vrot.lane.b32.xlu0 %v1114, 64
    %v1271 = vpop.permute.xlu0 %1270
    %1272 = vrot.lane.b32.xlu0 %v1115, 64
    %v1273 = vpop.permute.xlu0 %1272
    %1274 = vrot.lane.b32.xlu0 %v1116, 64
    %v1275 = vpop.permute.xlu0 %1274
    %1276 = vrot.lane.b32.xlu0 %v1117, 64
    %v1277 = vpop.permute.xlu0 %1276
    %1278 = vrot.lane.b32.xlu0 %v1118, 64
    %v1279 = vpop.permute.xlu0 %1278
    %1280 = vrot.lane.b32.xlu0 %v1119, 64
    %v1281 = vpop.permute.xlu0 %1280
    %1282 = vrot.lane.b32.xlu0 %v1120, 64
    %v1283 = vpop.permute.xlu0 %1282
    %1284 = vrot.lane.b32.xlu0 %v1121, 64
    %v1285 = vpop.permute.xlu0 %1284
    %1286 = vrot.lane.b32.xlu0 %v1122, 64
    %v1287 = vpop.permute.xlu0 %1286
    %1288 = vrot.lane.b32.xlu0 %v1123, 64
    %v1289 = vpop.permute.xlu0 %1288
    %1290 = vrot.lane.b32.xlu0 %v1124, 64
    %v1291 = vpop.permute.xlu0 %1290
    %1292 = vrot.lane.b32.xlu0 %v1125, 64
    %v1293 = vpop.permute.xlu0 %1292
    %1294 = vrot.lane.b32.xlu0 %v1126, 64
    %v1295 = vpop.permute.xlu0 %1294
    %1296 = vrot.lane.b32.xlu0 %v1127, 64
    %v1297 = vpop.permute.xlu0 %1296
    %1298 = vrot.lane.b32.xlu0 %v1128, 64
    %v1299 = vpop.permute.xlu0 %1298
    %1300 = vrot.lane.b32.xlu0 %v1129, 64
    %v1301 = vpop.permute.xlu0 %1300
    %1302 = vrot.lane.b32.xlu0 %v1130, 64
    %v1303 = vpop.permute.xlu0 %1302
    %1304 = vrot.lane.b32.xlu0 %v1131, 64
    %v1305 = vpop.permute.xlu0 %1304
    %1306 = vrot.lane.b32.xlu0 %v1132, 64
    %v1307 = vpop.permute.xlu0 %1306
    %1308 = vrot.lane.b32.xlu0 %v1133, 64
    %v1309 = vpop.permute.xlu0 %1308
    %1310 = vrot.lane.b32.xlu0 %v1134, 64
    %v1311 = vpop.permute.xlu0 %1310
    %1312 = vrot.lane.b32.xlu0 %v1135, 64
    %v1313 = vpop.permute.xlu0 %1312
    %1314 = vrot.lane.b32.xlu0 %v1136, 64
    %v1315 = vpop.permute.xlu0 %1314
    %1316 = vrot.lane.b32.xlu0 %v1137, 64
    %v1317 = vpop.permute.xlu0 %1316
    %1318 = vrot.lane.b32.xlu0 %v1138, 64
    %v1319 = vpop.permute.xlu0 %1318
    %1320 = vrot.lane.b32.xlu0 %v1139, 64
    %v1321 = vpop.permute.xlu0 %1320
    %1322 = vrot.lane.b32.xlu0 %v1140, 64
    %v1323 = vpop.permute.xlu0 %1322
    %1324 = vrot.lane.b32.xlu0 %v1141, 64
    %v1325 = vpop.permute.xlu0 %1324
    %1326 = vrot.lane.b32.xlu0 %v1142, 64
    %v1327 = vpop.permute.xlu0 %1326
    %1328 = vrot.lane.b32.xlu0 %v1143, 64
    %v1329 = vpop.permute.xlu0 %1328
    %1330 = vrot.lane.b32.xlu0 %v1144, 64
    %v1331 = vpop.permute.xlu0 %1330
    %1332 = vrot.lane.b32.xlu0 %v1145, 64
    %v1333 = vpop.permute.xlu0 %1332
    %1334 = vrot.lane.b32.xlu0 %v1146, 64
    %v1335 = vpop.permute.xlu0 %1334
    %1336 = vrot.lane.b32.xlu0 %v1147, 64
    %v1337 = vpop.permute.xlu0 %1336
    %1338 = vrot.lane.b32.xlu0 %v1148, 64
    %v1339 = vpop.permute.xlu0 %1338
    %1340 = vrot.lane.b32.xlu0 %v1149, 64
    %v1341 = vpop.permute.xlu0 %1340
    %vm1406 = vcmask 781824
    %1407 = vst.msk [vmem:[#allocation4] sm:$0xf] %vm1406, %v1215
    %1408 = vst.msk [vmem:[#allocation4 + $0xc] sm:$0xf] %vm1406, %v1217
    %1409 = vst.msk [vmem:[#allocation4 + $0x18] sm:$0xf] %vm1406, %v1219
    %1410 = vst.msk [vmem:[#allocation4 + $0x24] sm:$0xf] %vm1406, %v1221
    %1411 = vst.msk [vmem:[#allocation4 + $0x30] sm:$0xf] %vm1406, %v1223
    %1412 = vst.msk [vmem:[#allocation4 + $0x3c] sm:$0xf] %vm1406, %v1225
    %1413 = vst.msk [vmem:[#allocation4 + $0x48] sm:$0xf] %vm1406, %v1227
    %1414 = vst.msk [vmem:[#allocation4 + $0x54] sm:$0xf] %vm1406, %v1229
    %1415 = vst.msk [vmem:[#allocation4 + $0x60] sm:$0xf] %vm1406, %v1231
    %1416 = vst.msk [vmem:[#allocation4 + $0x6c] sm:$0xf] %vm1406, %v1233
    %1417 = vst.msk [vmem:[#allocation4 + $0x78] sm:$0xf] %vm1406, %v1235
    %1418 = vst.msk [vmem:[#allocation4 + $0x84] sm:$0xf] %vm1406, %v1237
    %1419 = vst.msk [vmem:[#allocation4 + $0x90] sm:$0xf] %vm1406, %v1239
    %1420 = vst.msk [vmem:[#allocation4 + $0x9c] sm:$0xf] %vm1406, %v1241
    %1421 = vst.msk [vmem:[#allocation4 + $0xa8] sm:$0xf] %vm1406, %v1243
    %1422 = vst.msk [vmem:[#allocation4 + $0xb4] sm:$0xf] %vm1406, %v1245
    %1423 = vst.msk [vmem:[#allocation4 + $0xc0] sm:$0xf] %vm1406, %v1247
    %1424 = vst.msk [vmem:[#allocation4 + $0xcc] sm:$0xf] %vm1406, %v1249
    %1425 = vst.msk [vmem:[#allocation4 + $0xd8] sm:$0xf] %vm1406, %v1251
    %1426 = vst.msk [vmem:[#allocation4 + $0xe4] sm:$0xf] %vm1406, %v1253
    %1427 = vst.msk [vmem:[#allocation4 + $0xf0] sm:$0xf] %vm1406, %v1255
    %1428 = vst.msk [vmem:[#allocation4 + $0xfc] sm:$0xf] %vm1406, %v1257
    %1429 = vst.msk [vmem:[#allocation4 + $0x108] sm:$0xf] %vm1406, %v1259
    %1430 = vst.msk [vmem:[#allocation4 + $0x114] sm:$0xf] %vm1406, %v1261
    %1431 = vst.msk [vmem:[#allocation4 + $0x120] sm:$0xf] %vm1406, %v1263
    %1432 = vst.msk [vmem:[#allocation4 + $0x12c] sm:$0xf] %vm1406, %v1265
    %1433 = vst.msk [vmem:[#allocation4 + $0x138] sm:$0xf] %vm1406, %v1267
    %1434 = vst.msk [vmem:[#allocation4 + $0x144] sm:$0xf] %vm1406, %v1269
    %1435 = vst.msk [vmem:[#allocation4 + $0x150] sm:$0xf] %vm1406, %v1271
    %1436 = vst.msk [vmem:[#allocation4 + $0x15c] sm:$0xf] %vm1406, %v1273
    %1437 = vst.msk [vmem:[#allocation4 + $0x168] sm:$0xf] %vm1406, %v1275
    %1438 = vst.msk [vmem:[#allocation4 + $0x174] sm:$0xf] %vm1406, %v1277
    %1439 = vst.msk [vmem:[#allocation4 + $0x180] sm:$0xf] %vm1406, %v1279
    %1440 = vst.msk [vmem:[#allocation4 + $0x18c] sm:$0xf] %vm1406, %v1281
    %1441 = vst.msk [vmem:[#allocation4 + $0x198] sm:$0xf] %vm1406, %v1283
    %1442 = vst.msk [vmem:[#allocation4 + $0x1a4] sm:$0xf] %vm1406, %v1285
    %1443 = vst.msk [vmem:[#allocation4 + $0x1b0] sm:$0xf] %vm1406, %v1287
    %1444 = vst.msk [vmem:[#allocation4 + $0x1bc] sm:$0xf] %vm1406, %v1289
    %1445 = vst.msk [vmem:[#allocation4 + $0x1c8] sm:$0xf] %vm1406, %v1291
    %1446 = vst.msk [vmem:[#allocation4 + $0x1d4] sm:$0xf] %vm1406, %v1293
    %1447 = vst.msk [vmem:[#allocation4 + $0x1e0] sm:$0xf] %vm1406, %v1295
    %1448 = vst.msk [vmem:[#allocation4 + $0x1ec] sm:$0xf] %vm1406, %v1297
    %1449 = vst.msk [vmem:[#allocation4 + $0x1f8] sm:$0xf] %vm1406, %v1299
    %1450 = vst.msk [vmem:[#allocation4 + $0x204] sm:$0xf] %vm1406, %v1301
    %1451 = vst.msk [vmem:[#allocation4 + $0x210] sm:$0xf] %vm1406, %v1303
    %1452 = vst.msk [vmem:[#allocation4 + $0x21c] sm:$0xf] %vm1406, %v1305
    %1453 = vst.msk [vmem:[#allocation4 + $0x228] sm:$0xf] %vm1406, %v1307
    %1454 = vst.msk [vmem:[#allocation4 + $0x234] sm:$0xf] %vm1406, %v1309
    %1455 = vst.msk [vmem:[#allocation4 + $0x240] sm:$0xf] %vm1406, %v1311
    %1456 = vst.msk [vmem:[#allocation4 + $0x24c] sm:$0xf] %vm1406, %v1313
    %1457 = vst.msk [vmem:[#allocation4 + $0x258] sm:$0xf] %vm1406, %v1315
    %1458 = vst.msk [vmem:[#allocation4 + $0x264] sm:$0xf] %vm1406, %v1317
    %1459 = vst.msk [vmem:[#allocation4 + $0x270] sm:$0xf] %vm1406, %v1319
    %1460 = vst.msk [vmem:[#allocation4 + $0x27c] sm:$0xf] %vm1406, %v1321
    %1461 = vst.msk [vmem:[#allocation4 + $0x288] sm:$0xf] %vm1406, %v1323
    %1462 = vst.msk [vmem:[#allocation4 + $0x294] sm:$0xf] %vm1406, %v1325
    %1463 = vst.msk [vmem:[#allocation4 + $0x2a0] sm:$0xf] %vm1406, %v1327
    %1464 = vst.msk [vmem:[#allocation4 + $0x2ac] sm:$0xf] %vm1406, %v1329
    %1465 = vst.msk [vmem:[#allocation4 + $0x2b8] sm:$0xf] %vm1406, %v1331
    %1466 = vst.msk [vmem:[#allocation4 + $0x2c4] sm:$0xf] %vm1406, %v1333
    %1467 = vst.msk [vmem:[#allocation4 + $0x2d0] sm:$0xf] %vm1406, %v1335
    %1468 = vst.msk [vmem:[#allocation4 + $0x2dc] sm:$0xf] %vm1406, %v1337
    %1469 = vst.msk [vmem:[#allocation4 + $0x2e8] sm:$0xf] %vm1406, %v1339
    %1470 = vst.msk [vmem:[#allocation4 + $0x2f4] sm:$0xf] %vm1406, %v1341
    %v1471 = vld [vmem:[%s315] sm:$0xff]
    %v1472 = vld [vmem:[%s315 + $0x8] sm:$0xff]
    %v1473 = vld [vmem:[%s315 + $0x18] sm:$0xff]
    %v1474 = vld [vmem:[%s315 + $0x20] sm:$0xff]
    %v1475 = vld [vmem:[%s315 + $0x30] sm:$0xff]
    %v1476 = vld [vmem:[%s315 + $0x38] sm:$0xff]
    %v1477 = vld [vmem:[%s315 + $0x48] sm:$0xff]
    %v1478 = vld [vmem:[%s315 + $0x50] sm:$0xff]
    %v1479 = vld [vmem:[%s315 + $0x60] sm:$0xff]
    %v1480 = vld [vmem:[%s315 + $0x68] sm:$0xff]
    %v1481 = vld [vmem:[%s315 + $0x78] sm:$0xff]
    %v1482 = vld [vmem:[%s315 + $0x80] sm:$0xff]
    %v1483 = vld [vmem:[%s315 + $0x90] sm:$0xff]
    %v1484 = vld [vmem:[%s315 + $0x98] sm:$0xff]
    %v1485 = vld [vmem:[%s315 + $0xa8] sm:$0xff]
    %v1486 = vld [vmem:[%s315 + $0xb0] sm:$0xff]
    %v1487 = vld [vmem:[%s315 + $0xc0] sm:$0xff]
    %v1488 = vld [vmem:[%s315 + $0xc8] sm:$0xff]
    %v1489 = vld [vmem:[%s315 + $0xd8] sm:$0xff]
    %v1490 = vld [vmem:[%s315 + $0xe0] sm:$0xff]
    %v1491 = vld [vmem:[%s315 + $0xf0] sm:$0xff]
    %v1492 = vld [vmem:[%s315 + $0xf8] sm:$0xff]
    %v1493 = vld [vmem:[%s315 + $0x108] sm:$0xff]
    %v1494 = vld [vmem:[%s315 + $0x110] sm:$0xff]
    %v1495 = vld [vmem:[%s315 + $0x120] sm:$0xff]
    %v1496 = vld [vmem:[%s315 + $0x128] sm:$0xff]
    %v1497 = vld [vmem:[%s315 + $0x138] sm:$0xff]
    %v1498 = vld [vmem:[%s315 + $0x140] sm:$0xff]
    %v1499 = vld [vmem:[%s315 + $0x150] sm:$0xff]
    %v1500 = vld [vmem:[%s315 + $0x158] sm:$0xff]
    %v1501 = vld [vmem:[%s315 + $0x168] sm:$0xff]
    %v1502 = vld [vmem:[%s315 + $0x170] sm:$0xff]
    %v1503 = vld [vmem:[%s315 + $0x1b0] sm:$0xff]
    %v1504 = vld [vmem:[%s315 + $0x1b8] sm:$0xff]
    %v1505 = vld [vmem:[%s315 + $0x1c8] sm:$0xff]
    %v1506 = vld [vmem:[%s315 + $0x1d0] sm:$0xff]
    %v1507 = vld [vmem:[%s315 + $0x1e0] sm:$0xff]
    %v1508 = vld [vmem:[%s315 + $0x1e8] sm:$0xff]
    %v1509 = vld [vmem:[%s315 + $0x1f8] sm:$0xff]
    %v1510 = vld [vmem:[%s315 + $0x200] sm:$0xff]
    %v1511 = vld [vmem:[%s315 + $0x210] sm:$0xff]
    %v1512 = vld [vmem:[%s315 + $0x218] sm:$0xff]
    %v1513 = vld [vmem:[%s315 + $0x228] sm:$0xff]
    %v1514 = vld [vmem:[%s315 + $0x230] sm:$0xff]
    %v1515 = vld [vmem:[%s315 + $0x240] sm:$0xff]
    %v1516 = vld [vmem:[%s315 + $0x248] sm:$0xff]
    %v1517 = vld [vmem:[%s315 + $0x258] sm:$0xff]
    %v1518 = vld [vmem:[%s315 + $0x260] sm:$0xff]
    %v1519 = vld [vmem:[%s315 + $0x270] sm:$0xff]
    %v1520 = vld [vmem:[%s315 + $0x278] sm:$0xff]
    %v1521 = vld [vmem:[%s315 + $0x288] sm:$0xff]
    %v1522 = vld [vmem:[%s315 + $0x290] sm:$0xff]
    %v1523 = vld [vmem:[%s315 + $0x2a0] sm:$0xff]
    %v1524 = vld [vmem:[%s315 + $0x2a8] sm:$0xff]
    %v1525 = vld [vmem:[%s315 + $0x2b8] sm:$0xff]
    %v1526 = vld [vmem:[%s315 + $0x2c0] sm:$0xff]
    %v1527 = vld [vmem:[%s315 + $0x2d0] sm:$0xff]
    %v1528 = vld [vmem:[%s315 + $0x2d8] sm:$0xff]
    %v1529 = vld [vmem:[%s315 + $0x2e8] sm:$0xff]
    %v1530 = vld [vmem:[%s315 + $0x2f0] sm:$0xff]
    %v1531 = vld [vmem:[%s315 + $0x300] sm:$0xff]
    %v1532 = vld [vmem:[%s315 + $0x308] sm:$0xff]
    %v1533 = vld [vmem:[%s315 + $0x318] sm:$0xff]
    %v1534 = vld [vmem:[%s315 + $0x320] sm:$0xff]
    %v1535 = vpack.c.bf16 %v1471, %v1471
    %v1536 = vpack.c.bf16 %v1472, %v1472
    %v1537 = vpack.c.bf16 %v1473, %v1473
    %v1538 = vpack.c.bf16 %v1474, %v1474
    %v1539 = vpack.c.bf16 %v1475, %v1475
    %v1540 = vpack.c.bf16 %v1476, %v1476
    %v1541 = vpack.c.bf16 %v1477, %v1477
    %v1542 = vpack.c.bf16 %v1478, %v1478
    %v1543 = vpack.c.bf16 %v1479, %v1479
    %v1544 = vpack.c.bf16 %v1480, %v1480
    %v1545 = vpack.c.bf16 %v1481, %v1481
    %v1546 = vpack.c.bf16 %v1482, %v1482
    %v1547 = vpack.c.bf16 %v1483, %v1483
    %v1548 = vpack.c.bf16 %v1484, %v1484
    %v1549 = vpack.c.bf16 %v1485, %v1485
    %v1550 = vpack.c.bf16 %v1486, %v1486
    %v1551 = vpack.c.bf16 %v1487, %v1487
    %v1552 = vpack.c.bf16 %v1488, %v1488
    %v1553 = vpack.c.bf16 %v1489, %v1489
    %v1554 = vpack.c.bf16 %v1490, %v1490
    %v1555 = vpack.c.bf16 %v1491, %v1491
    %v1556 = vpack.c.bf16 %v1492, %v1492
    %v1557 = vpack.c.bf16 %v1493, %v1493
    %v1558 = vpack.c.bf16 %v1494, %v1494
    %v1559 = vpack.c.bf16 %v1495, %v1495
    %v1560 = vpack.c.bf16 %v1496, %v1496
    %v1561 = vpack.c.bf16 %v1497, %v1497
    %v1562 = vpack.c.bf16 %v1498, %v1498
    %v1563 = vpack.c.bf16 %v1499, %v1499
    %v1564 = vpack.c.bf16 %v1500, %v1500
    %v1565 = vpack.c.bf16 %v1501, %v1501
    %v1566 = vpack.c.bf16 %v1502, %v1502
    %v1567 = vpack.c.bf16 %v1503, %v1503
    %v1568 = vpack.c.bf16 %v1504, %v1504
    %v1569 = vpack.c.bf16 %v1505, %v1505
    %v1570 = vpack.c.bf16 %v1506, %v1506
    %v1571 = vpack.c.bf16 %v1507, %v1507
    %v1572 = vpack.c.bf16 %v1508, %v1508
    %v1573 = vpack.c.bf16 %v1509, %v1509
    %v1574 = vpack.c.bf16 %v1510, %v1510
    %v1575 = vpack.c.bf16 %v1511, %v1511
    %v1576 = vpack.c.bf16 %v1512, %v1512
    %v1577 = vpack.c.bf16 %v1513, %v1513
    %v1578 = vpack.c.bf16 %v1514, %v1514
    %v1579 = vpack.c.bf16 %v1515, %v1515
    %v1580 = vpack.c.bf16 %v1516, %v1516
    %v1581 = vpack.c.bf16 %v1517, %v1517
    %v1582 = vpack.c.bf16 %v1518, %v1518
    %v1583 = vpack.c.bf16 %v1519, %v1519
    %v1584 = vpack.c.bf16 %v1520, %v1520
    %v1585 = vpack.c.bf16 %v1521, %v1521
    %v1586 = vpack.c.bf16 %v1522, %v1522
    %v1587 = vpack.c.bf16 %v1523, %v1523
    %v1588 = vpack.c.bf16 %v1524, %v1524
    %v1589 = vpack.c.bf16 %v1525, %v1525
    %v1590 = vpack.c.bf16 %v1526, %v1526
    %v1591 = vpack.c.bf16 %v1527, %v1527
    %v1592 = vpack.c.bf16 %v1528, %v1528
    %v1593 = vpack.c.bf16 %v1529, %v1529
    %v1594 = vpack.c.bf16 %v1530, %v1530
    %v1595 = vpack.c.bf16 %v1531, %v1531
    %v1596 = vpack.c.bf16 %v1532, %v1532
    %v1597 = vpack.c.bf16 %v1533, %v1533
    %v1598 = vpack.c.bf16 %v1534, %v1534
    %1663 = vrot.lane.b32.xlu0 %v1535, 96
    %v1664 = vpop.permute.xlu0 %1663
    %1665 = vrot.lane.b32.xlu0 %v1536, 96
    %v1666 = vpop.permute.xlu0 %1665
    %1667 = vrot.lane.b32.xlu0 %v1537, 96
    %v1668 = vpop.permute.xlu0 %1667
    %1669 = vrot.lane.b32.xlu0 %v1538, 96
    %v1670 = vpop.permute.xlu0 %1669
    %1671 = vrot.lane.b32.xlu0 %v1539, 96
    %v1672 = vpop.permute.xlu0 %1671
    %1673 = vrot.lane.b32.xlu0 %v1540, 96
    %v1674 = vpop.permute.xlu0 %1673
    %1675 = vrot.lane.b32.xlu0 %v1541, 96
    %v1676 = vpop.permute.xlu0 %1675
    %1677 = vrot.lane.b32.xlu0 %v1542, 96
    %v1678 = vpop.permute.xlu0 %1677
    %1679 = vrot.lane.b32.xlu0 %v1543, 96
    %v1680 = vpop.permute.xlu0 %1679
    %1681 = vrot.lane.b32.xlu0 %v1544, 96
    %v1682 = vpop.permute.xlu0 %1681
    %1683 = vrot.lane.b32.xlu0 %v1545, 96
    %v1684 = vpop.permute.xlu0 %1683
    %1685 = vrot.lane.b32.xlu0 %v1546, 96
    %v1686 = vpop.permute.xlu0 %1685
    %1687 = vrot.lane.b32.xlu0 %v1547, 96
    %v1688 = vpop.permute.xlu0 %1687
    %1689 = vrot.lane.b32.xlu0 %v1548, 96
    %v1690 = vpop.permute.xlu0 %1689
    %1691 = vrot.lane.b32.xlu0 %v1549, 96
    %v1692 = vpop.permute.xlu0 %1691
    %1693 = vrot.lane.b32.xlu0 %v1550, 96
    %v1694 = vpop.permute.xlu0 %1693
    %1695 = vrot.lane.b32.xlu0 %v1551, 96
    %v1696 = vpop.permute.xlu0 %1695
    %1697 = vrot.lane.b32.xlu0 %v1552, 96
    %v1698 = vpop.permute.xlu0 %1697
    %1699 = vrot.lane.b32.xlu0 %v1553, 96
    %v1700 = vpop.permute.xlu0 %1699
    %1701 = vrot.lane.b32.xlu0 %v1554, 96
    %v1702 = vpop.permute.xlu0 %1701
    %1703 = vrot.lane.b32.xlu0 %v1555, 96
    %v1704 = vpop.permute.xlu0 %1703
    %1705 = vrot.lane.b32.xlu0 %v1556, 96
    %v1706 = vpop.permute.xlu0 %1705
    %1707 = vrot.lane.b32.xlu0 %v1557, 96
    %v1708 = vpop.permute.xlu0 %1707
    %1709 = vrot.lane.b32.xlu0 %v1558, 96
    %v1710 = vpop.permute.xlu0 %1709
    %1711 = vrot.lane.b32.xlu0 %v1559, 96
    %v1712 = vpop.permute.xlu0 %1711
    %1713 = vrot.lane.b32.xlu0 %v1560, 96
    %v1714 = vpop.permute.xlu0 %1713
    %1715 = vrot.lane.b32.xlu0 %v1561, 96
    %v1716 = vpop.permute.xlu0 %1715
    %1717 = vrot.lane.b32.xlu0 %v1562, 96
    %v1718 = vpop.permute.xlu0 %1717
    %1719 = vrot.lane.b32.xlu0 %v1563, 96
    %v1720 = vpop.permute.xlu0 %1719
    %1721 = vrot.lane.b32.xlu0 %v1564, 96
    %v1722 = vpop.permute.xlu0 %1721
    %1723 = vrot.lane.b32.xlu0 %v1565, 96
    %v1724 = vpop.permute.xlu0 %1723
    %1725 = vrot.lane.b32.xlu0 %v1566, 96
    %v1726 = vpop.permute.xlu0 %1725
    %1727 = vrot.lane.b32.xlu0 %v1567, 96
    %v1728 = vpop.permute.xlu0 %1727
    %1729 = vrot.lane.b32.xlu0 %v1568, 96
    %v1730 = vpop.permute.xlu0 %1729
    %1731 = vrot.lane.b32.xlu0 %v1569, 96
    %v1732 = vpop.permute.xlu0 %1731
    %1733 = vrot.lane.b32.xlu0 %v1570, 96
    %v1734 = vpop.permute.xlu0 %1733
    %1735 = vrot.lane.b32.xlu0 %v1571, 96
    %v1736 = vpop.permute.xlu0 %1735
    %1737 = vrot.lane.b32.xlu0 %v1572, 96
    %v1738 = vpop.permute.xlu0 %1737
    %1739 = vrot.lane.b32.xlu0 %v1573, 96
    %v1740 = vpop.permute.xlu0 %1739
    %1741 = vrot.lane.b32.xlu0 %v1574, 96
    %v1742 = vpop.permute.xlu0 %1741
    %1743 = vrot.lane.b32.xlu0 %v1575, 96
    %v1744 = vpop.permute.xlu0 %1743
    %1745 = vrot.lane.b32.xlu0 %v1576, 96
    %v1746 = vpop.permute.xlu0 %1745
    %1747 = vrot.lane.b32.xlu0 %v1577, 96
    %v1748 = vpop.permute.xlu0 %1747
    %1749 = vrot.lane.b32.xlu0 %v1578, 96
    %v1750 = vpop.permute.xlu0 %1749
    %1751 = vrot.lane.b32.xlu0 %v1579, 96
    %v1752 = vpop.permute.xlu0 %1751
    %1753 = vrot.lane.b32.xlu0 %v1580, 96
    %v1754 = vpop.permute.xlu0 %1753
    %1755 = vrot.lane.b32.xlu0 %v1581, 96
    %v1756 = vpop.permute.xlu0 %1755
    %1757 = vrot.lane.b32.xlu0 %v1582, 96
    %v1758 = vpop.permute.xlu0 %1757
    %1759 = vrot.lane.b32.xlu0 %v1583, 96
    %v1760 = vpop.permute.xlu0 %1759
    %1761 = vrot.lane.b32.xlu0 %v1584, 96
    %v1762 = vpop.permute.xlu0 %1761
    %1763 = vrot.lane.b32.xlu0 %v1585, 96
    %v1764 = vpop.permute.xlu0 %1763
    %1765 = vrot.lane.b32.xlu0 %v1586, 96
    %v1766 = vpop.permute.xlu0 %1765
    %1767 = vrot.lane.b32.xlu0 %v1587, 96
    %v1768 = vpop.permute.xlu0 %1767
    %1769 = vrot.lane.b32.xlu0 %v1588, 96
    %v1770 = vpop.permute.xlu0 %1769
    %1771 = vrot.lane.b32.xlu0 %v1589, 96
    %v1772 = vpop.permute.xlu0 %1771
    %1773 = vrot.lane.b32.xlu0 %v1590, 96
    %v1774 = vpop.permute.xlu0 %1773
    %1775 = vrot.lane.b32.xlu0 %v1591, 96
    %v1776 = vpop.permute.xlu0 %1775
    %1777 = vrot.lane.b32.xlu0 %v1592, 96
    %v1778 = vpop.permute.xlu0 %1777
    %1779 = vrot.lane.b32.xlu0 %v1593, 96
    %v1780 = vpop.permute.xlu0 %1779
    %1781 = vrot.lane.b32.xlu0 %v1594, 96
    %v1782 = vpop.permute.xlu0 %1781
    %1783 = vrot.lane.b32.xlu0 %v1595, 96
    %v1784 = vpop.permute.xlu0 %1783
    %1785 = vrot.lane.b32.xlu0 %v1596, 96
    %v1786 = vpop.permute.xlu0 %1785
    %1787 = vrot.lane.b32.xlu0 %v1597, 96
    %v1788 = vpop.permute.xlu0 %1787
    %1789 = vrot.lane.b32.xlu0 %v1598, 96
    %v1790 = vpop.permute.xlu0 %1789
    %vm1855 = vcmask 1044224
    %1856 = vst.msk [vmem:[#allocation4] sm:$0xf] %vm1855, %v1664
    %1857 = vst.msk [vmem:[#allocation4 + $0xc] sm:$0xf] %vm1855, %v1666
    %1858 = vst.msk [vmem:[#allocation4 + $0x18] sm:$0xf] %vm1855, %v1668
    %1859 = vst.msk [vmem:[#allocation4 + $0x24] sm:$0xf] %vm1855, %v1670
    %1860 = vst.msk [vmem:[#allocation4 + $0x30] sm:$0xf] %vm1855, %v1672
    %1861 = vst.msk [vmem:[#allocation4 + $0x3c] sm:$0xf] %vm1855, %v1674
    %1862 = vst.msk [vmem:[#allocation4 + $0x48] sm:$0xf] %vm1855, %v1676
    %1863 = vst.msk [vmem:[#allocation4 + $0x54] sm:$0xf] %vm1855, %v1678
    %1864 = vst.msk [vmem:[#allocation4 + $0x60] sm:$0xf] %vm1855, %v1680
    %1865 = vst.msk [vmem:[#allocation4 + $0x6c] sm:$0xf] %vm1855, %v1682
    %1866 = vst.msk [vmem:[#allocation4 + $0x78] sm:$0xf] %vm1855, %v1684
    %1867 = vst.msk [vmem:[#allocation4 + $0x84] sm:$0xf] %vm1855, %v1686
    %1868 = vst.msk [vmem:[#allocation4 + $0x90] sm:$0xf] %vm1855, %v1688
    %1869 = vst.msk [vmem:[#allocation4 + $0x9c] sm:$0xf] %vm1855, %v1690
    %1870 = vst.msk [vmem:[#allocation4 + $0xa8] sm:$0xf] %vm1855, %v1692
    %1871 = vst.msk [vmem:[#allocation4 + $0xb4] sm:$0xf] %vm1855, %v1694
    %1872 = vst.msk [vmem:[#allocation4 + $0xc0] sm:$0xf] %vm1855, %v1696
    %1873 = vst.msk [vmem:[#allocation4 + $0xcc] sm:$0xf] %vm1855, %v1698
    %1874 = vst.msk [vmem:[#allocation4 + $0xd8] sm:$0xf] %vm1855, %v1700
    %1875 = vst.msk [vmem:[#allocation4 + $0xe4] sm:$0xf] %vm1855, %v1702
    %1876 = vst.msk [vmem:[#allocation4 + $0xf0] sm:$0xf] %vm1855, %v1704
    %1877 = vst.msk [vmem:[#allocation4 + $0xfc] sm:$0xf] %vm1855, %v1706
    %1878 = vst.msk [vmem:[#allocation4 + $0x108] sm:$0xf] %vm1855, %v1708
    %1879 = vst.msk [vmem:[#allocation4 + $0x114] sm:$0xf] %vm1855, %v1710
    %1880 = vst.msk [vmem:[#allocation4 + $0x120] sm:$0xf] %vm1855, %v1712
    %1881 = vst.msk [vmem:[#allocation4 + $0x12c] sm:$0xf] %vm1855, %v1714
    %1882 = vst.msk [vmem:[#allocation4 + $0x138] sm:$0xf] %vm1855, %v1716
    %1883 = vst.msk [vmem:[#allocation4 + $0x144] sm:$0xf] %vm1855, %v1718
    %1884 = vst.msk [vmem:[#allocation4 + $0x150] sm:$0xf] %vm1855, %v1720
    %1885 = vst.msk [vmem:[#allocation4 + $0x15c] sm:$0xf] %vm1855, %v1722
    %1886 = vst.msk [vmem:[#allocation4 + $0x168] sm:$0xf] %vm1855, %v1724
    %1887 = vst.msk [vmem:[#allocation4 + $0x174] sm:$0xf] %vm1855, %v1726
    %1888 = vst.msk [vmem:[#allocation4 + $0x180] sm:$0xf] %vm1855, %v1728
    %1889 = vst.msk [vmem:[#allocation4 + $0x18c] sm:$0xf] %vm1855, %v1730
    %1890 = vst.msk [vmem:[#allocation4 + $0x198] sm:$0xf] %vm1855, %v1732
    %1891 = vst.msk [vmem:[#allocation4 + $0x1a4] sm:$0xf] %vm1855, %v1734
    %1892 = vst.msk [vmem:[#allocation4 + $0x1b0] sm:$0xf] %vm1855, %v1736
    %1893 = vst.msk [vmem:[#allocation4 + $0x1bc] sm:$0xf] %vm1855, %v1738
    %1894 = vst.msk [vmem:[#allocation4 + $0x1c8] sm:$0xf] %vm1855, %v1740
    %1895 = vst.msk [vmem:[#allocation4 + $0x1d4] sm:$0xf] %vm1855, %v1742
    %1896 = vst.msk [vmem:[#allocation4 + $0x1e0] sm:$0xf] %vm1855, %v1744
    %1897 = vst.msk [vmem:[#allocation4 + $0x1ec] sm:$0xf] %vm1855, %v1746
    %1898 = vst.msk [vmem:[#allocation4 + $0x1f8] sm:$0xf] %vm1855, %v1748
    %1899 = vst.msk [vmem:[#allocation4 + $0x204] sm:$0xf] %vm1855, %v1750
    %1900 = vst.msk [vmem:[#allocation4 + $0x210] sm:$0xf] %vm1855, %v1752
    %1901 = vst.msk [vmem:[#allocation4 + $0x21c] sm:$0xf] %vm1855, %v1754
    %1902 = vst.msk [vmem:[#allocation4 + $0x228] sm:$0xf] %vm1855, %v1756
    %1903 = vst.msk [vmem:[#allocation4 + $0x234] sm:$0xf] %vm1855, %v1758
    %1904 = vst.msk [vmem:[#allocation4 + $0x240] sm:$0xf] %vm1855, %v1760
    %1905 = vst.msk [vmem:[#allocation4 + $0x24c] sm:$0xf] %vm1855, %v1762
    %1906 = vst.msk [vmem:[#allocation4 + $0x258] sm:$0xf] %vm1855, %v1764
    %1907 = vst.msk [vmem:[#allocation4 + $0x264] sm:$0xf] %vm1855, %v1766
    %1908 = vst.msk [vmem:[#allocation4 + $0x270] sm:$0xf] %vm1855, %v1768
    %1909 = vst.msk [vmem:[#allocation4 + $0x27c] sm:$0xf] %vm1855, %v1770
    %1910 = vst.msk [vmem:[#allocation4 + $0x288] sm:$0xf] %vm1855, %v1772
    %1911 = vst.msk [vmem:[#allocation4 + $0x294] sm:$0xf] %vm1855, %v1774
    %1912 = vst.msk [vmem:[#allocation4 + $0x2a0] sm:$0xf] %vm1855, %v1776
    %1913 = vst.msk [vmem:[#allocation4 + $0x2ac] sm:$0xf] %vm1855, %v1778
    %1914 = vst.msk [vmem:[#allocation4 + $0x2b8] sm:$0xf] %vm1855, %v1780
    %1915 = vst.msk [vmem:[#allocation4 + $0x2c4] sm:$0xf] %vm1855, %v1782
    %1916 = vst.msk [vmem:[#allocation4 + $0x2d0] sm:$0xf] %vm1855, %v1784
    %1917 = vst.msk [vmem:[#allocation4 + $0x2dc] sm:$0xf] %vm1855, %v1786
    %1918 = vst.msk [vmem:[#allocation4 + $0x2e8] sm:$0xf] %vm1855, %v1788
    %1919 = vst.msk [vmem:[#allocation4 + $0x2f4] sm:$0xf] %vm1855, %v1790
    %v1920 = vld [vmem:[%s315 + $0x1] sm:$0xff]
    %v1921 = vld [vmem:[%s315 + $0x9] sm:$0xff]
    %v1922 = vld [vmem:[%s315 + $0x19] sm:$0xff]
    %v1923 = vld [vmem:[%s315 + $0x21] sm:$0xff]
    %v1924 = vld [vmem:[%s315 + $0x31] sm:$0xff]
    %v1925 = vld [vmem:[%s315 + $0x39] sm:$0xff]
    %v1926 = vld [vmem:[%s315 + $0x49] sm:$0xff]
    %v1927 = vld [vmem:[%s315 + $0x51] sm:$0xff]
    %v1928 = vld [vmem:[%s315 + $0x61] sm:$0xff]
    %v1929 = vld [vmem:[%s315 + $0x69] sm:$0xff]
    %v1930 = vld [vmem:[%s315 + $0x79] sm:$0xff]
    %v1931 = vld [vmem:[%s315 + $0x81] sm:$0xff]
    %v1932 = vld [vmem:[%s315 + $0x91] sm:$0xff]
    %v1933 = vld [vmem:[%s315 + $0x99] sm:$0xff]
    %v1934 = vld [vmem:[%s315 + $0xa9] sm:$0xff]
    %v1935 = vld [vmem:[%s315 + $0xb1] sm:$0xff]
    %v1936 = vld [vmem:[%s315 + $0xc1] sm:$0xff]
    %v1937 = vld [vmem:[%s315 + $0xc9] sm:$0xff]
    %v1938 = vld [vmem:[%s315 + $0xd9] sm:$0xff]
    %v1939 = vld [vmem:[%s315 + $0xe1] sm:$0xff]
    %v1940 = vld [vmem:[%s315 + $0xf1] sm:$0xff]
    %v1941 = vld [vmem:[%s315 + $0xf9] sm:$0xff]
    %v1942 = vld [vmem:[%s315 + $0x109] sm:$0xff]
    %v1943 = vld [vmem:[%s315 + $0x111] sm:$0xff]
    %v1944 = vld [vmem:[%s315 + $0x121] sm:$0xff]
    %v1945 = vld [vmem:[%s315 + $0x129] sm:$0xff]
    %v1946 = vld [vmem:[%s315 + $0x139] sm:$0xff]
    %v1947 = vld [vmem:[%s315 + $0x141] sm:$0xff]
    %v1948 = vld [vmem:[%s315 + $0x151] sm:$0xff]
    %v1949 = vld [vmem:[%s315 + $0x159] sm:$0xff]
    %v1950 = vld [vmem:[%s315 + $0x169] sm:$0xff]
    %v1951 = vld [vmem:[%s315 + $0x171] sm:$0xff]
    %v1952 = vld [vmem:[%s315 + $0x1b1] sm:$0xff]
    %v1953 = vld [vmem:[%s315 + $0x1b9] sm:$0xff]
    %v1954 = vld [vmem:[%s315 + $0x1c9] sm:$0xff]
    %v1955 = vld [vmem:[%s315 + $0x1d1] sm:$0xff]
    %v1956 = vld [vmem:[%s315 + $0x1e1] sm:$0xff]
    %v1957 = vld [vmem:[%s315 + $0x1e9] sm:$0xff]
    %v1958 = vld [vmem:[%s315 + $0x1f9] sm:$0xff]
    %v1959 = vld [vmem:[%s315 + $0x201] sm:$0xff]
    %v1960 = vld [vmem:[%s315 + $0x211] sm:$0xff]
    %v1961 = vld [vmem:[%s315 + $0x219] sm:$0xff]
    %v1962 = vld [vmem:[%s315 + $0x229] sm:$0xff]
    %v1963 = vld [vmem:[%s315 + $0x231] sm:$0xff]
    %v1964 = vld [vmem:[%s315 + $0x241] sm:$0xff]
    %v1965 = vld [vmem:[%s315 + $0x249] sm:$0xff]
    %v1966 = vld [vmem:[%s315 + $0x259] sm:$0xff]
    %v1967 = vld [vmem:[%s315 + $0x261] sm:$0xff]
    %v1968 = vld [vmem:[%s315 + $0x271] sm:$0xff]
    %v1969 = vld [vmem:[%s315 + $0x279] sm:$0xff]
    %v1970 = vld [vmem:[%s315 + $0x289] sm:$0xff]
    %v1971 = vld [vmem:[%s315 + $0x291] sm:$0xff]
    %v1972 = vld [vmem:[%s315 + $0x2a1] sm:$0xff]
    %v1973 = vld [vmem:[%s315 + $0x2a9] sm:$0xff]
    %v1974 = vld [vmem:[%s315 + $0x2b9] sm:$0xff]
    %v1975 = vld [vmem:[%s315 + $0x2c1] sm:$0xff]
    %v1976 = vld [vmem:[%s315 + $0x2d1] sm:$0xff]
    %v1977 = vld [vmem:[%s315 + $0x2d9] sm:$0xff]
    %v1978 = vld [vmem:[%s315 + $0x2e9] sm:$0xff]
    %v1979 = vld [vmem:[%s315 + $0x2f1] sm:$0xff]
    %v1980 = vld [vmem:[%s315 + $0x301] sm:$0xff]
    %v1981 = vld [vmem:[%s315 + $0x309] sm:$0xff]
    %v1982 = vld [vmem:[%s315 + $0x319] sm:$0xff]
    %v1983 = vld [vmem:[%s315 + $0x321] sm:$0xff]
    %v1984 = vpack.c.bf16 %v1920, %v1920
    %v1985 = vpack.c.bf16 %v1921, %v1921
    %v1986 = vpack.c.bf16 %v1922, %v1922
    %v1987 = vpack.c.bf16 %v1923, %v1923
    %v1988 = vpack.c.bf16 %v1924, %v1924
    %v1989 = vpack.c.bf16 %v1925, %v1925
    %v1990 = vpack.c.bf16 %v1926, %v1926
    %v1991 = vpack.c.bf16 %v1927, %v1927
    %v1992 = vpack.c.bf16 %v1928, %v1928
    %v1993 = vpack.c.bf16 %v1929, %v1929
    %v1994 = vpack.c.bf16 %v1930, %v1930
    %v1995 = vpack.c.bf16 %v1931, %v1931
    %v1996 = vpack.c.bf16 %v1932, %v1932
    %v1997 = vpack.c.bf16 %v1933, %v1933
    %v1998 = vpack.c.bf16 %v1934, %v1934
    %v1999 = vpack.c.bf16 %v1935, %v1935
    %v2000 = vpack.c.bf16 %v1936, %v1936
    %v2001 = vpack.c.bf16 %v1937, %v1937
    %v2002 = vpack.c.bf16 %v1938, %v1938
    %v2003 = vpack.c.bf16 %v1939, %v1939
    %v2004 = vpack.c.bf16 %v1940, %v1940
    %v2005 = vpack.c.bf16 %v1941, %v1941
    %v2006 = vpack.c.bf16 %v1942, %v1942
    %v2007 = vpack.c.bf16 %v1943, %v1943
    %v2008 = vpack.c.bf16 %v1944, %v1944
    %v2009 = vpack.c.bf16 %v1945, %v1945
    %v2010 = vpack.c.bf16 %v1946, %v1946
    %v2011 = vpack.c.bf16 %v1947, %v1947
    %v2012 = vpack.c.bf16 %v1948, %v1948
    %v2013 = vpack.c.bf16 %v1949, %v1949
    %v2014 = vpack.c.bf16 %v1950, %v1950
    %v2015 = vpack.c.bf16 %v1951, %v1951
    %v2016 = vpack.c.bf16 %v1952, %v1952
    %v2017 = vpack.c.bf16 %v1953, %v1953
    %v2018 = vpack.c.bf16 %v1954, %v1954
    %v2019 = vpack.c.bf16 %v1955, %v1955
    %v2020 = vpack.c.bf16 %v1956, %v1956
    %v2021 = vpack.c.bf16 %v1957, %v1957
    %v2022 = vpack.c.bf16 %v1958, %v1958
    %v2023 = vpack.c.bf16 %v1959, %v1959
    %v2024 = vpack.c.bf16 %v1960, %v1960
    %v2025 = vpack.c.bf16 %v1961, %v1961
    %v2026 = vpack.c.bf16 %v1962, %v1962
    %v2027 = vpack.c.bf16 %v1963, %v1963
    %v2028 = vpack.c.bf16 %v1964, %v1964
    %v2029 = vpack.c.bf16 %v1965, %v1965
    %v2030 = vpack.c.bf16 %v1966, %v1966
    %v2031 = vpack.c.bf16 %v1967, %v1967
    %v2032 = vpack.c.bf16 %v1968, %v1968
    %v2033 = vpack.c.bf16 %v1969, %v1969
    %v2034 = vpack.c.bf16 %v1970, %v1970
    %v2035 = vpack.c.bf16 %v1971, %v1971
    %v2036 = vpack.c.bf16 %v1972, %v1972
    %v2037 = vpack.c.bf16 %v1973, %v1973
    %v2038 = vpack.c.bf16 %v1974, %v1974
    %v2039 = vpack.c.bf16 %v1975, %v1975
    %v2040 = vpack.c.bf16 %v1976, %v1976
    %v2041 = vpack.c.bf16 %v1977, %v1977
    %v2042 = vpack.c.bf16 %v1978, %v1978
    %v2043 = vpack.c.bf16 %v1979, %v1979
    %v2044 = vpack.c.bf16 %v1980, %v1980
    %v2045 = vpack.c.bf16 %v1981, %v1981
    %v2046 = vpack.c.bf16 %v1982, %v1982
    %v2047 = vpack.c.bf16 %v1983, %v1983
    %2048 = vst.msk [vmem:[#allocation4 + $0x4] sm:$0xf] %vm508, %v1984
    %2049 = vst.msk [vmem:[#allocation4 + $0x10] sm:$0xf] %vm508, %v1985
    %2050 = vst.msk [vmem:[#allocation4 + $0x1c] sm:$0xf] %vm508, %v1986
    %2051 = vst.msk [vmem:[#allocation4 + $0x28] sm:$0xf] %vm508, %v1987
    %2052 = vst.msk [vmem:[#allocation4 + $0x34] sm:$0xf] %vm508, %v1988
    %2053 = vst.msk [vmem:[#allocation4 + $0x40] sm:$0xf] %vm508, %v1989
    %2054 = vst.msk [vmem:[#allocation4 + $0x4c] sm:$0xf] %vm508, %v1990
    %2055 = vst.msk [vmem:[#allocation4 + $0x58] sm:$0xf] %vm508, %v1991
    %2056 = vst.msk [vmem:[#allocation4 + $0x64] sm:$0xf] %vm508, %v1992
    %2057 = vst.msk [vmem:[#allocation4 + $0x70] sm:$0xf] %vm508, %v1993
    %2058 = vst.msk [vmem:[#allocation4 + $0x7c] sm:$0xf] %vm508, %v1994
    %2059 = vst.msk [vmem:[#allocation4 + $0x88] sm:$0xf] %vm508, %v1995
    %2060 = vst.msk [vmem:[#allocation4 + $0x94] sm:$0xf] %vm508, %v1996
    %2061 = vst.msk [vmem:[#allocation4 + $0xa0] sm:$0xf] %vm508, %v1997
    %2062 = vst.msk [vmem:[#allocation4 + $0xac] sm:$0xf] %vm508, %v1998
    %2063 = vst.msk [vmem:[#allocation4 + $0xb8] sm:$0xf] %vm508, %v1999
    %2064 = vst.msk [vmem:[#allocation4 + $0xc4] sm:$0xf] %vm508, %v2000
    %2065 = vst.msk [vmem:[#allocation4 + $0xd0] sm:$0xf] %vm508, %v2001
    %2066 = vst.msk [vmem:[#allocation4 + $0xdc] sm:$0xf] %vm508, %v2002
    %2067 = vst.msk [vmem:[#allocation4 + $0xe8] sm:$0xf] %vm508, %v2003
    %2068 = vst.msk [vmem:[#allocation4 + $0xf4] sm:$0xf] %vm508, %v2004
    %2069 = vst.msk [vmem:[#allocation4 + $0x100] sm:$0xf] %vm508, %v2005
    %2070 = vst.msk [vmem:[#allocation4 + $0x10c] sm:$0xf] %vm508, %v2006
    %2071 = vst.msk [vmem:[#allocation4 + $0x118] sm:$0xf] %vm508, %v2007
    %2072 = vst.msk [vmem:[#allocation4 + $0x124] sm:$0xf] %vm508, %v2008
    %2073 = vst.msk [vmem:[#allocation4 + $0x130] sm:$0xf] %vm508, %v2009
    %2074 = vst.msk [vmem:[#allocation4 + $0x13c] sm:$0xf] %vm508, %v2010
    %2075 = vst.msk [vmem:[#allocation4 + $0x148] sm:$0xf] %vm508, %v2011
    %2076 = vst.msk [vmem:[#allocation4 + $0x154] sm:$0xf] %vm508, %v2012
    %2077 = vst.msk [vmem:[#allocation4 + $0x160] sm:$0xf] %vm508, %v2013
    %2078 = vst.msk [vmem:[#allocation4 + $0x16c] sm:$0xf] %vm508, %v2014
    %2079 = vst.msk [vmem:[#allocation4 + $0x178] sm:$0xf] %vm508, %v2015
    %2080 = vst.msk [vmem:[#allocation4 + $0x184] sm:$0xf] %vm508, %v2016
    %2081 = vst.msk [vmem:[#allocation4 + $0x190] sm:$0xf] %vm508, %v2017
    %2082 = vst.msk [vmem:[#allocation4 + $0x19c] sm:$0xf] %vm508, %v2018
    %2083 = vst.msk [vmem:[#allocation4 + $0x1a8] sm:$0xf] %vm508, %v2019
    %2084 = vst.msk [vmem:[#allocation4 + $0x1b4] sm:$0xf] %vm508, %v2020
    %2085 = vst.msk [vmem:[#allocation4 + $0x1c0] sm:$0xf] %vm508, %v2021
    %2086 = vst.msk [vmem:[#allocation4 + $0x1cc] sm:$0xf] %vm508, %v2022
    %2087 = vst.msk [vmem:[#allocation4 + $0x1d8] sm:$0xf] %vm508, %v2023
    %2088 = vst.msk [vmem:[#allocation4 + $0x1e4] sm:$0xf] %vm508, %v2024
    %2089 = vst.msk [vmem:[#allocation4 + $0x1f0] sm:$0xf] %vm508, %v2025
    %2090 = vst.msk [vmem:[#allocation4 + $0x1fc] sm:$0xf] %vm508, %v2026
    %2091 = vst.msk [vmem:[#allocation4 + $0x208] sm:$0xf] %vm508, %v2027
    %2092 = vst.msk [vmem:[#allocation4 + $0x214] sm:$0xf] %vm508, %v2028
    %2093 = vst.msk [vmem:[#allocation4 + $0x220] sm:$0xf] %vm508, %v2029
    %2094 = vst.msk [vmem:[#allocation4 + $0x22c] sm:$0xf] %vm508, %v2030
    %2095 = vst.msk [vmem:[#allocation4 + $0x238] sm:$0xf] %vm508, %v2031
    %2096 = vst.msk [vmem:[#allocation4 + $0x244] sm:$0xf] %vm508, %v2032
    %2097 = vst.msk [vmem:[#allocation4 + $0x250] sm:$0xf] %vm508, %v2033
    %2098 = vst.msk [vmem:[#allocation4 + $0x25c] sm:$0xf] %vm508, %v2034
    %2099 = vst.msk [vmem:[#allocation4 + $0x268] sm:$0xf] %vm508, %v2035
    %2100 = vst.msk [vmem:[#allocation4 + $0x274] sm:$0xf] %vm508, %v2036
    %2101 = vst.msk [vmem:[#allocation4 + $0x280] sm:$0xf] %vm508, %v2037
    %2102 = vst.msk [vmem:[#allocation4 + $0x28c] sm:$0xf] %vm508, %v2038
    %2103 = vst.msk [vmem:[#allocation4 + $0x298] sm:$0xf] %vm508, %v2039
    %2104 = vst.msk [vmem:[#allocation4 + $0x2a4] sm:$0xf] %vm508, %v2040
    %2105 = vst.msk [vmem:[#allocation4 + $0x2b0] sm:$0xf] %vm508, %v2041
    %2106 = vst.msk [vmem:[#allocation4 + $0x2bc] sm:$0xf] %vm508, %v2042
    %2107 = vst.msk [vmem:[#allocation4 + $0x2c8] sm:$0xf] %vm508, %v2043
    %2108 = vst.msk [vmem:[#allocation4 + $0x2d4] sm:$0xf] %vm508, %v2044
    %2109 = vst.msk [vmem:[#allocation4 + $0x2e0] sm:$0xf] %vm508, %v2045
    %2110 = vst.msk [vmem:[#allocation4 + $0x2ec] sm:$0xf] %vm508, %v2046
    %2111 = vst.msk [vmem:[#allocation4 + $0x2f8] sm:$0xf] %vm508, %v2047
    %v2112 = vld [vmem:[%s315 + $0x2] sm:$0xff]
    %v2113 = vld [vmem:[%s315 + $0xa] sm:$0xff]
    %v2114 = vld [vmem:[%s315 + $0x1a] sm:$0xff]
    %v2115 = vld [vmem:[%s315 + $0x22] sm:$0xff]
    %v2116 = vld [vmem:[%s315 + $0x32] sm:$0xff]
    %v2117 = vld [vmem:[%s315 + $0x3a] sm:$0xff]
    %v2118 = vld [vmem:[%s315 + $0x4a] sm:$0xff]
    %v2119 = vld [vmem:[%s315 + $0x52] sm:$0xff]
    %v2120 = vld [vmem:[%s315 + $0x62] sm:$0xff]
    %v2121 = vld [vmem:[%s315 + $0x6a] sm:$0xff]
    %v2122 = vld [vmem:[%s315 + $0x7a] sm:$0xff]
    %v2123 = vld [vmem:[%s315 + $0x82] sm:$0xff]
    %v2124 = vld [vmem:[%s315 + $0x92] sm:$0xff]
    %v2125 = vld [vmem:[%s315 + $0x9a] sm:$0xff]
    %v2126 = vld [vmem:[%s315 + $0xaa] sm:$0xff]
    %v2127 = vld [vmem:[%s315 + $0xb2] sm:$0xff]
    %v2128 = vld [vmem:[%s315 + $0xc2] sm:$0xff]
    %v2129 = vld [vmem:[%s315 + $0xca] sm:$0xff]
    %v2130 = vld [vmem:[%s315 + $0xda] sm:$0xff]
    %v2131 = vld [vmem:[%s315 + $0xe2] sm:$0xff]
    %v2132 = vld [vmem:[%s315 + $0xf2] sm:$0xff]
    %v2133 = vld [vmem:[%s315 + $0xfa] sm:$0xff]
    %v2134 = vld [vmem:[%s315 + $0x10a] sm:$0xff]
    %v2135 = vld [vmem:[%s315 + $0x112] sm:$0xff]
    %v2136 = vld [vmem:[%s315 + $0x122] sm:$0xff]
    %v2137 = vld [vmem:[%s315 + $0x12a] sm:$0xff]
    %v2138 = vld [vmem:[%s315 + $0x13a] sm:$0xff]
    %v2139 = vld [vmem:[%s315 + $0x142] sm:$0xff]
    %v2140 = vld [vmem:[%s315 + $0x152] sm:$0xff]
    %v2141 = vld [vmem:[%s315 + $0x15a] sm:$0xff]
    %v2142 = vld [vmem:[%s315 + $0x16a] sm:$0xff]
    %v2143 = vld [vmem:[%s315 + $0x172] sm:$0xff]
    %v2144 = vld [vmem:[%s315 + $0x1b2] sm:$0xff]
    %v2145 = vld [vmem:[%s315 + $0x1ba] sm:$0xff]
    %v2146 = vld [vmem:[%s315 + $0x1ca] sm:$0xff]
    %v2147 = vld [vmem:[%s315 + $0x1d2] sm:$0xff]
    %v2148 = vld [vmem:[%s315 + $0x1e2] sm:$0xff]
    %v2149 = vld [vmem:[%s315 + $0x1ea] sm:$0xff]
    %v2150 = vld [vmem:[%s315 + $0x1fa] sm:$0xff]
    %v2151 = vld [vmem:[%s315 + $0x202] sm:$0xff]
    %v2152 = vld [vmem:[%s315 + $0x212] sm:$0xff]
    %v2153 = vld [vmem:[%s315 + $0x21a] sm:$0xff]
    %v2154 = vld [vmem:[%s315 + $0x22a] sm:$0xff]
    %v2155 = vld [vmem:[%s315 + $0x232] sm:$0xff]
    %v2156 = vld [vmem:[%s315 + $0x242] sm:$0xff]
    %v2157 = vld [vmem:[%s315 + $0x24a] sm:$0xff]
    %v2158 = vld [vmem:[%s315 + $0x25a] sm:$0xff]
    %v2159 = vld [vmem:[%s315 + $0x262] sm:$0xff]
    %v2160 = vld [vmem:[%s315 + $0x272] sm:$0xff]
    %v2161 = vld [vmem:[%s315 + $0x27a] sm:$0xff]
    %v2162 = vld [vmem:[%s315 + $0x28a] sm:$0xff]
    %v2163 = vld [vmem:[%s315 + $0x292] sm:$0xff]
    %v2164 = vld [vmem:[%s315 + $0x2a2] sm:$0xff]
    %v2165 = vld [vmem:[%s315 + $0x2aa] sm:$0xff]
    %v2166 = vld [vmem:[%s315 + $0x2ba] sm:$0xff]
    %v2167 = vld [vmem:[%s315 + $0x2c2] sm:$0xff]
    %v2168 = vld [vmem:[%s315 + $0x2d2] sm:$0xff]
    %v2169 = vld [vmem:[%s315 + $0x2da] sm:$0xff]
    %v2170 = vld [vmem:[%s315 + $0x2ea] sm:$0xff]
    %v2171 = vld [vmem:[%s315 + $0x2f2] sm:$0xff]
    %v2172 = vld [vmem:[%s315 + $0x302] sm:$0xff]
    %v2173 = vld [vmem:[%s315 + $0x30a] sm:$0xff]
    %v2174 = vld [vmem:[%s315 + $0x31a] sm:$0xff]
    %v2175 = vld [vmem:[%s315 + $0x322] sm:$0xff]
    %v2176 = vpack.c.bf16 %v2112, %v2112
    %v2177 = vpack.c.bf16 %v2113, %v2113
    %v2178 = vpack.c.bf16 %v2114, %v2114
    %v2179 = vpack.c.bf16 %v2115, %v2115
    %v2180 = vpack.c.bf16 %v2116, %v2116
    %v2181 = vpack.c.bf16 %v2117, %v2117
    %v2182 = vpack.c.bf16 %v2118, %v2118
    %v2183 = vpack.c.bf16 %v2119, %v2119
    %v2184 = vpack.c.bf16 %v2120, %v2120
    %v2185 = vpack.c.bf16 %v2121, %v2121
    %v2186 = vpack.c.bf16 %v2122, %v2122
    %v2187 = vpack.c.bf16 %v2123, %v2123
    %v2188 = vpack.c.bf16 %v2124, %v2124
    %v2189 = vpack.c.bf16 %v2125, %v2125
    %v2190 = vpack.c.bf16 %v2126, %v2126
    %v2191 = vpack.c.bf16 %v2127, %v2127
    %v2192 = vpack.c.bf16 %v2128, %v2128
    %v2193 = vpack.c.bf16 %v2129, %v2129
    %v2194 = vpack.c.bf16 %v2130, %v2130
    %v2195 = vpack.c.bf16 %v2131, %v2131
    %v2196 = vpack.c.bf16 %v2132, %v2132
    %v2197 = vpack.c.bf16 %v2133, %v2133
    %v2198 = vpack.c.bf16 %v2134, %v2134
    %v2199 = vpack.c.bf16 %v2135, %v2135
    %v2200 = vpack.c.bf16 %v2136, %v2136
    %v2201 = vpack.c.bf16 %v2137, %v2137
    %v2202 = vpack.c.bf16 %v2138, %v2138
    %v2203 = vpack.c.bf16 %v2139, %v2139
    %v2204 = vpack.c.bf16 %v2140, %v2140
    %v2205 = vpack.c.bf16 %v2141, %v2141
    %v2206 = vpack.c.bf16 %v2142, %v2142
    %v2207 = vpack.c.bf16 %v2143, %v2143
    %v2208 = vpack.c.bf16 %v2144, %v2144
    %v2209 = vpack.c.bf16 %v2145, %v2145
    %v2210 = vpack.c.bf16 %v2146, %v2146
    %v2211 = vpack.c.bf16 %v2147, %v2147
    %v2212 = vpack.c.bf16 %v2148, %v2148
    %v2213 = vpack.c.bf16 %v2149, %v2149
    %v2214 = vpack.c.bf16 %v2150, %v2150
    %v2215 = vpack.c.bf16 %v2151, %v2151
    %v2216 = vpack.c.bf16 %v2152, %v2152
    %v2217 = vpack.c.bf16 %v2153, %v2153
    %v2218 = vpack.c.bf16 %v2154, %v2154
    %v2219 = vpack.c.bf16 %v2155, %v2155
    %v2220 = vpack.c.bf16 %v2156, %v2156
    %v2221 = vpack.c.bf16 %v2157, %v2157
    %v2222 = vpack.c.bf16 %v2158, %v2158
    %v2223 = vpack.c.bf16 %v2159, %v2159
    %v2224 = vpack.c.bf16 %v2160, %v2160
    %v2225 = vpack.c.bf16 %v2161, %v2161
    %v2226 = vpack.c.bf16 %v2162, %v2162
    %v2227 = vpack.c.bf16 %v2163, %v2163
    %v2228 = vpack.c.bf16 %v2164, %v2164
    %v2229 = vpack.c.bf16 %v2165, %v2165
    %v2230 = vpack.c.bf16 %v2166, %v2166
    %v2231 = vpack.c.bf16 %v2167, %v2167
    %v2232 = vpack.c.bf16 %v2168, %v2168
    %v2233 = vpack.c.bf16 %v2169, %v2169
    %v2234 = vpack.c.bf16 %v2170, %v2170
    %v2235 = vpack.c.bf16 %v2171, %v2171
    %v2236 = vpack.c.bf16 %v2172, %v2172
    %v2237 = vpack.c.bf16 %v2173, %v2173
    %v2238 = vpack.c.bf16 %v2174, %v2174
    %v2239 = vpack.c.bf16 %v2175, %v2175
    %2304 = vrot.lane.b32.xlu0 %v2176, 32
    %v2305 = vpop.permute.xlu0 %2304
    %2306 = vrot.lane.b32.xlu0 %v2177, 32
    %v2307 = vpop.permute.xlu0 %2306
    %2308 = vrot.lane.b32.xlu0 %v2178, 32
    %v2309 = vpop.permute.xlu0 %2308
    %2310 = vrot.lane.b32.xlu0 %v2179, 32
    %v2311 = vpop.permute.xlu0 %2310
    %2312 = vrot.lane.b32.xlu0 %v2180, 32
    %v2313 = vpop.permute.xlu0 %2312
    %2314 = vrot.lane.b32.xlu0 %v2181, 32
    %v2315 = vpop.permute.xlu0 %2314
    %2316 = vrot.lane.b32.xlu0 %v2182, 32
    %v2317 = vpop.permute.xlu0 %2316
    %2318 = vrot.lane.b32.xlu0 %v2183, 32
    %v2319 = vpop.permute.xlu0 %2318
    %2320 = vrot.lane.b32.xlu0 %v2184, 32
    %v2321 = vpop.permute.xlu0 %2320
    %2322 = vrot.lane.b32.xlu0 %v2185, 32
    %v2323 = vpop.permute.xlu0 %2322
    %2324 = vrot.lane.b32.xlu0 %v2186, 32
    %v2325 = vpop.permute.xlu0 %2324
    %2326 = vrot.lane.b32.xlu0 %v2187, 32
    %v2327 = vpop.permute.xlu0 %2326
    %2328 = vrot.lane.b32.xlu0 %v2188, 32
    %v2329 = vpop.permute.xlu0 %2328
    %2330 = vrot.lane.b32.xlu0 %v2189, 32
    %v2331 = vpop.permute.xlu0 %2330
    %2332 = vrot.lane.b32.xlu0 %v2190, 32
    %v2333 = vpop.permute.xlu0 %2332
    %2334 = vrot.lane.b32.xlu0 %v2191, 32
    %v2335 = vpop.permute.xlu0 %2334
    %2336 = vrot.lane.b32.xlu0 %v2192, 32
    %v2337 = vpop.permute.xlu0 %2336
    %2338 = vrot.lane.b32.xlu0 %v2193, 32
    %v2339 = vpop.permute.xlu0 %2338
    %2340 = vrot.lane.b32.xlu0 %v2194, 32
    %v2341 = vpop.permute.xlu0 %2340
    %2342 = vrot.lane.b32.xlu0 %v2195, 32
    %v2343 = vpop.permute.xlu0 %2342
    %2344 = vrot.lane.b32.xlu0 %v2196, 32
    %v2345 = vpop.permute.xlu0 %2344
    %2346 = vrot.lane.b32.xlu0 %v2197, 32
    %v2347 = vpop.permute.xlu0 %2346
    %2348 = vrot.lane.b32.xlu0 %v2198, 32
    %v2349 = vpop.permute.xlu0 %2348
    %2350 = vrot.lane.b32.xlu0 %v2199, 32
    %v2351 = vpop.permute.xlu0 %2350
    %2352 = vrot.lane.b32.xlu0 %v2200, 32
    %v2353 = vpop.permute.xlu0 %2352
    %2354 = vrot.lane.b32.xlu0 %v2201, 32
    %v2355 = vpop.permute.xlu0 %2354
    %2356 = vrot.lane.b32.xlu0 %v2202, 32
    %v2357 = vpop.permute.xlu0 %2356
    %2358 = vrot.lane.b32.xlu0 %v2203, 32
    %v2359 = vpop.permute.xlu0 %2358
    %2360 = vrot.lane.b32.xlu0 %v2204, 32
    %v2361 = vpop.permute.xlu0 %2360
    %2362 = vrot.lane.b32.xlu0 %v2205, 32
    %v2363 = vpop.permute.xlu0 %2362
    %2364 = vrot.lane.b32.xlu0 %v2206, 32
    %v2365 = vpop.permute.xlu0 %2364
    %2366 = vrot.lane.b32.xlu0 %v2207, 32
    %v2367 = vpop.permute.xlu0 %2366
    %2368 = vrot.lane.b32.xlu0 %v2208, 32
    %v2369 = vpop.permute.xlu0 %2368
    %2370 = vrot.lane.b32.xlu0 %v2209, 32
    %v2371 = vpop.permute.xlu0 %2370
    %2372 = vrot.lane.b32.xlu0 %v2210, 32
    %v2373 = vpop.permute.xlu0 %2372
    %2374 = vrot.lane.b32.xlu0 %v2211, 32
    %v2375 = vpop.permute.xlu0 %2374
    %2376 = vrot.lane.b32.xlu0 %v2212, 32
    %v2377 = vpop.permute.xlu0 %2376
    %2378 = vrot.lane.b32.xlu0 %v2213, 32
    %v2379 = vpop.permute.xlu0 %2378
    %2380 = vrot.lane.b32.xlu0 %v2214, 32
    %v2381 = vpop.permute.xlu0 %2380
    %2382 = vrot.lane.b32.xlu0 %v2215, 32
    %v2383 = vpop.permute.xlu0 %2382
    %2384 = vrot.lane.b32.xlu0 %v2216, 32
    %v2385 = vpop.permute.xlu0 %2384
    %2386 = vrot.lane.b32.xlu0 %v2217, 32
    %v2387 = vpop.permute.xlu0 %2386
    %2388 = vrot.lane.b32.xlu0 %v2218, 32
    %v2389 = vpop.permute.xlu0 %2388
    %2390 = vrot.lane.b32.xlu0 %v2219, 32
    %v2391 = vpop.permute.xlu0 %2390
    %2392 = vrot.lane.b32.xlu0 %v2220, 32
    %v2393 = vpop.permute.xlu0 %2392
    %2394 = vrot.lane.b32.xlu0 %v2221, 32
    %v2395 = vpop.permute.xlu0 %2394
    %2396 = vrot.lane.b32.xlu0 %v2222, 32
    %v2397 = vpop.permute.xlu0 %2396
    %2398 = vrot.lane.b32.xlu0 %v2223, 32
    %v2399 = vpop.permute.xlu0 %2398
    %2400 = vrot.lane.b32.xlu0 %v2224, 32
    %v2401 = vpop.permute.xlu0 %2400
    %2402 = vrot.lane.b32.xlu0 %v2225, 32
    %v2403 = vpop.permute.xlu0 %2402
    %2404 = vrot.lane.b32.xlu0 %v2226, 32
    %v2405 = vpop.permute.xlu0 %2404
    %2406 = vrot.lane.b32.xlu0 %v2227, 32
    %v2407 = vpop.permute.xlu0 %2406
    %2408 = vrot.lane.b32.xlu0 %v2228, 32
    %v2409 = vpop.permute.xlu0 %2408
    %2410 = vrot.lane.b32.xlu0 %v2229, 32
    %v2411 = vpop.permute.xlu0 %2410
    %2412 = vrot.lane.b32.xlu0 %v2230, 32
    %v2413 = vpop.permute.xlu0 %2412
    %2414 = vrot.lane.b32.xlu0 %v2231, 32
    %v2415 = vpop.permute.xlu0 %2414
    %2416 = vrot.lane.b32.xlu0 %v2232, 32
    %v2417 = vpop.permute.xlu0 %2416
    %2418 = vrot.lane.b32.xlu0 %v2233, 32
    %v2419 = vpop.permute.xlu0 %2418
    %2420 = vrot.lane.b32.xlu0 %v2234, 32
    %v2421 = vpop.permute.xlu0 %2420
    %2422 = vrot.lane.b32.xlu0 %v2235, 32
    %v2423 = vpop.permute.xlu0 %2422
    %2424 = vrot.lane.b32.xlu0 %v2236, 32
    %v2425 = vpop.permute.xlu0 %2424
    %2426 = vrot.lane.b32.xlu0 %v2237, 32
    %v2427 = vpop.permute.xlu0 %2426
    %2428 = vrot.lane.b32.xlu0 %v2238, 32
    %v2429 = vpop.permute.xlu0 %2428
    %2430 = vrot.lane.b32.xlu0 %v2239, 32
    %v2431 = vpop.permute.xlu0 %2430
    %2496 = vst.msk [vmem:[#allocation4 + $0x4] sm:$0xf] %vm957, %v2305
    %2497 = vst.msk [vmem:[#allocation4 + $0x10] sm:$0xf] %vm957, %v2307
    %2498 = vst.msk [vmem:[#allocation4 + $0x1c] sm:$0xf] %vm957, %v2309
    %2499 = vst.msk [vmem:[#allocation4 + $0x28] sm:$0xf] %vm957, %v2311
    %2500 = vst.msk [vmem:[#allocation4 + $0x34] sm:$0xf] %vm957, %v2313
    %2501 = vst.msk [vmem:[#allocation4 + $0x40] sm:$0xf] %vm957, %v2315
    %2502 = vst.msk [vmem:[#allocation4 + $0x4c] sm:$0xf] %vm957, %v2317
    %2503 = vst.msk [vmem:[#allocation4 + $0x58] sm:$0xf] %vm957, %v2319
    %2504 = vst.msk [vmem:[#allocation4 + $0x64] sm:$0xf] %vm957, %v2321
    %2505 = vst.msk [vmem:[#allocation4 + $0x70] sm:$0xf] %vm957, %v2323
    %2506 = vst.msk [vmem:[#allocation4 + $0x7c] sm:$0xf] %vm957, %v2325
    %2507 = vst.msk [vmem:[#allocation4 + $0x88] sm:$0xf] %vm957, %v2327
    %2508 = vst.msk [vmem:[#allocation4 + $0x94] sm:$0xf] %vm957, %v2329
    %2509 = vst.msk [vmem:[#allocation4 + $0xa0] sm:$0xf] %vm957, %v2331
    %2510 = vst.msk [vmem:[#allocation4 + $0xac] sm:$0xf] %vm957, %v2333
    %2511 = vst.msk [vmem:[#allocation4 + $0xb8] sm:$0xf] %vm957, %v2335
    %2512 = vst.msk [vmem:[#allocation4 + $0xc4] sm:$0xf] %vm957, %v2337
    %2513 = vst.msk [vmem:[#allocation4 + $0xd0] sm:$0xf] %vm957, %v2339
    %2514 = vst.msk [vmem:[#allocation4 + $0xdc] sm:$0xf] %vm957, %v2341
    %2515 = vst.msk [vmem:[#allocation4 + $0xe8] sm:$0xf] %vm957, %v2343
    %2516 = vst.msk [vmem:[#allocation4 + $0xf4] sm:$0xf] %vm957, %v2345
    %2517 = vst.msk [vmem:[#allocation4 + $0x100] sm:$0xf] %vm957, %v2347
    %2518 = vst.msk [vmem:[#allocation4 + $0x10c] sm:$0xf] %vm957, %v2349
    %2519 = vst.msk [vmem:[#allocation4 + $0x118] sm:$0xf] %vm957, %v2351
    %2520 = vst.msk [vmem:[#allocation4 + $0x124] sm:$0xf] %vm957, %v2353
    %2521 = vst.msk [vmem:[#allocation4 + $0x130] sm:$0xf] %vm957, %v2355
    %2522 = vst.msk [vmem:[#allocation4 + $0x13c] sm:$0xf] %vm957, %v2357
    %2523 = vst.msk [vmem:[#allocation4 + $0x148] sm:$0xf] %vm957, %v2359
    %2524 = vst.msk [vmem:[#allocation4 + $0x154] sm:$0xf] %vm957, %v2361
    %2525 = vst.msk [vmem:[#allocation4 + $0x160] sm:$0xf] %vm957, %v2363
    %2526 = vst.msk [vmem:[#allocation4 + $0x16c] sm:$0xf] %vm957, %v2365
    %2527 = vst.msk [vmem:[#allocation4 + $0x178] sm:$0xf] %vm957, %v2367
    %2528 = vst.msk [vmem:[#allocation4 + $0x184] sm:$0xf] %vm957, %v2369
    %2529 = vst.msk [vmem:[#allocation4 + $0x190] sm:$0xf] %vm957, %v2371
    %2530 = vst.msk [vmem:[#allocation4 + $0x19c] sm:$0xf] %vm957, %v2373
    %2531 = vst.msk [vmem:[#allocation4 + $0x1a8] sm:$0xf] %vm957, %v2375
    %2532 = vst.msk [vmem:[#allocation4 + $0x1b4] sm:$0xf] %vm957, %v2377
    %2533 = vst.msk [vmem:[#allocation4 + $0x1c0] sm:$0xf] %vm957, %v2379
    %2534 = vst.msk [vmem:[#allocation4 + $0x1cc] sm:$0xf] %vm957, %v2381
    %2535 = vst.msk [vmem:[#allocation4 + $0x1d8] sm:$0xf] %vm957, %v2383
    %2536 = vst.msk [vmem:[#allocation4 + $0x1e4] sm:$0xf] %vm957, %v2385
    %2537 = vst.msk [vmem:[#allocation4 + $0x1f0] sm:$0xf] %vm957, %v2387
    %2538 = vst.msk [vmem:[#allocation4 + $0x1fc] sm:$0xf] %vm957, %v2389
    %2539 = vst.msk [vmem:[#allocation4 + $0x208] sm:$0xf] %vm957, %v2391
    %2540 = vst.msk [vmem:[#allocation4 + $0x214] sm:$0xf] %vm957, %v2393
    %2541 = vst.msk [vmem:[#allocation4 + $0x220] sm:$0xf] %vm957, %v2395
    %2542 = vst.msk [vmem:[#allocation4 + $0x22c] sm:$0xf] %vm957, %v2397
    %2543 = vst.msk [vmem:[#allocation4 + $0x238] sm:$0xf] %vm957, %v2399
    %2544 = vst.msk [vmem:[#allocation4 + $0x244] sm:$0xf] %vm957, %v2401
    %2545 = vst.msk [vmem:[#allocation4 + $0x250] sm:$0xf] %vm957, %v2403
    %2546 = vst.msk [vmem:[#allocation4 + $0x25c] sm:$0xf] %vm957, %v2405
    %2547 = vst.msk [vmem:[#allocation4 + $0x268] sm:$0xf] %vm957, %v2407
    %2548 = vst.msk [vmem:[#allocation4 + $0x274] sm:$0xf] %vm957, %v2409
    %2549 = vst.msk [vmem:[#allocation4 + $0x280] sm:$0xf] %vm957, %v2411
    %2550 = vst.msk [vmem:[#allocation4 + $0x28c] sm:$0xf] %vm957, %v2413
    %2551 = vst.msk [vmem:[#allocation4 + $0x298] sm:$0xf] %vm957, %v2415
    %2552 = vst.msk [vmem:[#allocation4 + $0x2a4] sm:$0xf] %vm957, %v2417
    %2553 = vst.msk [vmem:[#allocation4 + $0x2b0] sm:$0xf] %vm957, %v2419
    %2554 = vst.msk [vmem:[#allocation4 + $0x2bc] sm:$0xf] %vm957, %v2421
    %2555 = vst.msk [vmem:[#allocation4 + $0x2c8] sm:$0xf] %vm957, %v2423
    %2556 = vst.msk [vmem:[#allocation4 + $0x2d4] sm:$0xf] %vm957, %v2425
    %2557 = vst.msk [vmem:[#allocation4 + $0x2e0] sm:$0xf] %vm957, %v2427
    %2558 = vst.msk [vmem:[#allocation4 + $0x2ec] sm:$0xf] %vm957, %v2429
    %2559 = vst.msk [vmem:[#allocation4 + $0x2f8] sm:$0xf] %vm957, %v2431
    %s2560 = scalar_lea.vmem [#allocation2], 48
    %v2561 = vld [vmem:[%s2560] sm:$0xff]
    %v2562 = vld [vmem:[%s2560 + $0x8] sm:$0xff]
    %v2563 = vld [vmem:[%s2560 + $0x18] sm:$0xff]
    %v2564 = vld [vmem:[%s2560 + $0x20] sm:$0xff]
    %v2565 = vld [vmem:[%s2560 + $0x30] sm:$0xff]
    %v2566 = vld [vmem:[%s2560 + $0x38] sm:$0xff]
    %v2567 = vld [vmem:[%s2560 + $0x48] sm:$0xff]
    %v2568 = vld [vmem:[%s2560 + $0x50] sm:$0xff]
    %v2569 = vld [vmem:[%s2560 + $0x60] sm:$0xff]
    %v2570 = vld [vmem:[%s2560 + $0x68] sm:$0xff]
    %v2571 = vld [vmem:[%s2560 + $0x78] sm:$0xff]
    %v2572 = vld [vmem:[%s2560 + $0x80] sm:$0xff]
    %v2573 = vld [vmem:[%s2560 + $0x90] sm:$0xff]
    %v2574 = vld [vmem:[%s2560 + $0x98] sm:$0xff]
    %v2575 = vld [vmem:[%s2560 + $0xa8] sm:$0xff]
    %v2576 = vld [vmem:[%s2560 + $0xb0] sm:$0xff]
    %v2577 = vld [vmem:[%s2560 + $0xc0] sm:$0xff]
    %v2578 = vld [vmem:[%s2560 + $0xc8] sm:$0xff]
    %v2579 = vld [vmem:[%s2560 + $0xd8] sm:$0xff]
    %v2580 = vld [vmem:[%s2560 + $0xe0] sm:$0xff]
    %v2581 = vld [vmem:[%s2560 + $0xf0] sm:$0xff]
    %v2582 = vld [vmem:[%s2560 + $0xf8] sm:$0xff]
    %v2583 = vld [vmem:[%s2560 + $0x108] sm:$0xff]
    %v2584 = vld [vmem:[%s2560 + $0x110] sm:$0xff]
    %v2585 = vld [vmem:[%s2560 + $0x120] sm:$0xff]
    %v2586 = vld [vmem:[%s2560 + $0x128] sm:$0xff]
    %v2587 = vld [vmem:[%s2560 + $0x138] sm:$0xff]
    %v2588 = vld [vmem:[%s2560 + $0x140] sm:$0xff]
    %v2589 = vld [vmem:[%s2560 + $0x150] sm:$0xff]
    %v2590 = vld [vmem:[%s2560 + $0x158] sm:$0xff]
    %v2591 = vld [vmem:[%s2560 + $0x168] sm:$0xff]
    %v2592 = vld [vmem:[%s2560 + $0x170] sm:$0xff]
    %v2593 = vld [vmem:[%s2560 + $0x1b0] sm:$0xff]
    %v2594 = vld [vmem:[%s2560 + $0x1b8] sm:$0xff]
    %v2595 = vld [vmem:[%s2560 + $0x1c8] sm:$0xff]
    %v2596 = vld [vmem:[%s2560 + $0x1d0] sm:$0xff]
    %v2597 = vld [vmem:[%s2560 + $0x1e0] sm:$0xff]
    %v2598 = vld [vmem:[%s2560 + $0x1e8] sm:$0xff]
    %v2599 = vld [vmem:[%s2560 + $0x1f8] sm:$0xff]
    %v2600 = vld [vmem:[%s2560 + $0x200] sm:$0xff]
    %v2601 = vld [vmem:[%s2560 + $0x210] sm:$0xff]
    %v2602 = vld [vmem:[%s2560 + $0x218] sm:$0xff]
    %v2603 = vld [vmem:[%s2560 + $0x228] sm:$0xff]
    %v2604 = vld [vmem:[%s2560 + $0x230] sm:$0xff]
    %v2605 = vld [vmem:[%s2560 + $0x240] sm:$0xff]
    %v2606 = vld [vmem:[%s2560 + $0x248] sm:$0xff]
    %v2607 = vld [vmem:[%s2560 + $0x258] sm:$0xff]
    %v2608 = vld [vmem:[%s2560 + $0x260] sm:$0xff]
    %v2609 = vld [vmem:[%s2560 + $0x270] sm:$0xff]
    %v2610 = vld [vmem:[%s2560 + $0x278] sm:$0xff]
    %v2611 = vld [vmem:[%s2560 + $0x288] sm:$0xff]
    %v2612 = vld [vmem:[%s2560 + $0x290] sm:$0xff]
    %v2613 = vld [vmem:[%s2560 + $0x2a0] sm:$0xff]
    %v2614 = vld [vmem:[%s2560 + $0x2a8] sm:$0xff]
    %v2615 = vld [vmem:[%s2560 + $0x2b8] sm:$0xff]
    %v2616 = vld [vmem:[%s2560 + $0x2c0] sm:$0xff]
    %v2617 = vld [vmem:[%s2560 + $0x2d0] sm:$0xff]
    %v2618 = vld [vmem:[%s2560 + $0x2d8] sm:$0xff]
    %v2619 = vld [vmem:[%s2560 + $0x2e8] sm:$0xff]
    %v2620 = vld [vmem:[%s2560 + $0x2f0] sm:$0xff]
    %v2621 = vld [vmem:[%s2560 + $0x300] sm:$0xff]
    %v2622 = vld [vmem:[%s2560 + $0x308] sm:$0xff]
    %v2623 = vld [vmem:[%s2560 + $0x318] sm:$0xff]
    %v2624 = vld [vmem:[%s2560 + $0x320] sm:$0xff]
    %v2625 = vpack.c.bf16 %v2561, %v2561
    %v2626 = vpack.c.bf16 %v2562, %v2562
    %v2627 = vpack.c.bf16 %v2563, %v2563
    %v2628 = vpack.c.bf16 %v2564, %v2564
    %v2629 = vpack.c.bf16 %v2565, %v2565
    %v2630 = vpack.c.bf16 %v2566, %v2566
    %v2631 = vpack.c.bf16 %v2567, %v2567
    %v2632 = vpack.c.bf16 %v2568, %v2568
    %v2633 = vpack.c.bf16 %v2569, %v2569
    %v2634 = vpack.c.bf16 %v2570, %v2570
    %v2635 = vpack.c.bf16 %v2571, %v2571
    %v2636 = vpack.c.bf16 %v2572, %v2572
    %v2637 = vpack.c.bf16 %v2573, %v2573
    %v2638 = vpack.c.bf16 %v2574, %v2574
    %v2639 = vpack.c.bf16 %v2575, %v2575
    %v2640 = vpack.c.bf16 %v2576, %v2576
    %v2641 = vpack.c.bf16 %v2577, %v2577
    %v2642 = vpack.c.bf16 %v2578, %v2578
    %v2643 = vpack.c.bf16 %v2579, %v2579
    %v2644 = vpack.c.bf16 %v2580, %v2580
    %v2645 = vpack.c.bf16 %v2581, %v2581
    %v2646 = vpack.c.bf16 %v2582, %v2582
    %v2647 = vpack.c.bf16 %v2583, %v2583
    %v2648 = vpack.c.bf16 %v2584, %v2584
    %v2649 = vpack.c.bf16 %v2585, %v2585
    %v2650 = vpack.c.bf16 %v2586, %v2586
    %v2651 = vpack.c.bf16 %v2587, %v2587
    %v2652 = vpack.c.bf16 %v2588, %v2588
    %v2653 = vpack.c.bf16 %v2589, %v2589
    %v2654 = vpack.c.bf16 %v2590, %v2590
    %v2655 = vpack.c.bf16 %v2591, %v2591
    %v2656 = vpack.c.bf16 %v2592, %v2592
    %v2657 = vpack.c.bf16 %v2593, %v2593
    %v2658 = vpack.c.bf16 %v2594, %v2594
    %v2659 = vpack.c.bf16 %v2595, %v2595
    %v2660 = vpack.c.bf16 %v2596, %v2596
    %v2661 = vpack.c.bf16 %v2597, %v2597
    %v2662 = vpack.c.bf16 %v2598, %v2598
    %v2663 = vpack.c.bf16 %v2599, %v2599
    %v2664 = vpack.c.bf16 %v2600, %v2600
    %v2665 = vpack.c.bf16 %v2601, %v2601
    %v2666 = vpack.c.bf16 %v2602, %v2602
    %v2667 = vpack.c.bf16 %v2603, %v2603
    %v2668 = vpack.c.bf16 %v2604, %v2604
    %v2669 = vpack.c.bf16 %v2605, %v2605
    %v2670 = vpack.c.bf16 %v2606, %v2606
    %v2671 = vpack.c.bf16 %v2607, %v2607
    %v2672 = vpack.c.bf16 %v2608, %v2608
    %v2673 = vpack.c.bf16 %v2609, %v2609
    %v2674 = vpack.c.bf16 %v2610, %v2610
    %v2675 = vpack.c.bf16 %v2611, %v2611
    %v2676 = vpack.c.bf16 %v2612, %v2612
    %v2677 = vpack.c.bf16 %v2613, %v2613
    %v2678 = vpack.c.bf16 %v2614, %v2614
    %v2679 = vpack.c.bf16 %v2615, %v2615
    %v2680 = vpack.c.bf16 %v2616, %v2616
    %v2681 = vpack.c.bf16 %v2617, %v2617
    %v2682 = vpack.c.bf16 %v2618, %v2618
    %v2683 = vpack.c.bf16 %v2619, %v2619
    %v2684 = vpack.c.bf16 %v2620, %v2620
    %v2685 = vpack.c.bf16 %v2621, %v2621
    %v2686 = vpack.c.bf16 %v2622, %v2622
    %v2687 = vpack.c.bf16 %v2623, %v2623
    %v2688 = vpack.c.bf16 %v2624, %v2624
    %2753 = vrot.lane.b32.xlu0 %v2625, 64
    %v2754 = vpop.permute.xlu0 %2753
    %2755 = vrot.lane.b32.xlu0 %v2626, 64
    %v2756 = vpop.permute.xlu0 %2755
    %2757 = vrot.lane.b32.xlu0 %v2627, 64
    %v2758 = vpop.permute.xlu0 %2757
    %2759 = vrot.lane.b32.xlu0 %v2628, 64
    %v2760 = vpop.permute.xlu0 %2759
    %2761 = vrot.lane.b32.xlu0 %v2629, 64
    %v2762 = vpop.permute.xlu0 %2761
    %2763 = vrot.lane.b32.xlu0 %v2630, 64
    %v2764 = vpop.permute.xlu0 %2763
    %2765 = vrot.lane.b32.xlu0 %v2631, 64
    %v2766 = vpop.permute.xlu0 %2765
    %2767 = vrot.lane.b32.xlu0 %v2632, 64
    %v2768 = vpop.permute.xlu0 %2767
    %2769 = vrot.lane.b32.xlu0 %v2633, 64
    %v2770 = vpop.permute.xlu0 %2769
    %2771 = vrot.lane.b32.xlu0 %v2634, 64
    %v2772 = vpop.permute.xlu0 %2771
    %2773 = vrot.lane.b32.xlu0 %v2635, 64
    %v2774 = vpop.permute.xlu0 %2773
    %2775 = vrot.lane.b32.xlu0 %v2636, 64
    %v2776 = vpop.permute.xlu0 %2775
    %2777 = vrot.lane.b32.xlu0 %v2637, 64
    %v2778 = vpop.permute.xlu0 %2777
    %2779 = vrot.lane.b32.xlu0 %v2638, 64
    %v2780 = vpop.permute.xlu0 %2779
    %2781 = vrot.lane.b32.xlu0 %v2639, 64
    %v2782 = vpop.permute.xlu0 %2781
    %2783 = vrot.lane.b32.xlu0 %v2640, 64
    %v2784 = vpop.permute.xlu0 %2783
    %2785 = vrot.lane.b32.xlu0 %v2641, 64
    %v2786 = vpop.permute.xlu0 %2785
    %2787 = vrot.lane.b32.xlu0 %v2642, 64
    %v2788 = vpop.permute.xlu0 %2787
    %2789 = vrot.lane.b32.xlu0 %v2643, 64
    %v2790 = vpop.permute.xlu0 %2789
    %2791 = vrot.lane.b32.xlu0 %v2644, 64
    %v2792 = vpop.permute.xlu0 %2791
    %2793 = vrot.lane.b32.xlu0 %v2645, 64
    %v2794 = vpop.permute.xlu0 %2793
    %2795 = vrot.lane.b32.xlu0 %v2646, 64
    %v2796 = vpop.permute.xlu0 %2795
    %2797 = vrot.lane.b32.xlu0 %v2647, 64
    %v2798 = vpop.permute.xlu0 %2797
    %2799 = vrot.lane.b32.xlu0 %v2648, 64
    %v2800 = vpop.permute.xlu0 %2799
    %2801 = vrot.lane.b32.xlu0 %v2649, 64
    %v2802 = vpop.permute.xlu0 %2801
    %2803 = vrot.lane.b32.xlu0 %v2650, 64
    %v2804 = vpop.permute.xlu0 %2803
    %2805 = vrot.lane.b32.xlu0 %v2651, 64
    %v2806 = vpop.permute.xlu0 %2805
    %2807 = vrot.lane.b32.xlu0 %v2652, 64
    %v2808 = vpop.permute.xlu0 %2807
    %2809 = vrot.lane.b32.xlu0 %v2653, 64
    %v2810 = vpop.permute.xlu0 %2809
    %2811 = vrot.lane.b32.xlu0 %v2654, 64
    %v2812 = vpop.permute.xlu0 %2811
    %2813 = vrot.lane.b32.xlu0 %v2655, 64
    %v2814 = vpop.permute.xlu0 %2813
    %2815 = vrot.lane.b32.xlu0 %v2656, 64
    %v2816 = vpop.permute.xlu0 %2815
    %2817 = vrot.lane.b32.xlu0 %v2657, 64
    %v2818 = vpop.permute.xlu0 %2817
    %2819 = vrot.lane.b32.xlu0 %v2658, 64
    %v2820 = vpop.permute.xlu0 %2819
    %2821 = vrot.lane.b32.xlu0 %v2659, 64
    %v2822 = vpop.permute.xlu0 %2821
    %2823 = vrot.lane.b32.xlu0 %v2660, 64
    %v2824 = vpop.permute.xlu0 %2823
    %2825 = vrot.lane.b32.xlu0 %v2661, 64
    %v2826 = vpop.permute.xlu0 %2825
    %2827 = vrot.lane.b32.xlu0 %v2662, 64
    %v2828 = vpop.permute.xlu0 %2827
    %2829 = vrot.lane.b32.xlu0 %v2663, 64
    %v2830 = vpop.permute.xlu0 %2829
    %2831 = vrot.lane.b32.xlu0 %v2664, 64
    %v2832 = vpop.permute.xlu0 %2831
    %2833 = vrot.lane.b32.xlu0 %v2665, 64
    %v2834 = vpop.permute.xlu0 %2833
    %2835 = vrot.lane.b32.xlu0 %v2666, 64
    %v2836 = vpop.permute.xlu0 %2835
    %2837 = vrot.lane.b32.xlu0 %v2667, 64
    %v2838 = vpop.permute.xlu0 %2837
    %2839 = vrot.lane.b32.xlu0 %v2668, 64
    %v2840 = vpop.permute.xlu0 %2839
    %2841 = vrot.lane.b32.xlu0 %v2669, 64
    %v2842 = vpop.permute.xlu0 %2841
    %2843 = vrot.lane.b32.xlu0 %v2670, 64
    %v2844 = vpop.permute.xlu0 %2843
    %2845 = vrot.lane.b32.xlu0 %v2671, 64
    %v2846 = vpop.permute.xlu0 %2845
    %2847 = vrot.lane.b32.xlu0 %v2672, 64
    %v2848 = vpop.permute.xlu0 %2847
    %2849 = vrot.lane.b32.xlu0 %v2673, 64
    %v2850 = vpop.permute.xlu0 %2849
    %2851 = vrot.lane.b32.xlu0 %v2674, 64
    %v2852 = vpop.permute.xlu0 %2851
    %2853 = vrot.lane.b32.xlu0 %v2675, 64
    %v2854 = vpop.permute.xlu0 %2853
    %2855 = vrot.lane.b32.xlu0 %v2676, 64
    %v2856 = vpop.permute.xlu0 %2855
    %2857 = vrot.lane.b32.xlu0 %v2677, 64
    %v2858 = vpop.permute.xlu0 %2857
    %2859 = vrot.lane.b32.xlu0 %v2678, 64
    %v2860 = vpop.permute.xlu0 %2859
    %2861 = vrot.lane.b32.xlu0 %v2679, 64
    %v2862 = vpop.permute.xlu0 %2861
    %2863 = vrot.lane.b32.xlu0 %v2680, 64
    %v2864 = vpop.permute.xlu0 %2863
    %2865 = vrot.lane.b32.xlu0 %v2681, 64
    %v2866 = vpop.permute.xlu0 %2865
    %2867 = vrot.lane.b32.xlu0 %v2682, 64
    %v2868 = vpop.permute.xlu0 %2867
    %2869 = vrot.lane.b32.xlu0 %v2683, 64
    %v2870 = vpop.permute.xlu0 %2869
    %2871 = vrot.lane.b32.xlu0 %v2684, 64
    %v2872 = vpop.permute.xlu0 %2871
    %2873 = vrot.lane.b32.xlu0 %v2685, 64
    %v2874 = vpop.permute.xlu0 %2873
    %2875 = vrot.lane.b32.xlu0 %v2686, 64
    %v2876 = vpop.permute.xlu0 %2875
    %2877 = vrot.lane.b32.xlu0 %v2687, 64
    %v2878 = vpop.permute.xlu0 %2877
    %2879 = vrot.lane.b32.xlu0 %v2688, 64
    %v2880 = vpop.permute.xlu0 %2879
    %2945 = vst.msk [vmem:[#allocation4 + $0x4] sm:$0xf] %vm1406, %v2754
    %2946 = vst.msk [vmem:[#allocation4 + $0x10] sm:$0xf] %vm1406, %v2756
    %2947 = vst.msk [vmem:[#allocation4 + $0x1c] sm:$0xf] %vm1406, %v2758
    %2948 = vst.msk [vmem:[#allocation4 + $0x28] sm:$0xf] %vm1406, %v2760
    %2949 = vst.msk [vmem:[#allocation4 + $0x34] sm:$0xf] %vm1406, %v2762
    %2950 = vst.msk [vmem:[#allocation4 + $0x40] sm:$0xf] %vm1406, %v2764
    %2951 = vst.msk [vmem:[#allocation4 + $0x4c] sm:$0xf] %vm1406, %v2766
    %2952 = vst.msk [vmem:[#allocation4 + $0x58] sm:$0xf] %vm1406, %v2768
    %2953 = vst.msk [vmem:[#allocation4 + $0x64] sm:$0xf] %vm1406, %v2770
    %2954 = vst.msk [vmem:[#allocation4 + $0x70] sm:$0xf] %vm1406, %v2772
    %2955 = vst.msk [vmem:[#allocation4 + $0x7c] sm:$0xf] %vm1406, %v2774
    %2956 = vst.msk [vmem:[#allocation4 + $0x88] sm:$0xf] %vm1406, %v2776
    %2957 = vst.msk [vmem:[#allocation4 + $0x94] sm:$0xf] %vm1406, %v2778
    %2958 = vst.msk [vmem:[#allocation4 + $0xa0] sm:$0xf] %vm1406, %v2780
    %2959 = vst.msk [vmem:[#allocation4 + $0xac] sm:$0xf] %vm1406, %v2782
    %2960 = vst.msk [vmem:[#allocation4 + $0xb8] sm:$0xf] %vm1406, %v2784
    %2961 = vst.msk [vmem:[#allocation4 + $0xc4] sm:$0xf] %vm1406, %v2786
    %2962 = vst.msk [vmem:[#allocation4 + $0xd0] sm:$0xf] %vm1406, %v2788
    %2963 = vst.msk [vmem:[#allocation4 + $0xdc] sm:$0xf] %vm1406, %v2790
    %2964 = vst.msk [vmem:[#allocation4 + $0xe8] sm:$0xf] %vm1406, %v2792
    %2965 = vst.msk [vmem:[#allocation4 + $0xf4] sm:$0xf] %vm1406, %v2794
    %2966 = vst.msk [vmem:[#allocation4 + $0x100] sm:$0xf] %vm1406, %v2796
    %2967 = vst.msk [vmem:[#allocation4 + $0x10c] sm:$0xf] %vm1406, %v2798
    %2968 = vst.msk [vmem:[#allocation4 + $0x118] sm:$0xf] %vm1406, %v2800
    %2969 = vst.msk [vmem:[#allocation4 + $0x124] sm:$0xf] %vm1406, %v2802
    %2970 = vst.msk [vmem:[#allocation4 + $0x130] sm:$0xf] %vm1406, %v2804
    %2971 = vst.msk [vmem:[#allocation4 + $0x13c] sm:$0xf] %vm1406, %v2806
    %2972 = vst.msk [vmem:[#allocation4 + $0x148] sm:$0xf] %vm1406, %v2808
    %2973 = vst.msk [vmem:[#allocation4 + $0x154] sm:$0xf] %vm1406, %v2810
    %2974 = vst.msk [vmem:[#allocation4 + $0x160] sm:$0xf] %vm1406, %v2812
    %2975 = vst.msk [vmem:[#allocation4 + $0x16c] sm:$0xf] %vm1406, %v2814
    %2976 = vst.msk [vmem:[#allocation4 + $0x178] sm:$0xf] %vm1406, %v2816
    %2977 = vst.msk [vmem:[#allocation4 + $0x184] sm:$0xf] %vm1406, %v2818
    %2978 = vst.msk [vmem:[#allocation4 + $0x190] sm:$0xf] %vm1406, %v2820
    %2979 = vst.msk [vmem:[#allocation4 + $0x19c] sm:$0xf] %vm1406, %v2822
    %2980 = vst.msk [vmem:[#allocation4 + $0x1a8] sm:$0xf] %vm1406, %v2824
    %2981 = vst.msk [vmem:[#allocation4 + $0x1b4] sm:$0xf] %vm1406, %v2826
    %2982 = vst.msk [vmem:[#allocation4 + $0x1c0] sm:$0xf] %vm1406, %v2828
    %2983 = vst.msk [vmem:[#allocation4 + $0x1cc] sm:$0xf] %vm1406, %v2830
    %2984 = vst.msk [vmem:[#allocation4 + $0x1d8] sm:$0xf] %vm1406, %v2832
    %2985 = vst.msk [vmem:[#allocation4 + $0x1e4] sm:$0xf] %vm1406, %v2834
    %2986 = vst.msk [vmem:[#allocation4 + $0x1f0] sm:$0xf] %vm1406, %v2836
    %2987 = vst.msk [vmem:[#allocation4 + $0x1fc] sm:$0xf] %vm1406, %v2838
    %2988 = vst.msk [vmem:[#allocation4 + $0x208] sm:$0xf] %vm1406, %v2840
    %2989 = vst.msk [vmem:[#allocation4 + $0x214] sm:$0xf] %vm1406, %v2842
    %2990 = vst.msk [vmem:[#allocation4 + $0x220] sm:$0xf] %vm1406, %v2844
    %2991 = vst.msk [vmem:[#allocation4 + $0x22c] sm:$0xf] %vm1406, %v2846
    %2992 = vst.msk [vmem:[#allocation4 + $0x238] sm:$0xf] %vm1406, %v2848
    %2993 = vst.msk [vmem:[#allocation4 + $0x244] sm:$0xf] %vm1406, %v2850
    %2994 = vst.msk [vmem:[#allocation4 + $0x250] sm:$0xf] %vm1406, %v2852
    %2995 = vst.msk [vmem:[#allocation4 + $0x25c] sm:$0xf] %vm1406, %v2854
    %2996 = vst.msk [vmem:[#allocation4 + $0x268] sm:$0xf] %vm1406, %v2856
    %2997 = vst.msk [vmem:[#allocation4 + $0x274] sm:$0xf] %vm1406, %v2858
    %2998 = vst.msk [vmem:[#allocation4 + $0x280] sm:$0xf] %vm1406, %v2860
    %2999 = vst.msk [vmem:[#allocation4 + $0x28c] sm:$0xf] %vm1406, %v2862
    %3000 = vst.msk [vmem:[#allocation4 + $0x298] sm:$0xf] %vm1406, %v2864
    %3001 = vst.msk [vmem:[#allocation4 + $0x2a4] sm:$0xf] %vm1406, %v2866
    %3002 = vst.msk [vmem:[#allocation4 + $0x2b0] sm:$0xf] %vm1406, %v2868
    %3003 = vst.msk [vmem:[#allocation4 + $0x2bc] sm:$0xf] %vm1406, %v2870
    %3004 = vst.msk [vmem:[#allocation4 + $0x2c8] sm:$0xf] %vm1406, %v2872
    %3005 = vst.msk [vmem:[#allocation4 + $0x2d4] sm:$0xf] %vm1406, %v2874
    %3006 = vst.msk [vmem:[#allocation4 + $0x2e0] sm:$0xf] %vm1406, %v2876
    %3007 = vst.msk [vmem:[#allocation4 + $0x2ec] sm:$0xf] %vm1406, %v2878
    %3008 = vst.msk [vmem:[#allocation4 + $0x2f8] sm:$0xf] %vm1406, %v2880
    %v3009 = vld [vmem:[%s2560 + $0x1] sm:$0xff]
    %v3010 = vld [vmem:[%s2560 + $0x9] sm:$0xff]
    %v3011 = vld [vmem:[%s2560 + $0x19] sm:$0xff]
    %v3012 = vld [vmem:[%s2560 + $0x21] sm:$0xff]
    %v3013 = vld [vmem:[%s2560 + $0x31] sm:$0xff]
    %v3014 = vld [vmem:[%s2560 + $0x39] sm:$0xff]
    %v3015 = vld [vmem:[%s2560 + $0x49] sm:$0xff]
    %v3016 = vld [vmem:[%s2560 + $0x51] sm:$0xff]
    %v3017 = vld [vmem:[%s2560 + $0x61] sm:$0xff]
    %v3018 = vld [vmem:[%s2560 + $0x69] sm:$0xff]
    %v3019 = vld [vmem:[%s2560 + $0x79] sm:$0xff]
    %v3020 = vld [vmem:[%s2560 + $0x81] sm:$0xff]
    %v3021 = vld [vmem:[%s2560 + $0x91] sm:$0xff]
    %v3022 = vld [vmem:[%s2560 + $0x99] sm:$0xff]
    %v3023 = vld [vmem:[%s2560 + $0xa9] sm:$0xff]
    %v3024 = vld [vmem:[%s2560 + $0xb1] sm:$0xff]
    %v3025 = vld [vmem:[%s2560 + $0xc1] sm:$0xff]
    %v3026 = vld [vmem:[%s2560 + $0xc9] sm:$0xff]
    %v3027 = vld [vmem:[%s2560 + $0xd9] sm:$0xff]
    %v3028 = vld [vmem:[%s2560 + $0xe1] sm:$0xff]
    %v3029 = vld [vmem:[%s2560 + $0xf1] sm:$0xff]
    %v3030 = vld [vmem:[%s2560 + $0xf9] sm:$0xff]
    %v3031 = vld [vmem:[%s2560 + $0x109] sm:$0xff]
    %v3032 = vld [vmem:[%s2560 + $0x111] sm:$0xff]
    %v3033 = vld [vmem:[%s2560 + $0x121] sm:$0xff]
    %v3034 = vld [vmem:[%s2560 + $0x129] sm:$0xff]
    %v3035 = vld [vmem:[%s2560 + $0x139] sm:$0xff]
    %v3036 = vld [vmem:[%s2560 + $0x141] sm:$0xff]
    %v3037 = vld [vmem:[%s2560 + $0x151] sm:$0xff]
    %v3038 = vld [vmem:[%s2560 + $0x159] sm:$0xff]
    %v3039 = vld [vmem:[%s2560 + $0x169] sm:$0xff]
    %v3040 = vld [vmem:[%s2560 + $0x171] sm:$0xff]
    %v3041 = vld [vmem:[%s2560 + $0x1b1] sm:$0xff]
    %v3042 = vld [vmem:[%s2560 + $0x1b9] sm:$0xff]
    %v3043 = vld [vmem:[%s2560 + $0x1c9] sm:$0xff]
    %v3044 = vld [vmem:[%s2560 + $0x1d1] sm:$0xff]
    %v3045 = vld [vmem:[%s2560 + $0x1e1] sm:$0xff]
    %v3046 = vld [vmem:[%s2560 + $0x1e9] sm:$0xff]
    %v3047 = vld [vmem:[%s2560 + $0x1f9] sm:$0xff]
    %v3048 = vld [vmem:[%s2560 + $0x201] sm:$0xff]
    %v3049 = vld [vmem:[%s2560 + $0x211] sm:$0xff]
    %v3050 = vld [vmem:[%s2560 + $0x219] sm:$0xff]
    %v3051 = vld [vmem:[%s2560 + $0x229] sm:$0xff]
    %v3052 = vld [vmem:[%s2560 + $0x231] sm:$0xff]
    %v3053 = vld [vmem:[%s2560 + $0x241] sm:$0xff]
    %v3054 = vld [vmem:[%s2560 + $0x249] sm:$0xff]
    %v3055 = vld [vmem:[%s2560 + $0x259] sm:$0xff]
    %v3056 = vld [vmem:[%s2560 + $0x261] sm:$0xff]
    %v3057 = vld [vmem:[%s2560 + $0x271] sm:$0xff]
    %v3058 = vld [vmem:[%s2560 + $0x279] sm:$0xff]
    %v3059 = vld [vmem:[%s2560 + $0x289] sm:$0xff]
    %v3060 = vld [vmem:[%s2560 + $0x291] sm:$0xff]
    %v3061 = vld [vmem:[%s2560 + $0x2a1] sm:$0xff]
    %v3062 = vld [vmem:[%s2560 + $0x2a9] sm:$0xff]
    %v3063 = vld [vmem:[%s2560 + $0x2b9] sm:$0xff]
    %v3064 = vld [vmem:[%s2560 + $0x2c1] sm:$0xff]
    %v3065 = vld [vmem:[%s2560 + $0x2d1] sm:$0xff]
    %v3066 = vld [vmem:[%s2560 + $0x2d9] sm:$0xff]
    %v3067 = vld [vmem:[%s2560 + $0x2e9] sm:$0xff]
    %v3068 = vld [vmem:[%s2560 + $0x2f1] sm:$0xff]
    %v3069 = vld [vmem:[%s2560 + $0x301] sm:$0xff]
    %v3070 = vld [vmem:[%s2560 + $0x309] sm:$0xff]
    %v3071 = vld [vmem:[%s2560 + $0x319] sm:$0xff]
    %v3072 = vld [vmem:[%s2560 + $0x321] sm:$0xff]
    %v3073 = vpack.c.bf16 %v3009, %v3009
    %v3074 = vpack.c.bf16 %v3010, %v3010
    %v3075 = vpack.c.bf16 %v3011, %v3011
    %v3076 = vpack.c.bf16 %v3012, %v3012
    %v3077 = vpack.c.bf16 %v3013, %v3013
    %v3078 = vpack.c.bf16 %v3014, %v3014
    %v3079 = vpack.c.bf16 %v3015, %v3015
    %v3080 = vpack.c.bf16 %v3016, %v3016
    %v3081 = vpack.c.bf16 %v3017, %v3017
    %v3082 = vpack.c.bf16 %v3018, %v3018
    %v3083 = vpack.c.bf16 %v3019, %v3019
    %v3084 = vpack.c.bf16 %v3020, %v3020
    %v3085 = vpack.c.bf16 %v3021, %v3021
    %v3086 = vpack.c.bf16 %v3022, %v3022
    %v3087 = vpack.c.bf16 %v3023, %v3023
    %v3088 = vpack.c.bf16 %v3024, %v3024
    %v3089 = vpack.c.bf16 %v3025, %v3025
    %v3090 = vpack.c.bf16 %v3026, %v3026
    %v3091 = vpack.c.bf16 %v3027, %v3027
    %v3092 = vpack.c.bf16 %v3028, %v3028
    %v3093 = vpack.c.bf16 %v3029, %v3029
    %v3094 = vpack.c.bf16 %v3030, %v3030
    %v3095 = vpack.c.bf16 %v3031, %v3031
    %v3096 = vpack.c.bf16 %v3032, %v3032
    %v3097 = vpack.c.bf16 %v3033, %v3033
    %v3098 = vpack.c.bf16 %v3034, %v3034
    %v3099 = vpack.c.bf16 %v3035, %v3035
    %v3100 = vpack.c.bf16 %v3036, %v3036
    %v3101 = vpack.c.bf16 %v3037, %v3037
    %v3102 = vpack.c.bf16 %v3038, %v3038
    %v3103 = vpack.c.bf16 %v3039, %v3039
    %v3104 = vpack.c.bf16 %v3040, %v3040
    %v3105 = vpack.c.bf16 %v3041, %v3041
    %v3106 = vpack.c.bf16 %v3042, %v3042
    %v3107 = vpack.c.bf16 %v3043, %v3043
    %v3108 = vpack.c.bf16 %v3044, %v3044
    %v3109 = vpack.c.bf16 %v3045, %v3045
    %v3110 = vpack.c.bf16 %v3046, %v3046
    %v3111 = vpack.c.bf16 %v3047, %v3047
    %v3112 = vpack.c.bf16 %v3048, %v3048
    %v3113 = vpack.c.bf16 %v3049, %v3049
    %v3114 = vpack.c.bf16 %v3050, %v3050
    %v3115 = vpack.c.bf16 %v3051, %v3051
    %v3116 = vpack.c.bf16 %v3052, %v3052
    %v3117 = vpack.c.bf16 %v3053, %v3053
    %v3118 = vpack.c.bf16 %v3054, %v3054
    %v3119 = vpack.c.bf16 %v3055, %v3055
    %v3120 = vpack.c.bf16 %v3056, %v3056
    %v3121 = vpack.c.bf16 %v3057, %v3057
    %v3122 = vpack.c.bf16 %v3058, %v3058
    %v3123 = vpack.c.bf16 %v3059, %v3059
    %v3124 = vpack.c.bf16 %v3060, %v3060
    %v3125 = vpack.c.bf16 %v3061, %v3061
    %v3126 = vpack.c.bf16 %v3062, %v3062
    %v3127 = vpack.c.bf16 %v3063, %v3063
    %v3128 = vpack.c.bf16 %v3064, %v3064
    %v3129 = vpack.c.bf16 %v3065, %v3065
    %v3130 = vpack.c.bf16 %v3066, %v3066
    %v3131 = vpack.c.bf16 %v3067, %v3067
    %v3132 = vpack.c.bf16 %v3068, %v3068
    %v3133 = vpack.c.bf16 %v3069, %v3069
    %v3134 = vpack.c.bf16 %v3070, %v3070
    %v3135 = vpack.c.bf16 %v3071, %v3071
    %v3136 = vpack.c.bf16 %v3072, %v3072
    %3201 = vrot.lane.b32.xlu0 %v3073, 96
    %v3202 = vpop.permute.xlu0 %3201
    %3203 = vrot.lane.b32.xlu0 %v3074, 96
    %v3204 = vpop.permute.xlu0 %3203
    %3205 = vrot.lane.b32.xlu0 %v3075, 96
    %v3206 = vpop.permute.xlu0 %3205
    %3207 = vrot.lane.b32.xlu0 %v3076, 96
    %v3208 = vpop.permute.xlu0 %3207
    %3209 = vrot.lane.b32.xlu0 %v3077, 96
    %v3210 = vpop.permute.xlu0 %3209
    %3211 = vrot.lane.b32.xlu0 %v3078, 96
    %v3212 = vpop.permute.xlu0 %3211
    %3213 = vrot.lane.b32.xlu0 %v3079, 96
    %v3214 = vpop.permute.xlu0 %3213
    %3215 = vrot.lane.b32.xlu0 %v3080, 96
    %v3216 = vpop.permute.xlu0 %3215
    %3217 = vrot.lane.b32.xlu0 %v3081, 96
    %v3218 = vpop.permute.xlu0 %3217
    %3219 = vrot.lane.b32.xlu0 %v3082, 96
    %v3220 = vpop.permute.xlu0 %3219
    %3221 = vrot.lane.b32.xlu0 %v3083, 96
    %v3222 = vpop.permute.xlu0 %3221
    %3223 = vrot.lane.b32.xlu0 %v3084, 96
    %v3224 = vpop.permute.xlu0 %3223
    %3225 = vrot.lane.b32.xlu0 %v3085, 96
    %v3226 = vpop.permute.xlu0 %3225
    %3227 = vrot.lane.b32.xlu0 %v3086, 96
    %v3228 = vpop.permute.xlu0 %3227
    %3229 = vrot.lane.b32.xlu0 %v3087, 96
    %v3230 = vpop.permute.xlu0 %3229
    %3231 = vrot.lane.b32.xlu0 %v3088, 96
    %v3232 = vpop.permute.xlu0 %3231
    %3233 = vrot.lane.b32.xlu0 %v3089, 96
    %v3234 = vpop.permute.xlu0 %3233
    %3235 = vrot.lane.b32.xlu0 %v3090, 96
    %v3236 = vpop.permute.xlu0 %3235
    %3237 = vrot.lane.b32.xlu0 %v3091, 96
    %v3238 = vpop.permute.xlu0 %3237
    %3239 = vrot.lane.b32.xlu0 %v3092, 96
    %v3240 = vpop.permute.xlu0 %3239
    %3241 = vrot.lane.b32.xlu0 %v3093, 96
    %v3242 = vpop.permute.xlu0 %3241
    %3243 = vrot.lane.b32.xlu0 %v3094, 96
    %v3244 = vpop.permute.xlu0 %3243
    %3245 = vrot.lane.b32.xlu0 %v3095, 96
    %v3246 = vpop.permute.xlu0 %3245
    %3247 = vrot.lane.b32.xlu0 %v3096, 96
    %v3248 = vpop.permute.xlu0 %3247
    %3249 = vrot.lane.b32.xlu0 %v3097, 96
    %v3250 = vpop.permute.xlu0 %3249
    %3251 = vrot.lane.b32.xlu0 %v3098, 96
    %v3252 = vpop.permute.xlu0 %3251
    %3253 = vrot.lane.b32.xlu0 %v3099, 96
    %v3254 = vpop.permute.xlu0 %3253
    %3255 = vrot.lane.b32.xlu0 %v3100, 96
    %v3256 = vpop.permute.xlu0 %3255
    %3257 = vrot.lane.b32.xlu0 %v3101, 96
    %v3258 = vpop.permute.xlu0 %3257
    %3259 = vrot.lane.b32.xlu0 %v3102, 96
    %v3260 = vpop.permute.xlu0 %3259
    %3261 = vrot.lane.b32.xlu0 %v3103, 96
    %v3262 = vpop.permute.xlu0 %3261
    %3263 = vrot.lane.b32.xlu0 %v3104, 96
    %v3264 = vpop.permute.xlu0 %3263
    %3265 = vrot.lane.b32.xlu0 %v3105, 96
    %v3266 = vpop.permute.xlu0 %3265
    %3267 = vrot.lane.b32.xlu0 %v3106, 96
    %v3268 = vpop.permute.xlu0 %3267
    %3269 = vrot.lane.b32.xlu0 %v3107, 96
    %v3270 = vpop.permute.xlu0 %3269
    %3271 = vrot.lane.b32.xlu0 %v3108, 96
    %v3272 = vpop.permute.xlu0 %3271
    %3273 = vrot.lane.b32.xlu0 %v3109, 96
    %v3274 = vpop.permute.xlu0 %3273
    %3275 = vrot.lane.b32.xlu0 %v3110, 96
    %v3276 = vpop.permute.xlu0 %3275
    %3277 = vrot.lane.b32.xlu0 %v3111, 96
    %v3278 = vpop.permute.xlu0 %3277
    %3279 = vrot.lane.b32.xlu0 %v3112, 96
    %v3280 = vpop.permute.xlu0 %3279
    %3281 = vrot.lane.b32.xlu0 %v3113, 96
    %v3282 = vpop.permute.xlu0 %3281
    %3283 = vrot.lane.b32.xlu0 %v3114, 96
    %v3284 = vpop.permute.xlu0 %3283
    %3285 = vrot.lane.b32.xlu0 %v3115, 96
    %v3286 = vpop.permute.xlu0 %3285
    %3287 = vrot.lane.b32.xlu0 %v3116, 96
    %v3288 = vpop.permute.xlu0 %3287
    %3289 = vrot.lane.b32.xlu0 %v3117, 96
    %v3290 = vpop.permute.xlu0 %3289
    %3291 = vrot.lane.b32.xlu0 %v3118, 96
    %v3292 = vpop.permute.xlu0 %3291
    %3293 = vrot.lane.b32.xlu0 %v3119, 96
    %v3294 = vpop.permute.xlu0 %3293
    %3295 = vrot.lane.b32.xlu0 %v3120, 96
    %v3296 = vpop.permute.xlu0 %3295
    %3297 = vrot.lane.b32.xlu0 %v3121, 96
    %v3298 = vpop.permute.xlu0 %3297
    %3299 = vrot.lane.b32.xlu0 %v3122, 96
    %v3300 = vpop.permute.xlu0 %3299
    %3301 = vrot.lane.b32.xlu0 %v3123, 96
    %v3302 = vpop.permute.xlu0 %3301
    %3303 = vrot.lane.b32.xlu0 %v3124, 96
    %v3304 = vpop.permute.xlu0 %3303
    %3305 = vrot.lane.b32.xlu0 %v3125, 96
    %v3306 = vpop.permute.xlu0 %3305
    %3307 = vrot.lane.b32.xlu0 %v3126, 96
    %v3308 = vpop.permute.xlu0 %3307
    %3309 = vrot.lane.b32.xlu0 %v3127, 96
    %v3310 = vpop.permute.xlu0 %3309
    %3311 = vrot.lane.b32.xlu0 %v3128, 96
    %v3312 = vpop.permute.xlu0 %3311
    %3313 = vrot.lane.b32.xlu0 %v3129, 96
    %v3314 = vpop.permute.xlu0 %3313
    %3315 = vrot.lane.b32.xlu0 %v3130, 96
    %v3316 = vpop.permute.xlu0 %3315
    %3317 = vrot.lane.b32.xlu0 %v3131, 96
    %v3318 = vpop.permute.xlu0 %3317
    %3319 = vrot.lane.b32.xlu0 %v3132, 96
    %v3320 = vpop.permute.xlu0 %3319
    %3321 = vrot.lane.b32.xlu0 %v3133, 96
    %v3322 = vpop.permute.xlu0 %3321
    %3323 = vrot.lane.b32.xlu0 %v3134, 96
    %v3324 = vpop.permute.xlu0 %3323
    %3325 = vrot.lane.b32.xlu0 %v3135, 96
    %v3326 = vpop.permute.xlu0 %3325
    %3327 = vrot.lane.b32.xlu0 %v3136, 96
    %v3328 = vpop.permute.xlu0 %3327
    %3393 = vst.msk [vmem:[#allocation4 + $0x4] sm:$0xf] %vm1855, %v3202
    %3394 = vst.msk [vmem:[#allocation4 + $0x10] sm:$0xf] %vm1855, %v3204
    %3395 = vst.msk [vmem:[#allocation4 + $0x1c] sm:$0xf] %vm1855, %v3206
    %3396 = vst.msk [vmem:[#allocation4 + $0x28] sm:$0xf] %vm1855, %v3208
    %3397 = vst.msk [vmem:[#allocation4 + $0x34] sm:$0xf] %vm1855, %v3210
    %3398 = vst.msk [vmem:[#allocation4 + $0x40] sm:$0xf] %vm1855, %v3212
    %3399 = vst.msk [vmem:[#allocation4 + $0x4c] sm:$0xf] %vm1855, %v3214
    %3400 = vst.msk [vmem:[#allocation4 + $0x58] sm:$0xf] %vm1855, %v3216
    %3401 = vst.msk [vmem:[#allocation4 + $0x64] sm:$0xf] %vm1855, %v3218
    %3402 = vst.msk [vmem:[#allocation4 + $0x70] sm:$0xf] %vm1855, %v3220
    %3403 = vst.msk [vmem:[#allocation4 + $0x7c] sm:$0xf] %vm1855, %v3222
    %3404 = vst.msk [vmem:[#allocation4 + $0x88] sm:$0xf] %vm1855, %v3224
    %3405 = vst.msk [vmem:[#allocation4 + $0x94] sm:$0xf] %vm1855, %v3226
    %3406 = vst.msk [vmem:[#allocation4 + $0xa0] sm:$0xf] %vm1855, %v3228
    %3407 = vst.msk [vmem:[#allocation4 + $0xac] sm:$0xf] %vm1855, %v3230
    %3408 = vst.msk [vmem:[#allocation4 + $0xb8] sm:$0xf] %vm1855, %v3232
    %3409 = vst.msk [vmem:[#allocation4 + $0xc4] sm:$0xf] %vm1855, %v3234
    %3410 = vst.msk [vmem:[#allocation4 + $0xd0] sm:$0xf] %vm1855, %v3236
    %3411 = vst.msk [vmem:[#allocation4 + $0xdc] sm:$0xf] %vm1855, %v3238
    %3412 = vst.msk [vmem:[#allocation4 + $0xe8] sm:$0xf] %vm1855, %v3240
    %3413 = vst.msk [vmem:[#allocation4 + $0xf4] sm:$0xf] %vm1855, %v3242
    %3414 = vst.msk [vmem:[#allocation4 + $0x100] sm:$0xf] %vm1855, %v3244
    %3415 = vst.msk [vmem:[#allocation4 + $0x10c] sm:$0xf] %vm1855, %v3246
    %3416 = vst.msk [vmem:[#allocation4 + $0x118] sm:$0xf] %vm1855, %v3248
    %3417 = vst.msk [vmem:[#allocation4 + $0x124] sm:$0xf] %vm1855, %v3250
    %3418 = vst.msk [vmem:[#allocation4 + $0x130] sm:$0xf] %vm1855, %v3252
    %3419 = vst.msk [vmem:[#allocation4 + $0x13c] sm:$0xf] %vm1855, %v3254
    %3420 = vst.msk [vmem:[#allocation4 + $0x148] sm:$0xf] %vm1855, %v3256
    %3421 = vst.msk [vmem:[#allocation4 + $0x154] sm:$0xf] %vm1855, %v3258
    %3422 = vst.msk [vmem:[#allocation4 + $0x160] sm:$0xf] %vm1855, %v3260
    %3423 = vst.msk [vmem:[#allocation4 + $0x16c] sm:$0xf] %vm1855, %v3262
    %3424 = vst.msk [vmem:[#allocation4 + $0x178] sm:$0xf] %vm1855, %v3264
    %3425 = vst.msk [vmem:[#allocation4 + $0x184] sm:$0xf] %vm1855, %v3266
    %3426 = vst.msk [vmem:[#allocation4 + $0x190] sm:$0xf] %vm1855, %v3268
    %3427 = vst.msk [vmem:[#allocation4 + $0x19c] sm:$0xf] %vm1855, %v3270
    %3428 = vst.msk [vmem:[#allocation4 + $0x1a8] sm:$0xf] %vm1855, %v3272
    %3429 = vst.msk [vmem:[#allocation4 + $0x1b4] sm:$0xf] %vm1855, %v3274
    %3430 = vst.msk [vmem:[#allocation4 + $0x1c0] sm:$0xf] %vm1855, %v3276
    %3431 = vst.msk [vmem:[#allocation4 + $0x1cc] sm:$0xf] %vm1855, %v3278
    %3432 = vst.msk [vmem:[#allocation4 + $0x1d8] sm:$0xf] %vm1855, %v3280
    %3433 = vst.msk [vmem:[#allocation4 + $0x1e4] sm:$0xf] %vm1855, %v3282
    %3434 = vst.msk [vmem:[#allocation4 + $0x1f0] sm:$0xf] %vm1855, %v3284
    %3435 = vst.msk [vmem:[#allocation4 + $0x1fc] sm:$0xf] %vm1855, %v3286
    %3436 = vst.msk [vmem:[#allocation4 + $0x208] sm:$0xf] %vm1855, %v3288
    %3437 = vst.msk [vmem:[#allocation4 + $0x214] sm:$0xf] %vm1855, %v3290
    %3438 = vst.msk [vmem:[#allocation4 + $0x220] sm:$0xf] %vm1855, %v3292
    %3439 = vst.msk [vmem:[#allocation4 + $0x22c] sm:$0xf] %vm1855, %v3294
    %3440 = vst.msk [vmem:[#allocation4 + $0x238] sm:$0xf] %vm1855, %v3296
    %3441 = vst.msk [vmem:[#allocation4 + $0x244] sm:$0xf] %vm1855, %v3298
    %3442 = vst.msk [vmem:[#allocation4 + $0x250] sm:$0xf] %vm1855, %v3300
    %3443 = vst.msk [vmem:[#allocation4 + $0x25c] sm:$0xf] %vm1855, %v3302
    %3444 = vst.msk [vmem:[#allocation4 + $0x268] sm:$0xf] %vm1855, %v3304
    %3445 = vst.msk [vmem:[#allocation4 + $0x274] sm:$0xf] %vm1855, %v3306
    %3446 = vst.msk [vmem:[#allocation4 + $0x280] sm:$0xf] %vm1855, %v3308
    %3447 = vst.msk [vmem:[#allocation4 + $0x28c] sm:$0xf] %vm1855, %v3310
    %3448 = vst.msk [vmem:[#allocation4 + $0x298] sm:$0xf] %vm1855, %v3312
    %3449 = vst.msk [vmem:[#allocation4 + $0x2a4] sm:$0xf] %vm1855, %v3314
    %3450 = vst.msk [vmem:[#allocation4 + $0x2b0] sm:$0xf] %vm1855, %v3316
    %3451 = vst.msk [vmem:[#allocation4 + $0x2bc] sm:$0xf] %vm1855, %v3318
    %3452 = vst.msk [vmem:[#allocation4 + $0x2c8] sm:$0xf] %vm1855, %v3320
    %3453 = vst.msk [vmem:[#allocation4 + $0x2d4] sm:$0xf] %vm1855, %v3322
    %3454 = vst.msk [vmem:[#allocation4 + $0x2e0] sm:$0xf] %vm1855, %v3324
    %3455 = vst.msk [vmem:[#allocation4 + $0x2ec] sm:$0xf] %vm1855, %v3326
    %3456 = vst.msk [vmem:[#allocation4 + $0x2f8] sm:$0xf] %vm1855, %v3328
    %v3457 = vld [vmem:[%s2560 + $0x2] sm:$0xff]
    %v3458 = vld [vmem:[%s2560 + $0xa] sm:$0xff]
    %v3459 = vld [vmem:[%s2560 + $0x1a] sm:$0xff]
    %v3460 = vld [vmem:[%s2560 + $0x22] sm:$0xff]
    %v3461 = vld [vmem:[%s2560 + $0x32] sm:$0xff]
    %v3462 = vld [vmem:[%s2560 + $0x3a] sm:$0xff]
    %v3463 = vld [vmem:[%s2560 + $0x4a] sm:$0xff]
    %v3464 = vld [vmem:[%s2560 + $0x52] sm:$0xff]
    %v3465 = vld [vmem:[%s2560 + $0x62] sm:$0xff]
    %v3466 = vld [vmem:[%s2560 + $0x6a] sm:$0xff]
    %v3467 = vld [vmem:[%s2560 + $0x7a] sm:$0xff]
    %v3468 = vld [vmem:[%s2560 + $0x82] sm:$0xff]
    %v3469 = vld [vmem:[%s2560 + $0x92] sm:$0xff]
    %v3470 = vld [vmem:[%s2560 + $0x9a] sm:$0xff]
    %v3471 = vld [vmem:[%s2560 + $0xaa] sm:$0xff]
    %v3472 = vld [vmem:[%s2560 + $0xb2] sm:$0xff]
    %v3473 = vld [vmem:[%s2560 + $0xc2] sm:$0xff]
    %v3474 = vld [vmem:[%s2560 + $0xca] sm:$0xff]
    %v3475 = vld [vmem:[%s2560 + $0xda] sm:$0xff]
    %v3476 = vld [vmem:[%s2560 + $0xe2] sm:$0xff]
    %v3477 = vld [vmem:[%s2560 + $0xf2] sm:$0xff]
    %v3478 = vld [vmem:[%s2560 + $0xfa] sm:$0xff]
    %v3479 = vld [vmem:[%s2560 + $0x10a] sm:$0xff]
    %v3480 = vld [vmem:[%s2560 + $0x112] sm:$0xff]
    %v3481 = vld [vmem:[%s2560 + $0x122] sm:$0xff]
    %v3482 = vld [vmem:[%s2560 + $0x12a] sm:$0xff]
    %v3483 = vld [vmem:[%s2560 + $0x13a] sm:$0xff]
    %v3484 = vld [vmem:[%s2560 + $0x142] sm:$0xff]
    %v3485 = vld [vmem:[%s2560 + $0x152] sm:$0xff]
    %v3486 = vld [vmem:[%s2560 + $0x15a] sm:$0xff]
    %v3487 = vld [vmem:[%s2560 + $0x16a] sm:$0xff]
    %v3488 = vld [vmem:[%s2560 + $0x172] sm:$0xff]
    %v3489 = vld [vmem:[%s2560 + $0x1b2] sm:$0xff]
    %v3490 = vld [vmem:[%s2560 + $0x1ba] sm:$0xff]
    %v3491 = vld [vmem:[%s2560 + $0x1ca] sm:$0xff]
    %v3492 = vld [vmem:[%s2560 + $0x1d2] sm:$0xff]
    %v3493 = vld [vmem:[%s2560 + $0x1e2] sm:$0xff]
    %v3494 = vld [vmem:[%s2560 + $0x1ea] sm:$0xff]
    %v3495 = vld [vmem:[%s2560 + $0x1fa] sm:$0xff]
    %v3496 = vld [vmem:[%s2560 + $0x202] sm:$0xff]
    %v3497 = vld [vmem:[%s2560 + $0x212] sm:$0xff]
    %v3498 = vld [vmem:[%s2560 + $0x21a] sm:$0xff]
    %v3499 = vld [vmem:[%s2560 + $0x22a] sm:$0xff]
    %v3500 = vld [vmem:[%s2560 + $0x232] sm:$0xff]
    %v3501 = vld [vmem:[%s2560 + $0x242] sm:$0xff]
    %v3502 = vld [vmem:[%s2560 + $0x24a] sm:$0xff]
    %v3503 = vld [vmem:[%s2560 + $0x25a] sm:$0xff]
    %v3504 = vld [vmem:[%s2560 + $0x262] sm:$0xff]
    %v3505 = vld [vmem:[%s2560 + $0x272] sm:$0xff]
    %v3506 = vld [vmem:[%s2560 + $0x27a] sm:$0xff]
    %v3507 = vld [vmem:[%s2560 + $0x28a] sm:$0xff]
    %v3508 = vld [vmem:[%s2560 + $0x292] sm:$0xff]
    %v3509 = vld [vmem:[%s2560 + $0x2a2] sm:$0xff]
    %v3510 = vld [vmem:[%s2560 + $0x2aa] sm:$0xff]
    %v3511 = vld [vmem:[%s2560 + $0x2ba] sm:$0xff]
    %v3512 = vld [vmem:[%s2560 + $0x2c2] sm:$0xff]
    %v3513 = vld [vmem:[%s2560 + $0x2d2] sm:$0xff]
    %v3514 = vld [vmem:[%s2560 + $0x2da] sm:$0xff]
    %v3515 = vld [vmem:[%s2560 + $0x2ea] sm:$0xff]
    %v3516 = vld [vmem:[%s2560 + $0x2f2] sm:$0xff]
    %v3517 = vld [vmem:[%s2560 + $0x302] sm:$0xff]
    %v3518 = vld [vmem:[%s2560 + $0x30a] sm:$0xff]
    %v3519 = vld [vmem:[%s2560 + $0x31a] sm:$0xff]
    %v3520 = vld [vmem:[%s2560 + $0x322] sm:$0xff]
    %v3521 = vpack.c.bf16 %v3457, %v3457
    %v3522 = vpack.c.bf16 %v3458, %v3458
    %v3523 = vpack.c.bf16 %v3459, %v3459
    %v3524 = vpack.c.bf16 %v3460, %v3460
    %v3525 = vpack.c.bf16 %v3461, %v3461
    %v3526 = vpack.c.bf16 %v3462, %v3462
    %v3527 = vpack.c.bf16 %v3463, %v3463
    %v3528 = vpack.c.bf16 %v3464, %v3464
    %v3529 = vpack.c.bf16 %v3465, %v3465
    %v3530 = vpack.c.bf16 %v3466, %v3466
    %v3531 = vpack.c.bf16 %v3467, %v3467
    %v3532 = vpack.c.bf16 %v3468, %v3468
    %v3533 = vpack.c.bf16 %v3469, %v3469
    %v3534 = vpack.c.bf16 %v3470, %v3470
    %v3535 = vpack.c.bf16 %v3471, %v3471
    %v3536 = vpack.c.bf16 %v3472, %v3472
    %v3537 = vpack.c.bf16 %v3473, %v3473
    %v3538 = vpack.c.bf16 %v3474, %v3474
    %v3539 = vpack.c.bf16 %v3475, %v3475
    %v3540 = vpack.c.bf16 %v3476, %v3476
    %v3541 = vpack.c.bf16 %v3477, %v3477
    %v3542 = vpack.c.bf16 %v3478, %v3478
    %v3543 = vpack.c.bf16 %v3479, %v3479
    %v3544 = vpack.c.bf16 %v3480, %v3480
    %v3545 = vpack.c.bf16 %v3481, %v3481
    %v3546 = vpack.c.bf16 %v3482, %v3482
    %v3547 = vpack.c.bf16 %v3483, %v3483
    %v3548 = vpack.c.bf16 %v3484, %v3484
    %v3549 = vpack.c.bf16 %v3485, %v3485
    %v3550 = vpack.c.bf16 %v3486, %v3486
    %v3551 = vpack.c.bf16 %v3487, %v3487
    %v3552 = vpack.c.bf16 %v3488, %v3488
    %v3553 = vpack.c.bf16 %v3489, %v3489
    %v3554 = vpack.c.bf16 %v3490, %v3490
    %v3555 = vpack.c.bf16 %v3491, %v3491
    %v3556 = vpack.c.bf16 %v3492, %v3492
    %v3557 = vpack.c.bf16 %v3493, %v3493
    %v3558 = vpack.c.bf16 %v3494, %v3494
    %v3559 = vpack.c.bf16 %v3495, %v3495
    %v3560 = vpack.c.bf16 %v3496, %v3496
    %v3561 = vpack.c.bf16 %v3497, %v3497
    %v3562 = vpack.c.bf16 %v3498, %v3498
    %v3563 = vpack.c.bf16 %v3499, %v3499
    %v3564 = vpack.c.bf16 %v3500, %v3500
    %v3565 = vpack.c.bf16 %v3501, %v3501
    %v3566 = vpack.c.bf16 %v3502, %v3502
    %v3567 = vpack.c.bf16 %v3503, %v3503
    %v3568 = vpack.c.bf16 %v3504, %v3504
    %v3569 = vpack.c.bf16 %v3505, %v3505
    %v3570 = vpack.c.bf16 %v3506, %v3506
    %v3571 = vpack.c.bf16 %v3507, %v3507
    %v3572 = vpack.c.bf16 %v3508, %v3508
    %v3573 = vpack.c.bf16 %v3509, %v3509
    %v3574 = vpack.c.bf16 %v3510, %v3510
    %v3575 = vpack.c.bf16 %v3511, %v3511
    %v3576 = vpack.c.bf16 %v3512, %v3512
    %v3577 = vpack.c.bf16 %v3513, %v3513
    %v3578 = vpack.c.bf16 %v3514, %v3514
    %v3579 = vpack.c.bf16 %v3515, %v3515
    %v3580 = vpack.c.bf16 %v3516, %v3516
    %v3581 = vpack.c.bf16 %v3517, %v3517
    %v3582 = vpack.c.bf16 %v3518, %v3518
    %v3583 = vpack.c.bf16 %v3519, %v3519
    %v3584 = vpack.c.bf16 %v3520, %v3520
    %3585 = vst.msk [vmem:[#allocation4 + $0x8] sm:$0xf] %vm508, %v3521
    %3586 = vst.msk [vmem:[#allocation4 + $0x14] sm:$0xf] %vm508, %v3522
    %3587 = vst.msk [vmem:[#allocation4 + $0x20] sm:$0xf] %vm508, %v3523
    %3588 = vst.msk [vmem:[#allocation4 + $0x2c] sm:$0xf] %vm508, %v3524
    %3589 = vst.msk [vmem:[#allocation4 + $0x38] sm:$0xf] %vm508, %v3525
    %3590 = vst.msk [vmem:[#allocation4 + $0x44] sm:$0xf] %vm508, %v3526
    %3591 = vst.msk [vmem:[#allocation4 + $0x50] sm:$0xf] %vm508, %v3527
    %3592 = vst.msk [vmem:[#allocation4 + $0x5c] sm:$0xf] %vm508, %v3528
    %3593 = vst.msk [vmem:[#allocation4 + $0x68] sm:$0xf] %vm508, %v3529
    %3594 = vst.msk [vmem:[#allocation4 + $0x74] sm:$0xf] %vm508, %v3530
    %3595 = vst.msk [vmem:[#allocation4 + $0x80] sm:$0xf] %vm508, %v3531
    %3596 = vst.msk [vmem:[#allocation4 + $0x8c] sm:$0xf] %vm508, %v3532
    %3597 = vst.msk [vmem:[#allocation4 + $0x98] sm:$0xf] %vm508, %v3533
    %3598 = vst.msk [vmem:[#allocation4 + $0xa4] sm:$0xf] %vm508, %v3534
    %3599 = vst.msk [vmem:[#allocation4 + $0xb0] sm:$0xf] %vm508, %v3535
    %3600 = vst.msk [vmem:[#allocation4 + $0xbc] sm:$0xf] %vm508, %v3536
    %3601 = vst.msk [vmem:[#allocation4 + $0xc8] sm:$0xf] %vm508, %v3537
    %3602 = vst.msk [vmem:[#allocation4 + $0xd4] sm:$0xf] %vm508, %v3538
    %3603 = vst.msk [vmem:[#allocation4 + $0xe0] sm:$0xf] %vm508, %v3539
    %3604 = vst.msk [vmem:[#allocation4 + $0xec] sm:$0xf] %vm508, %v3540
    %3605 = vst.msk [vmem:[#allocation4 + $0xf8] sm:$0xf] %vm508, %v3541
    %3606 = vst.msk [vmem:[#allocation4 + $0x104] sm:$0xf] %vm508, %v3542
    %3607 = vst.msk [vmem:[#allocation4 + $0x110] sm:$0xf] %vm508, %v3543
    %3608 = vst.msk [vmem:[#allocation4 + $0x11c] sm:$0xf] %vm508, %v3544
    %3609 = vst.msk [vmem:[#allocation4 + $0x128] sm:$0xf] %vm508, %v3545
    %3610 = vst.msk [vmem:[#allocation4 + $0x134] sm:$0xf] %vm508, %v3546
    %3611 = vst.msk [vmem:[#allocation4 + $0x140] sm:$0xf] %vm508, %v3547
    %3612 = vst.msk [vmem:[#allocation4 + $0x14c] sm:$0xf] %vm508, %v3548
    %3613 = vst.msk [vmem:[#allocation4 + $0x158] sm:$0xf] %vm508, %v3549
    %3614 = vst.msk [vmem:[#allocation4 + $0x164] sm:$0xf] %vm508, %v3550
    %3615 = vst.msk [vmem:[#allocation4 + $0x170] sm:$0xf] %vm508, %v3551
    %3616 = vst.msk [vmem:[#allocation4 + $0x17c] sm:$0xf] %vm508, %v3552
    %3617 = vst.msk [vmem:[#allocation4 + $0x188] sm:$0xf] %vm508, %v3553
    %3618 = vst.msk [vmem:[#allocation4 + $0x194] sm:$0xf] %vm508, %v3554
    %3619 = vst.msk [vmem:[#allocation4 + $0x1a0] sm:$0xf] %vm508, %v3555
    %3620 = vst.msk [vmem:[#allocation4 + $0x1ac] sm:$0xf] %vm508, %v3556
    %3621 = vst.msk [vmem:[#allocation4 + $0x1b8] sm:$0xf] %vm508, %v3557
    %3622 = vst.msk [vmem:[#allocation4 + $0x1c4] sm:$0xf] %vm508, %v3558
    %3623 = vst.msk [vmem:[#allocation4 + $0x1d0] sm:$0xf] %vm508, %v3559
    %3624 = vst.msk [vmem:[#allocation4 + $0x1dc] sm:$0xf] %vm508, %v3560
    %3625 = vst.msk [vmem:[#allocation4 + $0x1e8] sm:$0xf] %vm508, %v3561
    %3626 = vst.msk [vmem:[#allocation4 + $0x1f4] sm:$0xf] %vm508, %v3562
    %3627 = vst.msk [vmem:[#allocation4 + $0x200] sm:$0xf] %vm508, %v3563
    %3628 = vst.msk [vmem:[#allocation4 + $0x20c] sm:$0xf] %vm508, %v3564
    %3629 = vst.msk [vmem:[#allocation4 + $0x218] sm:$0xf] %vm508, %v3565
    %3630 = vst.msk [vmem:[#allocation4 + $0x224] sm:$0xf] %vm508, %v3566
    %3631 = vst.msk [vmem:[#allocation4 + $0x230] sm:$0xf] %vm508, %v3567
    %3632 = vst.msk [vmem:[#allocation4 + $0x23c] sm:$0xf] %vm508, %v3568
    %3633 = vst.msk [vmem:[#allocation4 + $0x248] sm:$0xf] %vm508, %v3569
    %3634 = vst.msk [vmem:[#allocation4 + $0x254] sm:$0xf] %vm508, %v3570
    %3635 = vst.msk [vmem:[#allocation4 + $0x260] sm:$0xf] %vm508, %v3571
    %3636 = vst.msk [vmem:[#allocation4 + $0x26c] sm:$0xf] %vm508, %v3572
    %3637 = vst.msk [vmem:[#allocation4 + $0x278] sm:$0xf] %vm508, %v3573
    %3638 = vst.msk [vmem:[#allocation4 + $0x284] sm:$0xf] %vm508, %v3574
    %3639 = vst.msk [vmem:[#allocation4 + $0x290] sm:$0xf] %vm508, %v3575
    %3640 = vst.msk [vmem:[#allocation4 + $0x29c] sm:$0xf] %vm508, %v3576
    %3641 = vst.msk [vmem:[#allocation4 + $0x2a8] sm:$0xf] %vm508, %v3577
    %3642 = vst.msk [vmem:[#allocation4 + $0x2b4] sm:$0xf] %vm508, %v3578
    %3643 = vst.msk [vmem:[#allocation4 + $0x2c0] sm:$0xf] %vm508, %v3579
    %3644 = vst.msk [vmem:[#allocation4 + $0x2cc] sm:$0xf] %vm508, %v3580
    %3645 = vst.msk [vmem:[#allocation4 + $0x2d8] sm:$0xf] %vm508, %v3581
    %3646 = vst.msk [vmem:[#allocation4 + $0x2e4] sm:$0xf] %vm508, %v3582
    %3647 = vst.msk [vmem:[#allocation4 + $0x2f0] sm:$0xf] %vm508, %v3583
    %3648 = vst.msk [vmem:[#allocation4 + $0x2fc] sm:$0xf] %vm508, %v3584
    %v3649 = vld [vmem:[#allocation4] sm:$0xff]
    %v3650 = vld [vmem:[#allocation4 + $0x8] sm:$0xf]
    %v3651 = vld [vmem:[#allocation4 + $0xc] sm:$0xff]
    %v3652 = vld [vmem:[#allocation4 + $0x14] sm:$0xf]
    %v3653 = vld [vmem:[#allocation4 + $0x18] sm:$0xff]
    %v3654 = vld [vmem:[#allocation4 + $0x20] sm:$0xf]
    %v3655 = vld [vmem:[#allocation4 + $0x24] sm:$0xff]
    %v3656 = vld [vmem:[#allocation4 + $0x2c] sm:$0xf]
    %v3657 = vld [vmem:[#allocation4 + $0x30] sm:$0xff]
    %v3658 = vld [vmem:[#allocation4 + $0x38] sm:$0xf]
    %v3659 = vld [vmem:[#allocation4 + $0x3c] sm:$0xff]
    %v3660 = vld [vmem:[#allocation4 + $0x44] sm:$0xf]
    %v3661 = vld [vmem:[#allocation4 + $0x48] sm:$0xff]
    %v3662 = vld [vmem:[#allocation4 + $0x50] sm:$0xf]
    %v3663 = vld [vmem:[#allocation4 + $0x54] sm:$0xff]
    %v3664 = vld [vmem:[#allocation4 + $0x5c] sm:$0xf]
    %v3665 = vld [vmem:[#allocation4 + $0x60] sm:$0xff]
    %v3666 = vld [vmem:[#allocation4 + $0x68] sm:$0xf]
    %v3667 = vld [vmem:[#allocation4 + $0x6c] sm:$0xff]
    %v3668 = vld [vmem:[#allocation4 + $0x74] sm:$0xf]
    %v3669 = vld [vmem:[#allocation4 + $0x78] sm:$0xff]
    %v3670 = vld [vmem:[#allocation4 + $0x80] sm:$0xf]
    %v3671 = vld [vmem:[#allocation4 + $0x84] sm:$0xff]
    %v3672 = vld [vmem:[#allocation4 + $0x8c] sm:$0xf]
    %v3673 = vld [vmem:[#allocation4 + $0x90] sm:$0xff]
    %v3674 = vld [vmem:[#allocation4 + $0x98] sm:$0xf]
    %v3675 = vld [vmem:[#allocation4 + $0x9c] sm:$0xff]
    %v3676 = vld [vmem:[#allocation4 + $0xa4] sm:$0xf]
    %v3677 = vld [vmem:[#allocation4 + $0xa8] sm:$0xff]
    %v3678 = vld [vmem:[#allocation4 + $0xb0] sm:$0xf]
    %v3679 = vld [vmem:[#allocation4 + $0xb4] sm:$0xff]
    %v3680 = vld [vmem:[#allocation4 + $0xbc] sm:$0xf]
    %v3681 = vld [vmem:[#allocation4 + $0xc0] sm:$0xff]
    %v3682 = vld [vmem:[#allocation4 + $0xc8] sm:$0xf]
    %v3683 = vld [vmem:[#allocation4 + $0xcc] sm:$0xff]
    %v3684 = vld [vmem:[#allocation4 + $0xd4] sm:$0xf]
    %v3685 = vld [vmem:[#allocation4 + $0xd8] sm:$0xff]
    %v3686 = vld [vmem:[#allocation4 + $0xe0] sm:$0xf]
    %v3687 = vld [vmem:[#allocation4 + $0xe4] sm:$0xff]
    %v3688 = vld [vmem:[#allocation4 + $0xec] sm:$0xf]
    %v3689 = vld [vmem:[#allocation4 + $0xf0] sm:$0xff]
    %v3690 = vld [vmem:[#allocation4 + $0xf8] sm:$0xf]
    %v3691 = vld [vmem:[#allocation4 + $0xfc] sm:$0xff]
    %v3692 = vld [vmem:[#allocation4 + $0x104] sm:$0xf]
    %v3693 = vld [vmem:[#allocation4 + $0x108] sm:$0xff]
    %v3694 = vld [vmem:[#allocation4 + $0x110] sm:$0xf]
    %v3695 = vld [vmem:[#allocation4 + $0x114] sm:$0xff]
    %v3696 = vld [vmem:[#allocation4 + $0x11c] sm:$0xf]
    %v3697 = vld [vmem:[#allocation4 + $0x120] sm:$0xff]
    %v3698 = vld [vmem:[#allocation4 + $0x128] sm:$0xf]
    %v3699 = vld [vmem:[#allocation4 + $0x12c] sm:$0xff]
    %v3700 = vld [vmem:[#allocation4 + $0x134] sm:$0xf]
    %v3701 = vld [vmem:[#allocation4 + $0x138] sm:$0xff]
    %v3702 = vld [vmem:[#allocation4 + $0x140] sm:$0xf]
    %v3703 = vld [vmem:[#allocation4 + $0x144] sm:$0xff]
    %v3704 = vld [vmem:[#allocation4 + $0x14c] sm:$0xf]
    %v3705 = vld [vmem:[#allocation4 + $0x150] sm:$0xff]
    %v3706 = vld [vmem:[#allocation4 + $0x158] sm:$0xf]
    %v3707 = vld [vmem:[#allocation4 + $0x15c] sm:$0xff]
    %v3708 = vld [vmem:[#allocation4 + $0x164] sm:$0xf]
    %v3709 = vld [vmem:[#allocation4 + $0x168] sm:$0xff]
    %v3710 = vld [vmem:[#allocation4 + $0x170] sm:$0xf]
    %v3711 = vld [vmem:[#allocation4 + $0x174] sm:$0xff]
    %v3712 = vld [vmem:[#allocation4 + $0x17c] sm:$0xf]
    %v3713 = vld [vmem:[#allocation4 + $0x180] sm:$0xff]
    %v3714 = vld [vmem:[#allocation4 + $0x188] sm:$0xf]
    %v3715 = vld [vmem:[#allocation4 + $0x18c] sm:$0xff]
    %v3716 = vld [vmem:[#allocation4 + $0x194] sm:$0xf]
    %v3717 = vld [vmem:[#allocation4 + $0x198] sm:$0xff]
    %v3718 = vld [vmem:[#allocation4 + $0x1a0] sm:$0xf]
    %v3719 = vld [vmem:[#allocation4 + $0x1a4] sm:$0xff]
    %v3720 = vld [vmem:[#allocation4 + $0x1ac] sm:$0xf]
    %v3721 = vld [vmem:[#allocation4 + $0x1b0] sm:$0xff]
    %v3722 = vld [vmem:[#allocation4 + $0x1b8] sm:$0xf]
    %v3723 = vld [vmem:[#allocation4 + $0x1bc] sm:$0xff]
    %v3724 = vld [vmem:[#allocation4 + $0x1c4] sm:$0xf]
    %v3725 = vld [vmem:[#allocation4 + $0x1c8] sm:$0xff]
    %v3726 = vld [vmem:[#allocation4 + $0x1d0] sm:$0xf]
    %v3727 = vld [vmem:[#allocation4 + $0x1d4] sm:$0xff]
    %v3728 = vld [vmem:[#allocation4 + $0x1dc] sm:$0xf]
    %v3729 = vld [vmem:[#allocation4 + $0x1e0] sm:$0xff]
    %v3730 = vld [vmem:[#allocation4 + $0x1e8] sm:$0xf]
    %v3731 = vld [vmem:[#allocation4 + $0x1ec] sm:$0xff]
    %v3732 = vld [vmem:[#allocation4 + $0x1f4] sm:$0xf]
    %v3733 = vld [vmem:[#allocation4 + $0x1f8] sm:$0xff]
    %v3734 = vld [vmem:[#allocation4 + $0x200] sm:$0xf]
    %v3735 = vld [vmem:[#allocation4 + $0x204] sm:$0xff]
    %v3736 = vld [vmem:[#allocation4 + $0x20c] sm:$0xf]
    %v3737 = vld [vmem:[#allocation4 + $0x210] sm:$0xff]
    %v3738 = vld [vmem:[#allocation4 + $0x218] sm:$0xf]
    %v3739 = vld [vmem:[#allocation4 + $0x21c] sm:$0xff]
    %v3740 = vld [vmem:[#allocation4 + $0x224] sm:$0xf]
    %v3741 = vld [vmem:[#allocation4 + $0x228] sm:$0xff]
    %v3742 = vld [vmem:[#allocation4 + $0x230] sm:$0xf]
    %v3743 = vld [vmem:[#allocation4 + $0x234] sm:$0xff]
    %v3744 = vld [vmem:[#allocation4 + $0x23c] sm:$0xf]
    %v3745 = vld [vmem:[#allocation4 + $0x240] sm:$0xff]
    %v3746 = vld [vmem:[#allocation4 + $0x248] sm:$0xf]
    %v3747 = vld [vmem:[#allocation4 + $0x24c] sm:$0xff]
    %v3748 = vld [vmem:[#allocation4 + $0x254] sm:$0xf]
    %v3749 = vld [vmem:[#allocation4 + $0x258] sm:$0xff]
    %v3750 = vld [vmem:[#allocation4 + $0x260] sm:$0xf]
    %v3751 = vld [vmem:[#allocation4 + $0x264] sm:$0xff]
    %v3752 = vld [vmem:[#allocation4 + $0x26c] sm:$0xf]
    %v3753 = vld [vmem:[#allocation4 + $0x270] sm:$0xff]
    %v3754 = vld [vmem:[#allocation4 + $0x278] sm:$0xf]
    %v3755 = vld [vmem:[#allocation4 + $0x27c] sm:$0xff]
    %v3756 = vld [vmem:[#allocation4 + $0x284] sm:$0xf]
    %v3757 = vld [vmem:[#allocation4 + $0x288] sm:$0xff]
    %v3758 = vld [vmem:[#allocation4 + $0x290] sm:$0xf]
    %v3759 = vld [vmem:[#allocation4 + $0x294] sm:$0xff]
    %v3760 = vld [vmem:[#allocation4 + $0x29c] sm:$0xf]
    %v3761 = vld [vmem:[#allocation4 + $0x2a0] sm:$0xff]
    %v3762 = vld [vmem:[#allocation4 + $0x2a8] sm:$0xf]
    %v3763 = vld [vmem:[#allocation4 + $0x2ac] sm:$0xff]
    %v3764 = vld [vmem:[#allocation4 + $0x2b4] sm:$0xf]
    %v3765 = vld [vmem:[#allocation4 + $0x2b8] sm:$0xff]
    %v3766 = vld [vmem:[#allocation4 + $0x2c0] sm:$0xf]
    %v3767 = vld [vmem:[#allocation4 + $0x2c4] sm:$0xff]
    %v3768 = vld [vmem:[#allocation4 + $0x2cc] sm:$0xf]
    %v3769 = vld [vmem:[#allocation4 + $0x2d0] sm:$0xff]
    %v3770 = vld [vmem:[#allocation4 + $0x2d8] sm:$0xf]
    %v3771 = vld [vmem:[#allocation4 + $0x2dc] sm:$0xff]
    %v3772 = vld [vmem:[#allocation4 + $0x2e4] sm:$0xf]
    %v3773 = vld [vmem:[#allocation4 + $0x2e8] sm:$0xff]
    %v3774 = vld [vmem:[#allocation4 + $0x2f0] sm:$0xf]
    %v3775 = vld [vmem:[#allocation4 + $0x2f4] sm:$0xff]
    %v3776 = vld [vmem:[#allocation4 + $0x2fc] sm:$0xf]
    %v3777 = vld [vmem:[%s1] sm:$0xf]
    %v3778 = vld [vmem:[%s1 + $0x4] sm:$0xf]
    %v3779 = vld [vmem:[%s1 + $0x8] sm:$0xf]
    %v3780 = vld [vmem:[%s1 + $0xc] sm:$0xf]
    %v3781 = vld [vmem:[%s1 + $0x10] sm:$0xf]
    %v3782 = vld [vmem:[%s1 + $0x14] sm:$0xf]
    %v3783 = vld [vmem:[%s1 + $0x18] sm:$0xf]
    %v3784 = vld [vmem:[%s1 + $0x1c] sm:$0xf]
    %v3785 = vld [vmem:[%s1 + $0x20] sm:$0xf]
    %v3786 = vld [vmem:[%s1 + $0x24] sm:$0xf]
    %v3787 = vld [vmem:[%s1 + $0x28] sm:$0xf]
    %v3788 = vld [vmem:[%s1 + $0x2c] sm:$0xf]
    %v3789 = vld [vmem:[%s1 + $0x30] sm:$0xf]
    %v3790 = vld [vmem:[%s1 + $0x34] sm:$0xf]
    %v3791 = vld [vmem:[%s1 + $0x38] sm:$0xf]
    %v3792 = vld [vmem:[%s1 + $0x3c] sm:$0xf]
    %v3793 = vld [vmem:[%s1 + $0x40] sm:$0xf]
    %v3794 = vld [vmem:[%s1 + $0x44] sm:$0xf]
    %v3795 = vld [vmem:[%s1 + $0x48] sm:$0xf]
    %v3796 = vld [vmem:[%s1 + $0x4c] sm:$0xf]
    %v3797 = vld [vmem:[%s1 + $0x50] sm:$0xf]
    %v3798 = vld [vmem:[%s1 + $0x54] sm:$0xf]
    %v3799 = vld [vmem:[%s1 + $0x58] sm:$0xf]
    %v3800 = vld [vmem:[%s1 + $0x5c] sm:$0xf]
    %v3801 = vld [vmem:[%s1 + $0x60] sm:$0xf]
    %v3802 = vld [vmem:[%s1 + $0x64] sm:$0xf]
    %v3803 = vld [vmem:[%s1 + $0x68] sm:$0xf]
    %v3804 = vld [vmem:[%s1 + $0x6c] sm:$0xf]
    %v3805 = vld [vmem:[%s1 + $0x70] sm:$0xf]
    %v3806 = vld [vmem:[%s1 + $0x74] sm:$0xf]
    %v3807 = vld [vmem:[%s1 + $0x78] sm:$0xf]
    %v3808 = vld [vmem:[%s1 + $0x7c] sm:$0xf]
    %v3809 = vld [vmem:[%s1 + $0x80] sm:$0xf]
    %v3810 = vld [vmem:[%s1 + $0x84] sm:$0xf]
    %v3811 = vld [vmem:[%s1 + $0x88] sm:$0xf]
    %v3812 = vld [vmem:[%s1 + $0x8c] sm:$0xf]
    %v3813 = vperm.slane %v32, 0
    %v3942 = vunpack.c.l.b16 %v3649
    %v3943 = vunpack.c.h.b16 %v3649
    %v3944 = vunpack.c.l.b16 %v3650
    %v3945 = vunpack.c.l.b16 %v3651
    %v3946 = vunpack.c.h.b16 %v3651
    %v3947 = vunpack.c.l.b16 %v3652
    %v3948 = vunpack.c.l.b16 %v3653
    %v3949 = vunpack.c.h.b16 %v3653
    %v3950 = vunpack.c.l.b16 %v3654
    %v3951 = vunpack.c.l.b16 %v3655
    %v3952 = vunpack.c.h.b16 %v3655
    %v3953 = vunpack.c.l.b16 %v3656
    %v3954 = vunpack.c.l.b16 %v3657
    %v3955 = vunpack.c.h.b16 %v3657
    %v3956 = vunpack.c.l.b16 %v3658
    %v3957 = vunpack.c.l.b16 %v3659
    %v3958 = vunpack.c.h.b16 %v3659
    %v3959 = vunpack.c.l.b16 %v3660
    %v3960 = vunpack.c.l.b16 %v3661
    %v3961 = vunpack.c.h.b16 %v3661
    %v3962 = vunpack.c.l.b16 %v3662
    %v3963 = vunpack.c.l.b16 %v3663
    %v3964 = vunpack.c.h.b16 %v3663
    %v3965 = vunpack.c.l.b16 %v3664
    %v3966 = vunpack.c.l.b16 %v3665
    %v3967 = vunpack.c.h.b16 %v3665
    %v3968 = vunpack.c.l.b16 %v3666
    %v3969 = vunpack.c.l.b16 %v3667
    %v3970 = vunpack.c.h.b16 %v3667
    %v3971 = vunpack.c.l.b16 %v3668
    %v3972 = vunpack.c.l.b16 %v3669
    %v3973 = vunpack.c.h.b16 %v3669
    %v3974 = vunpack.c.l.b16 %v3670
    %v3975 = vunpack.c.l.b16 %v3671
    %v3976 = vunpack.c.h.b16 %v3671
    %v3977 = vunpack.c.l.b16 %v3672
    %v3978 = vunpack.c.l.b16 %v3673
    %v3979 = vunpack.c.h.b16 %v3673
    %v3980 = vunpack.c.l.b16 %v3674
    %v3981 = vunpack.c.l.b16 %v3675
    %v3982 = vunpack.c.h.b16 %v3675
    %v3983 = vunpack.c.l.b16 %v3676
    %v3984 = vunpack.c.l.b16 %v3677
    %v3985 = vunpack.c.h.b16 %v3677
    %v3986 = vunpack.c.l.b16 %v3678
    %v3987 = vunpack.c.l.b16 %v3679
    %v3988 = vunpack.c.h.b16 %v3679
    %v3989 = vunpack.c.l.b16 %v3680
    %v3990 = vunpack.c.l.b16 %v3681
    %v3991 = vunpack.c.h.b16 %v3681
    %v3992 = vunpack.c.l.b16 %v3682
    %v3993 = vunpack.c.l.b16 %v3683
    %v3994 = vunpack.c.h.b16 %v3683
    %v3995 = vunpack.c.l.b16 %v3684
    %v3996 = vunpack.c.l.b16 %v3685
    %v3997 = vunpack.c.h.b16 %v3685
    %v3998 = vunpack.c.l.b16 %v3686
    %v3999 = vunpack.c.l.b16 %v3687
    %v4000 = vunpack.c.h.b16 %v3687
    %v4001 = vunpack.c.l.b16 %v3688
    %v4002 = vunpack.c.l.b16 %v3689
    %v4003 = vunpack.c.h.b16 %v3689
    %v4004 = vunpack.c.l.b16 %v3690
    %v4005 = vunpack.c.l.b16 %v3691
    %v4006 = vunpack.c.h.b16 %v3691
    %v4007 = vunpack.c.l.b16 %v3692
    %v4008 = vunpack.c.l.b16 %v3693
    %v4009 = vunpack.c.h.b16 %v3693
    %v4010 = vunpack.c.l.b16 %v3694
    %v4011 = vunpack.c.l.b16 %v3695
    %v4012 = vunpack.c.h.b16 %v3695
    %v4013 = vunpack.c.l.b16 %v3696
    %v4014 = vunpack.c.l.b16 %v3697
    %v4015 = vunpack.c.h.b16 %v3697
    %v4016 = vunpack.c.l.b16 %v3698
    %v4017 = vunpack.c.l.b16 %v3699
    %v4018 = vunpack.c.h.b16 %v3699
    %v4019 = vunpack.c.l.b16 %v3700
    %v4020 = vunpack.c.l.b16 %v3701
    %v4021 = vunpack.c.h.b16 %v3701
    %v4022 = vunpack.c.l.b16 %v3702
    %v4023 = vunpack.c.l.b16 %v3703
    %v4024 = vunpack.c.h.b16 %v3703
    %v4025 = vunpack.c.l.b16 %v3704
    %v4026 = vunpack.c.l.b16 %v3705
    %v4027 = vunpack.c.h.b16 %v3705
    %v4028 = vunpack.c.l.b16 %v3706
    %v4029 = vunpack.c.l.b16 %v3707
    %v4030 = vunpack.c.h.b16 %v3707
    %v4031 = vunpack.c.l.b16 %v3708
    %v4032 = vunpack.c.l.b16 %v3709
    %v4033 = vunpack.c.h.b16 %v3709
    %v4034 = vunpack.c.l.b16 %v3710
    %v4035 = vunpack.c.l.b16 %v3711
    %v4036 = vunpack.c.h.b16 %v3711
    %v4037 = vunpack.c.l.b16 %v3712
    %v4038 = vunpack.c.l.b16 %v3713
    %v4039 = vunpack.c.h.b16 %v3713
    %v4040 = vunpack.c.l.b16 %v3714
    %v4041 = vunpack.c.l.b16 %v3715
    %v4042 = vunpack.c.h.b16 %v3715
    %v4043 = vunpack.c.l.b16 %v3716
    %v4044 = vunpack.c.l.b16 %v3717
    %v4045 = vunpack.c.h.b16 %v3717
    %v4046 = vunpack.c.l.b16 %v3718
    %v4047 = vunpack.c.l.b16 %v3719
    %v4048 = vunpack.c.h.b16 %v3719
    %v4049 = vunpack.c.l.b16 %v3720
    %v4050 = vunpack.c.l.b16 %v3721
    %v4051 = vunpack.c.h.b16 %v3721
    %v4052 = vunpack.c.l.b16 %v3722
    %v4053 = vunpack.c.l.b16 %v3723
    %v4054 = vunpack.c.h.b16 %v3723
    %v4055 = vunpack.c.l.b16 %v3724
    %v4056 = vunpack.c.l.b16 %v3725
    %v4057 = vunpack.c.h.b16 %v3725
    %v4058 = vunpack.c.l.b16 %v3726
    %v4059 = vunpack.c.l.b16 %v3727
    %v4060 = vunpack.c.h.b16 %v3727
    %v4061 = vunpack.c.l.b16 %v3728
    %v4062 = vunpack.c.l.b16 %v3729
    %v4063 = vunpack.c.h.b16 %v3729
    %v4064 = vunpack.c.l.b16 %v3730
    %v4065 = vunpack.c.l.b16 %v3731
    %v4066 = vunpack.c.h.b16 %v3731
    %v4067 = vunpack.c.l.b16 %v3732
    %v4068 = vunpack.c.l.b16 %v3733
    %v4069 = vunpack.c.h.b16 %v3733
    %v4070 = vunpack.c.l.b16 %v3734
    %v4071 = vunpack.c.l.b16 %v3735
    %v4072 = vunpack.c.h.b16 %v3735
    %v4073 = vunpack.c.l.b16 %v3736
    %v4074 = vunpack.c.l.b16 %v3737
    %v4075 = vunpack.c.h.b16 %v3737
    %v4076 = vunpack.c.l.b16 %v3738
    %v4077 = vunpack.c.l.b16 %v3739
    %v4078 = vunpack.c.h.b16 %v3739
    %v4079 = vunpack.c.l.b16 %v3740
    %v4080 = vunpack.c.l.b16 %v3741
    %v4081 = vunpack.c.h.b16 %v3741
    %v4082 = vunpack.c.l.b16 %v3742
    %v4083 = vunpack.c.l.b16 %v3743
    %v4084 = vunpack.c.h.b16 %v3743
    %v4085 = vunpack.c.l.b16 %v3744
    %v4086 = vunpack.c.l.b16 %v3745
    %v4087 = vunpack.c.h.b16 %v3745
    %v4088 = vunpack.c.l.b16 %v3746
    %v4089 = vunpack.c.l.b16 %v3747
    %v4090 = vunpack.c.h.b16 %v3747
    %v4091 = vunpack.c.l.b16 %v3748
    %v4092 = vunpack.c.l.b16 %v3749
    %v4093 = vunpack.c.h.b16 %v3749
    %v4094 = vunpack.c.l.b16 %v3750
    %v4095 = vunpack.c.l.b16 %v3751
    %v4096 = vunpack.c.h.b16 %v3751
    %v4097 = vunpack.c.l.b16 %v3752
    %v4098 = vunpack.c.l.b16 %v3753
    %v4099 = vunpack.c.h.b16 %v3753
    %v4100 = vunpack.c.l.b16 %v3754
    %v4101 = vunpack.c.l.b16 %v3755
    %v4102 = vunpack.c.h.b16 %v3755
    %v4103 = vunpack.c.l.b16 %v3756
    %v4104 = vunpack.c.l.b16 %v3757
    %v4105 = vunpack.c.h.b16 %v3757
    %v4106 = vunpack.c.l.b16 %v3758
    %v4107 = vunpack.c.l.b16 %v3759
    %v4108 = vunpack.c.h.b16 %v3759
    %v4109 = vunpack.c.l.b16 %v3760
    %v4110 = vunpack.c.l.b16 %v3761
    %v4111 = vunpack.c.h.b16 %v3761
    %v4112 = vunpack.c.l.b16 %v3762
    %v4113 = vunpack.c.l.b16 %v3763
    %v4114 = vunpack.c.h.b16 %v3763
    %v4115 = vunpack.c.l.b16 %v3764
    %v4116 = vunpack.c.l.b16 %v3765
    %v4117 = vunpack.c.h.b16 %v3765
    %v4118 = vunpack.c.l.b16 %v3766
    %v4119 = vunpack.c.l.b16 %v3767
    %v4120 = vunpack.c.h.b16 %v3767
    %v4121 = vunpack.c.l.b16 %v3768
    %v4122 = vunpack.c.l.b16 %v3769
    %v4123 = vunpack.c.h.b16 %v3769
    %v4124 = vunpack.c.l.b16 %v3770
    %v4125 = vunpack.c.l.b16 %v3771
    %v4126 = vunpack.c.h.b16 %v3771
    %v4127 = vunpack.c.l.b16 %v3772
    %v4128 = vunpack.c.l.b16 %v3773
    %v4129 = vunpack.c.h.b16 %v3773
    %v4130 = vunpack.c.l.b16 %v3774
    %v4131 = vunpack.c.l.b16 %v3775
    %v4132 = vunpack.c.h.b16 %v3775
    %v4133 = vunpack.c.l.b16 %v3776
    %v4134 = vpack.c.b16 %v3945, %v3942
    %v4135 = vpack.c.b16 %v3946, %v3943
    %v4136 = vpack.c.b16 %v3947, %v3944
    %v4137 = vpack.c.b16 %v3951, %v3948
    %v4138 = vpack.c.b16 %v3952, %v3949
    %v4139 = vpack.c.b16 %v3953, %v3950
    %v4140 = vpack.c.b16 %v3957, %v3954
    %v4141 = vpack.c.b16 %v3958, %v3955
    %v4142 = vpack.c.b16 %v3959, %v3956
    %v4143 = vpack.c.b16 %v3963, %v3960
    %v4144 = vpack.c.b16 %v3964, %v3961
    %v4145 = vpack.c.b16 %v3965, %v3962
    %v4146 = vpack.c.b16 %v3969, %v3966
    %v4147 = vpack.c.b16 %v3970, %v3967
    %v4148 = vpack.c.b16 %v3971, %v3968
    %v4149 = vpack.c.b16 %v3975, %v3972
    %v4150 = vpack.c.b16 %v3976, %v3973
    %v4151 = vpack.c.b16 %v3977, %v3974
    %v4152 = vpack.c.b16 %v3981, %v3978
    %v4153 = vpack.c.b16 %v3982, %v3979
    %v4154 = vpack.c.b16 %v3983, %v3980
    %v4155 = vpack.c.b16 %v3987, %v3984
    %v4156 = vpack.c.b16 %v3988, %v3985
    %v4157 = vpack.c.b16 %v3989, %v3986
    %v4158 = vpack.c.b16 %v3993, %v3990
    %v4159 = vpack.c.b16 %v3994, %v3991
    %v4160 = vpack.c.b16 %v3995, %v3992
    %v4161 = vpack.c.b16 %v3999, %v3996
    %v4162 = vpack.c.b16 %v4000, %v3997
    %v4163 = vpack.c.b16 %v4001, %v3998
    %v4164 = vpack.c.b16 %v4005, %v4002
    %v4165 = vpack.c.b16 %v4006, %v4003
    %v4166 = vpack.c.b16 %v4007, %v4004
    %v4167 = vpack.c.b16 %v4011, %v4008
    %v4168 = vpack.c.b16 %v4012, %v4009
    %v4169 = vpack.c.b16 %v4013, %v4010
    %v4170 = vpack.c.b16 %v4017, %v4014
    %v4171 = vpack.c.b16 %v4018, %v4015
    %v4172 = vpack.c.b16 %v4019, %v4016
    %v4173 = vpack.c.b16 %v4023, %v4020
    %v4174 = vpack.c.b16 %v4024, %v4021
    %v4175 = vpack.c.b16 %v4025, %v4022
    %v4176 = vpack.c.b16 %v4029, %v4026
    %v4177 = vpack.c.b16 %v4030, %v4027
    %v4178 = vpack.c.b16 %v4031, %v4028
    %v4179 = vpack.c.b16 %v4035, %v4032
    %v4180 = vpack.c.b16 %v4036, %v4033
    %v4181 = vpack.c.b16 %v4037, %v4034
    %v4182 = vpack.c.b16 %v4041, %v4038
    %v4183 = vpack.c.b16 %v4042, %v4039
    %v4184 = vpack.c.b16 %v4043, %v4040
    %v4185 = vpack.c.b16 %v4047, %v4044
    %v4186 = vpack.c.b16 %v4048, %v4045
    %v4187 = vpack.c.b16 %v4049, %v4046
    %v4188 = vpack.c.b16 %v4053, %v4050
    %v4189 = vpack.c.b16 %v4054, %v4051
    %v4190 = vpack.c.b16 %v4055, %v4052
    %v4191 = vpack.c.b16 %v4059, %v4056
    %v4192 = vpack.c.b16 %v4060, %v4057
    %v4193 = vpack.c.b16 %v4061, %v4058
    %v4194 = vpack.c.b16 %v4065, %v4062
    %v4195 = vpack.c.b16 %v4066, %v4063
    %v4196 = vpack.c.b16 %v4067, %v4064
    %v4197 = vpack.c.b16 %v4071, %v4068
    %v4198 = vpack.c.b16 %v4072, %v4069
    %v4199 = vpack.c.b16 %v4073, %v4070
    %v4200 = vpack.c.b16 %v4077, %v4074
    %v4201 = vpack.c.b16 %v4078, %v4075
    %v4202 = vpack.c.b16 %v4079, %v4076
    %v4203 = vpack.c.b16 %v4083, %v4080
    %v4204 = vpack.c.b16 %v4084, %v4081
    %v4205 = vpack.c.b16 %v4085, %v4082
    %v4206 = vpack.c.b16 %v4089, %v4086
    %v4207 = vpack.c.b16 %v4090, %v4087
    %v4208 = vpack.c.b16 %v4091, %v4088
    %v4209 = vpack.c.b16 %v4095, %v4092
    %v4210 = vpack.c.b16 %v4096, %v4093
    %v4211 = vpack.c.b16 %v4097, %v4094
    %v4212 = vpack.c.b16 %v4101, %v4098
    %v4213 = vpack.c.b16 %v4102, %v4099
    %v4214 = vpack.c.b16 %v4103, %v4100
    %v4215 = vpack.c.b16 %v4107, %v4104
    %v4216 = vpack.c.b16 %v4108, %v4105
    %v4217 = vpack.c.b16 %v4109, %v4106
    %v4218 = vpack.c.b16 %v4113, %v4110
    %v4219 = vpack.c.b16 %v4114, %v4111
    %v4220 = vpack.c.b16 %v4115, %v4112
    %v4221 = vpack.c.b16 %v4119, %v4116
    %v4222 = vpack.c.b16 %v4120, %v4117
    %v4223 = vpack.c.b16 %v4121, %v4118
    %v4224 = vpack.c.b16 %v4125, %v4122
    %v4225 = vpack.c.b16 %v4126, %v4123
    %v4226 = vpack.c.b16 %v4127, %v4124
    %v4227 = vpack.c.b16 %v4131, %v4128
    %v4228 = vpack.c.b16 %v4132, %v4129
    %v4229 = vpack.c.b16 %v4133, %v4130
    %v4330 = vunpack.c.l.b16 %v3777
    %v4331 = vunpack.c.l.b16 %v3778
    %v4332 = vunpack.c.l.b16 %v3779
    %v4333 = vunpack.c.l.b16 %v3780
    %v4334 = vunpack.c.l.b16 %v3781
    %v4335 = vunpack.c.l.b16 %v3782
    %v4336 = vunpack.c.l.b16 %v3783
    %v4337 = vunpack.c.l.b16 %v3784
    %v4338 = vunpack.c.l.b16 %v3785
    %v4339 = vunpack.c.l.b16 %v3786
    %v4340 = vunpack.c.l.b16 %v3787
    %v4341 = vunpack.c.l.b16 %v3788
    %v4342 = vunpack.c.l.b16 %v3789
    %v4343 = vunpack.c.l.b16 %v3790
    %v4344 = vunpack.c.l.b16 %v3791
    %v4345 = vunpack.c.l.b16 %v3792
    %v4346 = vunpack.c.l.b16 %v3793
    %v4347 = vunpack.c.l.b16 %v3794
    %v4348 = vunpack.c.l.b16 %v3795
    %v4349 = vunpack.c.l.b16 %v3796
    %v4350 = vunpack.c.l.b16 %v3797
    %v4351 = vunpack.c.l.b16 %v3798
    %v4352 = vunpack.c.l.b16 %v3799
    %v4353 = vunpack.c.l.b16 %v3800
    %v4354 = vunpack.c.l.b16 %v3801
    %v4355 = vunpack.c.l.b16 %v3802
    %v4356 = vunpack.c.l.b16 %v3803
    %v4357 = vunpack.c.l.b16 %v3804
    %v4358 = vunpack.c.l.b16 %v3805
    %v4359 = vunpack.c.l.b16 %v3806
    %v4360 = vunpack.c.l.b16 %v3807
    %v4361 = vunpack.c.l.b16 %v3808
    %v4362 = vunpack.c.l.b16 %v3809
    %v4363 = vunpack.c.l.b16 %v3810
    %v4364 = vunpack.c.l.b16 %v3811
    %v4365 = vunpack.c.l.b16 %v3812
    %v4366 = vpack.c.b16 %v4331, %v4330
    %v4367 = vpack.c.b16 %v4333, %v4332
    %v4368 = vpack.c.b16 %v4335, %v4334
    %v4369 = vpack.c.b16 %v4337, %v4336
    %v4370 = vpack.c.b16 %v4339, %v4338
    %v4371 = vpack.c.b16 %v4341, %v4340
    %v4372 = vpack.c.b16 %v4343, %v4342
    %v4373 = vpack.c.b16 %v4345, %v4344
    %v4374 = vpack.c.b16 %v4347, %v4346
    %v4375 = vpack.c.b16 %v4349, %v4348
    %v4376 = vpack.c.b16 %v4351, %v4350
    %v4377 = vpack.c.b16 %v4353, %v4352
    %v4378 = vpack.c.b16 %v4355, %v4354
    %v4379 = vpack.c.b16 %v4357, %v4356
    %v4380 = vpack.c.b16 %v4359, %v4358
    %v4381 = vpack.c.b16 %v4361, %v4360
    %v4382 = vpack.c.b16 %v4363, %v4362
    %v4383 = vpack.c.b16 %v4365, %v4364
    %v4403 = vsel %vm33, %v4136, 0
    %v4406 = vsel %vm33, %v4139, 0
    %v4409 = vsel %vm33, %v4142, 0
    %v4412 = vsel %vm33, %v4145, 0
    %v4415 = vsel %vm33, %v4148, 0
    %v4418 = vsel %vm33, %v4151, 0
    %v4421 = vsel %vm33, %v4154, 0
    %v4424 = vsel %vm33, %v4157, 0
    %v4427 = vsel %vm33, %v4160, 0
    %v4430 = vsel %vm33, %v4163, 0
    %v4433 = vsel %vm33, %v4166, 0
    %v4436 = vsel %vm33, %v4169, 0
    %v4439 = vsel %vm33, %v4172, 0
    %v4442 = vsel %vm33, %v4175, 0
    %v4445 = vsel %vm33, %v4178, 0
    %v4448 = vsel %vm33, %v4181, 0
    %v4451 = vsel %vm33, %v4184, 0
    %v4454 = vsel %vm33, %v4187, 0
    %v4457 = vsel %vm33, %v4190, 0
    %v4460 = vsel %vm33, %v4193, 0
    %v4463 = vsel %vm33, %v4196, 0
    %v4466 = vsel %vm33, %v4199, 0
    %v4469 = vsel %vm33, %v4202, 0
    %v4472 = vsel %vm33, %v4205, 0
    %v4475 = vsel %vm33, %v4208, 0
    %v4478 = vsel %vm33, %v4211, 0
    %v4481 = vsel %vm33, %v4214, 0
    %v4484 = vsel %vm33, %v4217, 0
    %v4487 = vsel %vm33, %v4220, 0
    %v4490 = vsel %vm33, %v4223, 0
    %v4493 = vsel %vm33, %v4226, 0
    %v4496 = vsel %vm33, %v4229, 0
    %4498 = vmatpush.bf16.msra.mxu0 %v4373
    %4499 = vmatpush.bf16.msra.mxu0 %v4372
    %4500 = vmatpush.bf16.msra.mxu0 %v4371
    %4501 = vmatpush.bf16.msra.mxu0 %v4370
    %4502 = vmatpush.bf16.msra.mxu0 %v4369
    %4503 = vmatpush.bf16.msra.mxu0 %v4368
    %4504 = vmatpush.bf16.msra.mxu0 %v4367
    %4505 = vmatpush.bf16.msra.mxu0 %v4366
    %4506 = vmatmul.bf16.gmra.mxu0 %v4134
    %v4507 = vpop.f32.mrf.mxu0
    %v4508 = vadd.f32 %v3813, %v4507
    %v4509 = vpop.f32.mrf.mxu0
    %v4510 = vadd.f32 %v3813, %v4509
    %4511 = vmatmul.bf16.gmra.mxu0 %v4137
    %v4512 = vpop.f32.mrf.mxu0
    %v4513 = vadd.f32 %v3813, %v4512
    %v4514 = vpop.f32.mrf.mxu0
    %v4515 = vadd.f32 %v3813, %v4514
    %4516 = vmatmul.bf16.gmra.mxu0 %v4140
    %v4517 = vpop.f32.mrf.mxu0
    %v4518 = vadd.f32 %v3813, %v4517
    %v4519 = vpop.f32.mrf.mxu0
    %v4520 = vadd.f32 %v3813, %v4519
    %4521 = vmatmul.bf16.gmra.mxu0 %v4143
    %v4522 = vpop.f32.mrf.mxu0
    %v4523 = vadd.f32 %v3813, %v4522
    %v4524 = vpop.f32.mrf.mxu0
    %v4525 = vadd.f32 %v3813, %v4524
    %4526 = vmatmul.bf16.gmra.mxu0 %v4146
    %v4527 = vpop.f32.mrf.mxu0
    %v4528 = vadd.f32 %v3813, %v4527
    %v4529 = vpop.f32.mrf.mxu0
    %v4530 = vadd.f32 %v3813, %v4529
    %4531 = vmatmul.bf16.gmra.mxu0 %v4149
    %v4532 = vpop.f32.mrf.mxu0
    %v4533 = vadd.f32 %v3813, %v4532
    %v4534 = vpop.f32.mrf.mxu0
    %v4535 = vadd.f32 %v3813, %v4534
    %4536 = vmatmul.bf16.gmra.mxu0 %v4152
    %v4537 = vpop.f32.mrf.mxu0
    %v4538 = vadd.f32 %v3813, %v4537
    %v4539 = vpop.f32.mrf.mxu0
    %v4540 = vadd.f32 %v3813, %v4539
    %4541 = vmatmul.bf16.gmra.mxu0 %v4155
    %v4542 = vpop.f32.mrf.mxu0
    %v4543 = vadd.f32 %v3813, %v4542
    %v4544 = vpop.f32.mrf.mxu0
    %v4545 = vadd.f32 %v3813, %v4544
    %4546 = vmatmul.bf16.gmra.mxu0 %v4158
    %v4547 = vpop.f32.mrf.mxu0
    %v4548 = vadd.f32 %v3813, %v4547
    %v4549 = vpop.f32.mrf.mxu0
    %v4550 = vadd.f32 %v3813, %v4549
    %4551 = vmatmul.bf16.gmra.mxu0 %v4161
    %v4552 = vpop.f32.mrf.mxu0
    %v4553 = vadd.f32 %v3813, %v4552
    %v4554 = vpop.f32.mrf.mxu0
    %v4555 = vadd.f32 %v3813, %v4554
    %4556 = vmatmul.bf16.gmra.mxu0 %v4164
    %v4557 = vpop.f32.mrf.mxu0
    %v4558 = vadd.f32 %v3813, %v4557
    %v4559 = vpop.f32.mrf.mxu0
    %v4560 = vadd.f32 %v3813, %v4559
    %4561 = vmatmul.bf16.gmra.mxu0 %v4167
    %v4562 = vpop.f32.mrf.mxu0
    %v4563 = vadd.f32 %v3813, %v4562
    %v4564 = vpop.f32.mrf.mxu0
    %v4565 = vadd.f32 %v3813, %v4564
    %4566 = vmatmul.bf16.gmra.mxu0 %v4170
    %v4567 = vpop.f32.mrf.mxu0
    %v4568 = vadd.f32 %v3813, %v4567
    %v4569 = vpop.f32.mrf.mxu0
    %v4570 = vadd.f32 %v3813, %v4569
    %4571 = vmatmul.bf16.gmra.mxu0 %v4173
    %v4572 = vpop.f32.mrf.mxu0
    %v4573 = vadd.f32 %v3813, %v4572
    %v4574 = vpop.f32.mrf.mxu0
    %v4575 = vadd.f32 %v3813, %v4574
    %4576 = vmatmul.bf16.gmra.mxu0 %v4176
    %v4577 = vpop.f32.mrf.mxu0
    %v4578 = vadd.f32 %v3813, %v4577
    %v4579 = vpop.f32.mrf.mxu0
    %v4580 = vadd.f32 %v3813, %v4579
    %4581 = vmatmul.bf16.gmra.mxu0 %v4179
    %v4582 = vpop.f32.mrf.mxu0
    %v4583 = vadd.f32 %v3813, %v4582
    %v4584 = vpop.f32.mrf.mxu0
    %v4585 = vadd.f32 %v3813, %v4584
    %4586 = vmatmul.bf16.gmra.mxu0 %v4182
    %v4587 = vpop.f32.mrf.mxu0
    %v4588 = vadd.f32 %v3813, %v4587
    %v4589 = vpop.f32.mrf.mxu0
    %v4590 = vadd.f32 %v3813, %v4589
    %4591 = vmatmul.bf16.gmra.mxu0 %v4185
    %v4592 = vpop.f32.mrf.mxu0
    %v4593 = vadd.f32 %v3813, %v4592
    %v4594 = vpop.f32.mrf.mxu0
    %v4595 = vadd.f32 %v3813, %v4594
    %4596 = vmatmul.bf16.gmra.mxu0 %v4188
    %v4597 = vpop.f32.mrf.mxu0
    %v4598 = vadd.f32 %v3813, %v4597
    %v4599 = vpop.f32.mrf.mxu0
    %v4600 = vadd.f32 %v3813, %v4599
    %4601 = vmatmul.bf16.gmra.mxu0 %v4191
    %v4602 = vpop.f32.mrf.mxu0
    %v4603 = vadd.f32 %v3813, %v4602
    %v4604 = vpop.f32.mrf.mxu0
    %v4605 = vadd.f32 %v3813, %v4604
    %4606 = vmatmul.bf16.gmra.mxu0 %v4194
    %v4607 = vpop.f32.mrf.mxu0
    %v4608 = vadd.f32 %v3813, %v4607
    %v4609 = vpop.f32.mrf.mxu0
    %v4610 = vadd.f32 %v3813, %v4609
    %4611 = vmatmul.bf16.gmra.mxu0 %v4197
    %v4612 = vpop.f32.mrf.mxu0
    %v4613 = vadd.f32 %v3813, %v4612
    %v4614 = vpop.f32.mrf.mxu0
    %v4615 = vadd.f32 %v3813, %v4614
    %4616 = vmatmul.bf16.gmra.mxu0 %v4200
    %v4617 = vpop.f32.mrf.mxu0
    %v4618 = vadd.f32 %v3813, %v4617
    %v4619 = vpop.f32.mrf.mxu0
    %v4620 = vadd.f32 %v3813, %v4619
    %4621 = vmatmul.bf16.gmra.mxu0 %v4203
    %v4622 = vpop.f32.mrf.mxu0
    %v4623 = vadd.f32 %v3813, %v4622
    %v4624 = vpop.f32.mrf.mxu0
    %v4625 = vadd.f32 %v3813, %v4624
    %4626 = vmatmul.bf16.gmra.mxu0 %v4206
    %v4627 = vpop.f32.mrf.mxu0
    %v4628 = vadd.f32 %v3813, %v4627
    %v4629 = vpop.f32.mrf.mxu0
    %v4630 = vadd.f32 %v3813, %v4629
    %4631 = vmatmul.bf16.gmra.mxu0 %v4209
    %v4632 = vpop.f32.mrf.mxu0
    %v4633 = vadd.f32 %v3813, %v4632
    %v4634 = vpop.f32.mrf.mxu0
    %v4635 = vadd.f32 %v3813, %v4634
    %4636 = vmatmul.bf16.gmra.mxu0 %v4212
    %v4637 = vpop.f32.mrf.mxu0
    %v4638 = vadd.f32 %v3813, %v4637
    %v4639 = vpop.f32.mrf.mxu0
    %v4640 = vadd.f32 %v3813, %v4639
    %4641 = vmatmul.bf16.gmra.mxu0 %v4215
    %v4642 = vpop.f32.mrf.mxu0
    %v4643 = vadd.f32 %v3813, %v4642
    %v4644 = vpop.f32.mrf.mxu0
    %v4645 = vadd.f32 %v3813, %v4644
    %4646 = vmatmul.bf16.gmra.mxu0 %v4218
    %v4647 = vpop.f32.mrf.mxu0
    %v4648 = vadd.f32 %v3813, %v4647
    %v4649 = vpop.f32.mrf.mxu0
    %v4650 = vadd.f32 %v3813, %v4649
    %4651 = vmatmul.bf16.gmra.mxu0 %v4221
    %v4652 = vpop.f32.mrf.mxu0
    %v4653 = vadd.f32 %v3813, %v4652
    %v4654 = vpop.f32.mrf.mxu0
    %v4655 = vadd.f32 %v3813, %v4654
    %4656 = vmatmul.bf16.gmra.mxu0 %v4224
    %v4657 = vpop.f32.mrf.mxu0
    %v4658 = vadd.f32 %v3813, %v4657
    %v4659 = vpop.f32.mrf.mxu0
    %v4660 = vadd.f32 %v3813, %v4659
    %4661 = vmatmul.bf16.gmra.mxu0 %v4227
    %v4662 = vpop.f32.mrf.mxu0
    %v4663 = vadd.f32 %v3813, %v4662
    %v4664 = vpop.f32.mrf.mxu0
    %v4665 = vadd.f32 %v3813, %v4664
    %4666 = vdwg.mxu0
    %4667 = vmatpush.bf16.msra.mxu0 %v4381
    %4668 = vmatpush.bf16.msra.mxu0 %v4380
    %4669 = vmatpush.bf16.msra.mxu0 %v4379
    %4670 = vmatpush.bf16.msra.mxu0 %v4378
    %4671 = vmatpush.bf16.msra.mxu0 %v4377
    %4672 = vmatpush.bf16.msra.mxu0 %v4376
    %4673 = vmatpush.bf16.msra.mxu0 %v4375
    %4674 = vmatpush.bf16.msra.mxu0 %v4374
    %4675 = vmatmul.bf16.gmra.mxu0 %v4135
    %v4676 = vpop.f32.mrf.mxu0
    %v4677 = vadd.f32 %v4508, %v4676
    %v4678 = vpop.f32.mrf.mxu0
    %v4679 = vadd.f32 %v4510, %v4678
    %4680 = vmatmul.bf16.gmra.mxu0 %v4138
    %v4681 = vpop.f32.mrf.mxu0
    %v4682 = vadd.f32 %v4513, %v4681
    %v4683 = vpop.f32.mrf.mxu0
    %v4684 = vadd.f32 %v4515, %v4683
    %4685 = vmatmul.bf16.gmra.mxu0 %v4141
    %v4686 = vpop.f32.mrf.mxu0
    %v4687 = vadd.f32 %v4518, %v4686
    %v4688 = vpop.f32.mrf.mxu0
    %v4689 = vadd.f32 %v4520, %v4688
    %4690 = vmatmul.bf16.gmra.mxu0 %v4144
    %v4691 = vpop.f32.mrf.mxu0
    %v4692 = vadd.f32 %v4523, %v4691
    %v4693 = vpop.f32.mrf.mxu0
    %v4694 = vadd.f32 %v4525, %v4693
    %4695 = vmatmul.bf16.gmra.mxu0 %v4147
    %v4696 = vpop.f32.mrf.mxu0
    %v4697 = vadd.f32 %v4528, %v4696
    %v4698 = vpop.f32.mrf.mxu0
    %v4699 = vadd.f32 %v4530, %v4698
    %4700 = vmatmul.bf16.gmra.mxu0 %v4150
    %v4701 = vpop.f32.mrf.mxu0
    %v4702 = vadd.f32 %v4533, %v4701
    %v4703 = vpop.f32.mrf.mxu0
    %v4704 = vadd.f32 %v4535, %v4703
    %4705 = vmatmul.bf16.gmra.mxu0 %v4153
    %v4706 = vpop.f32.mrf.mxu0
    %v4707 = vadd.f32 %v4538, %v4706
    %v4708 = vpop.f32.mrf.mxu0
    %v4709 = vadd.f32 %v4540, %v4708
    %4710 = vmatmul.bf16.gmra.mxu0 %v4156
    %v4711 = vpop.f32.mrf.mxu0
    %v4712 = vadd.f32 %v4543, %v4711
    %v4713 = vpop.f32.mrf.mxu0
    %v4714 = vadd.f32 %v4545, %v4713
    %4715 = vmatmul.bf16.gmra.mxu0 %v4159
    %v4716 = vpop.f32.mrf.mxu0
    %v4717 = vadd.f32 %v4548, %v4716
    %v4718 = vpop.f32.mrf.mxu0
    %v4719 = vadd.f32 %v4550, %v4718
    %4720 = vmatmul.bf16.gmra.mxu0 %v4162
    %v4721 = vpop.f32.mrf.mxu0
    %v4722 = vadd.f32 %v4553, %v4721
    %v4723 = vpop.f32.mrf.mxu0
    %v4724 = vadd.f32 %v4555, %v4723
    %4725 = vmatmul.bf16.gmra.mxu0 %v4165
    %v4726 = vpop.f32.mrf.mxu0
    %v4727 = vadd.f32 %v4558, %v4726
    %v4728 = vpop.f32.mrf.mxu0
    %v4729 = vadd.f32 %v4560, %v4728
    %4730 = vmatmul.bf16.gmra.mxu0 %v4168
    %v4731 = vpop.f32.mrf.mxu0
    %v4732 = vadd.f32 %v4563, %v4731
    %v4733 = vpop.f32.mrf.mxu0
    %v4734 = vadd.f32 %v4565, %v4733
    %4735 = vmatmul.bf16.gmra.mxu0 %v4171
    %v4736 = vpop.f32.mrf.mxu0
    %v4737 = vadd.f32 %v4568, %v4736
    %v4738 = vpop.f32.mrf.mxu0
    %v4739 = vadd.f32 %v4570, %v4738
    %4740 = vmatmul.bf16.gmra.mxu0 %v4174
    %v4741 = vpop.f32.mrf.mxu0
    %v4742 = vadd.f32 %v4573, %v4741
    %v4743 = vpop.f32.mrf.mxu0
    %v4744 = vadd.f32 %v4575, %v4743
    %4745 = vmatmul.bf16.gmra.mxu0 %v4177
    %v4746 = vpop.f32.mrf.mxu0
    %v4747 = vadd.f32 %v4578, %v4746
    %v4748 = vpop.f32.mrf.mxu0
    %v4749 = vadd.f32 %v4580, %v4748
    %4750 = vmatmul.bf16.gmra.mxu0 %v4180
    %v4751 = vpop.f32.mrf.mxu0
    %v4752 = vadd.f32 %v4583, %v4751
    %v4753 = vpop.f32.mrf.mxu0
    %v4754 = vadd.f32 %v4585, %v4753
    %4755 = vmatmul.bf16.gmra.mxu0 %v4183
    %v4756 = vpop.f32.mrf.mxu0
    %v4757 = vadd.f32 %v4588, %v4756
    %v4758 = vpop.f32.mrf.mxu0
    %v4759 = vadd.f32 %v4590, %v4758
    %4760 = vmatmul.bf16.gmra.mxu0 %v4186
    %v4761 = vpop.f32.mrf.mxu0
    %v4762 = vadd.f32 %v4593, %v4761
    %v4763 = vpop.f32.mrf.mxu0
    %v4764 = vadd.f32 %v4595, %v4763
    %4765 = vmatmul.bf16.gmra.mxu0 %v4189
    %v4766 = vpop.f32.mrf.mxu0
    %v4767 = vadd.f32 %v4598, %v4766
    %v4768 = vpop.f32.mrf.mxu0
    %v4769 = vadd.f32 %v4600, %v4768
    %4770 = vmatmul.bf16.gmra.mxu0 %v4192
    %v4771 = vpop.f32.mrf.mxu0
    %v4772 = vadd.f32 %v4603, %v4771
    %v4773 = vpop.f32.mrf.mxu0
    %v4774 = vadd.f32 %v4605, %v4773
    %4775 = vmatmul.bf16.gmra.mxu0 %v4195
    %v4776 = vpop.f32.mrf.mxu0
    %v4777 = vadd.f32 %v4608, %v4776
    %v4778 = vpop.f32.mrf.mxu0
    %v4779 = vadd.f32 %v4610, %v4778
    %4780 = vmatmul.bf16.gmra.mxu0 %v4198
    %v4781 = vpop.f32.mrf.mxu0
    %v4782 = vadd.f32 %v4613, %v4781
    %v4783 = vpop.f32.mrf.mxu0
    %v4784 = vadd.f32 %v4615, %v4783
    %4785 = vmatmul.bf16.gmra.mxu0 %v4201
    %v4786 = vpop.f32.mrf.mxu0
    %v4787 = vadd.f32 %v4618, %v4786
    %v4788 = vpop.f32.mrf.mxu0
    %v4789 = vadd.f32 %v4620, %v4788
    %4790 = vmatmul.bf16.gmra.mxu0 %v4204
    %v4791 = vpop.f32.mrf.mxu0
    %v4792 = vadd.f32 %v4623, %v4791
    %v4793 = vpop.f32.mrf.mxu0
    %v4794 = vadd.f32 %v4625, %v4793
    %4795 = vmatmul.bf16.gmra.mxu0 %v4207
    %v4796 = vpop.f32.mrf.mxu0
    %v4797 = vadd.f32 %v4628, %v4796
    %v4798 = vpop.f32.mrf.mxu0
    %v4799 = vadd.f32 %v4630, %v4798
    %4800 = vmatmul.bf16.gmra.mxu0 %v4210
    %v4801 = vpop.f32.mrf.mxu0
    %v4802 = vadd.f32 %v4633, %v4801
    %v4803 = vpop.f32.mrf.mxu0
    %v4804 = vadd.f32 %v4635, %v4803
    %4805 = vmatmul.bf16.gmra.mxu0 %v4213
    %v4806 = vpop.f32.mrf.mxu0
    %v4807 = vadd.f32 %v4638, %v4806
    %v4808 = vpop.f32.mrf.mxu0
    %v4809 = vadd.f32 %v4640, %v4808
    %4810 = vmatmul.bf16.gmra.mxu0 %v4216
    %v4811 = vpop.f32.mrf.mxu0
    %v4812 = vadd.f32 %v4643, %v4811
    %v4813 = vpop.f32.mrf.mxu0
    %v4814 = vadd.f32 %v4645, %v4813
    %4815 = vmatmul.bf16.gmra.mxu0 %v4219
    %v4816 = vpop.f32.mrf.mxu0
    %v4817 = vadd.f32 %v4648, %v4816
    %v4818 = vpop.f32.mrf.mxu0
    %v4819 = vadd.f32 %v4650, %v4818
    %4820 = vmatmul.bf16.gmra.mxu0 %v4222
    %v4821 = vpop.f32.mrf.mxu0
    %v4822 = vadd.f32 %v4653, %v4821
    %v4823 = vpop.f32.mrf.mxu0
    %v4824 = vadd.f32 %v4655, %v4823
    %4825 = vmatmul.bf16.gmra.mxu0 %v4225
    %v4826 = vpop.f32.mrf.mxu0
    %v4827 = vadd.f32 %v4658, %v4826
    %v4828 = vpop.f32.mrf.mxu0
    %v4829 = vadd.f32 %v4660, %v4828
    %4830 = vmatmul.bf16.gmra.mxu0 %v4228
    %v4831 = vpop.f32.mrf.mxu0
    %v4832 = vadd.f32 %v4663, %v4831
    %v4833 = vpop.f32.mrf.mxu0
    %v4834 = vadd.f32 %v4665, %v4833
    %4835 = vdwg.mxu0
    %4836 = vmatpush.bf16.msra.mxu0 0
    %4837 = vmatpush.bf16.msra.mxu0 0
    %4838 = vmatpush.bf16.msra.mxu0 0
    %4839 = vmatpush.bf16.msra.mxu0 0
    %4840 = vmatpush.bf16.msra.mxu0 0
    %4841 = vmatpush.bf16.msra.mxu0 0
    %4842 = vmatpush.bf16.msra.mxu0 %v4383
    %4843 = vmatpush.bf16.msra.mxu0 %v4382
    %4844 = vmatmul.bf16.gmra.mxu0 %v4403
    %v4845 = vpop.f32.mrf.mxu0
    %v4846 = vadd.f32 %v4677, %v4845
    %v4847 = vpop.f32.mrf.mxu0
    %v4848 = vadd.f32 %v4679, %v4847
    %4849 = vmatmul.bf16.gmra.mxu0 %v4406
    %v4850 = vpop.f32.mrf.mxu0
    %v4851 = vadd.f32 %v4682, %v4850
    %v4852 = vpop.f32.mrf.mxu0
    %v4853 = vadd.f32 %v4684, %v4852
    %4854 = vmatmul.bf16.gmra.mxu0 %v4409
    %v4855 = vpop.f32.mrf.mxu0
    %v4856 = vadd.f32 %v4687, %v4855
    %v4857 = vpop.f32.mrf.mxu0
    %v4858 = vadd.f32 %v4689, %v4857
    %4859 = vmatmul.bf16.gmra.mxu0 %v4412
    %v4860 = vpop.f32.mrf.mxu0
    %v4861 = vadd.f32 %v4692, %v4860
    %v4862 = vpop.f32.mrf.mxu0
    %v4863 = vadd.f32 %v4694, %v4862
    %4864 = vmatmul.bf16.gmra.mxu0 %v4415
    %v4865 = vpop.f32.mrf.mxu0
    %v4866 = vadd.f32 %v4697, %v4865
    %v4867 = vpop.f32.mrf.mxu0
    %v4868 = vadd.f32 %v4699, %v4867
    %4869 = vmatmul.bf16.gmra.mxu0 %v4418
    %v4870 = vpop.f32.mrf.mxu0
    %v4871 = vadd.f32 %v4702, %v4870
    %v4872 = vpop.f32.mrf.mxu0
    %v4873 = vadd.f32 %v4704, %v4872
    %4874 = vmatmul.bf16.gmra.mxu0 %v4421
    %v4875 = vpop.f32.mrf.mxu0
    %v4876 = vadd.f32 %v4707, %v4875
    %v4877 = vpop.f32.mrf.mxu0
    %v4878 = vadd.f32 %v4709, %v4877
    %4879 = vmatmul.bf16.gmra.mxu0 %v4424
    %v4880 = vpop.f32.mrf.mxu0
    %v4881 = vadd.f32 %v4712, %v4880
    %v4882 = vpop.f32.mrf.mxu0
    %v4883 = vadd.f32 %v4714, %v4882
    %4884 = vmatmul.bf16.gmra.mxu0 %v4427
    %v4885 = vpop.f32.mrf.mxu0
    %v4886 = vadd.f32 %v4717, %v4885
    %v4887 = vpop.f32.mrf.mxu0
    %v4888 = vadd.f32 %v4719, %v4887
    %4889 = vmatmul.bf16.gmra.mxu0 %v4430
    %v4890 = vpop.f32.mrf.mxu0
    %v4891 = vadd.f32 %v4722, %v4890
    %v4892 = vpop.f32.mrf.mxu0
    %v4893 = vadd.f32 %v4724, %v4892
    %4894 = vmatmul.bf16.gmra.mxu0 %v4433
    %v4895 = vpop.f32.mrf.mxu0
    %v4896 = vadd.f32 %v4727, %v4895
    %v4897 = vpop.f32.mrf.mxu0
    %v4898 = vadd.f32 %v4729, %v4897
    %4899 = vmatmul.bf16.gmra.mxu0 %v4436
    %v4900 = vpop.f32.mrf.mxu0
    %v4901 = vadd.f32 %v4732, %v4900
    %v4902 = vpop.f32.mrf.mxu0
    %v4903 = vadd.f32 %v4734, %v4902
    %4904 = vmatmul.bf16.gmra.mxu0 %v4439
    %v4905 = vpop.f32.mrf.mxu0
    %v4906 = vadd.f32 %v4737, %v4905
    %v4907 = vpop.f32.mrf.mxu0
    %v4908 = vadd.f32 %v4739, %v4907
    %4909 = vmatmul.bf16.gmra.mxu0 %v4442
    %v4910 = vpop.f32.mrf.mxu0
    %v4911 = vadd.f32 %v4742, %v4910
    %v4912 = vpop.f32.mrf.mxu0
    %v4913 = vadd.f32 %v4744, %v4912
    %4914 = vmatmul.bf16.gmra.mxu0 %v4445
    %v4915 = vpop.f32.mrf.mxu0
    %v4916 = vadd.f32 %v4747, %v4915
    %v4917 = vpop.f32.mrf.mxu0
    %v4918 = vadd.f32 %v4749, %v4917
    %4919 = vmatmul.bf16.gmra.mxu0 %v4448
    %v4920 = vpop.f32.mrf.mxu0
    %v4921 = vadd.f32 %v4752, %v4920
    %v4922 = vpop.f32.mrf.mxu0
    %v4923 = vadd.f32 %v4754, %v4922
    %4924 = vmatmul.bf16.gmra.mxu0 %v4451
    %v4925 = vpop.f32.mrf.mxu0
    %v4926 = vadd.f32 %v4757, %v4925
    %v4927 = vpop.f32.mrf.mxu0
    %v4928 = vadd.f32 %v4759, %v4927
    %4929 = vmatmul.bf16.gmra.mxu0 %v4454
    %v4930 = vpop.f32.mrf.mxu0
    %v4931 = vadd.f32 %v4762, %v4930
    %v4932 = vpop.f32.mrf.mxu0
    %v4933 = vadd.f32 %v4764, %v4932
    %4934 = vmatmul.bf16.gmra.mxu0 %v4457
    %v4935 = vpop.f32.mrf.mxu0
    %v4936 = vadd.f32 %v4767, %v4935
    %v4937 = vpop.f32.mrf.mxu0
    %v4938 = vadd.f32 %v4769, %v4937
    %4939 = vmatmul.bf16.gmra.mxu0 %v4460
    %v4940 = vpop.f32.mrf.mxu0
    %v4941 = vadd.f32 %v4772, %v4940
    %v4942 = vpop.f32.mrf.mxu0
    %v4943 = vadd.f32 %v4774, %v4942
    %4944 = vmatmul.bf16.gmra.mxu0 %v4463
    %v4945 = vpop.f32.mrf.mxu0
    %v4946 = vadd.f32 %v4777, %v4945
    %v4947 = vpop.f32.mrf.mxu0
    %v4948 = vadd.f32 %v4779, %v4947
    %4949 = vmatmul.bf16.gmra.mxu0 %v4466
    %v4950 = vpop.f32.mrf.mxu0
    %v4951 = vadd.f32 %v4782, %v4950
    %v4952 = vpop.f32.mrf.mxu0
    %v4953 = vadd.f32 %v4784, %v4952
    %4954 = vmatmul.bf16.gmra.mxu0 %v4469
    %v4955 = vpop.f32.mrf.mxu0
    %v4956 = vadd.f32 %v4787, %v4955
    %v4957 = vpop.f32.mrf.mxu0
    %v4958 = vadd.f32 %v4789, %v4957
    %4959 = vmatmul.bf16.gmra.mxu0 %v4472
    %v4960 = vpop.f32.mrf.mxu0
    %v4961 = vadd.f32 %v4792, %v4960
    %v4962 = vpop.f32.mrf.mxu0
    %v4963 = vadd.f32 %v4794, %v4962
    %4964 = vmatmul.bf16.gmra.mxu0 %v4475
    %v4965 = vpop.f32.mrf.mxu0
    %v4966 = vadd.f32 %v4797, %v4965
    %v4967 = vpop.f32.mrf.mxu0
    %v4968 = vadd.f32 %v4799, %v4967
    %4969 = vmatmul.bf16.gmra.mxu0 %v4478
    %v4970 = vpop.f32.mrf.mxu0
    %v4971 = vadd.f32 %v4802, %v4970
    %v4972 = vpop.f32.mrf.mxu0
    %v4973 = vadd.f32 %v4804, %v4972
    %4974 = vmatmul.bf16.gmra.mxu0 %v4481
    %v4975 = vpop.f32.mrf.mxu0
    %v4976 = vadd.f32 %v4807, %v4975
    %v4977 = vpop.f32.mrf.mxu0
    %v4978 = vadd.f32 %v4809, %v4977
    %4979 = vmatmul.bf16.gmra.mxu0 %v4484
    %v4980 = vpop.f32.mrf.mxu0
    %v4981 = vadd.f32 %v4812, %v4980
    %v4982 = vpop.f32.mrf.mxu0
    %v4983 = vadd.f32 %v4814, %v4982
    %4984 = vmatmul.bf16.gmra.mxu0 %v4487
    %v4985 = vpop.f32.mrf.mxu0
    %v4986 = vadd.f32 %v4817, %v4985
    %v4987 = vpop.f32.mrf.mxu0
    %v4988 = vadd.f32 %v4819, %v4987
    %4989 = vmatmul.bf16.gmra.mxu0 %v4490
    %v4990 = vpop.f32.mrf.mxu0
    %v4991 = vadd.f32 %v4822, %v4990
    %v4992 = vpop.f32.mrf.mxu0
    %v4993 = vadd.f32 %v4824, %v4992
    %4994 = vmatmul.bf16.gmra.mxu0 %v4493
    %v4995 = vpop.f32.mrf.mxu0
    %v4996 = vadd.f32 %v4827, %v4995
    %v4997 = vpop.f32.mrf.mxu0
    %v4998 = vadd.f32 %v4829, %v4997
    %4999 = vmatmul.bf16.gmra.mxu0 %v4496
    %v5000 = vpop.f32.mrf.mxu0
    %v5001 = vadd.f32 %v4832, %v5000
    %v5002 = vpop.f32.mrf.mxu0
    %v5003 = vadd.f32 %v4834, %v5002
    %5004 = vdwg.mxu0
    %vm5005 = vcmp.ge.f32.partialorder %v4846, 0.0
    %vm5006 = vcmp.ge.f32.partialorder %v4848, 0.0
    %vm5007 = vcmp.ge.f32.partialorder %v4851, 0.0
    %vm5008 = vcmp.ge.f32.partialorder %v4853, 0.0
    %vm5009 = vcmp.ge.f32.partialorder %v4856, 0.0
    %vm5010 = vcmp.ge.f32.partialorder %v4858, 0.0
    %vm5011 = vcmp.ge.f32.partialorder %v4861, 0.0
    %vm5012 = vcmp.ge.f32.partialorder %v4863, 0.0
    %vm5013 = vcmp.ge.f32.partialorder %v4866, 0.0
    %vm5014 = vcmp.ge.f32.partialorder %v4868, 0.0
    %vm5015 = vcmp.ge.f32.partialorder %v4871, 0.0
    %vm5016 = vcmp.ge.f32.partialorder %v4873, 0.0
    %vm5017 = vcmp.ge.f32.partialorder %v4876, 0.0
    %vm5018 = vcmp.ge.f32.partialorder %v4878, 0.0
    %vm5019 = vcmp.ge.f32.partialorder %v4881, 0.0
    %vm5020 = vcmp.ge.f32.partialorder %v4883, 0.0
    %vm5021 = vcmp.ge.f32.partialorder %v4886, 0.0
    %vm5022 = vcmp.ge.f32.partialorder %v4888, 0.0
    %vm5023 = vcmp.ge.f32.partialorder %v4891, 0.0
    %vm5024 = vcmp.ge.f32.partialorder %v4893, 0.0
    %vm5025 = vcmp.ge.f32.partialorder %v4896, 0.0
    %vm5026 = vcmp.ge.f32.partialorder %v4898, 0.0
    %vm5027 = vcmp.ge.f32.partialorder %v4901, 0.0
    %vm5028 = vcmp.ge.f32.partialorder %v4903, 0.0
    %vm5029 = vcmp.ge.f32.partialorder %v4906, 0.0
    %vm5030 = vcmp.ge.f32.partialorder %v4908, 0.0
    %vm5031 = vcmp.ge.f32.partialorder %v4911, 0.0
    %vm5032 = vcmp.ge.f32.partialorder %v4913, 0.0
    %vm5033 = vcmp.ge.f32.partialorder %v4916, 0.0
    %vm5034 = vcmp.ge.f32.partialorder %v4918, 0.0
    %vm5035 = vcmp.ge.f32.partialorder %v4921, 0.0
    %vm5036 = vcmp.ge.f32.partialorder %v4923, 0.0
    %vm5037 = vcmp.ge.f32.partialorder %v4926, 0.0
    %vm5038 = vcmp.ge.f32.partialorder %v4928, 0.0
    %vm5039 = vcmp.ge.f32.partialorder %v4931, 0.0
    %vm5040 = vcmp.ge.f32.partialorder %v4933, 0.0
    %vm5041 = vcmp.ge.f32.partialorder %v4936, 0.0
    %vm5042 = vcmp.ge.f32.partialorder %v4938, 0.0
    %vm5043 = vcmp.ge.f32.partialorder %v4941, 0.0
    %vm5044 = vcmp.ge.f32.partialorder %v4943, 0.0
    %vm5045 = vcmp.ge.f32.partialorder %v4946, 0.0
    %vm5046 = vcmp.ge.f32.partialorder %v4948, 0.0
    %vm5047 = vcmp.ge.f32.partialorder %v4951, 0.0
    %vm5048 = vcmp.ge.f32.partialorder %v4953, 0.0
    %vm5049 = vcmp.ge.f32.partialorder %v4956, 0.0
    %vm5050 = vcmp.ge.f32.partialorder %v4958, 0.0
    %vm5051 = vcmp.ge.f32.partialorder %v4961, 0.0
    %vm5052 = vcmp.ge.f32.partialorder %v4963, 0.0
    %vm5053 = vcmp.ge.f32.partialorder %v4966, 0.0
    %vm5054 = vcmp.ge.f32.partialorder %v4968, 0.0
    %vm5055 = vcmp.ge.f32.partialorder %v4971, 0.0
    %vm5056 = vcmp.ge.f32.partialorder %v4973, 0.0
    %vm5057 = vcmp.ge.f32.partialorder %v4976, 0.0
    %vm5058 = vcmp.ge.f32.partialorder %v4978, 0.0
    %vm5059 = vcmp.ge.f32.partialorder %v4981, 0.0
    %vm5060 = vcmp.ge.f32.partialorder %v4983, 0.0
    %vm5061 = vcmp.ge.f32.partialorder %v4986, 0.0
    %vm5062 = vcmp.ge.f32.partialorder %v4988, 0.0
    %vm5063 = vcmp.ge.f32.partialorder %v4991, 0.0
    %vm5064 = vcmp.ge.f32.partialorder %v4993, 0.0
    %vm5065 = vcmp.ge.f32.partialorder %v4996, 0.0
    %vm5066 = vcmp.ge.f32.partialorder %v4998, 0.0
    %vm5067 = vcmp.ge.f32.partialorder %v5001, 0.0
    %vm5068 = vcmp.ge.f32.partialorder %v5003, 0.0
    %v5069 = vperm.slane %v32, 1
    %v5070 = vmul.f32 %v4846, %v5069
    %v5071 = vmul.f32 %v4848, %v5069
    %v5072 = vmul.f32 %v4851, %v5069
    %v5073 = vmul.f32 %v4853, %v5069
    %v5074 = vmul.f32 %v4856, %v5069
    %v5075 = vmul.f32 %v4858, %v5069
    %v5076 = vmul.f32 %v4861, %v5069
    %v5077 = vmul.f32 %v4863, %v5069
    %v5078 = vmul.f32 %v4866, %v5069
    %v5079 = vmul.f32 %v4868, %v5069
    %v5080 = vmul.f32 %v4871, %v5069
    %v5081 = vmul.f32 %v4873, %v5069
    %v5082 = vmul.f32 %v4876, %v5069
    %v5083 = vmul.f32 %v4878, %v5069
    %v5084 = vmul.f32 %v4881, %v5069
    %v5085 = vmul.f32 %v4883, %v5069
    %v5086 = vmul.f32 %v4886, %v5069
    %v5087 = vmul.f32 %v4888, %v5069
    %v5088 = vmul.f32 %v4891, %v5069
    %v5089 = vmul.f32 %v4893, %v5069
    %v5090 = vmul.f32 %v4896, %v5069
    %v5091 = vmul.f32 %v4898, %v5069
    %v5092 = vmul.f32 %v4901, %v5069
    %v5093 = vmul.f32 %v4903, %v5069
    %v5094 = vmul.f32 %v4906, %v5069
    %v5095 = vmul.f32 %v4908, %v5069
    %v5096 = vmul.f32 %v4911, %v5069
    %v5097 = vmul.f32 %v4913, %v5069
    %v5098 = vmul.f32 %v4916, %v5069
    %v5099 = vmul.f32 %v4918, %v5069
    %v5100 = vmul.f32 %v4921, %v5069
    %v5101 = vmul.f32 %v4923, %v5069
    %v5102 = vmul.f32 %v4926, %v5069
    %v5103 = vmul.f32 %v4928, %v5069
    %v5104 = vmul.f32 %v4931, %v5069
    %v5105 = vmul.f32 %v4933, %v5069
    %v5106 = vmul.f32 %v4936, %v5069
    %v5107 = vmul.f32 %v4938, %v5069
    %v5108 = vmul.f32 %v4941, %v5069
    %v5109 = vmul.f32 %v4943, %v5069
    %v5110 = vmul.f32 %v4946, %v5069
    %v5111 = vmul.f32 %v4948, %v5069
    %v5112 = vmul.f32 %v4951, %v5069
    %v5113 = vmul.f32 %v4953, %v5069
    %v5114 = vmul.f32 %v4956, %v5069
    %v5115 = vmul.f32 %v4958, %v5069
    %v5116 = vmul.f32 %v4961, %v5069
    %v5117 = vmul.f32 %v4963, %v5069
    %v5118 = vmul.f32 %v4966, %v5069
    %v5119 = vmul.f32 %v4968, %v5069
    %v5120 = vmul.f32 %v4971, %v5069
    %v5121 = vmul.f32 %v4973, %v5069
    %v5122 = vmul.f32 %v4976, %v5069
    %v5123 = vmul.f32 %v4978, %v5069
    %v5124 = vmul.f32 %v4981, %v5069
    %v5125 = vmul.f32 %v4983, %v5069
    %v5126 = vmul.f32 %v4986, %v5069
    %v5127 = vmul.f32 %v4988, %v5069
    %v5128 = vmul.f32 %v4991, %v5069
    %v5129 = vmul.f32 %v4993, %v5069
    %v5130 = vmul.f32 %v4996, %v5069
    %v5131 = vmul.f32 %v4998, %v5069
    %v5132 = vmul.f32 %v5001, %v5069
    %v5133 = vmul.f32 %v5003, %v5069
    %v5134 = vsel %vm5005, %v4846, %v5070
    %v5135 = vsel %vm5006, %v4848, %v5071
    %v5136 = vsel %vm5007, %v4851, %v5072
    %v5137 = vsel %vm5008, %v4853, %v5073
    %v5138 = vsel %vm5009, %v4856, %v5074
    %v5139 = vsel %vm5010, %v4858, %v5075
    %v5140 = vsel %vm5011, %v4861, %v5076
    %v5141 = vsel %vm5012, %v4863, %v5077
    %v5142 = vsel %vm5013, %v4866, %v5078
    %v5143 = vsel %vm5014, %v4868, %v5079
    %v5144 = vsel %vm5015, %v4871, %v5080
    %v5145 = vsel %vm5016, %v4873, %v5081
    %v5146 = vsel %vm5017, %v4876, %v5082
    %v5147 = vsel %vm5018, %v4878, %v5083
    %v5148 = vsel %vm5019, %v4881, %v5084
    %v5149 = vsel %vm5020, %v4883, %v5085
    %v5150 = vsel %vm5021, %v4886, %v5086
    %v5151 = vsel %vm5022, %v4888, %v5087
    %v5152 = vsel %vm5023, %v4891, %v5088
    %v5153 = vsel %vm5024, %v4893, %v5089
    %v5154 = vsel %vm5025, %v4896, %v5090
    %v5155 = vsel %vm5026, %v4898, %v5091
    %v5156 = vsel %vm5027, %v4901, %v5092
    %v5157 = vsel %vm5028, %v4903, %v5093
    %v5158 = vsel %vm5029, %v4906, %v5094
    %v5159 = vsel %vm5030, %v4908, %v5095
    %v5160 = vsel %vm5031, %v4911, %v5096
    %v5161 = vsel %vm5032, %v4913, %v5097
    %v5162 = vsel %vm5033, %v4916, %v5098
    %v5163 = vsel %vm5034, %v4918, %v5099
    %v5164 = vsel %vm5035, %v4921, %v5100
    %v5165 = vsel %vm5036, %v4923, %v5101
    %v5166 = vsel %vm5037, %v4926, %v5102
    %v5167 = vsel %vm5038, %v4928, %v5103
    %v5168 = vsel %vm5039, %v4931, %v5104
    %v5169 = vsel %vm5040, %v4933, %v5105
    %v5170 = vsel %vm5041, %v4936, %v5106
    %v5171 = vsel %vm5042, %v4938, %v5107
    %v5172 = vsel %vm5043, %v4941, %v5108
    %v5173 = vsel %vm5044, %v4943, %v5109
    %v5174 = vsel %vm5045, %v4946, %v5110
    %v5175 = vsel %vm5046, %v4948, %v5111
    %v5176 = vsel %vm5047, %v4951, %v5112
    %v5177 = vsel %vm5048, %v4953, %v5113
    %v5178 = vsel %vm5049, %v4956, %v5114
    %v5179 = vsel %vm5050, %v4958, %v5115
    %v5180 = vsel %vm5051, %v4961, %v5116
    %v5181 = vsel %vm5052, %v4963, %v5117
    %v5182 = vsel %vm5053, %v4966, %v5118
    %v5183 = vsel %vm5054, %v4968, %v5119
    %v5184 = vsel %vm5055, %v4971, %v5120
    %v5185 = vsel %vm5056, %v4973, %v5121
    %v5186 = vsel %vm5057, %v4976, %v5122
    %v5187 = vsel %vm5058, %v4978, %v5123
    %v5188 = vsel %vm5059, %v4981, %v5124
    %v5189 = vsel %vm5060, %v4983, %v5125
    %v5190 = vsel %vm5061, %v4986, %v5126
    %v5191 = vsel %vm5062, %v4988, %v5127
    %v5192 = vsel %vm5063, %v4991, %v5128
    %v5193 = vsel %vm5064, %v4993, %v5129
    %v5194 = vsel %vm5065, %v4996, %v5130
    %v5195 = vsel %vm5066, %v4998, %v5131
    %v5196 = vsel %vm5067, %v5001, %v5132
    %v5197 = vsel %vm5068, %v5003, %v5133
    %vm5198 = vcmask 523264
    %5199 = vst.msk [vmem:[#allocation3] sm:$0xff] %vm5198, 0.0
    %5200 = vst.msk [vmem:[#allocation3 + $0x8] sm:$0xff] %vm5198, 0.0
    %vm5201 = vcmask 517120
    %5202 = vst.msk [vmem:[#allocation3 + $0x10] sm:$0x3] %vm5201, 0.0
    %5203 = vst.msk [vmem:[#allocation3 + $0x1b0] sm:$0xff] %vm5198, 0.0
    %5204 = vst.msk [vmem:[#allocation3 + $0x1b8] sm:$0xff] %vm5198, 0.0
    %5205 = vst.msk [vmem:[#allocation3 + $0x1c0] sm:$0x3] %vm5201, 0.0
    %s5206 = scalar_lea.vmem [#allocation3], 408
    %5207 = vst.msk [vmem:[%s5206] sm:$0xff] %vm5198, 0.0
    %5208 = vst.msk [vmem:[%s5206 + $0x8] sm:$0xff] %vm5198, 0.0
    %5209 = vst.msk [vmem:[%s5206 + $0x10] sm:$0x3] %vm5201, 0.0
    %5210 = vst.msk [vmem:[%s5206 + $0x1b0] sm:$0xff] %vm5198, 0.0
    %5211 = vst.msk [vmem:[%s5206 + $0x1b8] sm:$0xff] %vm5198, 0.0
    %5212 = vst.msk [vmem:[%s5206 + $0x1c0] sm:$0x3] %vm5201, 0.0
    %vm5213 = vcmask 516096
    %5214 = vst.msk [vmem:[#allocation3] sm:$0x1] %vm5213, 0.0
    %5215 = vst.msk [vmem:[#allocation3 + $0x18] sm:$0x1] %vm5213, 0.0
    %5216 = vst.msk [vmem:[#allocation3 + $0x30] sm:$0x1] %vm5213, 0.0
    %5217 = vst.msk [vmem:[#allocation3 + $0x48] sm:$0x1] %vm5213, 0.0
    %5218 = vst.msk [vmem:[#allocation3 + $0x60] sm:$0x1] %vm5213, 0.0
    %5219 = vst.msk [vmem:[#allocation3 + $0x78] sm:$0x1] %vm5213, 0.0
    %5220 = vst.msk [vmem:[#allocation3 + $0x90] sm:$0x1] %vm5213, 0.0
    %5221 = vst.msk [vmem:[#allocation3 + $0xa8] sm:$0x1] %vm5213, 0.0
    %5222 = vst.msk [vmem:[#allocation3 + $0xc0] sm:$0x1] %vm5213, 0.0
    %5223 = vst.msk [vmem:[#allocation3 + $0xd8] sm:$0x1] %vm5213, 0.0
    %5224 = vst.msk [vmem:[#allocation3 + $0xf0] sm:$0x1] %vm5213, 0.0
    %5225 = vst.msk [vmem:[#allocation3 + $0x108] sm:$0x1] %vm5213, 0.0
    %5226 = vst.msk [vmem:[#allocation3 + $0x120] sm:$0x1] %vm5213, 0.0
    %5227 = vst.msk [vmem:[#allocation3 + $0x138] sm:$0x1] %vm5213, 0.0
    %5228 = vst.msk [vmem:[#allocation3 + $0x150] sm:$0x1] %vm5213, 0.0
    %5229 = vst.msk [vmem:[#allocation3 + $0x168] sm:$0x1] %vm5213, 0.0
    %5230 = vst.msk [vmem:[#allocation3 + $0x180] sm:$0x1] %vm5213, 0.0
    %5231 = vst.msk [vmem:[#allocation3 + $0x198] sm:$0x1] %vm5213, 0.0
    %5232 = vst.msk [vmem:[#allocation3 + $0x1b0] sm:$0x1] %vm5213, 0.0
    %5233 = vst.msk [vmem:[#allocation3 + $0x1c8] sm:$0x1] %vm5213, 0.0
    %5234 = vst.msk [vmem:[#allocation3 + $0x1e0] sm:$0x1] %vm5213, 0.0
    %5235 = vst.msk [vmem:[#allocation3 + $0x1f8] sm:$0x1] %vm5213, 0.0
    %5236 = vst.msk [vmem:[#allocation3 + $0x210] sm:$0x1] %vm5213, 0.0
    %5237 = vst.msk [vmem:[#allocation3 + $0x228] sm:$0x1] %vm5213, 0.0
    %5238 = vst.msk [vmem:[#allocation3 + $0x240] sm:$0x1] %vm5213, 0.0
    %5239 = vst.msk [vmem:[#allocation3 + $0x258] sm:$0x1] %vm5213, 0.0
    %5240 = vst.msk [vmem:[#allocation3 + $0x270] sm:$0x1] %vm5213, 0.0
    %5241 = vst.msk [vmem:[#allocation3 + $0x288] sm:$0x1] %vm5213, 0.0
    %5242 = vst.msk [vmem:[#allocation3 + $0x2a0] sm:$0x1] %vm5213, 0.0
    %5243 = vst.msk [vmem:[#allocation3 + $0x2b8] sm:$0x1] %vm5213, 0.0
    %5244 = vst.msk [vmem:[#allocation3 + $0x2d0] sm:$0x1] %vm5213, 0.0
    %5245 = vst.msk [vmem:[#allocation3 + $0x2e8] sm:$0x1] %vm5213, 0.0
    %5246 = vst.msk [vmem:[#allocation3 + $0x300] sm:$0x1] %vm5213, 0.0
    %5247 = vst.msk [vmem:[#allocation3 + $0x318] sm:$0x1] %vm5213, 0.0
    %5248 = vst.msk [vmem:[#allocation3 + $0x330] sm:$0x1] %vm5213, 0.0
    %5249 = vst.msk [vmem:[#allocation3 + $0x348] sm:$0x1] %vm5213, 0.0
    %5250 = vst.msk [vmem:[#allocation3 + $0x11] sm:$0x1] %vm5213, 0.0
    %5251 = vst.msk [vmem:[#allocation3 + $0x29] sm:$0x1] %vm5213, 0.0
    %5252 = vst.msk [vmem:[#allocation3 + $0x41] sm:$0x1] %vm5213, 0.0
    %5253 = vst.msk [vmem:[#allocation3 + $0x59] sm:$0x1] %vm5213, 0.0
    %5254 = vst.msk [vmem:[#allocation3 + $0x71] sm:$0x1] %vm5213, 0.0
    %5255 = vst.msk [vmem:[#allocation3 + $0x89] sm:$0x1] %vm5213, 0.0
    %5256 = vst.msk [vmem:[#allocation3 + $0xa1] sm:$0x1] %vm5213, 0.0
    %5257 = vst.msk [vmem:[#allocation3 + $0xb9] sm:$0x1] %vm5213, 0.0
    %5258 = vst.msk [vmem:[#allocation3 + $0xd1] sm:$0x1] %vm5213, 0.0
    %5259 = vst.msk [vmem:[#allocation3 + $0xe9] sm:$0x1] %vm5213, 0.0
    %5260 = vst.msk [vmem:[#allocation3 + $0x101] sm:$0x1] %vm5213, 0.0
    %5261 = vst.msk [vmem:[#allocation3 + $0x119] sm:$0x1] %vm5213, 0.0
    %5262 = vst.msk [vmem:[#allocation3 + $0x131] sm:$0x1] %vm5213, 0.0
    %5263 = vst.msk [vmem:[#allocation3 + $0x149] sm:$0x1] %vm5213, 0.0
    %5264 = vst.msk [vmem:[#allocation3 + $0x161] sm:$0x1] %vm5213, 0.0
    %5265 = vst.msk [vmem:[#allocation3 + $0x179] sm:$0x1] %vm5213, 0.0
    %5266 = vst.msk [vmem:[#allocation3 + $0x191] sm:$0x1] %vm5213, 0.0
    %5267 = vst.msk [vmem:[#allocation3 + $0x1a9] sm:$0x1] %vm5213, 0.0
    %5268 = vst.msk [vmem:[#allocation3 + $0x1c1] sm:$0x1] %vm5213, 0.0
    %5269 = vst.msk [vmem:[#allocation3 + $0x1d9] sm:$0x1] %vm5213, 0.0
    %5270 = vst.msk [vmem:[#allocation3 + $0x1f1] sm:$0x1] %vm5213, 0.0
    %5271 = vst.msk [vmem:[#allocation3 + $0x209] sm:$0x1] %vm5213, 0.0
    %5272 = vst.msk [vmem:[#allocation3 + $0x221] sm:$0x1] %vm5213, 0.0
    %5273 = vst.msk [vmem:[#allocation3 + $0x239] sm:$0x1] %vm5213, 0.0
    %5274 = vst.msk [vmem:[#allocation3 + $0x251] sm:$0x1] %vm5213, 0.0
    %5275 = vst.msk [vmem:[#allocation3 + $0x269] sm:$0x1] %vm5213, 0.0
    %5276 = vst.msk [vmem:[#allocation3 + $0x281] sm:$0x1] %vm5213, 0.0
    %5277 = vst.msk [vmem:[#allocation3 + $0x299] sm:$0x1] %vm5213, 0.0
    %5278 = vst.msk [vmem:[#allocation3 + $0x2b1] sm:$0x1] %vm5213, 0.0
    %5279 = vst.msk [vmem:[#allocation3 + $0x2c9] sm:$0x1] %vm5213, 0.0
    %5280 = vst.msk [vmem:[#allocation3 + $0x2e1] sm:$0x1] %vm5213, 0.0
    %5281 = vst.msk [vmem:[#allocation3 + $0x2f9] sm:$0x1] %vm5213, 0.0
    %5282 = vst.msk [vmem:[#allocation3 + $0x311] sm:$0x1] %vm5213, 0.0
    %5283 = vst.msk [vmem:[#allocation3 + $0x329] sm:$0x1] %vm5213, 0.0
    %5284 = vst.msk [vmem:[#allocation3 + $0x341] sm:$0x1] %vm5213, 0.0
    %5285 = vst.msk [vmem:[#allocation3 + $0x359] sm:$0x1] %vm5213, 0.0
    %v5286 = vperm.slane %v32, 2
    %v5287 = vmul.f32 %v5134, %v5286
    %v5288 = vmul.f32 %v5135, %v5286
    %v5289 = vmul.f32 %v5136, %v5286
    %v5290 = vmul.f32 %v5137, %v5286
    %v5291 = vmul.f32 %v5138, %v5286
    %v5292 = vmul.f32 %v5139, %v5286
    %v5293 = vmul.f32 %v5140, %v5286
    %v5294 = vmul.f32 %v5141, %v5286
    %v5295 = vmul.f32 %v5142, %v5286
    %v5296 = vmul.f32 %v5143, %v5286
    %v5297 = vmul.f32 %v5144, %v5286
    %v5298 = vmul.f32 %v5145, %v5286
    %v5299 = vmul.f32 %v5146, %v5286
    %v5300 = vmul.f32 %v5147, %v5286
    %v5301 = vmul.f32 %v5148, %v5286
    %v5302 = vmul.f32 %v5149, %v5286
    %v5303 = vmul.f32 %v5150, %v5286
    %v5304 = vmul.f32 %v5151, %v5286
    %v5305 = vmul.f32 %v5152, %v5286
    %v5306 = vmul.f32 %v5153, %v5286
    %v5307 = vmul.f32 %v5154, %v5286
    %v5308 = vmul.f32 %v5155, %v5286
    %v5309 = vmul.f32 %v5156, %v5286
    %v5310 = vmul.f32 %v5157, %v5286
    %v5311 = vmul.f32 %v5158, %v5286
    %v5312 = vmul.f32 %v5159, %v5286
    %v5313 = vmul.f32 %v5160, %v5286
    %v5314 = vmul.f32 %v5161, %v5286
    %v5315 = vmul.f32 %v5162, %v5286
    %v5316 = vmul.f32 %v5163, %v5286
    %v5317 = vmul.f32 %v5164, %v5286
    %v5318 = vmul.f32 %v5165, %v5286
    %v5319 = vmul.f32 %v5166, %v5286
    %v5320 = vmul.f32 %v5167, %v5286
    %v5321 = vmul.f32 %v5168, %v5286
    %v5322 = vmul.f32 %v5169, %v5286
    %v5323 = vmul.f32 %v5170, %v5286
    %v5324 = vmul.f32 %v5171, %v5286
    %v5325 = vmul.f32 %v5172, %v5286
    %v5326 = vmul.f32 %v5173, %v5286
    %v5327 = vmul.f32 %v5174, %v5286
    %v5328 = vmul.f32 %v5175, %v5286
    %v5329 = vmul.f32 %v5176, %v5286
    %v5330 = vmul.f32 %v5177, %v5286
    %v5331 = vmul.f32 %v5178, %v5286
    %v5332 = vmul.f32 %v5179, %v5286
    %v5333 = vmul.f32 %v5180, %v5286
    %v5334 = vmul.f32 %v5181, %v5286
    %v5335 = vmul.f32 %v5182, %v5286
    %v5336 = vmul.f32 %v5183, %v5286
    %v5337 = vmul.f32 %v5184, %v5286
    %v5338 = vmul.f32 %v5185, %v5286
    %v5339 = vmul.f32 %v5186, %v5286
    %v5340 = vmul.f32 %v5187, %v5286
    %v5341 = vmul.f32 %v5188, %v5286
    %v5342 = vmul.f32 %v5189, %v5286
    %v5343 = vmul.f32 %v5190, %v5286
    %v5344 = vmul.f32 %v5191, %v5286
    %v5345 = vmul.f32 %v5192, %v5286
    %v5346 = vmul.f32 %v5193, %v5286
    %v5347 = vmul.f32 %v5194, %v5286
    %v5348 = vmul.f32 %v5195, %v5286
    %v5349 = vmul.f32 %v5196, %v5286
    %v5350 = vmul.f32 %v5197, %v5286
    %v5351 = vperm.slane %v32, 3
    %v5352 = vadd.f32 %v5287, %v5351
    %v5353 = vadd.f32 %v5288, %v5351
    %v5354 = vadd.f32 %v5289, %v5351
    %v5355 = vadd.f32 %v5290, %v5351
    %v5356 = vadd.f32 %v5291, %v5351
    %v5357 = vadd.f32 %v5292, %v5351
    %v5358 = vadd.f32 %v5293, %v5351
    %v5359 = vadd.f32 %v5294, %v5351
    %v5360 = vadd.f32 %v5295, %v5351
    %v5361 = vadd.f32 %v5296, %v5351
    %v5362 = vadd.f32 %v5297, %v5351
    %v5363 = vadd.f32 %v5298, %v5351
    %v5364 = vadd.f32 %v5299, %v5351
    %v5365 = vadd.f32 %v5300, %v5351
    %v5366 = vadd.f32 %v5301, %v5351
    %v5367 = vadd.f32 %v5302, %v5351
    %v5368 = vadd.f32 %v5303, %v5351
    %v5369 = vadd.f32 %v5304, %v5351
    %v5370 = vadd.f32 %v5305, %v5351
    %v5371 = vadd.f32 %v5306, %v5351
    %v5372 = vadd.f32 %v5307, %v5351
    %v5373 = vadd.f32 %v5308, %v5351
    %v5374 = vadd.f32 %v5309, %v5351
    %v5375 = vadd.f32 %v5310, %v5351
    %v5376 = vadd.f32 %v5311, %v5351
    %v5377 = vadd.f32 %v5312, %v5351
    %v5378 = vadd.f32 %v5313, %v5351
    %v5379 = vadd.f32 %v5314, %v5351
    %v5380 = vadd.f32 %v5315, %v5351
    %v5381 = vadd.f32 %v5316, %v5351
    %v5382 = vadd.f32 %v5317, %v5351
    %v5383 = vadd.f32 %v5318, %v5351
    %v5384 = vadd.f32 %v5319, %v5351
    %v5385 = vadd.f32 %v5320, %v5351
    %v5386 = vadd.f32 %v5321, %v5351
    %v5387 = vadd.f32 %v5322, %v5351
    %v5388 = vadd.f32 %v5323, %v5351
    %v5389 = vadd.f32 %v5324, %v5351
    %v5390 = vadd.f32 %v5325, %v5351
    %v5391 = vadd.f32 %v5326, %v5351
    %v5392 = vadd.f32 %v5327, %v5351
    %v5393 = vadd.f32 %v5328, %v5351
    %v5394 = vadd.f32 %v5329, %v5351
    %v5395 = vadd.f32 %v5330, %v5351
    %v5396 = vadd.f32 %v5331, %v5351
    %v5397 = vadd.f32 %v5332, %v5351
    %v5398 = vadd.f32 %v5333, %v5351
    %v5399 = vadd.f32 %v5334, %v5351
    %v5400 = vadd.f32 %v5335, %v5351
    %v5401 = vadd.f32 %v5336, %v5351
    %v5402 = vadd.f32 %v5337, %v5351
    %v5403 = vadd.f32 %v5338, %v5351
    %v5404 = vadd.f32 %v5339, %v5351
    %v5405 = vadd.f32 %v5340, %v5351
    %v5406 = vadd.f32 %v5341, %v5351
    %v5407 = vadd.f32 %v5342, %v5351
    %v5408 = vadd.f32 %v5343, %v5351
    %v5409 = vadd.f32 %v5344, %v5351
    %v5410 = vadd.f32 %v5345, %v5351
    %v5411 = vadd.f32 %v5346, %v5351
    %v5412 = vadd.f32 %v5347, %v5351
    %v5413 = vadd.f32 %v5348, %v5351
    %v5414 = vadd.f32 %v5349, %v5351
    %v5415 = vadd.f32 %v5350, %v5351
    %s5416 = scalar_lea.vmem [#allocation3], 24
    %5417 = vst.msk [vmem:[%s5416 + $0x1] sm:$0xff] %vm5198, %v5352
    %5418 = vst.msk [vmem:[%s5416 + $0x9] sm:$0xff] %vm5198, %v5353
    %5419 = vst.msk [vmem:[%s5416 + $0x19] sm:$0xff] %vm5198, %v5354
    %5420 = vst.msk [vmem:[%s5416 + $0x21] sm:$0xff] %vm5198, %v5355
    %5421 = vst.msk [vmem:[%s5416 + $0x31] sm:$0xff] %vm5198, %v5356
    %5422 = vst.msk [vmem:[%s5416 + $0x39] sm:$0xff] %vm5198, %v5357
    %5423 = vst.msk [vmem:[%s5416 + $0x49] sm:$0xff] %vm5198, %v5358
    %5424 = vst.msk [vmem:[%s5416 + $0x51] sm:$0xff] %vm5198, %v5359
    %5425 = vst.msk [vmem:[%s5416 + $0x61] sm:$0xff] %vm5198, %v5360
    %5426 = vst.msk [vmem:[%s5416 + $0x69] sm:$0xff] %vm5198, %v5361
    %5427 = vst.msk [vmem:[%s5416 + $0x79] sm:$0xff] %vm5198, %v5362
    %5428 = vst.msk [vmem:[%s5416 + $0x81] sm:$0xff] %vm5198, %v5363
    %5429 = vst.msk [vmem:[%s5416 + $0x91] sm:$0xff] %vm5198, %v5364
    %5430 = vst.msk [vmem:[%s5416 + $0x99] sm:$0xff] %vm5198, %v5365
    %5431 = vst.msk [vmem:[%s5416 + $0xa9] sm:$0xff] %vm5198, %v5366
    %5432 = vst.msk [vmem:[%s5416 + $0xb1] sm:$0xff] %vm5198, %v5367
    %5433 = vst.msk [vmem:[%s5416 + $0xc1] sm:$0xff] %vm5198, %v5368
    %5434 = vst.msk [vmem:[%s5416 + $0xc9] sm:$0xff] %vm5198, %v5369
    %5435 = vst.msk [vmem:[%s5416 + $0xd9] sm:$0xff] %vm5198, %v5370
    %5436 = vst.msk [vmem:[%s5416 + $0xe1] sm:$0xff] %vm5198, %v5371
    %5437 = vst.msk [vmem:[%s5416 + $0xf1] sm:$0xff] %vm5198, %v5372
    %5438 = vst.msk [vmem:[%s5416 + $0xf9] sm:$0xff] %vm5198, %v5373
    %5439 = vst.msk [vmem:[%s5416 + $0x109] sm:$0xff] %vm5198, %v5374
    %5440 = vst.msk [vmem:[%s5416 + $0x111] sm:$0xff] %vm5198, %v5375
    %5441 = vst.msk [vmem:[%s5416 + $0x121] sm:$0xff] %vm5198, %v5376
    %5442 = vst.msk [vmem:[%s5416 + $0x129] sm:$0xff] %vm5198, %v5377
    %5443 = vst.msk [vmem:[%s5416 + $0x139] sm:$0xff] %vm5198, %v5378
    %5444 = vst.msk [vmem:[%s5416 + $0x141] sm:$0xff] %vm5198, %v5379
    %5445 = vst.msk [vmem:[%s5416 + $0x151] sm:$0xff] %vm5198, %v5380
    %5446 = vst.msk [vmem:[%s5416 + $0x159] sm:$0xff] %vm5198, %v5381
    %5447 = vst.msk [vmem:[%s5416 + $0x169] sm:$0xff] %vm5198, %v5382
    %5448 = vst.msk [vmem:[%s5416 + $0x171] sm:$0xff] %vm5198, %v5383
    %5449 = vst.msk [vmem:[%s5416 + $0x1b1] sm:$0xff] %vm5198, %v5384
    %5450 = vst.msk [vmem:[%s5416 + $0x1b9] sm:$0xff] %vm5198, %v5385
    %5451 = vst.msk [vmem:[%s5416 + $0x1c9] sm:$0xff] %vm5198, %v5386
    %5452 = vst.msk [vmem:[%s5416 + $0x1d1] sm:$0xff] %vm5198, %v5387
    %5453 = vst.msk [vmem:[%s5416 + $0x1e1] sm:$0xff] %vm5198, %v5388
    %5454 = vst.msk [vmem:[%s5416 + $0x1e9] sm:$0xff] %vm5198, %v5389
    %5455 = vst.msk [vmem:[%s5416 + $0x1f9] sm:$0xff] %vm5198, %v5390
    %5456 = vst.msk [vmem:[%s5416 + $0x201] sm:$0xff] %vm5198, %v5391
    %5457 = vst.msk [vmem:[%s5416 + $0x211] sm:$0xff] %vm5198, %v5392
    %5458 = vst.msk [vmem:[%s5416 + $0x219] sm:$0xff] %vm5198, %v5393
    %5459 = vst.msk [vmem:[%s5416 + $0x229] sm:$0xff] %vm5198, %v5394
    %5460 = vst.msk [vmem:[%s5416 + $0x231] sm:$0xff] %vm5198, %v5395
    %5461 = vst.msk [vmem:[%s5416 + $0x241] sm:$0xff] %vm5198, %v5396
    %5462 = vst.msk [vmem:[%s5416 + $0x249] sm:$0xff] %vm5198, %v5397
    %5463 = vst.msk [vmem:[%s5416 + $0x259] sm:$0xff] %vm5198, %v5398
    %5464 = vst.msk [vmem:[%s5416 + $0x261] sm:$0xff] %vm5198, %v5399
    %5465 = vst.msk [vmem:[%s5416 + $0x271] sm:$0xff] %vm5198, %v5400
    %5466 = vst.msk [vmem:[%s5416 + $0x279] sm:$0xff] %vm5198, %v5401
    %5467 = vst.msk [vmem:[%s5416 + $0x289] sm:$0xff] %vm5198, %v5402
    %5468 = vst.msk [vmem:[%s5416 + $0x291] sm:$0xff] %vm5198, %v5403
    %5469 = vst.msk [vmem:[%s5416 + $0x2a1] sm:$0xff] %vm5198, %v5404
    %5470 = vst.msk [vmem:[%s5416 + $0x2a9] sm:$0xff] %vm5198, %v5405
    %5471 = vst.msk [vmem:[%s5416 + $0x2b9] sm:$0xff] %vm5198, %v5406
    %5472 = vst.msk [vmem:[%s5416 + $0x2c1] sm:$0xff] %vm5198, %v5407
    %5473 = vst.msk [vmem:[%s5416 + $0x2d1] sm:$0xff] %vm5198, %v5408
    %5474 = vst.msk [vmem:[%s5416 + $0x2d9] sm:$0xff] %vm5198, %v5409
    %5475 = vst.msk [vmem:[%s5416 + $0x2e9] sm:$0xff] %vm5198, %v5410
    %5476 = vst.msk [vmem:[%s5416 + $0x2f1] sm:$0xff] %vm5198, %v5411
    %5477 = vst.msk [vmem:[%s5416 + $0x301] sm:$0xff] %vm5198, %v5412
    %5478 = vst.msk [vmem:[%s5416 + $0x309] sm:$0xff] %vm5198, %v5413
    %5479 = vst.msk [vmem:[%s5416 + $0x319] sm:$0xff] %vm5198, %v5414
    %5480 = vst.msk [vmem:[%s5416 + $0x321] sm:$0xff] %vm5198, %v5415
    %v5481 = vld [vmem:[#allocation3] ss:$2 sm:$0xff]
    %s5482 = scalar_lea.vmem [#allocation3], 48
    %v5483 = vld [vmem:[%s5482] ss:$2 sm:$0xff]
    %s5484 = scalar_lea.vmem [#allocation3], 96
    %v5485 = vld [vmem:[%s5484] ss:$2 sm:$0xff]
    %s5486 = scalar_lea.vmem [#allocation3], 144
    %v5487 = vld [vmem:[%s5486] ss:$2 sm:$0xff]
    %s5488 = scalar_lea.vmem [#allocation3], 192
    %v5489 = vld [vmem:[%s5488] ss:$2 sm:$0xff]
    %s5490 = scalar_lea.vmem [#allocation3], 240
    %v5491 = vld [vmem:[%s5490] ss:$2 sm:$0xff]
    %s5492 = scalar_lea.vmem [#allocation3], 288
    %v5493 = vld [vmem:[%s5492] ss:$2 sm:$0xff]
    %s5494 = scalar_lea.vmem [#allocation3], 336
    %v5495 = vld [vmem:[%s5494] ss:$2 sm:$0xff]
    %s5496 = scalar_lea.vmem [#allocation3], 432
    %v5497 = vld [vmem:[%s5496] ss:$2 sm:$0xff]
    %s5498 = scalar_lea.vmem [#allocation3], 480
    %v5499 = vld [vmem:[%s5498] ss:$2 sm:$0xff]
    %s5500 = scalar_lea.vmem [#allocation3], 528
    %v5501 = vld [vmem:[%s5500] ss:$2 sm:$0xff]
    %s5502 = scalar_lea.vmem [#allocation3], 576
    %v5503 = vld [vmem:[%s5502] ss:$2 sm:$0xff]
    %s5504 = scalar_lea.vmem [#allocation3], 624
    %v5505 = vld [vmem:[%s5504] ss:$2 sm:$0xff]
    %s5506 = scalar_lea.vmem [#allocation3], 672
    %v5507 = vld [vmem:[%s5506] ss:$2 sm:$0xff]
    %s5508 = scalar_lea.vmem [#allocation3], 720
    %v5509 = vld [vmem:[%s5508] ss:$2 sm:$0xff]
    %s5510 = scalar_lea.vmem [#allocation3], 768
    %v5511 = vld [vmem:[%s5510] ss:$2 sm:$0xff]
    %v5512 = vpack.c.bf16 %v5481, %v5481
    %v5513 = vpack.c.bf16 %v5483, %v5483
    %v5514 = vpack.c.bf16 %v5485, %v5485
    %v5515 = vpack.c.bf16 %v5487, %v5487
    %v5516 = vpack.c.bf16 %v5489, %v5489
    %v5517 = vpack.c.bf16 %v5491, %v5491
    %v5518 = vpack.c.bf16 %v5493, %v5493
    %v5519 = vpack.c.bf16 %v5495, %v5495
    %v5520 = vpack.c.bf16 %v5497, %v5497
    %v5521 = vpack.c.bf16 %v5499, %v5499
    %v5522 = vpack.c.bf16 %v5501, %v5501
    %v5523 = vpack.c.bf16 %v5503, %v5503
    %v5524 = vpack.c.bf16 %v5505, %v5505
    %v5525 = vpack.c.bf16 %v5507, %v5507
    %v5526 = vpack.c.bf16 %v5509, %v5509
    %v5527 = vpack.c.bf16 %v5511, %v5511
    %vm5528 = vcmask 519168
    %5529 = vst.msk [vmem:[#allocation5] sm:$0xf] %vm5528, %v5512
    %5530 = vst.msk [vmem:[#allocation5 + $0x14] sm:$0xf] %vm5528, %v5513
    %5531 = vst.msk [vmem:[#allocation5 + $0x28] sm:$0xf] %vm5528, %v5514
    %5532 = vst.msk [vmem:[#allocation5 + $0x3c] sm:$0xf] %vm5528, %v5515
    %5533 = vst.msk [vmem:[#allocation5 + $0x50] sm:$0xf] %vm5528, %v5516
    %5534 = vst.msk [vmem:[#allocation5 + $0x64] sm:$0xf] %vm5528, %v5517
    %5535 = vst.msk [vmem:[#allocation5 + $0x78] sm:$0xf] %vm5528, %v5518
    %5536 = vst.msk [vmem:[#allocation5 + $0x8c] sm:$0xf] %vm5528, %v5519
    %5537 = vst.msk [vmem:[#allocation5 + $0xa0] sm:$0xf] %vm5528, %v5520
    %5538 = vst.msk [vmem:[#allocation5 + $0xb4] sm:$0xf] %vm5528, %v5521
    %5539 = vst.msk [vmem:[#allocation5 + $0xc8] sm:$0xf] %vm5528, %v5522
    %5540 = vst.msk [vmem:[#allocation5 + $0xdc] sm:$0xf] %vm5528, %v5523
    %5541 = vst.msk [vmem:[#allocation5 + $0xf0] sm:$0xf] %vm5528, %v5524
    %5542 = vst.msk [vmem:[#allocation5 + $0x104] sm:$0xf] %vm5528, %v5525
    %5543 = vst.msk [vmem:[#allocation5 + $0x118] sm:$0xf] %vm5528, %v5526
    %5544 = vst.msk [vmem:[#allocation5 + $0x12c] sm:$0xf] %vm5528, %v5527
    %s5545 = scalar_lea.vmem [#allocation3], 1
    %v5546 = vld [vmem:[%s5545] ss:$2 sm:$0xff]
    %s5547 = scalar_lea.vmem [#allocation3], 49
    %v5548 = vld [vmem:[%s5547] ss:$2 sm:$0xff]
    %s5549 = scalar_lea.vmem [#allocation3], 97
    %v5550 = vld [vmem:[%s5549] ss:$2 sm:$0xff]
    %s5551 = scalar_lea.vmem [#allocation3], 145
    %v5552 = vld [vmem:[%s5551] ss:$2 sm:$0xff]
    %s5553 = scalar_lea.vmem [#allocation3], 193
    %v5554 = vld [vmem:[%s5553] ss:$2 sm:$0xff]
    %s5555 = scalar_lea.vmem [#allocation3], 241
    %v5556 = vld [vmem:[%s5555] ss:$2 sm:$0xff]
    %s5557 = scalar_lea.vmem [#allocation3], 289
    %v5558 = vld [vmem:[%s5557] ss:$2 sm:$0xff]
    %s5559 = scalar_lea.vmem [#allocation3], 337
    %v5560 = vld [vmem:[%s5559] ss:$2 sm:$0xff]
    %s5561 = scalar_lea.vmem [#allocation3], 433
    %v5562 = vld [vmem:[%s5561] ss:$2 sm:$0xff]
    %s5563 = scalar_lea.vmem [#allocation3], 481
    %v5564 = vld [vmem:[%s5563] ss:$2 sm:$0xff]
    %s5565 = scalar_lea.vmem [#allocation3], 529
    %v5566 = vld [vmem:[%s5565] ss:$2 sm:$0xff]
    %s5567 = scalar_lea.vmem [#allocation3], 577
    %v5568 = vld [vmem:[%s5567] ss:$2 sm:$0xff]
    %s5569 = scalar_lea.vmem [#allocation3], 625
    %v5570 = vld [vmem:[%s5569] ss:$2 sm:$0xff]
    %s5571 = scalar_lea.vmem [#allocation3], 673
    %v5572 = vld [vmem:[%s5571] ss:$2 sm:$0xff]
    %s5573 = scalar_lea.vmem [#allocation3], 721
    %v5574 = vld [vmem:[%s5573] ss:$2 sm:$0xff]
    %s5575 = scalar_lea.vmem [#allocation3], 769
    %v5576 = vld [vmem:[%s5575] ss:$2 sm:$0xff]
    %v5577 = vpack.c.bf16 %v5546, %v5546
    %v5578 = vpack.c.bf16 %v5548, %v5548
    %v5579 = vpack.c.bf16 %v5550, %v5550
    %v5580 = vpack.c.bf16 %v5552, %v5552
    %v5581 = vpack.c.bf16 %v5554, %v5554
    %v5582 = vpack.c.bf16 %v5556, %v5556
    %v5583 = vpack.c.bf16 %v5558, %v5558
    %v5584 = vpack.c.bf16 %v5560, %v5560
    %v5585 = vpack.c.bf16 %v5562, %v5562
    %v5586 = vpack.c.bf16 %v5564, %v5564
    %v5587 = vpack.c.bf16 %v5566, %v5566
    %v5588 = vpack.c.bf16 %v5568, %v5568
    %v5589 = vpack.c.bf16 %v5570, %v5570
    %v5590 = vpack.c.bf16 %v5572, %v5572
    %v5591 = vpack.c.bf16 %v5574, %v5574
    %v5592 = vpack.c.bf16 %v5576, %v5576
    %5609 = vrot.lane.b32.xlu0 %v5577, 64
    %v5610 = vpop.permute.xlu0 %5609
    %5611 = vrot.lane.b32.xlu0 %v5578, 64
    %v5612 = vpop.permute.xlu0 %5611
    %5613 = vrot.lane.b32.xlu0 %v5579, 64
    %v5614 = vpop.permute.xlu0 %5613
    %5615 = vrot.lane.b32.xlu0 %v5580, 64
    %v5616 = vpop.permute.xlu0 %5615
    %5617 = vrot.lane.b32.xlu0 %v5581, 64
    %v5618 = vpop.permute.xlu0 %5617
    %5619 = vrot.lane.b32.xlu0 %v5582, 64
    %v5620 = vpop.permute.xlu0 %5619
    %5621 = vrot.lane.b32.xlu0 %v5583, 64
    %v5622 = vpop.permute.xlu0 %5621
    %5623 = vrot.lane.b32.xlu0 %v5584, 64
    %v5624 = vpop.permute.xlu0 %5623
    %5625 = vrot.lane.b32.xlu0 %v5585, 64
    %v5626 = vpop.permute.xlu0 %5625
    %5627 = vrot.lane.b32.xlu0 %v5586, 64
    %v5628 = vpop.permute.xlu0 %5627
    %5629 = vrot.lane.b32.xlu0 %v5587, 64
    %v5630 = vpop.permute.xlu0 %5629
    %5631 = vrot.lane.b32.xlu0 %v5588, 64
    %v5632 = vpop.permute.xlu0 %5631
    %5633 = vrot.lane.b32.xlu0 %v5589, 64
    %v5634 = vpop.permute.xlu0 %5633
    %5635 = vrot.lane.b32.xlu0 %v5590, 64
    %v5636 = vpop.permute.xlu0 %5635
    %5637 = vrot.lane.b32.xlu0 %v5591, 64
    %v5638 = vpop.permute.xlu0 %5637
    %5639 = vrot.lane.b32.xlu0 %v5592, 64
    %v5640 = vpop.permute.xlu0 %5639
    %vm5657 = vcmask 1043968
    %5658 = vst.msk [vmem:[#allocation5] sm:$0xf] %vm5657, %v5610
    %5659 = vst.msk [vmem:[#allocation5 + $0x14] sm:$0xf] %vm5657, %v5612
    %5660 = vst.msk [vmem:[#allocation5 + $0x28] sm:$0xf] %vm5657, %v5614
    %5661 = vst.msk [vmem:[#allocation5 + $0x3c] sm:$0xf] %vm5657, %v5616
    %5662 = vst.msk [vmem:[#allocation5 + $0x50] sm:$0xf] %vm5657, %v5618
    %5663 = vst.msk [vmem:[#allocation5 + $0x64] sm:$0xf] %vm5657, %v5620
    %5664 = vst.msk [vmem:[#allocation5 + $0x78] sm:$0xf] %vm5657, %v5622
    %5665 = vst.msk [vmem:[#allocation5 + $0x8c] sm:$0xf] %vm5657, %v5624
    %5666 = vst.msk [vmem:[#allocation5 + $0xa0] sm:$0xf] %vm5657, %v5626
    %5667 = vst.msk [vmem:[#allocation5 + $0xb4] sm:$0xf] %vm5657, %v5628
    %5668 = vst.msk [vmem:[#allocation5 + $0xc8] sm:$0xf] %vm5657, %v5630
    %5669 = vst.msk [vmem:[#allocation5 + $0xdc] sm:$0xf] %vm5657, %v5632
    %5670 = vst.msk [vmem:[#allocation5 + $0xf0] sm:$0xf] %vm5657, %v5634
    %5671 = vst.msk [vmem:[#allocation5 + $0x104] sm:$0xf] %vm5657, %v5636
    %5672 = vst.msk [vmem:[#allocation5 + $0x118] sm:$0xf] %vm5657, %v5638
    %5673 = vst.msk [vmem:[#allocation5 + $0x12c] sm:$0xf] %vm5657, %v5640
    %s5674 = scalar_lea.vmem [#allocation3], 2
    %v5675 = vld [vmem:[%s5674] ss:$2 sm:$0xff]
    %s5676 = scalar_lea.vmem [#allocation3], 50
    %v5677 = vld [vmem:[%s5676] ss:$2 sm:$0xff]
    %s5678 = scalar_lea.vmem [#allocation3], 98
    %v5679 = vld [vmem:[%s5678] ss:$2 sm:$0xff]
    %s5680 = scalar_lea.vmem [#allocation3], 146
    %v5681 = vld [vmem:[%s5680] ss:$2 sm:$0xff]
    %s5682 = scalar_lea.vmem [#allocation3], 194
    %v5683 = vld [vmem:[%s5682] ss:$2 sm:$0xff]
    %s5684 = scalar_lea.vmem [#allocation3], 242
    %v5685 = vld [vmem:[%s5684] ss:$2 sm:$0xff]
    %s5686 = scalar_lea.vmem [#allocation3], 290
    %v5687 = vld [vmem:[%s5686] ss:$2 sm:$0xff]
    %s5688 = scalar_lea.vmem [#allocation3], 338
    %v5689 = vld [vmem:[%s5688] ss:$2 sm:$0xff]
    %s5690 = scalar_lea.vmem [#allocation3], 434
    %v5691 = vld [vmem:[%s5690] ss:$2 sm:$0xff]
    %s5692 = scalar_lea.vmem [#allocation3], 482
    %v5693 = vld [vmem:[%s5692] ss:$2 sm:$0xff]
    %s5694 = scalar_lea.vmem [#allocation3], 530
    %v5695 = vld [vmem:[%s5694] ss:$2 sm:$0xff]
    %s5696 = scalar_lea.vmem [#allocation3], 578
    %v5697 = vld [vmem:[%s5696] ss:$2 sm:$0xff]
    %s5698 = scalar_lea.vmem [#allocation3], 626
    %v5699 = vld [vmem:[%s5698] ss:$2 sm:$0xff]
    %s5700 = scalar_lea.vmem [#allocation3], 674
    %v5701 = vld [vmem:[%s5700] ss:$2 sm:$0xff]
    %s5702 = scalar_lea.vmem [#allocation3], 722
    %v5703 = vld [vmem:[%s5702] ss:$2 sm:$0xff]
    %s5704 = scalar_lea.vmem [#allocation3], 770
    %v5705 = vld [vmem:[%s5704] ss:$2 sm:$0xff]
    %v5706 = vpack.c.bf16 %v5675, %v5675
    %v5707 = vpack.c.bf16 %v5677, %v5677
    %v5708 = vpack.c.bf16 %v5679, %v5679
    %v5709 = vpack.c.bf16 %v5681, %v5681
    %v5710 = vpack.c.bf16 %v5683, %v5683
    %v5711 = vpack.c.bf16 %v5685, %v5685
    %v5712 = vpack.c.bf16 %v5687, %v5687
    %v5713 = vpack.c.bf16 %v5689, %v5689
    %v5714 = vpack.c.bf16 %v5691, %v5691
    %v5715 = vpack.c.bf16 %v5693, %v5693
    %v5716 = vpack.c.bf16 %v5695, %v5695
    %v5717 = vpack.c.bf16 %v5697, %v5697
    %v5718 = vpack.c.bf16 %v5699, %v5699
    %v5719 = vpack.c.bf16 %v5701, %v5701
    %v5720 = vpack.c.bf16 %v5703, %v5703
    %v5721 = vpack.c.bf16 %v5705, %v5705
    %5722 = vst.msk [vmem:[#allocation5 + $0x4] sm:$0xf] %vm5528, %v5706
    %5723 = vst.msk [vmem:[#allocation5 + $0x18] sm:$0xf] %vm5528, %v5707
    %5724 = vst.msk [vmem:[#allocation5 + $0x2c] sm:$0xf] %vm5528, %v5708
    %5725 = vst.msk [vmem:[#allocation5 + $0x40] sm:$0xf] %vm5528, %v5709
    %5726 = vst.msk [vmem:[#allocation5 + $0x54] sm:$0xf] %vm5528, %v5710
    %5727 = vst.msk [vmem:[#allocation5 + $0x68] sm:$0xf] %vm5528, %v5711
    %5728 = vst.msk [vmem:[#allocation5 + $0x7c] sm:$0xf] %vm5528, %v5712
    %5729 = vst.msk [vmem:[#allocation5 + $0x90] sm:$0xf] %vm5528, %v5713
    %5730 = vst.msk [vmem:[#allocation5 + $0xa4] sm:$0xf] %vm5528, %v5714
    %5731 = vst.msk [vmem:[#allocation5 + $0xb8] sm:$0xf] %vm5528, %v5715
    %5732 = vst.msk [vmem:[#allocation5 + $0xcc] sm:$0xf] %vm5528, %v5716
    %5733 = vst.msk [vmem:[#allocation5 + $0xe0] sm:$0xf] %vm5528, %v5717
    %5734 = vst.msk [vmem:[#allocation5 + $0xf4] sm:$0xf] %vm5528, %v5718
    %5735 = vst.msk [vmem:[#allocation5 + $0x108] sm:$0xf] %vm5528, %v5719
    %5736 = vst.msk [vmem:[#allocation5 + $0x11c] sm:$0xf] %vm5528, %v5720
    %5737 = vst.msk [vmem:[#allocation5 + $0x130] sm:$0xf] %vm5528, %v5721
    %v5738 = vld [vmem:[%s5416] ss:$2 sm:$0xff]
    %s5739 = scalar_lea.vmem %s5416, 48 [#allocation3]
    %v5740 = vld [vmem:[%s5739] ss:$2 sm:$0xff]
    %s5741 = scalar_lea.vmem %s5416, 96 [#allocation3]
    %v5742 = vld [vmem:[%s5741] ss:$2 sm:$0xff]
    %s5743 = scalar_lea.vmem %s5416, 144 [#allocation3]
    %v5744 = vld [vmem:[%s5743] ss:$2 sm:$0xff]
    %s5745 = scalar_lea.vmem %s5416, 192 [#allocation3]
    %v5746 = vld [vmem:[%s5745] ss:$2 sm:$0xff]
    %s5747 = scalar_lea.vmem %s5416, 240 [#allocation3]
    %v5748 = vld [vmem:[%s5747] ss:$2 sm:$0xff]
    %s5749 = scalar_lea.vmem %s5416, 288 [#allocation3]
    %v5750 = vld [vmem:[%s5749] ss:$2 sm:$0xff]
    %s5751 = scalar_lea.vmem %s5416, 336 [#allocation3]
    %v5752 = vld [vmem:[%s5751] ss:$2 sm:$0xff]
    %s5753 = scalar_lea.vmem %s5416, 432 [#allocation3]
    %v5754 = vld [vmem:[%s5753] ss:$2 sm:$0xff]
    %s5755 = scalar_lea.vmem %s5416, 480 [#allocation3]
    %v5756 = vld [vmem:[%s5755] ss:$2 sm:$0xff]
    %s5757 = scalar_lea.vmem %s5416, 528 [#allocation3]
    %v5758 = vld [vmem:[%s5757] ss:$2 sm:$0xff]
    %s5759 = scalar_lea.vmem %s5416, 576 [#allocation3]
    %v5760 = vld [vmem:[%s5759] ss:$2 sm:$0xff]
    %s5761 = scalar_lea.vmem %s5416, 624 [#allocation3]
    %v5762 = vld [vmem:[%s5761] ss:$2 sm:$0xff]
    %s5763 = scalar_lea.vmem %s5416, 672 [#allocation3]
    %v5764 = vld [vmem:[%s5763] ss:$2 sm:$0xff]
    %s5765 = scalar_lea.vmem %s5416, 720 [#allocation3]
    %v5766 = vld [vmem:[%s5765] ss:$2 sm:$0xff]
    %s5767 = scalar_lea.vmem %s5416, 768 [#allocation3]
    %v5768 = vld [vmem:[%s5767] ss:$2 sm:$0xff]
    %v5769 = vpack.c.bf16 %v5738, %v5738
    %v5770 = vpack.c.bf16 %v5740, %v5740
    %v5771 = vpack.c.bf16 %v5742, %v5742
    %v5772 = vpack.c.bf16 %v5744, %v5744
    %v5773 = vpack.c.bf16 %v5746, %v5746
    %v5774 = vpack.c.bf16 %v5748, %v5748
    %v5775 = vpack.c.bf16 %v5750, %v5750
    %v5776 = vpack.c.bf16 %v5752, %v5752
    %v5777 = vpack.c.bf16 %v5754, %v5754
    %v5778 = vpack.c.bf16 %v5756, %v5756
    %v5779 = vpack.c.bf16 %v5758, %v5758
    %v5780 = vpack.c.bf16 %v5760, %v5760
    %v5781 = vpack.c.bf16 %v5762, %v5762
    %v5782 = vpack.c.bf16 %v5764, %v5764
    %v5783 = vpack.c.bf16 %v5766, %v5766
    %v5784 = vpack.c.bf16 %v5768, %v5768
    %5801 = vrot.lane.b32.xlu0 %v5769, 64
    %v5802 = vpop.permute.xlu0 %5801
    %5803 = vrot.lane.b32.xlu0 %v5770, 64
    %v5804 = vpop.permute.xlu0 %5803
    %5805 = vrot.lane.b32.xlu0 %v5771, 64
    %v5806 = vpop.permute.xlu0 %5805
    %5807 = vrot.lane.b32.xlu0 %v5772, 64
    %v5808 = vpop.permute.xlu0 %5807
    %5809 = vrot.lane.b32.xlu0 %v5773, 64
    %v5810 = vpop.permute.xlu0 %5809
    %5811 = vrot.lane.b32.xlu0 %v5774, 64
    %v5812 = vpop.permute.xlu0 %5811
    %5813 = vrot.lane.b32.xlu0 %v5775, 64
    %v5814 = vpop.permute.xlu0 %5813
    %5815 = vrot.lane.b32.xlu0 %v5776, 64
    %v5816 = vpop.permute.xlu0 %5815
    %5817 = vrot.lane.b32.xlu0 %v5777, 64
    %v5818 = vpop.permute.xlu0 %5817
    %5819 = vrot.lane.b32.xlu0 %v5778, 64
    %v5820 = vpop.permute.xlu0 %5819
    %5821 = vrot.lane.b32.xlu0 %v5779, 64
    %v5822 = vpop.permute.xlu0 %5821
    %5823 = vrot.lane.b32.xlu0 %v5780, 64
    %v5824 = vpop.permute.xlu0 %5823
    %5825 = vrot.lane.b32.xlu0 %v5781, 64
    %v5826 = vpop.permute.xlu0 %5825
    %5827 = vrot.lane.b32.xlu0 %v5782, 64
    %v5828 = vpop.permute.xlu0 %5827
    %5829 = vrot.lane.b32.xlu0 %v5783, 64
    %v5830 = vpop.permute.xlu0 %5829
    %5831 = vrot.lane.b32.xlu0 %v5784, 64
    %v5832 = vpop.permute.xlu0 %5831
    %5849 = vst.msk [vmem:[#allocation5 + $0x4] sm:$0xf] %vm5657, %v5802
    %5850 = vst.msk [vmem:[#allocation5 + $0x18] sm:$0xf] %vm5657, %v5804
    %5851 = vst.msk [vmem:[#allocation5 + $0x2c] sm:$0xf] %vm5657, %v5806
    %5852 = vst.msk [vmem:[#allocation5 + $0x40] sm:$0xf] %vm5657, %v5808
    %5853 = vst.msk [vmem:[#allocation5 + $0x54] sm:$0xf] %vm5657, %v5810
    %5854 = vst.msk [vmem:[#allocation5 + $0x68] sm:$0xf] %vm5657, %v5812
    %5855 = vst.msk [vmem:[#allocation5 + $0x7c] sm:$0xf] %vm5657, %v5814
    %5856 = vst.msk [vmem:[#allocation5 + $0x90] sm:$0xf] %vm5657, %v5816
    %5857 = vst.msk [vmem:[#allocation5 + $0xa4] sm:$0xf] %vm5657, %v5818
    %5858 = vst.msk [vmem:[#allocation5 + $0xb8] sm:$0xf] %vm5657, %v5820
    %5859 = vst.msk [vmem:[#allocation5 + $0xcc] sm:$0xf] %vm5657, %v5822
    %5860 = vst.msk [vmem:[#allocation5 + $0xe0] sm:$0xf] %vm5657, %v5824
    %5861 = vst.msk [vmem:[#allocation5 + $0xf4] sm:$0xf] %vm5657, %v5826
    %5862 = vst.msk [vmem:[#allocation5 + $0x108] sm:$0xf] %vm5657, %v5828
    %5863 = vst.msk [vmem:[#allocation5 + $0x11c] sm:$0xf] %vm5657, %v5830
    %5864 = vst.msk [vmem:[#allocation5 + $0x130] sm:$0xf] %vm5657, %v5832
    %s5865 = scalar_lea.vmem %s5416, 1 [#allocation3]
    %v5866 = vld [vmem:[%s5865] ss:$2 sm:$0xff]
    %s5867 = scalar_lea.vmem %s5416, 49 [#allocation3]
    %v5868 = vld [vmem:[%s5867] ss:$2 sm:$0xff]
    %s5869 = scalar_lea.vmem %s5416, 97 [#allocation3]
    %v5870 = vld [vmem:[%s5869] ss:$2 sm:$0xff]
    %s5871 = scalar_lea.vmem %s5416, 145 [#allocation3]
    %v5872 = vld [vmem:[%s5871] ss:$2 sm:$0xff]
    %s5873 = scalar_lea.vmem %s5416, 193 [#allocation3]
    %v5874 = vld [vmem:[%s5873] ss:$2 sm:$0xff]
    %s5875 = scalar_lea.vmem %s5416, 241 [#allocation3]
    %v5876 = vld [vmem:[%s5875] ss:$2 sm:$0xff]
    %s5877 = scalar_lea.vmem %s5416, 289 [#allocation3]
    %v5878 = vld [vmem:[%s5877] ss:$2 sm:$0xff]
    %s5879 = scalar_lea.vmem %s5416, 337 [#allocation3]
    %v5880 = vld [vmem:[%s5879] ss:$2 sm:$0xff]
    %s5881 = scalar_lea.vmem %s5416, 433 [#allocation3]
    %v5882 = vld [vmem:[%s5881] ss:$2 sm:$0xff]
    %s5883 = scalar_lea.vmem %s5416, 481 [#allocation3]
    %v5884 = vld [vmem:[%s5883] ss:$2 sm:$0xff]
    %s5885 = scalar_lea.vmem %s5416, 529 [#allocation3]
    %v5886 = vld [vmem:[%s5885] ss:$2 sm:$0xff]
    %s5887 = scalar_lea.vmem %s5416, 577 [#allocation3]
    %v5888 = vld [vmem:[%s5887] ss:$2 sm:$0xff]
    %s5889 = scalar_lea.vmem %s5416, 625 [#allocation3]
    %v5890 = vld [vmem:[%s5889] ss:$2 sm:$0xff]
    %s5891 = scalar_lea.vmem %s5416, 673 [#allocation3]
    %v5892 = vld [vmem:[%s5891] ss:$2 sm:$0xff]
    %s5893 = scalar_lea.vmem %s5416, 721 [#allocation3]
    %v5894 = vld [vmem:[%s5893] ss:$2 sm:$0xff]
    %s5895 = scalar_lea.vmem %s5416, 769 [#allocation3]
    %v5896 = vld [vmem:[%s5895] ss:$2 sm:$0xff]
    %v5897 = vpack.c.bf16 %v5866, %v5866
    %v5898 = vpack.c.bf16 %v5868, %v5868
    %v5899 = vpack.c.bf16 %v5870, %v5870
    %v5900 = vpack.c.bf16 %v5872, %v5872
    %v5901 = vpack.c.bf16 %v5874, %v5874
    %v5902 = vpack.c.bf16 %v5876, %v5876
    %v5903 = vpack.c.bf16 %v5878, %v5878
    %v5904 = vpack.c.bf16 %v5880, %v5880
    %v5905 = vpack.c.bf16 %v5882, %v5882
    %v5906 = vpack.c.bf16 %v5884, %v5884
    %v5907 = vpack.c.bf16 %v5886, %v5886
    %v5908 = vpack.c.bf16 %v5888, %v5888
    %v5909 = vpack.c.bf16 %v5890, %v5890
    %v5910 = vpack.c.bf16 %v5892, %v5892
    %v5911 = vpack.c.bf16 %v5894, %v5894
    %v5912 = vpack.c.bf16 %v5896, %v5896
    %5913 = vst.msk [vmem:[#allocation5 + $0x8] sm:$0xf] %vm5528, %v5897
    %5914 = vst.msk [vmem:[#allocation5 + $0x1c] sm:$0xf] %vm5528, %v5898
    %5915 = vst.msk [vmem:[#allocation5 + $0x30] sm:$0xf] %vm5528, %v5899
    %5916 = vst.msk [vmem:[#allocation5 + $0x44] sm:$0xf] %vm5528, %v5900
    %5917 = vst.msk [vmem:[#allocation5 + $0x58] sm:$0xf] %vm5528, %v5901
    %5918 = vst.msk [vmem:[#allocation5 + $0x6c] sm:$0xf] %vm5528, %v5902
    %5919 = vst.msk [vmem:[#allocation5 + $0x80] sm:$0xf] %vm5528, %v5903
    %5920 = vst.msk [vmem:[#allocation5 + $0x94] sm:$0xf] %vm5528, %v5904
    %5921 = vst.msk [vmem:[#allocation5 + $0xa8] sm:$0xf] %vm5528, %v5905
    %5922 = vst.msk [vmem:[#allocation5 + $0xbc] sm:$0xf] %vm5528, %v5906
    %5923 = vst.msk [vmem:[#allocation5 + $0xd0] sm:$0xf] %vm5528, %v5907
    %5924 = vst.msk [vmem:[#allocation5 + $0xe4] sm:$0xf] %vm5528, %v5908
    %5925 = vst.msk [vmem:[#allocation5 + $0xf8] sm:$0xf] %vm5528, %v5909
    %5926 = vst.msk [vmem:[#allocation5 + $0x10c] sm:$0xf] %vm5528, %v5910
    %5927 = vst.msk [vmem:[#allocation5 + $0x120] sm:$0xf] %vm5528, %v5911
    %5928 = vst.msk [vmem:[#allocation5 + $0x134] sm:$0xf] %vm5528, %v5912
    %s5929 = scalar_lea.vmem %s5416, 2 [#allocation3]
    %v5930 = vld [vmem:[%s5929] ss:$2 sm:$0xff]
    %s5931 = scalar_lea.vmem %s5416, 50 [#allocation3]
    %v5932 = vld [vmem:[%s5931] ss:$2 sm:$0xff]
    %s5933 = scalar_lea.vmem %s5416, 98 [#allocation3]
    %v5934 = vld [vmem:[%s5933] ss:$2 sm:$0xff]
    %s5935 = scalar_lea.vmem %s5416, 146 [#allocation3]
    %v5936 = vld [vmem:[%s5935] ss:$2 sm:$0xff]
    %s5937 = scalar_lea.vmem %s5416, 194 [#allocation3]
    %v5938 = vld [vmem:[%s5937] ss:$2 sm:$0xff]
    %s5939 = scalar_lea.vmem %s5416, 242 [#allocation3]
    %v5940 = vld [vmem:[%s5939] ss:$2 sm:$0xff]
    %s5941 = scalar_lea.vmem %s5416, 290 [#allocation3]
    %v5942 = vld [vmem:[%s5941] ss:$2 sm:$0xff]
    %s5943 = scalar_lea.vmem %s5416, 338 [#allocation3]
    %v5944 = vld [vmem:[%s5943] ss:$2 sm:$0xff]
    %s5945 = scalar_lea.vmem %s5416, 434 [#allocation3]
    %v5946 = vld [vmem:[%s5945] ss:$2 sm:$0xff]
    %s5947 = scalar_lea.vmem %s5416, 482 [#allocation3]
    %v5948 = vld [vmem:[%s5947] ss:$2 sm:$0xff]
    %s5949 = scalar_lea.vmem %s5416, 530 [#allocation3]
    %v5950 = vld [vmem:[%s5949] ss:$2 sm:$0xff]
    %s5951 = scalar_lea.vmem %s5416, 578 [#allocation3]
    %v5952 = vld [vmem:[%s5951] ss:$2 sm:$0xff]
    %s5953 = scalar_lea.vmem %s5416, 626 [#allocation3]
    %v5954 = vld [vmem:[%s5953] ss:$2 sm:$0xff]
    %s5955 = scalar_lea.vmem %s5416, 674 [#allocation3]
    %v5956 = vld [vmem:[%s5955] ss:$2 sm:$0xff]
    %s5957 = scalar_lea.vmem %s5416, 722 [#allocation3]
    %v5958 = vld [vmem:[%s5957] ss:$2 sm:$0xff]
    %s5959 = scalar_lea.vmem %s5416, 770 [#allocation3]
    %v5960 = vld [vmem:[%s5959] ss:$2 sm:$0xff]
    %v5961 = vpack.c.bf16 %v5930, %v5930
    %v5962 = vpack.c.bf16 %v5932, %v5932
    %v5963 = vpack.c.bf16 %v5934, %v5934
    %v5964 = vpack.c.bf16 %v5936, %v5936
    %v5965 = vpack.c.bf16 %v5938, %v5938
    %v5966 = vpack.c.bf16 %v5940, %v5940
    %v5967 = vpack.c.bf16 %v5942, %v5942
    %v5968 = vpack.c.bf16 %v5944, %v5944
    %v5969 = vpack.c.bf16 %v5946, %v5946
    %v5970 = vpack.c.bf16 %v5948, %v5948
    %v5971 = vpack.c.bf16 %v5950, %v5950
    %v5972 = vpack.c.bf16 %v5952, %v5952
    %v5973 = vpack.c.bf16 %v5954, %v5954
    %v5974 = vpack.c.bf16 %v5956, %v5956
    %v5975 = vpack.c.bf16 %v5958, %v5958
    %v5976 = vpack.c.bf16 %v5960, %v5960
    %5993 = vrot.lane.b32.xlu0 %v5961, 64
    %v5994 = vpop.permute.xlu0 %5993
    %5995 = vrot.lane.b32.xlu0 %v5962, 64
    %v5996 = vpop.permute.xlu0 %5995
    %5997 = vrot.lane.b32.xlu0 %v5963, 64
    %v5998 = vpop.permute.xlu0 %5997
    %5999 = vrot.lane.b32.xlu0 %v5964, 64
    %v6000 = vpop.permute.xlu0 %5999
    %6001 = vrot.lane.b32.xlu0 %v5965, 64
    %v6002 = vpop.permute.xlu0 %6001
    %6003 = vrot.lane.b32.xlu0 %v5966, 64
    %v6004 = vpop.permute.xlu0 %6003
    %6005 = vrot.lane.b32.xlu0 %v5967, 64
    %v6006 = vpop.permute.xlu0 %6005
    %6007 = vrot.lane.b32.xlu0 %v5968, 64
    %v6008 = vpop.permute.xlu0 %6007
    %6009 = vrot.lane.b32.xlu0 %v5969, 64
    %v6010 = vpop.permute.xlu0 %6009
    %6011 = vrot.lane.b32.xlu0 %v5970, 64
    %v6012 = vpop.permute.xlu0 %6011
    %6013 = vrot.lane.b32.xlu0 %v5971, 64
    %v6014 = vpop.permute.xlu0 %6013
    %6015 = vrot.lane.b32.xlu0 %v5972, 64
    %v6016 = vpop.permute.xlu0 %6015
    %6017 = vrot.lane.b32.xlu0 %v5973, 64
    %v6018 = vpop.permute.xlu0 %6017
    %6019 = vrot.lane.b32.xlu0 %v5974, 64
    %v6020 = vpop.permute.xlu0 %6019
    %6021 = vrot.lane.b32.xlu0 %v5975, 64
    %v6022 = vpop.permute.xlu0 %6021
    %6023 = vrot.lane.b32.xlu0 %v5976, 64
    %v6024 = vpop.permute.xlu0 %6023
    %6041 = vst.msk [vmem:[#allocation5 + $0x8] sm:$0xf] %vm5657, %v5994
    %6042 = vst.msk [vmem:[#allocation5 + $0x1c] sm:$0xf] %vm5657, %v5996
    %6043 = vst.msk [vmem:[#allocation5 + $0x30] sm:$0xf] %vm5657, %v5998
    %6044 = vst.msk [vmem:[#allocation5 + $0x44] sm:$0xf] %vm5657, %v6000
    %6045 = vst.msk [vmem:[#allocation5 + $0x58] sm:$0xf] %vm5657, %v6002
    %6046 = vst.msk [vmem:[#allocation5 + $0x6c] sm:$0xf] %vm5657, %v6004
    %6047 = vst.msk [vmem:[#allocation5 + $0x80] sm:$0xf] %vm5657, %v6006
    %6048 = vst.msk [vmem:[#allocation5 + $0x94] sm:$0xf] %vm5657, %v6008
    %6049 = vst.msk [vmem:[#allocation5 + $0xa8] sm:$0xf] %vm5657, %v6010
    %6050 = vst.msk [vmem:[#allocation5 + $0xbc] sm:$0xf] %vm5657, %v6012
    %6051 = vst.msk [vmem:[#allocation5 + $0xd0] sm:$0xf] %vm5657, %v6014
    %6052 = vst.msk [vmem:[#allocation5 + $0xe4] sm:$0xf] %vm5657, %v6016
    %6053 = vst.msk [vmem:[#allocation5 + $0xf8] sm:$0xf] %vm5657, %v6018
    %6054 = vst.msk [vmem:[#allocation5 + $0x10c] sm:$0xf] %vm5657, %v6020
    %6055 = vst.msk [vmem:[#allocation5 + $0x120] sm:$0xf] %vm5657, %v6022
    %6056 = vst.msk [vmem:[#allocation5 + $0x134] sm:$0xf] %vm5657, %v6024
    %s6057 = scalar_lea.vmem [#allocation3], 48
    %v6058 = vld [vmem:[%s6057] ss:$2 sm:$0xff]
    %s6059 = scalar_lea.vmem %s6057, 48 [#allocation3]
    %v6060 = vld [vmem:[%s6059] ss:$2 sm:$0xff]
    %s6061 = scalar_lea.vmem %s6057, 96 [#allocation3]
    %v6062 = vld [vmem:[%s6061] ss:$2 sm:$0xff]
    %s6063 = scalar_lea.vmem %s6057, 144 [#allocation3]
    %v6064 = vld [vmem:[%s6063] ss:$2 sm:$0xff]
    %s6065 = scalar_lea.vmem %s6057, 192 [#allocation3]
    %v6066 = vld [vmem:[%s6065] ss:$2 sm:$0xff]
    %s6067 = scalar_lea.vmem %s6057, 240 [#allocation3]
    %v6068 = vld [vmem:[%s6067] ss:$2 sm:$0xff]
    %s6069 = scalar_lea.vmem %s6057, 288 [#allocation3]
    %v6070 = vld [vmem:[%s6069] ss:$2 sm:$0xff]
    %s6071 = scalar_lea.vmem %s6057, 336 [#allocation3]
    %v6072 = vld [vmem:[%s6071] ss:$2 sm:$0xff]
    %s6073 = scalar_lea.vmem %s6057, 432 [#allocation3]
    %v6074 = vld [vmem:[%s6073] ss:$2 sm:$0xff]
    %s6075 = scalar_lea.vmem %s6057, 480 [#allocation3]
    %v6076 = vld [vmem:[%s6075] ss:$2 sm:$0xff]
    %s6077 = scalar_lea.vmem %s6057, 528 [#allocation3]
    %v6078 = vld [vmem:[%s6077] ss:$2 sm:$0xff]
    %s6079 = scalar_lea.vmem %s6057, 576 [#allocation3]
    %v6080 = vld [vmem:[%s6079] ss:$2 sm:$0xff]
    %s6081 = scalar_lea.vmem %s6057, 624 [#allocation3]
    %v6082 = vld [vmem:[%s6081] ss:$2 sm:$0xff]
    %s6083 = scalar_lea.vmem %s6057, 672 [#allocation3]
    %v6084 = vld [vmem:[%s6083] ss:$2 sm:$0xff]
    %s6085 = scalar_lea.vmem %s6057, 720 [#allocation3]
    %v6086 = vld [vmem:[%s6085] ss:$2 sm:$0xff]
    %s6087 = scalar_lea.vmem %s6057, 768 [#allocation3]
    %v6088 = vld [vmem:[%s6087] ss:$2 sm:$0xff]
    %v6089 = vpack.c.bf16 %v6058, %v6058
    %v6090 = vpack.c.bf16 %v6060, %v6060
    %v6091 = vpack.c.bf16 %v6062, %v6062
    %v6092 = vpack.c.bf16 %v6064, %v6064
    %v6093 = vpack.c.bf16 %v6066, %v6066
    %v6094 = vpack.c.bf16 %v6068, %v6068
    %v6095 = vpack.c.bf16 %v6070, %v6070
    %v6096 = vpack.c.bf16 %v6072, %v6072
    %v6097 = vpack.c.bf16 %v6074, %v6074
    %v6098 = vpack.c.bf16 %v6076, %v6076
    %v6099 = vpack.c.bf16 %v6078, %v6078
    %v6100 = vpack.c.bf16 %v6080, %v6080
    %v6101 = vpack.c.bf16 %v6082, %v6082
    %v6102 = vpack.c.bf16 %v6084, %v6084
    %v6103 = vpack.c.bf16 %v6086, %v6086
    %v6104 = vpack.c.bf16 %v6088, %v6088
    %6105 = vst.msk [vmem:[#allocation5 + $0xc] sm:$0xf] %vm5528, %v6089
    %6106 = vst.msk [vmem:[#allocation5 + $0x20] sm:$0xf] %vm5528, %v6090
    %6107 = vst.msk [vmem:[#allocation5 + $0x34] sm:$0xf] %vm5528, %v6091
    %6108 = vst.msk [vmem:[#allocation5 + $0x48] sm:$0xf] %vm5528, %v6092
    %6109 = vst.msk [vmem:[#allocation5 + $0x5c] sm:$0xf] %vm5528, %v6093
    %6110 = vst.msk [vmem:[#allocation5 + $0x70] sm:$0xf] %vm5528, %v6094
    %6111 = vst.msk [vmem:[#allocation5 + $0x84] sm:$0xf] %vm5528, %v6095
    %6112 = vst.msk [vmem:[#allocation5 + $0x98] sm:$0xf] %vm5528, %v6096
    %6113 = vst.msk [vmem:[#allocation5 + $0xac] sm:$0xf] %vm5528, %v6097
    %6114 = vst.msk [vmem:[#allocation5 + $0xc0] sm:$0xf] %vm5528, %v6098
    %6115 = vst.msk [vmem:[#allocation5 + $0xd4] sm:$0xf] %vm5528, %v6099
    %6116 = vst.msk [vmem:[#allocation5 + $0xe8] sm:$0xf] %vm5528, %v6100
    %6117 = vst.msk [vmem:[#allocation5 + $0xfc] sm:$0xf] %vm5528, %v6101
    %6118 = vst.msk [vmem:[#allocation5 + $0x110] sm:$0xf] %vm5528, %v6102
    %6119 = vst.msk [vmem:[#allocation5 + $0x124] sm:$0xf] %vm5528, %v6103
    %6120 = vst.msk [vmem:[#allocation5 + $0x138] sm:$0xf] %vm5528, %v6104
    %s6121 = scalar_lea.vmem %s6057, 1 [#allocation3]
    %v6122 = vld [vmem:[%s6121] ss:$2 sm:$0xff]
    %s6123 = scalar_lea.vmem %s6057, 49 [#allocation3]
    %v6124 = vld [vmem:[%s6123] ss:$2 sm:$0xff]
    %s6125 = scalar_lea.vmem %s6057, 97 [#allocation3]
    %v6126 = vld [vmem:[%s6125] ss:$2 sm:$0xff]
    %s6127 = scalar_lea.vmem %s6057, 145 [#allocation3]
    %v6128 = vld [vmem:[%s6127] ss:$2 sm:$0xff]
    %s6129 = scalar_lea.vmem %s6057, 193 [#allocation3]
    %v6130 = vld [vmem:[%s6129] ss:$2 sm:$0xff]
    %s6131 = scalar_lea.vmem %s6057, 241 [#allocation3]
    %v6132 = vld [vmem:[%s6131] ss:$2 sm:$0xff]
    %s6133 = scalar_lea.vmem %s6057, 289 [#allocation3]
    %v6134 = vld [vmem:[%s6133] ss:$2 sm:$0xff]
    %s6135 = scalar_lea.vmem %s6057, 337 [#allocation3]
    %v6136 = vld [vmem:[%s6135] ss:$2 sm:$0xff]
    %s6137 = scalar_lea.vmem %s6057, 433 [#allocation3]
    %v6138 = vld [vmem:[%s6137] ss:$2 sm:$0xff]
    %s6139 = scalar_lea.vmem %s6057, 481 [#allocation3]
    %v6140 = vld [vmem:[%s6139] ss:$2 sm:$0xff]
    %s6141 = scalar_lea.vmem %s6057, 529 [#allocation3]
    %v6142 = vld [vmem:[%s6141] ss:$2 sm:$0xff]
    %s6143 = scalar_lea.vmem %s6057, 577 [#allocation3]
    %v6144 = vld [vmem:[%s6143] ss:$2 sm:$0xff]
    %s6145 = scalar_lea.vmem %s6057, 625 [#allocation3]
    %v6146 = vld [vmem:[%s6145] ss:$2 sm:$0xff]
    %s6147 = scalar_lea.vmem %s6057, 673 [#allocation3]
    %v6148 = vld [vmem:[%s6147] ss:$2 sm:$0xff]
    %s6149 = scalar_lea.vmem %s6057, 721 [#allocation3]
    %v6150 = vld [vmem:[%s6149] ss:$2 sm:$0xff]
    %s6151 = scalar_lea.vmem %s6057, 769 [#allocation3]
    %v6152 = vld [vmem:[%s6151] ss:$2 sm:$0xff]
    %v6153 = vpack.c.bf16 %v6122, %v6122
    %v6154 = vpack.c.bf16 %v6124, %v6124
    %v6155 = vpack.c.bf16 %v6126, %v6126
    %v6156 = vpack.c.bf16 %v6128, %v6128
    %v6157 = vpack.c.bf16 %v6130, %v6130
    %v6158 = vpack.c.bf16 %v6132, %v6132
    %v6159 = vpack.c.bf16 %v6134, %v6134
    %v6160 = vpack.c.bf16 %v6136, %v6136
    %v6161 = vpack.c.bf16 %v6138, %v6138
    %v6162 = vpack.c.bf16 %v6140, %v6140
    %v6163 = vpack.c.bf16 %v6142, %v6142
    %v6164 = vpack.c.bf16 %v6144, %v6144
    %v6165 = vpack.c.bf16 %v6146, %v6146
    %v6166 = vpack.c.bf16 %v6148, %v6148
    %v6167 = vpack.c.bf16 %v6150, %v6150
    %v6168 = vpack.c.bf16 %v6152, %v6152
    %6185 = vrot.lane.b32.xlu0 %v6153, 64
    %v6186 = vpop.permute.xlu0 %6185
    %6187 = vrot.lane.b32.xlu0 %v6154, 64
    %v6188 = vpop.permute.xlu0 %6187
    %6189 = vrot.lane.b32.xlu0 %v6155, 64
    %v6190 = vpop.permute.xlu0 %6189
    %6191 = vrot.lane.b32.xlu0 %v6156, 64
    %v6192 = vpop.permute.xlu0 %6191
    %6193 = vrot.lane.b32.xlu0 %v6157, 64
    %v6194 = vpop.permute.xlu0 %6193
    %6195 = vrot.lane.b32.xlu0 %v6158, 64
    %v6196 = vpop.permute.xlu0 %6195
    %6197 = vrot.lane.b32.xlu0 %v6159, 64
    %v6198 = vpop.permute.xlu0 %6197
    %6199 = vrot.lane.b32.xlu0 %v6160, 64
    %v6200 = vpop.permute.xlu0 %6199
    %6201 = vrot.lane.b32.xlu0 %v6161, 64
    %v6202 = vpop.permute.xlu0 %6201
    %6203 = vrot.lane.b32.xlu0 %v6162, 64
    %v6204 = vpop.permute.xlu0 %6203
    %6205 = vrot.lane.b32.xlu0 %v6163, 64
    %v6206 = vpop.permute.xlu0 %6205
    %6207 = vrot.lane.b32.xlu0 %v6164, 64
    %v6208 = vpop.permute.xlu0 %6207
    %6209 = vrot.lane.b32.xlu0 %v6165, 64
    %v6210 = vpop.permute.xlu0 %6209
    %6211 = vrot.lane.b32.xlu0 %v6166, 64
    %v6212 = vpop.permute.xlu0 %6211
    %6213 = vrot.lane.b32.xlu0 %v6167, 64
    %v6214 = vpop.permute.xlu0 %6213
    %6215 = vrot.lane.b32.xlu0 %v6168, 64
    %v6216 = vpop.permute.xlu0 %6215
    %6233 = vst.msk [vmem:[#allocation5 + $0xc] sm:$0xf] %vm5657, %v6186
    %6234 = vst.msk [vmem:[#allocation5 + $0x20] sm:$0xf] %vm5657, %v6188
    %6235 = vst.msk [vmem:[#allocation5 + $0x34] sm:$0xf] %vm5657, %v6190
    %6236 = vst.msk [vmem:[#allocation5 + $0x48] sm:$0xf] %vm5657, %v6192
    %6237 = vst.msk [vmem:[#allocation5 + $0x5c] sm:$0xf] %vm5657, %v6194
    %6238 = vst.msk [vmem:[#allocation5 + $0x70] sm:$0xf] %vm5657, %v6196
    %6239 = vst.msk [vmem:[#allocation5 + $0x84] sm:$0xf] %vm5657, %v6198
    %6240 = vst.msk [vmem:[#allocation5 + $0x98] sm:$0xf] %vm5657, %v6200
    %6241 = vst.msk [vmem:[#allocation5 + $0xac] sm:$0xf] %vm5657, %v6202
    %6242 = vst.msk [vmem:[#allocation5 + $0xc0] sm:$0xf] %vm5657, %v6204
    %6243 = vst.msk [vmem:[#allocation5 + $0xd4] sm:$0xf] %vm5657, %v6206
    %6244 = vst.msk [vmem:[#allocation5 + $0xe8] sm:$0xf] %vm5657, %v6208
    %6245 = vst.msk [vmem:[#allocation5 + $0xfc] sm:$0xf] %vm5657, %v6210
    %6246 = vst.msk [vmem:[#allocation5 + $0x110] sm:$0xf] %vm5657, %v6212
    %6247 = vst.msk [vmem:[#allocation5 + $0x124] sm:$0xf] %vm5657, %v6214
    %6248 = vst.msk [vmem:[#allocation5 + $0x138] sm:$0xf] %vm5657, %v6216
    %s6249 = scalar_lea.vmem %s6057, 2 [#allocation3]
    %v6250 = vld [vmem:[%s6249] ss:$2 sm:$0xff]
    %s6251 = scalar_lea.vmem %s6057, 50 [#allocation3]
    %v6252 = vld [vmem:[%s6251] ss:$2 sm:$0xff]
    %s6253 = scalar_lea.vmem %s6057, 98 [#allocation3]
    %v6254 = vld [vmem:[%s6253] ss:$2 sm:$0xff]
    %s6255 = scalar_lea.vmem %s6057, 146 [#allocation3]
    %v6256 = vld [vmem:[%s6255] ss:$2 sm:$0xff]
    %s6257 = scalar_lea.vmem %s6057, 194 [#allocation3]
    %v6258 = vld [vmem:[%s6257] ss:$2 sm:$0xff]
    %s6259 = scalar_lea.vmem %s6057, 242 [#allocation3]
    %v6260 = vld [vmem:[%s6259] ss:$2 sm:$0xff]
    %s6261 = scalar_lea.vmem %s6057, 290 [#allocation3]
    %v6262 = vld [vmem:[%s6261] ss:$2 sm:$0xff]
    %s6263 = scalar_lea.vmem %s6057, 338 [#allocation3]
    %v6264 = vld [vmem:[%s6263] ss:$2 sm:$0xff]
    %s6265 = scalar_lea.vmem %s6057, 434 [#allocation3]
    %v6266 = vld [vmem:[%s6265] ss:$2 sm:$0xff]
    %s6267 = scalar_lea.vmem %s6057, 482 [#allocation3]
    %v6268 = vld [vmem:[%s6267] ss:$2 sm:$0xff]
    %s6269 = scalar_lea.vmem %s6057, 530 [#allocation3]
    %v6270 = vld [vmem:[%s6269] ss:$2 sm:$0xff]
    %s6271 = scalar_lea.vmem %s6057, 578 [#allocation3]
    %v6272 = vld [vmem:[%s6271] ss:$2 sm:$0xff]
    %s6273 = scalar_lea.vmem %s6057, 626 [#allocation3]
    %v6274 = vld [vmem:[%s6273] ss:$2 sm:$0xff]
    %s6275 = scalar_lea.vmem %s6057, 674 [#allocation3]
    %v6276 = vld [vmem:[%s6275] ss:$2 sm:$0xff]
    %s6277 = scalar_lea.vmem %s6057, 722 [#allocation3]
    %v6278 = vld [vmem:[%s6277] ss:$2 sm:$0xff]
    %s6279 = scalar_lea.vmem %s6057, 770 [#allocation3]
    %v6280 = vld [vmem:[%s6279] ss:$2 sm:$0xff]
    %v6281 = vpack.c.bf16 %v6250, %v6250
    %v6282 = vpack.c.bf16 %v6252, %v6252
    %v6283 = vpack.c.bf16 %v6254, %v6254
    %v6284 = vpack.c.bf16 %v6256, %v6256
    %v6285 = vpack.c.bf16 %v6258, %v6258
    %v6286 = vpack.c.bf16 %v6260, %v6260
    %v6287 = vpack.c.bf16 %v6262, %v6262
    %v6288 = vpack.c.bf16 %v6264, %v6264
    %v6289 = vpack.c.bf16 %v6266, %v6266
    %v6290 = vpack.c.bf16 %v6268, %v6268
    %v6291 = vpack.c.bf16 %v6270, %v6270
    %v6292 = vpack.c.bf16 %v6272, %v6272
    %v6293 = vpack.c.bf16 %v6274, %v6274
    %v6294 = vpack.c.bf16 %v6276, %v6276
    %v6295 = vpack.c.bf16 %v6278, %v6278
    %v6296 = vpack.c.bf16 %v6280, %v6280
    %6297 = vst.msk [vmem:[#allocation5 + $0x10] sm:$0xf] %vm5528, %v6281
    %6298 = vst.msk [vmem:[#allocation5 + $0x24] sm:$0xf] %vm5528, %v6282
    %6299 = vst.msk [vmem:[#allocation5 + $0x38] sm:$0xf] %vm5528, %v6283
    %6300 = vst.msk [vmem:[#allocation5 + $0x4c] sm:$0xf] %vm5528, %v6284
    %6301 = vst.msk [vmem:[#allocation5 + $0x60] sm:$0xf] %vm5528, %v6285
    %6302 = vst.msk [vmem:[#allocation5 + $0x74] sm:$0xf] %vm5528, %v6286
    %6303 = vst.msk [vmem:[#allocation5 + $0x88] sm:$0xf] %vm5528, %v6287
    %6304 = vst.msk [vmem:[#allocation5 + $0x9c] sm:$0xf] %vm5528, %v6288
    %6305 = vst.msk [vmem:[#allocation5 + $0xb0] sm:$0xf] %vm5528, %v6289
    %6306 = vst.msk [vmem:[#allocation5 + $0xc4] sm:$0xf] %vm5528, %v6290
    %6307 = vst.msk [vmem:[#allocation5 + $0xd8] sm:$0xf] %vm5528, %v6291
    %6308 = vst.msk [vmem:[#allocation5 + $0xec] sm:$0xf] %vm5528, %v6292
    %6309 = vst.msk [vmem:[#allocation5 + $0x100] sm:$0xf] %vm5528, %v6293
    %6310 = vst.msk [vmem:[#allocation5 + $0x114] sm:$0xf] %vm5528, %v6294
    %6311 = vst.msk [vmem:[#allocation5 + $0x128] sm:$0xf] %vm5528, %v6295
    %6312 = vst.msk [vmem:[#allocation5 + $0x13c] sm:$0xf] %vm5528, %v6296
    %v6313 = vld [vmem:[#allocation5] sm:$0xff]
    %v6314 = vld [vmem:[#allocation5 + $0x8] sm:$0xff]
    %v6315 = vld [vmem:[#allocation5 + $0x10] sm:$0xf]
    %v6316 = vld [vmem:[#allocation5 + $0x14] sm:$0xff]
    %v6317 = vld [vmem:[#allocation5 + $0x1c] sm:$0xff]
    %v6318 = vld [vmem:[#allocation5 + $0x24] sm:$0xf]
    %v6319 = vld [vmem:[#allocation5 + $0x28] sm:$0xff]
    %v6320 = vld [vmem:[#allocation5 + $0x30] sm:$0xff]
    %v6321 = vld [vmem:[#allocation5 + $0x38] sm:$0xf]
    %v6322 = vld [vmem:[#allocation5 + $0x3c] sm:$0xff]
    %v6323 = vld [vmem:[#allocation5 + $0x44] sm:$0xff]
    %v6324 = vld [vmem:[#allocation5 + $0x4c] sm:$0xf]
    %v6325 = vld [vmem:[#allocation5 + $0x50] sm:$0xff]
    %v6326 = vld [vmem:[#allocation5 + $0x58] sm:$0xff]
    %v6327 = vld [vmem:[#allocation5 + $0x60] sm:$0xf]
    %v6328 = vld [vmem:[#allocation5 + $0x64] sm:$0xff]
    %v6329 = vld [vmem:[#allocation5 + $0x6c] sm:$0xff]
    %v6330 = vld [vmem:[#allocation5 + $0x74] sm:$0xf]
    %v6331 = vld [vmem:[#allocation5 + $0x78] sm:$0xff]
    %v6332 = vld [vmem:[#allocation5 + $0x80] sm:$0xff]
    %v6333 = vld [vmem:[#allocation5 + $0x88] sm:$0xf]
    %v6334 = vld [vmem:[#allocation5 + $0x8c] sm:$0xff]
    %v6335 = vld [vmem:[#allocation5 + $0x94] sm:$0xff]
    %v6336 = vld [vmem:[#allocation5 + $0x9c] sm:$0xf]
    %v6337 = vld [vmem:[#allocation5 + $0xa0] sm:$0xff]
    %v6338 = vld [vmem:[#allocation5 + $0xa8] sm:$0xff]
    %v6339 = vld [vmem:[#allocation5 + $0xb0] sm:$0xf]
    %v6340 = vld [vmem:[#allocation5 + $0xb4] sm:$0xff]
    %v6341 = vld [vmem:[#allocation5 + $0xbc] sm:$0xff]
    %v6342 = vld [vmem:[#allocation5 + $0xc4] sm:$0xf]
    %v6343 = vld [vmem:[#allocation5 + $0xc8] sm:$0xff]
    %v6344 = vld [vmem:[#allocation5 + $0xd0] sm:$0xff]
    %v6345 = vld [vmem:[#allocation5 + $0xd8] sm:$0xf]
    %v6346 = vld [vmem:[#allocation5 + $0xdc] sm:$0xff]
    %v6347 = vld [vmem:[#allocation5 + $0xe4] sm:$0xff]
    %v6348 = vld [vmem:[#allocation5 + $0xec] sm:$0xf]
    %v6349 = vld [vmem:[#allocation5 + $0xf0] sm:$0xff]
    %v6350 = vld [vmem:[#allocation5 + $0xf8] sm:$0xff]
    %v6351 = vld [vmem:[#allocation5 + $0x100] sm:$0xf]
    %v6352 = vld [vmem:[#allocation5 + $0x104] sm:$0xff]
    %v6353 = vld [vmem:[#allocation5 + $0x10c] sm:$0xff]
    %v6354 = vld [vmem:[#allocation5 + $0x114] sm:$0xf]
    %v6355 = vld [vmem:[#allocation5 + $0x118] sm:$0xff]
    %v6356 = vld [vmem:[#allocation5 + $0x120] sm:$0xff]
    %v6357 = vld [vmem:[#allocation5 + $0x128] sm:$0xf]
    %v6358 = vld [vmem:[#allocation5 + $0x12c] sm:$0xff]
    %v6359 = vld [vmem:[#allocation5 + $0x134] sm:$0xff]
    %v6360 = vld [vmem:[#allocation5 + $0x13c] sm:$0xf]
    %v6361 = vld [vmem:[%s2] sm:$0xf]
    %v6362 = vld [vmem:[%s2 + $0x4] sm:$0xf]
    %v6363 = vld [vmem:[%s2 + $0x8] sm:$0xf]
    %v6364 = vld [vmem:[%s2 + $0xc] sm:$0xf]
    %v6365 = vld [vmem:[%s2 + $0x10] sm:$0xf]
    %v6366 = vld [vmem:[%s2 + $0x14] sm:$0xf]
    %v6367 = vld [vmem:[%s2 + $0x18] sm:$0xf]
    %v6368 = vld [vmem:[%s2 + $0x1c] sm:$0xf]
    %v6369 = vld [vmem:[%s2 + $0x20] sm:$0xf]
    %v6370 = vld [vmem:[%s2 + $0x24] sm:$0xf]
    %v6371 = vld [vmem:[%s2 + $0x28] sm:$0xf]
    %v6372 = vld [vmem:[%s2 + $0x2c] sm:$0xf]
    %v6373 = vld [vmem:[%s2 + $0x30] sm:$0xf]
    %v6374 = vld [vmem:[%s2 + $0x34] sm:$0xf]
    %v6375 = vld [vmem:[%s2 + $0x38] sm:$0xf]
    %v6376 = vld [vmem:[%s2 + $0x3c] sm:$0xf]
    %v6377 = vld [vmem:[%s2 + $0x40] sm:$0xf]
    %v6378 = vld [vmem:[%s2 + $0x44] sm:$0xf]
    %v6379 = vld [vmem:[%s2 + $0x48] sm:$0xf]
    %v6380 = vld [vmem:[%s2 + $0x4c] sm:$0xf]
    %v6381 = vld [vmem:[%s2 + $0x50] sm:$0xf]
    %v6382 = vld [vmem:[%s2 + $0x54] sm:$0xf]
    %v6383 = vld [vmem:[%s2 + $0x58] sm:$0xf]
    %v6384 = vld [vmem:[%s2 + $0x5c] sm:$0xf]
    %v6385 = vld [vmem:[%s2 + $0x60] sm:$0xf]
    %v6386 = vld [vmem:[%s2 + $0x64] sm:$0xf]
    %v6387 = vld [vmem:[%s2 + $0x68] sm:$0xf]
    %v6388 = vld [vmem:[%s2 + $0x6c] sm:$0xf]
    %v6389 = vld [vmem:[%s2 + $0x70] sm:$0xf]
    %v6390 = vld [vmem:[%s2 + $0x74] sm:$0xf]
    %v6391 = vld [vmem:[%s2 + $0x78] sm:$0xf]
    %v6392 = vld [vmem:[%s2 + $0x7c] sm:$0xf]
    %v6393 = vld [vmem:[%s2 + $0x80] sm:$0xf]
    %v6394 = vld [vmem:[%s2 + $0x84] sm:$0xf]
    %v6395 = vld [vmem:[%s2 + $0x88] sm:$0xf]
    %v6396 = vld [vmem:[%s2 + $0x8c] sm:$0xf]
    %v6397 = vld [vmem:[%s2 + $0x90] sm:$0xf]
    %v6398 = vld [vmem:[%s2 + $0x94] sm:$0xf]
    %v6399 = vld [vmem:[%s2 + $0x98] sm:$0xf]
    %v6400 = vld [vmem:[%s2 + $0x9c] sm:$0xf]
    %v6401 = vld [vmem:[%s2 + $0xa0] sm:$0xf]
    %v6402 = vld [vmem:[%s2 + $0xa4] sm:$0xf]
    %v6403 = vld [vmem:[%s2 + $0xa8] sm:$0xf]
    %v6404 = vld [vmem:[%s2 + $0xac] sm:$0xf]
    %v6405 = vld [vmem:[%s2 + $0xb0] sm:$0xf]
    %v6406 = vld [vmem:[%s2 + $0xb4] sm:$0xf]
    %v6407 = vld [vmem:[%s2 + $0xb8] sm:$0xf]
    %v6408 = vld [vmem:[%s2 + $0xbc] sm:$0xf]
    %v6409 = vld [vmem:[%s2 + $0xc0] sm:$0xf]
    %v6410 = vld [vmem:[%s2 + $0xc4] sm:$0xf]
    %v6411 = vld [vmem:[%s2 + $0xc8] sm:$0xf]
    %v6412 = vld [vmem:[%s2 + $0xcc] sm:$0xf]
    %v6413 = vld [vmem:[%s2 + $0xd0] sm:$0xf]
    %v6414 = vld [vmem:[%s2 + $0xd4] sm:$0xf]
    %v6415 = vld [vmem:[%s2 + $0xd8] sm:$0xf]
    %v6416 = vld [vmem:[%s2 + $0xdc] sm:$0xf]
    %v6417 = vld [vmem:[%s2 + $0xe0] sm:$0xf]
    %v6418 = vld [vmem:[%s2 + $0xe4] sm:$0xf]
    %v6419 = vld [vmem:[%s2 + $0xe8] sm:$0xf]
    %v6420 = vld [vmem:[%s2 + $0xec] sm:$0xf]
    %v6421 = vld [vmem:[%s2 + $0xf0] sm:$0xf]
    %v6422 = vld [vmem:[%s2 + $0xf4] sm:$0xf]
    %v6423 = vld [vmem:[%s2 + $0xf8] sm:$0xf]
    %v6424 = vld [vmem:[%s2 + $0xfc] sm:$0xf]
    %v6425 = vld [vmem:[%s2 + $0x100] sm:$0xf]
    %v6426 = vld [vmem:[%s2 + $0x104] sm:$0xf]
    %v6427 = vld [vmem:[%s2 + $0x108] sm:$0xf]
    %v6428 = vld [vmem:[%s2 + $0x10c] sm:$0xf]
    %v6429 = vld [vmem:[%s2 + $0x110] sm:$0xf]
    %v6430 = vld [vmem:[%s2 + $0x114] sm:$0xf]
    %v6431 = vld [vmem:[%s2 + $0x118] sm:$0xf]
    %v6432 = vld [vmem:[%s2 + $0x11c] sm:$0xf]
    %v6481 = vunpack.c.l.b16 %v6313
    %v6482 = vunpack.c.h.b16 %v6313
    %v6483 = vunpack.c.l.b16 %v6314
    %v6484 = vunpack.c.h.b16 %v6314
    %v6485 = vunpack.c.l.b16 %v6315
    %v6486 = vunpack.c.l.b16 %v6316
    %v6487 = vunpack.c.h.b16 %v6316
    %v6488 = vunpack.c.l.b16 %v6317
    %v6489 = vunpack.c.h.b16 %v6317
    %v6490 = vunpack.c.l.b16 %v6318
    %v6491 = vunpack.c.l.b16 %v6319
    %v6492 = vunpack.c.h.b16 %v6319
    %v6493 = vunpack.c.l.b16 %v6320
    %v6494 = vunpack.c.h.b16 %v6320
    %v6495 = vunpack.c.l.b16 %v6321
    %v6496 = vunpack.c.l.b16 %v6322
    %v6497 = vunpack.c.h.b16 %v6322
    %v6498 = vunpack.c.l.b16 %v6323
    %v6499 = vunpack.c.h.b16 %v6323
    %v6500 = vunpack.c.l.b16 %v6324
    %v6501 = vunpack.c.l.b16 %v6325
    %v6502 = vunpack.c.h.b16 %v6325
    %v6503 = vunpack.c.l.b16 %v6326
    %v6504 = vunpack.c.h.b16 %v6326
    %v6505 = vunpack.c.l.b16 %v6327
    %v6506 = vunpack.c.l.b16 %v6328
    %v6507 = vunpack.c.h.b16 %v6328
    %v6508 = vunpack.c.l.b16 %v6329
    %v6509 = vunpack.c.h.b16 %v6329
    %v6510 = vunpack.c.l.b16 %v6330
    %v6511 = vunpack.c.l.b16 %v6331
    %v6512 = vunpack.c.h.b16 %v6331
    %v6513 = vunpack.c.l.b16 %v6332
    %v6514 = vunpack.c.h.b16 %v6332
    %v6515 = vunpack.c.l.b16 %v6333
    %v6516 = vunpack.c.l.b16 %v6334
    %v6517 = vunpack.c.h.b16 %v6334
    %v6518 = vunpack.c.l.b16 %v6335
    %v6519 = vunpack.c.h.b16 %v6335
    %v6520 = vunpack.c.l.b16 %v6336
    %v6521 = vunpack.c.l.b16 %v6337
    %v6522 = vunpack.c.h.b16 %v6337
    %v6523 = vunpack.c.l.b16 %v6338
    %v6524 = vunpack.c.h.b16 %v6338
    %v6525 = vunpack.c.l.b16 %v6339
    %v6526 = vunpack.c.l.b16 %v6340
    %v6527 = vunpack.c.h.b16 %v6340
    %v6528 = vunpack.c.l.b16 %v6341
    %v6529 = vunpack.c.h.b16 %v6341
    %v6530 = vunpack.c.l.b16 %v6342
    %v6531 = vunpack.c.l.b16 %v6343
    %v6532 = vunpack.c.h.b16 %v6343
    %v6533 = vunpack.c.l.b16 %v6344
    %v6534 = vunpack.c.h.b16 %v6344
    %v6535 = vunpack.c.l.b16 %v6345
    %v6536 = vunpack.c.l.b16 %v6346
    %v6537 = vunpack.c.h.b16 %v6346
    %v6538 = vunpack.c.l.b16 %v6347
    %v6539 = vunpack.c.h.b16 %v6347
    %v6540 = vunpack.c.l.b16 %v6348
    %v6541 = vunpack.c.l.b16 %v6349
    %v6542 = vunpack.c.h.b16 %v6349
    %v6543 = vunpack.c.l.b16 %v6350
    %v6544 = vunpack.c.h.b16 %v6350
    %v6545 = vunpack.c.l.b16 %v6351
    %v6546 = vunpack.c.l.b16 %v6352
    %v6547 = vunpack.c.h.b16 %v6352
    %v6548 = vunpack.c.l.b16 %v6353
    %v6549 = vunpack.c.h.b16 %v6353
    %v6550 = vunpack.c.l.b16 %v6354
    %v6551 = vunpack.c.l.b16 %v6355
    %v6552 = vunpack.c.h.b16 %v6355
    %v6553 = vunpack.c.l.b16 %v6356
    %v6554 = vunpack.c.h.b16 %v6356
    %v6555 = vunpack.c.l.b16 %v6357
    %v6556 = vunpack.c.l.b16 %v6358
    %v6557 = vunpack.c.h.b16 %v6358
    %v6558 = vunpack.c.l.b16 %v6359
    %v6559 = vunpack.c.h.b16 %v6359
    %v6560 = vunpack.c.l.b16 %v6360
    %v6561 = vpack.c.b16 %v6486, %v6481
    %v6562 = vpack.c.b16 %v6487, %v6482
    %v6563 = vpack.c.b16 %v6488, %v6483
    %v6564 = vpack.c.b16 %v6489, %v6484
    %v6565 = vpack.c.b16 %v6490, %v6485
    %v6566 = vpack.c.b16 %v6496, %v6491
    %v6567 = vpack.c.b16 %v6497, %v6492
    %v6568 = vpack.c.b16 %v6498, %v6493
    %v6569 = vpack.c.b16 %v6499, %v6494
    %v6570 = vpack.c.b16 %v6500, %v6495
    %v6571 = vpack.c.b16 %v6506, %v6501
    %v6572 = vpack.c.b16 %v6507, %v6502
    %v6573 = vpack.c.b16 %v6508, %v6503
    %v6574 = vpack.c.b16 %v6509, %v6504
    %v6575 = vpack.c.b16 %v6510, %v6505
    %v6576 = vpack.c.b16 %v6516, %v6511
    %v6577 = vpack.c.b16 %v6517, %v6512
    %v6578 = vpack.c.b16 %v6518, %v6513
    %v6579 = vpack.c.b16 %v6519, %v6514
    %v6580 = vpack.c.b16 %v6520, %v6515
    %v6581 = vpack.c.b16 %v6526, %v6521
    %v6582 = vpack.c.b16 %v6527, %v6522
    %v6583 = vpack.c.b16 %v6528, %v6523
    %v6584 = vpack.c.b16 %v6529, %v6524
    %v6585 = vpack.c.b16 %v6530, %v6525
    %v6586 = vpack.c.b16 %v6536, %v6531
    %v6587 = vpack.c.b16 %v6537, %v6532
    %v6588 = vpack.c.b16 %v6538, %v6533
    %v6589 = vpack.c.b16 %v6539, %v6534
    %v6590 = vpack.c.b16 %v6540, %v6535
    %v6591 = vpack.c.b16 %v6546, %v6541
    %v6592 = vpack.c.b16 %v6547, %v6542
    %v6593 = vpack.c.b16 %v6548, %v6543
    %v6594 = vpack.c.b16 %v6549, %v6544
    %v6595 = vpack.c.b16 %v6550, %v6545
    %v6596 = vpack.c.b16 %v6556, %v6551
    %v6597 = vpack.c.b16 %v6557, %v6552
    %v6598 = vpack.c.b16 %v6558, %v6553
    %v6599 = vpack.c.b16 %v6559, %v6554
    %v6600 = vpack.c.b16 %v6560, %v6555
    %v6705 = vunpack.c.l.b16 %v6361
    %v6706 = vunpack.c.l.b16 %v6362
    %v6707 = vunpack.c.l.b16 %v6363
    %v6708 = vunpack.c.l.b16 %v6364
    %v6709 = vunpack.c.l.b16 %v6365
    %v6710 = vunpack.c.l.b16 %v6366
    %v6711 = vunpack.c.l.b16 %v6367
    %v6712 = vunpack.c.l.b16 %v6368
    %v6713 = vunpack.c.l.b16 %v6369
    %v6714 = vunpack.c.l.b16 %v6370
    %v6715 = vunpack.c.l.b16 %v6371
    %v6716 = vunpack.c.l.b16 %v6372
    %v6717 = vunpack.c.l.b16 %v6373
    %v6718 = vunpack.c.l.b16 %v6374
    %v6719 = vunpack.c.l.b16 %v6375
    %v6720 = vunpack.c.l.b16 %v6376
    %v6721 = vunpack.c.l.b16 %v6377
    %v6722 = vunpack.c.l.b16 %v6378
    %v6723 = vunpack.c.l.b16 %v6379
    %v6724 = vunpack.c.l.b16 %v6380
    %v6725 = vunpack.c.l.b16 %v6381
    %v6726 = vunpack.c.l.b16 %v6382
    %v6727 = vunpack.c.l.b16 %v6383
    %v6728 = vunpack.c.l.b16 %v6384
    %v6729 = vunpack.c.l.b16 %v6385
    %v6730 = vunpack.c.l.b16 %v6386
    %v6731 = vunpack.c.l.b16 %v6387
    %v6732 = vunpack.c.l.b16 %v6388
    %v6733 = vunpack.c.l.b16 %v6389
    %v6734 = vunpack.c.l.b16 %v6390
    %v6735 = vunpack.c.l.b16 %v6391
    %v6736 = vunpack.c.l.b16 %v6392
    %v6737 = vunpack.c.l.b16 %v6393
    %v6738 = vunpack.c.l.b16 %v6394
    %v6739 = vunpack.c.l.b16 %v6395
    %v6740 = vunpack.c.l.b16 %v6396
    %v6741 = vunpack.c.l.b16 %v6397
    %v6742 = vunpack.c.l.b16 %v6398
    %v6743 = vunpack.c.l.b16 %v6399
    %v6744 = vunpack.c.l.b16 %v6400
    %v6745 = vunpack.c.l.b16 %v6401
    %v6746 = vunpack.c.l.b16 %v6402
    %v6747 = vunpack.c.l.b16 %v6403
    %v6748 = vunpack.c.l.b16 %v6404
    %v6749 = vunpack.c.l.b16 %v6405
    %v6750 = vunpack.c.l.b16 %v6406
    %v6751 = vunpack.c.l.b16 %v6407
    %v6752 = vunpack.c.l.b16 %v6408
    %v6753 = vunpack.c.l.b16 %v6409
    %v6754 = vunpack.c.l.b16 %v6410
    %v6755 = vunpack.c.l.b16 %v6411
    %v6756 = vunpack.c.l.b16 %v6412
    %v6757 = vunpack.c.l.b16 %v6413
    %v6758 = vunpack.c.l.b16 %v6414
    %v6759 = vunpack.c.l.b16 %v6415
    %v6760 = vunpack.c.l.b16 %v6416
    %v6761 = vunpack.c.l.b16 %v6417
    %v6762 = vunpack.c.l.b16 %v6418
    %v6763 = vunpack.c.l.b16 %v6419
    %v6764 = vunpack.c.l.b16 %v6420
    %v6765 = vunpack.c.l.b16 %v6421
    %v6766 = vunpack.c.l.b16 %v6422
    %v6767 = vunpack.c.l.b16 %v6423
    %v6768 = vunpack.c.l.b16 %v6424
    %v6769 = vunpack.c.l.b16 %v6425
    %v6770 = vunpack.c.l.b16 %v6426
    %v6771 = vunpack.c.l.b16 %v6427
    %v6772 = vunpack.c.l.b16 %v6428
    %v6773 = vunpack.c.l.b16 %v6429
    %v6774 = vunpack.c.l.b16 %v6430
    %v6775 = vunpack.c.l.b16 %v6431
    %v6776 = vunpack.c.l.b16 %v6432
    %v6777 = vpack.c.b16 %v6706, %v6705
    %v6778 = vpack.c.b16 %v6708, %v6707
    %v6779 = vpack.c.b16 %v6710, %v6709
    %v6780 = vpack.c.b16 %v6712, %v6711
    %v6781 = vpack.c.b16 %v6714, %v6713
    %v6782 = vpack.c.b16 %v6716, %v6715
    %v6783 = vpack.c.b16 %v6718, %v6717
    %v6784 = vpack.c.b16 %v6720, %v6719
    %v6785 = vpack.c.b16 %v6722, %v6721
    %v6786 = vpack.c.b16 %v6724, %v6723
    %v6787 = vpack.c.b16 %v6726, %v6725
    %v6788 = vpack.c.b16 %v6728, %v6727
    %v6789 = vpack.c.b16 %v6730, %v6729
    %v6790 = vpack.c.b16 %v6732, %v6731
    %v6791 = vpack.c.b16 %v6734, %v6733
    %v6792 = vpack.c.b16 %v6736, %v6735
    %v6793 = vpack.c.b16 %v6738, %v6737
    %v6794 = vpack.c.b16 %v6740, %v6739
    %v6795 = vpack.c.b16 %v6742, %v6741
    %v6796 = vpack.c.b16 %v6744, %v6743
    %v6797 = vpack.c.b16 %v6746, %v6745
    %v6798 = vpack.c.b16 %v6748, %v6747
    %v6799 = vpack.c.b16 %v6750, %v6749
    %v6800 = vpack.c.b16 %v6752, %v6751
    %v6801 = vpack.c.b16 %v6754, %v6753
    %v6802 = vpack.c.b16 %v6756, %v6755
    %v6803 = vpack.c.b16 %v6758, %v6757
    %v6804 = vpack.c.b16 %v6760, %v6759
    %v6805 = vpack.c.b16 %v6762, %v6761
    %v6806 = vpack.c.b16 %v6764, %v6763
    %v6807 = vpack.c.b16 %v6766, %v6765
    %v6808 = vpack.c.b16 %v6768, %v6767
    %v6809 = vpack.c.b16 %v6770, %v6769
    %v6810 = vpack.c.b16 %v6772, %v6771
    %v6811 = vpack.c.b16 %v6774, %v6773
    %v6812 = vpack.c.b16 %v6776, %v6775
    %v6850 = vsel %vm5198, %v6565, 0
    %v6853 = vsel %vm5198, %v6570, 0
    %v6856 = vsel %vm5198, %v6575, 0
    %v6859 = vsel %vm5198, %v6580, 0
    %v6862 = vsel %vm5198, %v6585, 0
    %v6865 = vsel %vm5198, %v6590, 0
    %v6868 = vsel %vm5198, %v6595, 0
    %v6871 = vsel %vm5198, %v6600, 0
    %6873 = vmatpush.bf16.msra.mxu0 %v6784
    %6874 = vmatpush.bf16.msra.mxu0 %v6783
    %6875 = vmatpush.bf16.msra.mxu0 %v6782
    %6876 = vmatpush.bf16.msra.mxu0 %v6781
    %6877 = vmatpush.bf16.msra.mxu0 %v6780
    %6878 = vmatpush.bf16.msra.mxu0 %v6779
    %6879 = vmatpush.bf16.msra.mxu0 %v6778
    %6880 = vmatpush.bf16.msra.mxu0 %v6777
    %6881 = vmatmul.bf16.gmra.mxu0 %v6561
    %v6882 = vpop.f32.mrf.mxu0
    %v6883 = vadd.f32 0.0, %v6882
    %v6884 = vpop.f32.mrf.mxu0
    %v6885 = vadd.f32 0.0, %v6884
    %6886 = vmatmul.bf16.gmra.mxu0 %v6566
    %v6887 = vpop.f32.mrf.mxu0
    %v6888 = vadd.f32 0.0, %v6887
    %v6889 = vpop.f32.mrf.mxu0
    %v6890 = vadd.f32 0.0, %v6889
    %6891 = vmatmul.bf16.gmra.mxu0 %v6571
    %v6892 = vpop.f32.mrf.mxu0
    %v6893 = vadd.f32 0.0, %v6892
    %v6894 = vpop.f32.mrf.mxu0
    %v6895 = vadd.f32 0.0, %v6894
    %6896 = vmatmul.bf16.gmra.mxu0 %v6576
    %v6897 = vpop.f32.mrf.mxu0
    %v6898 = vadd.f32 0.0, %v6897
    %v6899 = vpop.f32.mrf.mxu0
    %v6900 = vadd.f32 0.0, %v6899
    %6901 = vmatmul.bf16.gmra.mxu0 %v6581
    %v6902 = vpop.f32.mrf.mxu0
    %v6903 = vadd.f32 0.0, %v6902
    %v6904 = vpop.f32.mrf.mxu0
    %v6905 = vadd.f32 0.0, %v6904
    %6906 = vmatmul.bf16.gmra.mxu0 %v6586
    %v6907 = vpop.f32.mrf.mxu0
    %v6908 = vadd.f32 0.0, %v6907
    %v6909 = vpop.f32.mrf.mxu0
    %v6910 = vadd.f32 0.0, %v6909
    %6911 = vmatmul.bf16.gmra.mxu0 %v6591
    %v6912 = vpop.f32.mrf.mxu0
    %v6913 = vadd.f32 0.0, %v6912
    %v6914 = vpop.f32.mrf.mxu0
    %v6915 = vadd.f32 0.0, %v6914
    %6916 = vmatmul.bf16.gmra.mxu0 %v6596
    %v6917 = vpop.f32.mrf.mxu0
    %v6918 = vadd.f32 0.0, %v6917
    %v6919 = vpop.f32.mrf.mxu0
    %v6920 = vadd.f32 0.0, %v6919
    %6921 = vdwg.mxu0
    %6922 = vmatpush.bf16.msra.mxu0 %v6792
    %6923 = vmatpush.bf16.msra.mxu0 %v6791
    %6924 = vmatpush.bf16.msra.mxu0 %v6790
    %6925 = vmatpush.bf16.msra.mxu0 %v6789
    %6926 = vmatpush.bf16.msra.mxu0 %v6788
    %6927 = vmatpush.bf16.msra.mxu0 %v6787
    %6928 = vmatpush.bf16.msra.mxu0 %v6786
    %6929 = vmatpush.bf16.msra.mxu0 %v6785
    %6930 = vmatmul.bf16.gmra.mxu0 %v6562
    %v6931 = vpop.f32.mrf.mxu0
    %v6932 = vadd.f32 %v6883, %v6931
    %v6933 = vpop.f32.mrf.mxu0
    %v6934 = vadd.f32 %v6885, %v6933
    %6935 = vmatmul.bf16.gmra.mxu0 %v6567
    %v6936 = vpop.f32.mrf.mxu0
    %v6937 = vadd.f32 %v6888, %v6936
    %v6938 = vpop.f32.mrf.mxu0
    %v6939 = vadd.f32 %v6890, %v6938
    %6940 = vmatmul.bf16.gmra.mxu0 %v6572
    %v6941 = vpop.f32.mrf.mxu0
    %v6942 = vadd.f32 %v6893, %v6941
    %v6943 = vpop.f32.mrf.mxu0
    %v6944 = vadd.f32 %v6895, %v6943
    %6945 = vmatmul.bf16.gmra.mxu0 %v6577
    %v6946 = vpop.f32.mrf.mxu0
    %v6947 = vadd.f32 %v6898, %v6946
    %v6948 = vpop.f32.mrf.mxu0
    %v6949 = vadd.f32 %v6900, %v6948
    %6950 = vmatmul.bf16.gmra.mxu0 %v6582
    %v6951 = vpop.f32.mrf.mxu0
    %v6952 = vadd.f32 %v6903, %v6951
    %v6953 = vpop.f32.mrf.mxu0
    %v6954 = vadd.f32 %v6905, %v6953
    %6955 = vmatmul.bf16.gmra.mxu0 %v6587
    %v6956 = vpop.f32.mrf.mxu0
    %v6957 = vadd.f32 %v6908, %v6956
    %v6958 = vpop.f32.mrf.mxu0
    %v6959 = vadd.f32 %v6910, %v6958
    %6960 = vmatmul.bf16.gmra.mxu0 %v6592
    %v6961 = vpop.f32.mrf.mxu0
    %v6962 = vadd.f32 %v6913, %v6961
    %v6963 = vpop.f32.mrf.mxu0
    %v6964 = vadd.f32 %v6915, %v6963
    %6965 = vmatmul.bf16.gmra.mxu0 %v6597
    %v6966 = vpop.f32.mrf.mxu0
    %v6967 = vadd.f32 %v6918, %v6966
    %v6968 = vpop.f32.mrf.mxu0
    %v6969 = vadd.f32 %v6920, %v6968
    %6970 = vdwg.mxu0
    %6971 = vmatpush.bf16.msra.mxu0 %v6800
    %6972 = vmatpush.bf16.msra.mxu0 %v6799
    %6973 = vmatpush.bf16.msra.mxu0 %v6798
    %6974 = vmatpush.bf16.msra.mxu0 %v6797
    %6975 = vmatpush.bf16.msra.mxu0 %v6796
    %6976 = vmatpush.bf16.msra.mxu0 %v6795
    %6977 = vmatpush.bf16.msra.mxu0 %v6794
    %6978 = vmatpush.bf16.msra.mxu0 %v6793
    %6979 = vmatmul.bf16.gmra.mxu0 %v6563
    %v6980 = vpop.f32.mrf.mxu0
    %v6981 = vadd.f32 %v6932, %v6980
    %v6982 = vpop.f32.mrf.mxu0
    %v6983 = vadd.f32 %v6934, %v6982
    %6984 = vmatmul.bf16.gmra.mxu0 %v6568
    %v6985 = vpop.f32.mrf.mxu0
    %v6986 = vadd.f32 %v6937, %v6985
    %v6987 = vpop.f32.mrf.mxu0
    %v6988 = vadd.f32 %v6939, %v6987
    %6989 = vmatmul.bf16.gmra.mxu0 %v6573
    %v6990 = vpop.f32.mrf.mxu0
    %v6991 = vadd.f32 %v6942, %v6990
    %v6992 = vpop.f32.mrf.mxu0
    %v6993 = vadd.f32 %v6944, %v6992
    %6994 = vmatmul.bf16.gmra.mxu0 %v6578
    %v6995 = vpop.f32.mrf.mxu0
    %v6996 = vadd.f32 %v6947, %v6995
    %v6997 = vpop.f32.mrf.mxu0
    %v6998 = vadd.f32 %v6949, %v6997
    %6999 = vmatmul.bf16.gmra.mxu0 %v6583
    %v7000 = vpop.f32.mrf.mxu0
    %v7001 = vadd.f32 %v6952, %v7000
    %v7002 = vpop.f32.mrf.mxu0
    %v7003 = vadd.f32 %v6954, %v7002
    %7004 = vmatmul.bf16.gmra.mxu0 %v6588
    %v7005 = vpop.f32.mrf.mxu0
    %v7006 = vadd.f32 %v6957, %v7005
    %v7007 = vpop.f32.mrf.mxu0
    %v7008 = vadd.f32 %v6959, %v7007
    %7009 = vmatmul.bf16.gmra.mxu0 %v6593
    %v7010 = vpop.f32.mrf.mxu0
    %v7011 = vadd.f32 %v6962, %v7010
    %v7012 = vpop.f32.mrf.mxu0
    %v7013 = vadd.f32 %v6964, %v7012
    %7014 = vmatmul.bf16.gmra.mxu0 %v6598
    %v7015 = vpop.f32.mrf.mxu0
    %v7016 = vadd.f32 %v6967, %v7015
    %v7017 = vpop.f32.mrf.mxu0
    %v7018 = vadd.f32 %v6969, %v7017
    %7019 = vdwg.mxu0
    %7020 = vmatpush.bf16.msra.mxu0 %v6808
    %7021 = vmatpush.bf16.msra.mxu0 %v6807
    %7022 = vmatpush.bf16.msra.mxu0 %v6806
    %7023 = vmatpush.bf16.msra.mxu0 %v6805
    %7024 = vmatpush.bf16.msra.mxu0 %v6804
    %7025 = vmatpush.bf16.msra.mxu0 %v6803
    %7026 = vmatpush.bf16.msra.mxu0 %v6802
    %7027 = vmatpush.bf16.msra.mxu0 %v6801
    %7028 = vmatmul.bf16.gmra.mxu0 %v6564
    %v7029 = vpop.f32.mrf.mxu0
    %v7030 = vadd.f32 %v6981, %v7029
    %v7031 = vpop.f32.mrf.mxu0
    %v7032 = vadd.f32 %v6983, %v7031
    %7033 = vmatmul.bf16.gmra.mxu0 %v6569
    %v7034 = vpop.f32.mrf.mxu0
    %v7035 = vadd.f32 %v6986, %v7034
    %v7036 = vpop.f32.mrf.mxu0
    %v7037 = vadd.f32 %v6988, %v7036
    %7038 = vmatmul.bf16.gmra.mxu0 %v6574
    %v7039 = vpop.f32.mrf.mxu0
    %v7040 = vadd.f32 %v6991, %v7039
    %v7041 = vpop.f32.mrf.mxu0
    %v7042 = vadd.f32 %v6993, %v7041
    %7043 = vmatmul.bf16.gmra.mxu0 %v6579
    %v7044 = vpop.f32.mrf.mxu0
    %v7045 = vadd.f32 %v6996, %v7044
    %v7046 = vpop.f32.mrf.mxu0
    %v7047 = vadd.f32 %v6998, %v7046
    %7048 = vmatmul.bf16.gmra.mxu0 %v6584
    %v7049 = vpop.f32.mrf.mxu0
    %v7050 = vadd.f32 %v7001, %v7049
    %v7051 = vpop.f32.mrf.mxu0
    %v7052 = vadd.f32 %v7003, %v7051
    %7053 = vmatmul.bf16.gmra.mxu0 %v6589
    %v7054 = vpop.f32.mrf.mxu0
    %v7055 = vadd.f32 %v7006, %v7054
    %v7056 = vpop.f32.mrf.mxu0
    %v7057 = vadd.f32 %v7008, %v7056
    %7058 = vmatmul.bf16.gmra.mxu0 %v6594
    %v7059 = vpop.f32.mrf.mxu0
    %v7060 = vadd.f32 %v7011, %v7059
    %v7061 = vpop.f32.mrf.mxu0
    %v7062 = vadd.f32 %v7013, %v7061
    %7063 = vmatmul.bf16.gmra.mxu0 %v6599
    %v7064 = vpop.f32.mrf.mxu0
    %v7065 = vadd.f32 %v7016, %v7064
    %v7066 = vpop.f32.mrf.mxu0
    %v7067 = vadd.f32 %v7018, %v7066
    %7068 = vdwg.mxu0
    %7069 = vmatpush.bf16.msra.mxu0 0
    %7070 = vmatpush.bf16.msra.mxu0 0
    %7071 = vmatpush.bf16.msra.mxu0 0
    %7072 = vmatpush.bf16.msra.mxu0 0
    %7073 = vmatpush.bf16.msra.mxu0 %v6812
    %7074 = vmatpush.bf16.msra.mxu0 %v6811
    %7075 = vmatpush.bf16.msra.mxu0 %v6810
    %7076 = vmatpush.bf16.msra.mxu0 %v6809
    %7077 = vmatmul.bf16.gmra.mxu0 %v6850
    %v7078 = vpop.f32.mrf.mxu0
    %v7079 = vadd.f32 %v7030, %v7078
    %v7080 = vpop.f32.mrf.mxu0
    %v7081 = vadd.f32 %v7032, %v7080
    %7082 = vmatmul.bf16.gmra.mxu0 %v6853
    %v7083 = vpop.f32.mrf.mxu0
    %v7084 = vadd.f32 %v7035, %v7083
    %v7085 = vpop.f32.mrf.mxu0
    %v7086 = vadd.f32 %v7037, %v7085
    %7087 = vmatmul.bf16.gmra.mxu0 %v6856
    %v7088 = vpop.f32.mrf.mxu0
    %v7089 = vadd.f32 %v7040, %v7088
    %v7090 = vpop.f32.mrf.mxu0
    %v7091 = vadd.f32 %v7042, %v7090
    %7092 = vmatmul.bf16.gmra.mxu0 %v6859
    %v7093 = vpop.f32.mrf.mxu0
    %v7094 = vadd.f32 %v7045, %v7093
    %v7095 = vpop.f32.mrf.mxu0
    %v7096 = vadd.f32 %v7047, %v7095
    %7097 = vmatmul.bf16.gmra.mxu0 %v6862
    %v7098 = vpop.f32.mrf.mxu0
    %v7099 = vadd.f32 %v7050, %v7098
    %v7100 = vpop.f32.mrf.mxu0
    %v7101 = vadd.f32 %v7052, %v7100
    %7102 = vmatmul.bf16.gmra.mxu0 %v6865
    %v7103 = vpop.f32.mrf.mxu0
    %v7104 = vadd.f32 %v7055, %v7103
    %v7105 = vpop.f32.mrf.mxu0
    %v7106 = vadd.f32 %v7057, %v7105
    %7107 = vmatmul.bf16.gmra.mxu0 %v6868
    %v7108 = vpop.f32.mrf.mxu0
    %v7109 = vadd.f32 %v7060, %v7108
    %v7110 = vpop.f32.mrf.mxu0
    %v7111 = vadd.f32 %v7062, %v7110
    %7112 = vmatmul.bf16.gmra.mxu0 %v6871
    %v7113 = vpop.f32.mrf.mxu0
    %v7114 = vadd.f32 %v7065, %v7113
    %v7115 = vpop.f32.mrf.mxu0
    %v7116 = vadd.f32 %v7067, %v7115
    %7117 = vdwg.mxu0
    %v7118 = vperm.slane %v32, 4
    %v7119 = vmul.f32 %v7079, %v7118
    %v7120 = vmul.f32 %v7081, %v7118
    %v7121 = vmul.f32 %v7084, %v7118
    %v7122 = vmul.f32 %v7086, %v7118
    %v7123 = vmul.f32 %v7089, %v7118
    %v7124 = vmul.f32 %v7091, %v7118
    %v7125 = vmul.f32 %v7094, %v7118
    %v7126 = vmul.f32 %v7096, %v7118
    %v7127 = vmul.f32 %v7099, %v7118
    %v7128 = vmul.f32 %v7101, %v7118
    %v7129 = vmul.f32 %v7104, %v7118
    %v7130 = vmul.f32 %v7106, %v7118
    %v7131 = vmul.f32 %v7109, %v7118
    %v7132 = vmul.f32 %v7111, %v7118
    %v7133 = vmul.f32 %v7114, %v7118
    %v7134 = vmul.f32 %v7116, %v7118
    %v7135 = vperm.slane %v32, 5
    %v7136 = vadd.f32 %v7119, %v7135
    %v7137 = vadd.f32 %v7120, %v7135
    %v7138 = vadd.f32 %v7121, %v7135
    %v7139 = vadd.f32 %v7122, %v7135
    %v7140 = vadd.f32 %v7123, %v7135
    %v7141 = vadd.f32 %v7124, %v7135
    %v7142 = vadd.f32 %v7125, %v7135
    %v7143 = vadd.f32 %v7126, %v7135
    %v7144 = vadd.f32 %v7127, %v7135
    %v7145 = vadd.f32 %v7128, %v7135
    %v7146 = vadd.f32 %v7129, %v7135
    %v7147 = vadd.f32 %v7130, %v7135
    %v7148 = vadd.f32 %v7131, %v7135
    %v7149 = vadd.f32 %v7132, %v7135
    %v7150 = vadd.f32 %v7133, %v7135
    %v7151 = vadd.f32 %v7134, %v7135
    %v7152 = vsel %vm5198, %v7136, 0.0
    %v7153 = vsel %vm5198, %v7137, 0.0
    %v7154 = vadd.f32 %v7152, %v7153
    %v7155 = vsel %vm5198, %v7138, 0.0
    %v7156 = vadd.f32 %v7154, %v7155
    %v7157 = vsel %vm5198, %v7139, 0.0
    %v7158 = vadd.f32 %v7156, %v7157
    %v7159 = vsel %vm5198, %v7140, 0.0
    %v7160 = vadd.f32 %v7158, %v7159
    %v7161 = vsel %vm5198, %v7141, 0.0
    %v7162 = vadd.f32 %v7160, %v7161
    %v7163 = vsel %vm5198, %v7142, 0.0
    %v7164 = vadd.f32 %v7162, %v7163
    %v7165 = vsel %vm5198, %v7143, 0.0
    %v7166 = vadd.f32 %v7164, %v7165
    %v7167 = vrot.slane %v7166, 4
    %v7168 = vadd.f32 %v7166, %v7167
    %v7169 = vrot.slane %v7168, 2
    %v7170 = vadd.f32 %v7168, %v7169
    %v7171 = vrot.slane %v7170, 1
    %v7172 = vadd.f32 %v7170, %v7171
    %v7173 = vsel %vm5198, %v7144, 0.0
    %v7174 = vsel %vm5198, %v7145, 0.0
    %v7175 = vadd.f32 %v7173, %v7174
    %v7176 = vsel %vm5198, %v7146, 0.0
    %v7177 = vadd.f32 %v7175, %v7176
    %v7178 = vsel %vm5198, %v7147, 0.0
    %v7179 = vadd.f32 %v7177, %v7178
    %v7180 = vsel %vm5198, %v7148, 0.0
    %v7181 = vadd.f32 %v7179, %v7180
    %v7182 = vsel %vm5198, %v7149, 0.0
    %v7183 = vadd.f32 %v7181, %v7182
    %v7184 = vsel %vm5198, %v7150, 0.0
    %v7185 = vadd.f32 %v7183, %v7184
    %v7186 = vsel %vm5198, %v7151, 0.0
    %v7187 = vadd.f32 %v7185, %v7186
    %v7188 = vrot.slane %v7187, 4
    %v7189 = vadd.f32 %v7187, %v7188
    %v7190 = vrot.slane %v7189, 2
    %v7191 = vadd.f32 %v7189, %v7190
    %v7192 = vrot.slane %v7191, 1
    %v7193 = vadd.f32 %v7191, %v7192
    %v7194 = vrcp.pop 64.0
    %v7195 = vmul.f32 64.0, %v7194
    %v7196 = vsub.f32 1.0, %v7195
    %v7197 = vmul.f32 %v7194, %v7196
    %v7198 = vadd.f32 %v7194, %v7197
    %vm7199 = vweird.f32 %v7194
    %v7200 = vsel %vm7199, %v7194, %v7198
    %v7201 = vmul.f32 %v7172, %v7200
    %v7202 = vmul.f32 %v7193, %v7200
    %v7203 = vld [vmem:[%s3] sm:$0xff]
    %v7204 = vld [vmem:[%s3 + $0x8] sm:$0xff]
    %v7205 = vld [vmem:[%s3 + $0x10] sm:$0xff]
    %v7206 = vld [vmem:[%s3 + $0x18] sm:$0xff]
    %v7207 = vld [vmem:[%s3 + $0x20] sm:$0xff]
    %v7208 = vld [vmem:[%s3 + $0x28] sm:$0xff]
    %v7209 = vld [vmem:[%s3 + $0x30] sm:$0xff]
    %v7210 = vld [vmem:[%s3 + $0x38] sm:$0xff]
    %vm7213 = vcmask 1041409
    %v7214 = vsel %vm7213, %v7202, %v7201
    %v7215 = vsel %vm5198, %v7214, 0
    %7217 = vmatpush.msra.mxu0 0.0
    %7218 = vmatpush.msra.mxu0 0.0
    %7219 = vmatpush.msra.mxu0 0.0
    %7220 = vmatpush.msra.mxu0 0.0
    %7221 = vmatpush.msra.mxu0 0.0
    %7222 = vmatpush.msra.mxu0 0.0
    %7223 = vmatpush.msra.mxu0 0.0
    %7224 = vmatpush.msra.mxu0 0.0
    %7225 = vmatpush.msra.mxu0 %v7210
    %7226 = vmatpush.msra.mxu0 %v7209
    %7227 = vmatpush.msra.mxu0 %v7208
    %7228 = vmatpush.msra.mxu0 %v7207
    %7229 = vmatpush.msra.mxu0 %v7206
    %7230 = vmatpush.msra.mxu0 %v7205
    %7231 = vmatpush.msra.mxu0 %v7204
    %7232 = vmatpush.msra.mxu0 %v7203
    %7233 = vmatmul.f32.gmra.mxu0 %v7215
    %v7234 = vpop.f32.mrf.mxu0
    %v7235 = vadd.f32 0.0, %v7234
    %7236 = vdwg.mxu0
    %v7237 = vmax.f32 %v7235, 0.0
    %v7238 = vld [vmem:[%s4] sm:$0xf]
    %vm7239 = vcmask 31744
    %v7241 = vsel %vm7239, %v7237, 0
    %vm7243 = vcmask 1043456
    %v7245 = vsel %vm7243, %v7238, 0
    %7247 = vmatpush.msra.mxu0 0.0
    %7248 = vmatpush.msra.mxu0 0.0
    %7249 = vmatpush.msra.mxu0 0.0
    %7250 = vmatpush.msra.mxu0 0.0
    %7251 = vmatpush.msra.mxu0 0.0
    %7252 = vmatpush.msra.mxu0 0.0
    %7253 = vmatpush.msra.mxu0 0.0
    %7254 = vmatpush.msra.mxu0 0.0
    %7255 = vmatpush.msra.mxu0 0.0
    %7256 = vmatpush.msra.mxu0 0.0
    %7257 = vmatpush.msra.mxu0 0.0
    %7258 = vmatpush.msra.mxu0 0.0
    %7259 = vmatpush.msra.mxu0 0.0
    %7260 = vmatpush.msra.mxu0 0.0
    %7261 = vmatpush.msra.mxu0 0.0
    %7262 = vmatpush.msra.mxu0 %v7245
    %7263 = vmatmul.f32.gmra.mxu0 %v7241
    %v7264 = vpop.f32.mrf.mxu0
    %v7265 = vadd.f32 0.0, %v7264
    %7266 = vdwg.mxu0
    %v7267 = vsub.f32 0.0, %v7265
    %v7268 = vmul.f32 %v7267, 1.442695
    %v7269 = vpow.pop %v7268
    %v7270 = vadd.f32 %v7269, 1.0
    %v7271 = vrcp.pop %v7270
    %v7272 = vmul.f32 %v7270, %v7271
    %v7273 = vsub.f32 1.0, %v7272
    %v7274 = vmul.f32 %v7271, %v7273
    %v7275 = vadd.f32 %v7271, %v7274
    %vm7276 = vweird.f32 %v7270
    %vm7277 = vweird.f32 %v7271
    %vm7278 = vmor %vm7276, %vm7277
    %v7279 = vsel %vm7278, %v7271, %v7275
    %v7280 = vand.u32 2147483647, %v7270
    %vm7281 = vcmp.eq.f32.partialorder %v7280, 8.507059e+37
    %v7282 = vand.u32 %v7270, 2147483648
    %v7283 = vor.u32 1.1754944e-38, %v7282
    %v7284 = vsel %vm7281, %v7283, %v7279
    %v7285 = vmul.f32 1.0, %v7284
    %v7287 = vrot.slane %v7285, 1
    %v7288 = vperm.slane %v7285, 0
    %v7289 = vperm.slane %v7287, 0
    %v7292 = vmul.f32 %v7136, %v7288
    %v7293 = vmul.f32 %v7137, %v7288
    %v7294 = vmul.f32 %v7138, %v7288
    %v7295 = vmul.f32 %v7139, %v7288
    %v7296 = vmul.f32 %v7140, %v7288
    %v7297 = vmul.f32 %v7141, %v7288
    %v7298 = vmul.f32 %v7142, %v7288
    %v7299 = vmul.f32 %v7143, %v7288
    %v7300 = vmul.f32 %v7144, %v7289
    %v7301 = vmul.f32 %v7145, %v7289
    %v7302 = vmul.f32 %v7146, %v7289
    %v7303 = vmul.f32 %v7147, %v7289
    %v7304 = vmul.f32 %v7148, %v7289
    %v7305 = vmul.f32 %v7149, %v7289
    %v7306 = vmul.f32 %v7150, %v7289
    %v7307 = vmul.f32 %v7151, %v7289
    %v7308 = vld [vmem:[%s0] ss:$2 sm:$0xff]
    %s7309 = scalar_lea.vmem %s0, 32
    %v7310 = vld [vmem:[%s7309] ss:$2 sm:$0xff]
    %s7311 = scalar_lea.vmem %s0, 64
    %v7312 = vld [vmem:[%s7311] ss:$2 sm:$0xff]
    %s7313 = scalar_lea.vmem %s0, 96
    %v7314 = vld [vmem:[%s7313] ss:$2 sm:$0xff]
    %s7315 = scalar_lea.vmem %s0, 128
    %v7316 = vld [vmem:[%s7315] ss:$2 sm:$0xff]
    %s7317 = scalar_lea.vmem %s0, 160
    %v7318 = vld [vmem:[%s7317] ss:$2 sm:$0xff]
    %s7319 = scalar_lea.vmem %s0, 192
    %v7320 = vld [vmem:[%s7319] ss:$2 sm:$0xff]
    %s7321 = scalar_lea.vmem %s0, 224
    %v7322 = vld [vmem:[%s7321] ss:$2 sm:$0xff]
    %s7323 = scalar_lea.vmem %s0, 256
    %v7324 = vld [vmem:[%s7323] ss:$2 sm:$0xff]
    %s7325 = scalar_lea.vmem %s0, 288
    %v7326 = vld [vmem:[%s7325] ss:$2 sm:$0xff]
    %s7327 = scalar_lea.vmem %s0, 320
    %v7328 = vld [vmem:[%s7327] ss:$2 sm:$0xff]
    %s7329 = scalar_lea.vmem %s0, 352
    %v7330 = vld [vmem:[%s7329] ss:$2 sm:$0xff]
    %s7331 = scalar_lea.vmem %s0, 384
    %v7332 = vld [vmem:[%s7331] ss:$2 sm:$0xff]
    %s7333 = scalar_lea.vmem %s0, 416
    %v7334 = vld [vmem:[%s7333] ss:$2 sm:$0xff]
    %s7335 = scalar_lea.vmem %s0, 448
    %v7336 = vld [vmem:[%s7335] ss:$2 sm:$0xff]
    %s7337 = scalar_lea.vmem %s0, 480
    %v7338 = vld [vmem:[%s7337] ss:$2 sm:$0xff]
    %v7339 = vpack.c.bf16 %v7310, %v7308
    %v7340 = vpack.c.bf16 %v7314, %v7312
    %v7341 = vpack.c.bf16 %v7318, %v7316
    %v7342 = vpack.c.bf16 %v7322, %v7320
    %v7343 = vpack.c.bf16 %v7326, %v7324
    %v7344 = vpack.c.bf16 %v7330, %v7328
    %v7345 = vpack.c.bf16 %v7334, %v7332
    %v7346 = vpack.c.bf16 %v7338, %v7336
    %v7347 = vld [vmem:[%s5] sm:$0xf]
    %v7348 = vld [vmem:[%s5 + $0x4] sm:$0xf]
    %v7349 = vld [vmem:[%s5 + $0x8] sm:$0xf]
    %v7350 = vld [vmem:[%s5 + $0xc] sm:$0xf]
    %v7355 = vunpack.c.l.b16 %v7347
    %v7356 = vunpack.c.l.b16 %v7348
    %v7357 = vunpack.c.l.b16 %v7349
    %v7358 = vunpack.c.l.b16 %v7350
    %v7359 = vpack.c.b16 %v7356, %v7355
    %v7360 = vpack.c.b16 %v7358, %v7357
    %v7364 = vsel %vm33, %v7339, 0
    %v7367 = vsel %vm33, %v7340, 0
    %v7370 = vsel %vm33, %v7341, 0
    %v7373 = vsel %vm33, %v7342, 0
    %v7376 = vsel %vm33, %v7343, 0
    %v7379 = vsel %vm33, %v7344, 0
    %v7382 = vsel %vm33, %v7345, 0
    %v7385 = vsel %vm33, %v7346, 0
    %7387 = vmatpush.bf16.msra.mxu0 0
    %7388 = vmatpush.bf16.msra.mxu0 0
    %7389 = vmatpush.bf16.msra.mxu0 0
    %7390 = vmatpush.bf16.msra.mxu0 0
    %7391 = vmatpush.bf16.msra.mxu0 0
    %7392 = vmatpush.bf16.msra.mxu0 0
    %7393 = vmatpush.bf16.msra.mxu0 %v7360
    %7394 = vmatpush.bf16.msra.mxu0 %v7359
    %7395 = vmatmul.bf16.gmra.mxu0 %v7364
    %v7396 = vpop.f32.mrf.mxu0
    %v7397 = vadd.f32 0.0, %v7396
    %v7398 = vpop.f32.mrf.mxu0
    %v7399 = vadd.f32 0.0, %v7398
    %7400 = vmatmul.bf16.gmra.mxu0 %v7367
    %v7401 = vpop.f32.mrf.mxu0
    %v7402 = vadd.f32 0.0, %v7401
    %v7403 = vpop.f32.mrf.mxu0
    %v7404 = vadd.f32 0.0, %v7403
    %7405 = vmatmul.bf16.gmra.mxu0 %v7370
    %v7406 = vpop.f32.mrf.mxu0
    %v7407 = vadd.f32 0.0, %v7406
    %v7408 = vpop.f32.mrf.mxu0
    %v7409 = vadd.f32 0.0, %v7408
    %7410 = vmatmul.bf16.gmra.mxu0 %v7373
    %v7411 = vpop.f32.mrf.mxu0
    %v7412 = vadd.f32 0.0, %v7411
    %v7413 = vpop.f32.mrf.mxu0
    %v7414 = vadd.f32 0.0, %v7413
    %7415 = vmatmul.bf16.gmra.mxu0 %v7376
    %v7416 = vpop.f32.mrf.mxu0
    %v7417 = vadd.f32 0.0, %v7416
    %v7418 = vpop.f32.mrf.mxu0
    %v7419 = vadd.f32 0.0, %v7418
    %7420 = vmatmul.bf16.gmra.mxu0 %v7379
    %v7421 = vpop.f32.mrf.mxu0
    %v7422 = vadd.f32 0.0, %v7421
    %v7423 = vpop.f32.mrf.mxu0
    %v7424 = vadd.f32 0.0, %v7423
    %7425 = vmatmul.bf16.gmra.mxu0 %v7382
    %v7426 = vpop.f32.mrf.mxu0
    %v7427 = vadd.f32 0.0, %v7426
    %v7428 = vpop.f32.mrf.mxu0
    %v7429 = vadd.f32 0.0, %v7428
    %7430 = vmatmul.bf16.gmra.mxu0 %v7385
    %v7431 = vpop.f32.mrf.mxu0
    %v7432 = vadd.f32 0.0, %v7431
    %v7433 = vpop.f32.mrf.mxu0
    %v7434 = vadd.f32 0.0, %v7433
    %7435 = vdwg.mxu0
    %v7436 = vperm.slane %v32, 6
    %v7437 = vmul.f32 %v7397, %v7436
    %v7438 = vmul.f32 %v7399, %v7436
    %v7439 = vmul.f32 %v7402, %v7436
    %v7440 = vmul.f32 %v7404, %v7436
    %v7441 = vmul.f32 %v7407, %v7436
    %v7442 = vmul.f32 %v7409, %v7436
    %v7443 = vmul.f32 %v7412, %v7436
    %v7444 = vmul.f32 %v7414, %v7436
    %v7445 = vmul.f32 %v7417, %v7436
    %v7446 = vmul.f32 %v7419, %v7436
    %v7447 = vmul.f32 %v7422, %v7436
    %v7448 = vmul.f32 %v7424, %v7436
    %v7449 = vmul.f32 %v7427, %v7436
    %v7450 = vmul.f32 %v7429, %v7436
    %v7451 = vmul.f32 %v7432, %v7436
    %v7452 = vmul.f32 %v7434, %v7436
    %v7453 = vperm.slane %v32, 7
    %v7454 = vadd.f32 %v7437, %v7453
    %v7455 = vadd.f32 %v7438, %v7453
    %v7456 = vadd.f32 %v7439, %v7453
    %v7457 = vadd.f32 %v7440, %v7453
    %v7458 = vadd.f32 %v7441, %v7453
    %v7459 = vadd.f32 %v7442, %v7453
    %v7460 = vadd.f32 %v7443, %v7453
    %v7461 = vadd.f32 %v7444, %v7453
    %v7462 = vadd.f32 %v7445, %v7453
    %v7463 = vadd.f32 %v7446, %v7453
    %v7464 = vadd.f32 %v7447, %v7453
    %v7465 = vadd.f32 %v7448, %v7453
    %v7466 = vadd.f32 %v7449, %v7453
    %v7467 = vadd.f32 %v7450, %v7453
    %v7468 = vadd.f32 %v7451, %v7453
    %v7469 = vadd.f32 %v7452, %v7453
    %v7470 = vadd.f32 %v7292, %v7454
    %v7471 = vadd.f32 %v7293, %v7455
    %v7472 = vadd.f32 %v7294, %v7456
    %v7473 = vadd.f32 %v7295, %v7457
    %v7474 = vadd.f32 %v7296, %v7458
    %v7475 = vadd.f32 %v7297, %v7459
    %v7476 = vadd.f32 %v7298, %v7460
    %v7477 = vadd.f32 %v7299, %v7461
    %v7478 = vadd.f32 %v7300, %v7462
    %v7479 = vadd.f32 %v7301, %v7463
    %v7480 = vadd.f32 %v7302, %v7464
    %v7481 = vadd.f32 %v7303, %v7465
    %v7482 = vadd.f32 %v7304, %v7466
    %v7483 = vadd.f32 %v7305, %v7467
    %v7484 = vadd.f32 %v7306, %v7468
    %v7485 = vadd.f32 %v7307, %v7469
    %7486 = vst.msk [vmem:[#allocation6] sm:$0xff] %vm5198, %v7470
    %7487 = vst.msk [vmem:[#allocation6 + $0x8] sm:$0xff] %vm5198, %v7471
    %7488 = vst.msk [vmem:[#allocation6 + $0x10] sm:$0xff] %vm5198, %v7472
    %7489 = vst.msk [vmem:[#allocation6 + $0x18] sm:$0xff] %vm5198, %v7473
    %7490 = vst.msk [vmem:[#allocation6 + $0x20] sm:$0xff] %vm5198, %v7474
    %7491 = vst.msk [vmem:[#allocation6 + $0x28] sm:$0xff] %vm5198, %v7475
    %7492 = vst.msk [vmem:[#allocation6 + $0x30] sm:$0xff] %vm5198, %v7476
    %7493 = vst.msk [vmem:[#allocation6 + $0x38] sm:$0xff] %vm5198, %v7477
    %7494 = vst.msk [vmem:[#allocation6 + $0x40] sm:$0xff] %vm5198, %v7478
    %7495 = vst.msk [vmem:[#allocation6 + $0x48] sm:$0xff] %vm5198, %v7479
    %7496 = vst.msk [vmem:[#allocation6 + $0x50] sm:$0xff] %vm5198, %v7480
    %7497 = vst.msk [vmem:[#allocation6 + $0x58] sm:$0xff] %vm5198, %v7481
    %7498 = vst.msk [vmem:[#allocation6 + $0x60] sm:$0xff] %vm5198, %v7482
    %7499 = vst.msk [vmem:[#allocation6 + $0x68] sm:$0xff] %vm5198, %v7483
    %7500 = vst.msk [vmem:[#allocation6 + $0x70] sm:$0xff] %vm5198, %v7484
    %7501 = vst.msk [vmem:[#allocation6 + $0x78] sm:$0xff] %vm5198, %v7485
    // Predicated region
    $region34: #{tpu_custom_call.1} parent=1 // pred_check
      _
    $region35: #{tpu_custom_call.1} parent=1 // pred_check_branch
      %7503 = sbr.rel (0) target = $region37
    $region36: #{tpu_custom_call.1} parent=1 // pred_region
      %7505 = vsyncadd [#allocation7], 0
      %s7506 = sshll.u32 [#allocation6], 4
      %s7507 = int_to_ptr.vmem [resolvable:$true] %s7506
      %s7508 = sshll.u32 %s8, 4
      %s7509 = int_to_ptr.hbm [resolvable:$true] %s7508
      %7514 = dma.vmem_to_hbm [thread:$0]  %s7507, 2048, %s7509, [#allocation7], 128, 128, 8
    $region37: #{tpu_custom_call.1} parent=1 // pred_fallthru
      _
    // Predicated region
    $region38: #{tpu_custom_call.1} parent=1 // pred_check
      _
    $region39: #{tpu_custom_call.1} parent=1 // pred_check_branch
      %7516 = sbr.rel (0) target = $region41
    $region40: #{tpu_custom_call.1} parent=1 // pred_region
      %7518 = dma.done [#allocation7], 2048
    $region41: #{tpu_custom_call.1} parent=1 // pred_fallthru
      _
    %7519 = vsyncpa [#allocation7], 1

</llo_original>
